<compile_context>
chip_gen: v7x
topology: tpu7x:2x2x1
jax: 0.10.0
libtpu: 0.0.40
codegen_flags: <defaults>
</compile_context>

<pallas_src>
import functools

import jax
import jax.numpy as jnp
from jax.experimental import pallas as pl
from jax.experimental.pallas import tpu as pltpu

_GN2_GROUPS = 32   # group_norm(out_channels) default in out_layers
_EPS = 1e-5


# ----------------------------------------------------------------------------
# Fused kernel: one batch element per grid step
# ----------------------------------------------------------------------------
def _dwsep_resblock_kernel(*refs, H, W, eps, has_conv_shortcut):
    if has_conv_shortcut:
        (x_ref,
         gn1_c2g, gn1_g2c, gn1_g, gn1_b, dw1_w, dw1_b, pw1_w, pw1_b,
         gn2_c2g, gn2_g2c, gn2_g, gn2_b, dw2_w, dw2_b, pw2_w, pw2_b,
         sc_dw_w, sc_dw_b, sc_pw_w, sc_pw_b,
         o_ref) = refs
    else:
        (x_ref,
         gn1_c2g, gn1_g2c, gn1_g, gn1_b, dw1_w, dw1_b, pw1_w, pw1_b,
         gn2_c2g, gn2_g2c, gn2_g, gn2_b, dw2_w, dw2_b, pw2_w, pw2_b,
         o_ref) = refs

    HW = H * W

    # ---- hoisted constants: pixel coords + the 8 depthwise boundary masks ---
    # (computed once per grid step and shared by dw1 / dw2 / shortcut dw)
    pidx = jax.lax.broadcasted_iota(jnp.int32, (HW, 1), 0)
    if W & (W - 1) == 0:                   # power-of-two W: no vector div/rem
        xc = pidx & (W - 1)
        yc = pidx >> (W.bit_length() - 1)
    else:
        yc = pidx // W
        xc = pidx - yc * W

    offsets = [(ky - 1, kx - 1) for ky in range(3) for kx in range(3)]
    masks = {}
    for dy, dx in offsets:
        if dy == 0 and dx == 0:
            continue
        masks[(dy, dx)] = ((xc + dx >= 0) & (xc + dx < W) &
                           (yc + dy >= 0) & (yc + dy < H))     # (HW, 1) bool

    def group_norm_relu(a, c2g_ref, g2c_ref, g_ref, b_ref):
        # a: (HW, C) f32.  Per-group mean/var via two tiny factored matmuls
        # (1,C)@(C,G) then (1,G)@(G,C) with precomputed constant operands.
        # Padded lanes map to no group and have gamma=beta=0 -> stay exactly 0.
        c2g = c2g_ref[...]                                       # (C, G)
        g2c = g2c_ref[...]                                       # (G, C)
        colsum = jnp.sum(a, axis=0, keepdims=True)               # (1, C)
        mean = jnp.dot(jnp.dot(colsum, c2g, preferred_element_type=jnp.float32),
                       g2c, preferred_element_type=jnp.float32)  # (1, C)
        d = a - mean
        var = jnp.dot(jnp.dot(jnp.sum(d * d, axis=0, keepdims=True), c2g,
                              preferred_element_type=jnp.float32),
                      g2c, preferred_element_type=jnp.float32)   # (1, C)
        y = d * jax.lax.rsqrt(var + eps) * g_ref[...] + b_ref[...]
        return jnp.maximum(y, 0.0)

    def depthwise3x3(a, w_ref, b_ref):
        # a: (HW, C) f32 row-major flattened image.  3x3 depthwise conv with
        # zero padding: each tap is a circular sublane roll of the flattened
        # image (XLU) masked at image borders with the hoisted masks (VPU).
        w = w_ref[...]                                           # (9, 1, C)
        acc = jnp.zeros(a.shape, jnp.float32)
        for t, (dy, dx) in enumerate(offsets):
            if dy == 0 and dx == 0:
                tap = a
            else:
                delta = dy * W + dx                  # flattened source offset
                tap = pltpu.roll(a, shift=(-delta) % HW, axis=0)
                tap = jnp.where(masks[(dy, dx)], tap, 0.0)
            acc = acc + tap * w[t]
        return acc + b_ref[...]

    def pointwise1x1(a, w_ref, b_ref):
        # Single MXU matmul (HW, Cin) @ (Cin, Cp): bf16 in, f32 accumulate.
        return jnp.dot(a.astype(jnp.bfloat16), w_ref[...],
                       preferred_element_type=jnp.float32) + b_ref[...]

    x = x_ref[0]                                     # (HW, C1) f32

    # ---- in_layers: GN -> ReLU -> depthwise 3x3 -> pointwise 1x1 -----------
    a1 = group_norm_relu(x, gn1_c2g, gn1_g2c, gn1_g, gn1_b)
    h1 = pointwise1x1(depthwise3x3(a1, dw1_w, dw1_b), pw1_w, pw1_b)  # (HW,Cp)

    # ---- out_layers: GN -> ReLU -> Dropout(identity, eval) -> dw -> pw -----
    a2 = group_norm_relu(h1, gn2_c2g, gn2_g2c, gn2_g, gn2_b)
    h2 = pointwise1x1(depthwise3x3(a2, dw2_w, dw2_b), pw2_w, pw2_b)  # (HW,Cp)

    # ---- shortcut + residual add (DropPath(0.0) == identity) ---------------
    if has_conv_shortcut:
        s = pointwise1x1(depthwise3x3(x, sc_dw_w, sc_dw_b), sc_pw_w, sc_pw_b)
        o_ref[0] = h2 + s
    else:
        # Identity shortcut fused in-kernel: x was lane-padded to Cp by the
        # wrapper (padded lanes are zero), so this is a plain VMEM add.
        o_ref[0] = h2 + x


# ----------------------------------------------------------------------------
# Host-side constants for GroupNorm (grid-invariant kernel operands)
# ----------------------------------------------------------------------------
def _group_matrices(c_padded, c_real, groups, hw):
    """Factored group-averaging matrices: (Cp,G) scaled membership, (G,Cp) one-hot."""
    cg = c_real // groups
    ch = jnp.arange(c_padded)
    member = ((ch[:, None] // cg) == jnp.arange(groups)[None, :]) & \
             (ch[:, None] < c_real)                              # (Cp, G)
    c2g = jnp.where(member, 1.0 / (hw * cg), 0.0).astype(jnp.float32)
    g2c = jnp.where(member.T, 1.0, 0.0).astype(jnp.float32)      # (G, Cp)
    return c2g, g2c


# ----------------------------------------------------------------------------
# Channels-last core (use this directly if the surrounding model is NHWC)
# ----------------------------------------------------------------------------
def depthwise_separable_residual_block_nhwc(x_nhwc, params, num_groups=32):
    """Forward pass.  x_nhwc: (B, H, W, Cin) f32 -> (B, H, W, Cout) f32."""
    B, H, W, Cin = x_nhwc.shape
    Cout = params["pw1_w"].shape[-1]
    assert Cin % num_groups == 0 and Cout % _GN2_GROUPS == 0
    HW = H * W
    Cp = -(-Cout // 128) * 128             # lane-dense matmul-N / output dim
    has_conv_shortcut = (Cin != Cout)
    # Identity-shortcut case: pad x to Cp so the residual add happens in-kernel.
    C1 = Cin if has_conv_shortcut else Cp

    x_flat = x_nhwc.reshape(B, HW, Cin)
    if C1 != Cin:
        x_flat = jnp.pad(x_flat, ((0, 0), (0, 0), (0, C1 - Cin)))

    # --- zero-padding of weights (REQUIRED invariant; see header comment) ---
    def padc(a, to):
        return jnp.pad(a, [(0, 0)] * (a.ndim - 1) + [(0, to - a.shape[-1])])

    def pad_pw(w, rows, cols):
        return jnp.pad(w, [(0, rows - w.shape[0]), (0, cols - w.shape[1])])

    gn1_c2g, gn1_g2c = _group_matrices(C1, Cin, num_groups, HW)
    gn2_c2g, gn2_g2c = _group_matrices(Cp, Cout, _GN2_GROUPS, HW)

    gn1_g = padc(params["gn1_gamma"], C1); gn1_b = padc(params["gn1_beta"], C1)
    dw1_w = padc(params["dw1_w"], C1);     dw1_b = padc(params["dw1_b"], C1)
    pw1_w = pad_pw(params["pw1_w"], C1, Cp).astype(jnp.bfloat16)
    pw1_b = padc(params["pw1_b"], Cp)
    gn2_g = padc(params["gn2_gamma"], Cp); gn2_b = padc(params["gn2_beta"], Cp)
    dw2_w = padc(params["dw2_w"], Cp);     dw2_b = padc(params["dw2_b"], Cp)
    pw2_w = pad_pw(params["pw2_w"], Cp, Cp).astype(jnp.bfloat16)
    pw2_b = padc(params["pw2_b"], Cp)

    def rep(shape):  # grid-invariant operand: constant block index, fetched once
        return pl.BlockSpec(shape, lambda b, _r=len(shape): (0,) * _r)

    G1, G2 = num_groups, _GN2_GROUPS
    args = [x_flat, gn1_c2g, gn1_g2c, gn1_g, gn1_b, dw1_w, dw1_b, pw1_w, pw1_b,
            gn2_c2g, gn2_g2c, gn2_g, gn2_b, dw2_w, dw2_b, pw2_w, pw2_b]
    in_specs = [
        pl.BlockSpec((1, HW, C1), lambda b: (b, 0, 0)),
        rep((C1, G1)), rep((G1, C1)), rep((1, C1)), rep((1, C1)),   # gn1
        rep((9, 1, C1)), rep((1, C1)),                              # dw1
        rep((C1, Cp)), rep((1, Cp)),                                # pw1
        rep((Cp, G2)), rep((G2, Cp)), rep((1, Cp)), rep((1, Cp)),   # gn2
        rep((9, 1, Cp)), rep((1, Cp)),                              # dw2
        rep((Cp, Cp)), rep((1, Cp)),                                # pw2
    ]
    if has_conv_shortcut:
        args += [params["sc_dw_w"], params["sc_dw_b"],
                 pad_pw(params["sc_pw_w"], Cin, Cp).astype(jnp.bfloat16),
                 padc(params["sc_pw_b"], Cp)]
        in_specs += [rep((9, 1, Cin)), rep((1, Cin)),
                     rep((Cin, Cp)), rep((1, Cp))]

    kernel = functools.partial(
        _dwsep_resblock_kernel, H=H, W=W, eps=_EPS,
        has_conv_shortcut=has_conv_shortcut)

    # Explicit VMEM budget: double-buffered x/out blocks + ~10 live (HW,Cp) f32
    # intermediates + (double-buffered) weights.  Capped at 64 MiB (v7x-safe).
    est = (2 * HW * C1 * 4 + 2 * HW * Cp * 4 + 10 * HW * Cp * 4
           + 4 * (C1 * Cp + Cp * Cp + Cin * Cp) * 2
           + 4 * (C1 * G1 + Cp * G2) * 2 * 4)
    vmem_limit = int(min(max(est, 32 << 20), 64 << 20))

    out = pl.pallas_call(
        kernel,
        out_shape=jax.ShapeDtypeStruct((B, HW, Cp), jnp.float32),
        grid=(B,),
        in_specs=in_specs,
        out_specs=pl.BlockSpec((1, HW, Cp), lambda b: (b, 0, 0)),
        compiler_params=pltpu.CompilerParams(
            dimension_semantics=("parallel",),
            vmem_limit_bytes=vmem_limit),
    )(*args)

    # Residual add already done in-kernel; just drop the lane padding.
    return out[..., :Cout].reshape(B, H, W, Cout)


# ----------------------------------------------------------------------------
# NCHW wrapper (PyTorch layout).  The channel slice is kept adjacent to the
# transpose so XLA fuses slice+reshape+transpose into a single pass.
# ----------------------------------------------------------------------------
def depthwise_separable_residual_block(x_nchw, params, num_groups=32):
    """Forward pass.  x_nchw: (B, Cin, H, W) f32 -> (B, Cout, H, W) f32."""
    x_nhwc = jnp.transpose(x_nchw, (0, 2, 3, 1))
    out_nhwc = depthwise_separable_residual_block_nhwc(x_nhwc, params, num_groups)
    return jnp.transpose(out_nhwc, (0, 3, 1, 2))


# ----------------------------------------------------------------------------
# Parameters (kernel-friendly layouts)
# ----------------------------------------------------------------------------
def init_params(key, in_channels, out_channels):
    ks = jax.random.split(key, 6)

    def dw(k, c):
        # depthwise 3x3, tap-major: ours[ky*3+kx, 0, c] == torch W[c, 0, ky, kx]
        return jax.random.normal(k, (9, 1, c), jnp.float32) * (2.0 / 9.0) ** 0.5

    def pw(k, cin, cout):
        # pointwise 1x1: ours[ci, co] == torch W[co, ci, 0, 0]
        return jax.random.normal(k, (cin, cout), jnp.float32) * (2.0 / cin) ** 0.5

    def z(*s):
        return jnp.zeros(s, jnp.float32)

    # NOTE: PyTorch zero_module() zero-initialises the out_layers convs; random
    # values are used here so the demo exercises every code path — the forward
    # semantics implemented above are identical for any weight values.
    return dict(
        gn1_gamma=jnp.ones((1, in_channels), jnp.float32),
        gn1_beta=z(1, in_channels),
        dw1_w=dw(ks[0], in_channels), dw1_b=z(1, in_channels),
        pw1_w=pw(ks[1], in_channels, out_channels), pw1_b=z(1, out_channels),
        gn2_gamma=jnp.ones((1, out_channels), jnp.float32),
        gn2_beta=z(1, out_channels),
        dw2_w=dw(ks[2], out_channels), dw2_b=z(1, out_channels),
        pw2_w=pw(ks[3], out_channels, out_channels), pw2_b=z(1, out_channels),
        sc_dw_w=dw(ks[4], in_channels), sc_dw_b=z(1, in_channels),
        sc_pw_w=pw(ks[5], in_channels, out_channels), sc_pw_b=z(1, out_channels),
    )


# ----------------------------------------------------------------------------
# Pure-JAX reference (mirrors the PyTorch module in eval mode)
# ----------------------------------------------------------------------------
def _reference_forward(x, params, num_groups=32):
    B, Cin, H, W = x.shape
    Cout = params["pw1_w"].shape[-1]

    def gn(a, gamma, beta, groups):
        Bc, C, Hc, Wc = a.shape
        g = a.reshape(Bc, groups, C // groups, Hc, Wc)
        mu = g.mean(axis=(2, 3, 4), keepdims=True)
        var = ((g - mu) ** 2).mean(axis=(2, 3, 4), keepdims=True)
        a = ((g - mu) / jnp.sqrt(var + _EPS)).reshape(Bc, C, Hc, Wc)
        return a * gamma.reshape(1, C, 1, 1) + beta.reshape(1, C, 1, 1)

    def dw3x3(a, w, b):
        C = a.shape[1]
        ap = jnp.pad(a, ((0, 0), (0, 0), (1, 1), (1, 1)))
        out = jnp.zeros_like(a)
        for t in range(9):
            ky, kx = divmod(t, 3)
            out = out + ap[:, :, ky:ky + a.shape[2], kx:kx + a.shape[3]] * \
                w[t, 0].reshape(1, C, 1, 1)
        return out + b.reshape(1, C, 1, 1)

    def pw1x1(a, w, b):
        return jnp.einsum("bchw,cd->bdhw", a, w) + b.reshape(1, -1, 1, 1)

    h = gn(x, params["gn1_gamma"], params["gn1_beta"], num_groups)
    h = pw1x1(dw3x3(jax.nn.relu(h), params["dw1_w"], params["dw1_b"]),
              params["pw1_w"], params["pw1_b"])
    h = gn(h, params["gn2_gamma"], params["gn2_beta"], _GN2_GROUPS)
    h = pw1x1(dw3x3(jax.nn.relu(h), params["dw2_w"], params["dw2_b"]),
              params["pw2_w"], params["pw2_b"])
    if Cin == Cout:
        s = x
    else:
        s = pw1x1(dw3x3(x, params["sc_dw_w"], params["sc_dw_b"]),
                  params["sc_pw_w"], params["sc_pw_b"])
    return h + s


if __name__ == "__main__":
    key = jax.random.PRNGKey(0)
    B, H, W = 2, 16, 16

    # Case 1: Cin != Cout -> fused depthwise+pointwise conv shortcut.
    # Case 2: Cin == Cout -> identity shortcut, residual add fused in-kernel.
    for (Cin, Cout) in ((32, 64), (32, 32)):
        key, kx, kp = jax.random.split(key, 3)
        x = jax.random.normal(kx, (B, Cin, H, W), jnp.float32)
        params = init_params(kp, Cin, Cout)

        fwd = jax.jit(functools.partial(depthwise_separable_residual_block,
                                        num_groups=32))
        out = fwd(x, params)
        jax.block_until_ready(out)
        assert out.shape == (B, Cout, H, W), out.shape
        assert bool(jnp.all(jnp.isfinite(out)))

        ref = _reference_forward(x, params, num_groups=32)
        err = float(jnp.max(jnp.abs(out - ref)))
        scale = float(jnp.max(jnp.abs(ref)))
        # Pointwise convs use bf16 MXU operands (f32 accumulation), so allow a
        # small deviation from the f32 reference.
        assert err <= 5e-2 * scale + 1e-2, (err, scale)

    print("KERNEL_OK")
</pallas_src>

<mosaic_0001>
module attributes {stable_mosaic.version = 11 : i64} {
  func.func @_dwsep_resblock_kernel(%arg0: i32, %arg1: memref<1x256x32xf32, #tpu.memory_space<vmem>>, %arg2: memref<32x32xf32, #tpu.memory_space<vmem>>, %arg3: memref<32x32xf32, #tpu.memory_space<vmem>>, %arg4: memref<1x32xf32, #tpu.memory_space<vmem>>, %arg5: memref<1x32xf32, #tpu.memory_space<vmem>>, %arg6: memref<9x1x32xf32, #tpu.memory_space<vmem>>, %arg7: memref<1x32xf32, #tpu.memory_space<vmem>>, %arg8: memref<32x128xbf16, #tpu.memory_space<vmem>>, %arg9: memref<1x128xf32, #tpu.memory_space<vmem>>, %arg10: memref<128x32xf32, #tpu.memory_space<vmem>>, %arg11: memref<32x128xf32, #tpu.memory_space<vmem>>, %arg12: memref<1x128xf32, #tpu.memory_space<vmem>>, %arg13: memref<1x128xf32, #tpu.memory_space<vmem>>, %arg14: memref<9x1x128xf32, #tpu.memory_space<vmem>>, %arg15: memref<1x128xf32, #tpu.memory_space<vmem>>, %arg16: memref<128x128xbf16, #tpu.memory_space<vmem>>, %arg17: memref<1x128xf32, #tpu.memory_space<vmem>>, %arg18: memref<9x1x32xf32, #tpu.memory_space<vmem>>, %arg19: memref<1x32xf32, #tpu.memory_space<vmem>>, %arg20: memref<32x128xbf16, #tpu.memory_space<vmem>>, %arg21: memref<1x128xf32, #tpu.memory_space<vmem>>, %arg22: memref<1x256x128xf32, #tpu.memory_space<vmem>>) attributes {dimension_semantics = [#tpu.dimension_semantics<parallel>], iteration_bounds = array<i64: 2>, scalar_prefetch = 0 : i64, scratch_operands = 0 : i64, tpu.core_type = #tpu.core_type<tc>, window_params = [{transform_indices = @transform_0, window_bounds = array<i64: 1, 256, 32>}, {pipeline_mode = #tpu.pipeline_mode<synchronous>, transform_indices = @transform_1, window_bounds = array<i64: 32, 32>}, {pipeline_mode = #tpu.pipeline_mode<synchronous>, transform_indices = @transform_2, window_bounds = array<i64: 32, 32>}, {pipeline_mode = #tpu.pipeline_mode<synchronous>, transform_indices = @transform_3, window_bounds = array<i64: 1, 32>}, {pipeline_mode = #tpu.pipeline_mode<synchronous>, transform_indices = @transform_4, window_bounds = array<i64: 1, 32>}, {pipeline_mode = #tpu.pipeline_mode<synchronous>, transform_indices = @transform_5, window_bounds = array<i64: 9, 1, 32>}, {pipeline_mode = #tpu.pipeline_mode<synchronous>, transform_indices = @transform_6, window_bounds = array<i64: 1, 32>}, {pipeline_mode = #tpu.pipeline_mode<synchronous>, transform_indices = @transform_7, window_bounds = array<i64: 32, 128>}, {pipeline_mode = #tpu.pipeline_mode<synchronous>, transform_indices = @transform_8, window_bounds = array<i64: 1, 128>}, {pipeline_mode = #tpu.pipeline_mode<synchronous>, transform_indices = @transform_9, window_bounds = array<i64: 128, 32>}, {pipeline_mode = #tpu.pipeline_mode<synchronous>, transform_indices = @transform_10, window_bounds = array<i64: 32, 128>}, {pipeline_mode = #tpu.pipeline_mode<synchronous>, transform_indices = @transform_11, window_bounds = array<i64: 1, 128>}, {pipeline_mode = #tpu.pipeline_mode<synchronous>, transform_indices = @transform_12, window_bounds = array<i64: 1, 128>}, {pipeline_mode = #tpu.pipeline_mode<synchronous>, transform_indices = @transform_13, window_bounds = array<i64: 9, 1, 128>}, {pipeline_mode = #tpu.pipeline_mode<synchronous>, transform_indices = @transform_14, window_bounds = array<i64: 1, 128>}, {pipeline_mode = #tpu.pipeline_mode<synchronous>, transform_indices = @transform_15, window_bounds = array<i64: 128, 128>}, {pipeline_mode = #tpu.pipeline_mode<synchronous>, transform_indices = @transform_16, window_bounds = array<i64: 1, 128>}, {pipeline_mode = #tpu.pipeline_mode<synchronous>, transform_indices = @transform_17, window_bounds = array<i64: 9, 1, 32>}, {pipeline_mode = #tpu.pipeline_mode<synchronous>, transform_indices = @transform_18, window_bounds = array<i64: 1, 32>}, {pipeline_mode = #tpu.pipeline_mode<synchronous>, transform_indices = @transform_19, window_bounds = array<i64: 32, 128>}, {pipeline_mode = #tpu.pipeline_mode<synchronous>, transform_indices = @transform_20, window_bounds = array<i64: 1, 128>}, {transform_indices = @transform_21, window_bounds = array<i64: 1, 256, 128>}]} {
    %0 = tpu.iota {dimensions = array<i32: 0>} : vector<256x1xi32>
    %c15_i32 = arith.constant 15 : i32
    %1 = vector.broadcast %c15_i32 : i32 to vector<256x1xi32>
    %2 = arith.andi %0, %1 : vector<256x1xi32>
    %c4_i32 = arith.constant 4 : i32
    %3 = vector.broadcast %c4_i32 : i32 to vector<256x1xi32>
    %4 = arith.shrsi %0, %3 : vector<256x1xi32>
    %c-1_i32 = arith.constant -1 : i32
    %5 = vector.broadcast %c-1_i32 : i32 to vector<256x1xi32>
    %6 = arith.addi %2, %5 : vector<256x1xi32>
    %c0_i32 = arith.constant 0 : i32
    %7 = vector.broadcast %c0_i32 : i32 to vector<256x1xi32>
    %8 = arith.cmpi sge, %6, %7 : vector<256x1xi32>
    %c-1_i32_0 = arith.constant -1 : i32
    %9 = vector.broadcast %c-1_i32_0 : i32 to vector<256x1xi32>
    %10 = arith.addi %2, %9 : vector<256x1xi32>
    %c16_i32 = arith.constant 16 : i32
    %11 = vector.broadcast %c16_i32 : i32 to vector<256x1xi32>
    %12 = arith.cmpi slt, %10, %11 : vector<256x1xi32>
    %13 = arith.andi %8, %12 : vector<256x1xi1>
    %c-1_i32_1 = arith.constant -1 : i32
    %14 = vector.broadcast %c-1_i32_1 : i32 to vector<256x1xi32>
    %15 = arith.addi %4, %14 : vector<256x1xi32>
    %c0_i32_2 = arith.constant 0 : i32
    %16 = vector.broadcast %c0_i32_2 : i32 to vector<256x1xi32>
    %17 = arith.cmpi sge, %15, %16 : vector<256x1xi32>
    %18 = arith.andi %13, %17 : vector<256x1xi1>
    %c-1_i32_3 = arith.constant -1 : i32
    %19 = vector.broadcast %c-1_i32_3 : i32 to vector<256x1xi32>
    %20 = arith.addi %4, %19 : vector<256x1xi32>
    %c16_i32_4 = arith.constant 16 : i32
    %21 = vector.broadcast %c16_i32_4 : i32 to vector<256x1xi32>
    %22 = arith.cmpi slt, %20, %21 : vector<256x1xi32>
    %23 = arith.andi %18, %22 : vector<256x1xi1>
    %c0_i32_5 = arith.constant 0 : i32
    %24 = vector.broadcast %c0_i32_5 : i32 to vector<256x1xi32>
    %25 = arith.addi %2, %24 : vector<256x1xi32>
    %c0_i32_6 = arith.constant 0 : i32
    %26 = vector.broadcast %c0_i32_6 : i32 to vector<256x1xi32>
    %27 = arith.cmpi sge, %25, %26 : vector<256x1xi32>
    %c0_i32_7 = arith.constant 0 : i32
    %28 = vector.broadcast %c0_i32_7 : i32 to vector<256x1xi32>
    %29 = arith.addi %2, %28 : vector<256x1xi32>
    %c16_i32_8 = arith.constant 16 : i32
    %30 = vector.broadcast %c16_i32_8 : i32 to vector<256x1xi32>
    %31 = arith.cmpi slt, %29, %30 : vector<256x1xi32>
    %32 = arith.andi %27, %31 : vector<256x1xi1>
    %c-1_i32_9 = arith.constant -1 : i32
    %33 = vector.broadcast %c-1_i32_9 : i32 to vector<256x1xi32>
    %34 = arith.addi %4, %33 : vector<256x1xi32>
    %c0_i32_10 = arith.constant 0 : i32
    %35 = vector.broadcast %c0_i32_10 : i32 to vector<256x1xi32>
    %36 = arith.cmpi sge, %34, %35 : vector<256x1xi32>
    %37 = arith.andi %32, %36 : vector<256x1xi1>
    %c-1_i32_11 = arith.constant -1 : i32
    %38 = vector.broadcast %c-1_i32_11 : i32 to vector<256x1xi32>
    %39 = arith.addi %4, %38 : vector<256x1xi32>
    %c16_i32_12 = arith.constant 16 : i32
    %40 = vector.broadcast %c16_i32_12 : i32 to vector<256x1xi32>
    %41 = arith.cmpi slt, %39, %40 : vector<256x1xi32>
    %42 = arith.andi %37, %41 : vector<256x1xi1>
    %c1_i32 = arith.constant 1 : i32
    %43 = vector.broadcast %c1_i32 : i32 to vector<256x1xi32>
    %44 = arith.addi %2, %43 : vector<256x1xi32>
    %c0_i32_13 = arith.constant 0 : i32
    %45 = vector.broadcast %c0_i32_13 : i32 to vector<256x1xi32>
    %46 = arith.cmpi sge, %44, %45 : vector<256x1xi32>
    %c1_i32_14 = arith.constant 1 : i32
    %47 = vector.broadcast %c1_i32_14 : i32 to vector<256x1xi32>
    %48 = arith.addi %2, %47 : vector<256x1xi32>
    %c16_i32_15 = arith.constant 16 : i32
    %49 = vector.broadcast %c16_i32_15 : i32 to vector<256x1xi32>
    %50 = arith.cmpi slt, %48, %49 : vector<256x1xi32>
    %51 = arith.andi %46, %50 : vector<256x1xi1>
    %c-1_i32_16 = arith.constant -1 : i32
    %52 = vector.broadcast %c-1_i32_16 : i32 to vector<256x1xi32>
    %53 = arith.addi %4, %52 : vector<256x1xi32>
    %c0_i32_17 = arith.constant 0 : i32
    %54 = vector.broadcast %c0_i32_17 : i32 to vector<256x1xi32>
    %55 = arith.cmpi sge, %53, %54 : vector<256x1xi32>
    %56 = arith.andi %51, %55 : vector<256x1xi1>
    %c-1_i32_18 = arith.constant -1 : i32
    %57 = vector.broadcast %c-1_i32_18 : i32 to vector<256x1xi32>
    %58 = arith.addi %4, %57 : vector<256x1xi32>
    %c16_i32_19 = arith.constant 16 : i32
    %59 = vector.broadcast %c16_i32_19 : i32 to vector<256x1xi32>
    %60 = arith.cmpi slt, %58, %59 : vector<256x1xi32>
    %61 = arith.andi %56, %60 : vector<256x1xi1>
    %c-1_i32_20 = arith.constant -1 : i32
    %62 = vector.broadcast %c-1_i32_20 : i32 to vector<256x1xi32>
    %63 = arith.addi %2, %62 : vector<256x1xi32>
    %c0_i32_21 = arith.constant 0 : i32
    %64 = vector.broadcast %c0_i32_21 : i32 to vector<256x1xi32>
    %65 = arith.cmpi sge, %63, %64 : vector<256x1xi32>
    %c-1_i32_22 = arith.constant -1 : i32
    %66 = vector.broadcast %c-1_i32_22 : i32 to vector<256x1xi32>
    %67 = arith.addi %2, %66 : vector<256x1xi32>
    %c16_i32_23 = arith.constant 16 : i32
    %68 = vector.broadcast %c16_i32_23 : i32 to vector<256x1xi32>
    %69 = arith.cmpi slt, %67, %68 : vector<256x1xi32>
    %70 = arith.andi %65, %69 : vector<256x1xi1>
    %c0_i32_24 = arith.constant 0 : i32
    %71 = vector.broadcast %c0_i32_24 : i32 to vector<256x1xi32>
    %72 = arith.addi %4, %71 : vector<256x1xi32>
    %c0_i32_25 = arith.constant 0 : i32
    %73 = vector.broadcast %c0_i32_25 : i32 to vector<256x1xi32>
    %74 = arith.cmpi sge, %72, %73 : vector<256x1xi32>
    %75 = arith.andi %70, %74 : vector<256x1xi1>
    %c0_i32_26 = arith.constant 0 : i32
    %76 = vector.broadcast %c0_i32_26 : i32 to vector<256x1xi32>
    %77 = arith.addi %4, %76 : vector<256x1xi32>
    %c16_i32_27 = arith.constant 16 : i32
    %78 = vector.broadcast %c16_i32_27 : i32 to vector<256x1xi32>
    %79 = arith.cmpi slt, %77, %78 : vector<256x1xi32>
    %80 = arith.andi %75, %79 : vector<256x1xi1>
    %c1_i32_28 = arith.constant 1 : i32
    %81 = vector.broadcast %c1_i32_28 : i32 to vector<256x1xi32>
    %82 = arith.addi %2, %81 : vector<256x1xi32>
    %c0_i32_29 = arith.constant 0 : i32
    %83 = vector.broadcast %c0_i32_29 : i32 to vector<256x1xi32>
    %84 = arith.cmpi sge, %82, %83 : vector<256x1xi32>
    %c1_i32_30 = arith.constant 1 : i32
    %85 = vector.broadcast %c1_i32_30 : i32 to vector<256x1xi32>
    %86 = arith.addi %2, %85 : vector<256x1xi32>
    %c16_i32_31 = arith.constant 16 : i32
    %87 = vector.broadcast %c16_i32_31 : i32 to vector<256x1xi32>
    %88 = arith.cmpi slt, %86, %87 : vector<256x1xi32>
    %89 = arith.andi %84, %88 : vector<256x1xi1>
    %c0_i32_32 = arith.constant 0 : i32
    %90 = vector.broadcast %c0_i32_32 : i32 to vector<256x1xi32>
    %91 = arith.addi %4, %90 : vector<256x1xi32>
    %c0_i32_33 = arith.constant 0 : i32
    %92 = vector.broadcast %c0_i32_33 : i32 to vector<256x1xi32>
    %93 = arith.cmpi sge, %91, %92 : vector<256x1xi32>
    %94 = arith.andi %89, %93 : vector<256x1xi1>
    %c0_i32_34 = arith.constant 0 : i32
    %95 = vector.broadcast %c0_i32_34 : i32 to vector<256x1xi32>
    %96 = arith.addi %4, %95 : vector<256x1xi32>
    %c16_i32_35 = arith.constant 16 : i32
    %97 = vector.broadcast %c16_i32_35 : i32 to vector<256x1xi32>
    %98 = arith.cmpi slt, %96, %97 : vector<256x1xi32>
    %99 = arith.andi %94, %98 : vector<256x1xi1>
    %c-1_i32_36 = arith.constant -1 : i32
    %100 = vector.broadcast %c-1_i32_36 : i32 to vector<256x1xi32>
    %101 = arith.addi %2, %100 : vector<256x1xi32>
    %c0_i32_37 = arith.constant 0 : i32
    %102 = vector.broadcast %c0_i32_37 : i32 to vector<256x1xi32>
    %103 = arith.cmpi sge, %101, %102 : vector<256x1xi32>
    %c-1_i32_38 = arith.constant -1 : i32
    %104 = vector.broadcast %c-1_i32_38 : i32 to vector<256x1xi32>
    %105 = arith.addi %2, %104 : vector<256x1xi32>
    %c16_i32_39 = arith.constant 16 : i32
    %106 = vector.broadcast %c16_i32_39 : i32 to vector<256x1xi32>
    %107 = arith.cmpi slt, %105, %106 : vector<256x1xi32>
    %108 = arith.andi %103, %107 : vector<256x1xi1>
    %c1_i32_40 = arith.constant 1 : i32
    %109 = vector.broadcast %c1_i32_40 : i32 to vector<256x1xi32>
    %110 = arith.addi %4, %109 : vector<256x1xi32>
    %c0_i32_41 = arith.constant 0 : i32
    %111 = vector.broadcast %c0_i32_41 : i32 to vector<256x1xi32>
    %112 = arith.cmpi sge, %110, %111 : vector<256x1xi32>
    %113 = arith.andi %108, %112 : vector<256x1xi1>
    %c1_i32_42 = arith.constant 1 : i32
    %114 = vector.broadcast %c1_i32_42 : i32 to vector<256x1xi32>
    %115 = arith.addi %4, %114 : vector<256x1xi32>
    %c16_i32_43 = arith.constant 16 : i32
    %116 = vector.broadcast %c16_i32_43 : i32 to vector<256x1xi32>
    %117 = arith.cmpi slt, %115, %116 : vector<256x1xi32>
    %118 = arith.andi %113, %117 : vector<256x1xi1>
    %c0_i32_44 = arith.constant 0 : i32
    %119 = vector.broadcast %c0_i32_44 : i32 to vector<256x1xi32>
    %120 = arith.addi %2, %119 : vector<256x1xi32>
    %c0_i32_45 = arith.constant 0 : i32
    %121 = vector.broadcast %c0_i32_45 : i32 to vector<256x1xi32>
    %122 = arith.cmpi sge, %120, %121 : vector<256x1xi32>
    %c0_i32_46 = arith.constant 0 : i32
    %123 = vector.broadcast %c0_i32_46 : i32 to vector<256x1xi32>
    %124 = arith.addi %2, %123 : vector<256x1xi32>
    %c16_i32_47 = arith.constant 16 : i32
    %125 = vector.broadcast %c16_i32_47 : i32 to vector<256x1xi32>
    %126 = arith.cmpi slt, %124, %125 : vector<256x1xi32>
    %127 = arith.andi %122, %126 : vector<256x1xi1>
    %c1_i32_48 = arith.constant 1 : i32
    %128 = vector.broadcast %c1_i32_48 : i32 to vector<256x1xi32>
    %129 = arith.addi %4, %128 : vector<256x1xi32>
    %c0_i32_49 = arith.constant 0 : i32
    %130 = vector.broadcast %c0_i32_49 : i32 to vector<256x1xi32>
    %131 = arith.cmpi sge, %129, %130 : vector<256x1xi32>
    %132 = arith.andi %127, %131 : vector<256x1xi1>
    %c1_i32_50 = arith.constant 1 : i32
    %133 = vector.broadcast %c1_i32_50 : i32 to vector<256x1xi32>
    %134 = arith.addi %4, %133 : vector<256x1xi32>
    %c16_i32_51 = arith.constant 16 : i32
    %135 = vector.broadcast %c16_i32_51 : i32 to vector<256x1xi32>
    %136 = arith.cmpi slt, %134, %135 : vector<256x1xi32>
    %137 = arith.andi %132, %136 : vector<256x1xi1>
    %c1_i32_52 = arith.constant 1 : i32
    %138 = vector.broadcast %c1_i32_52 : i32 to vector<256x1xi32>
    %139 = arith.addi %2, %138 : vector<256x1xi32>
    %c0_i32_53 = arith.constant 0 : i32
    %140 = vector.broadcast %c0_i32_53 : i32 to vector<256x1xi32>
    %141 = arith.cmpi sge, %139, %140 : vector<256x1xi32>
    %c1_i32_54 = arith.constant 1 : i32
    %142 = vector.broadcast %c1_i32_54 : i32 to vector<256x1xi32>
    %143 = arith.addi %2, %142 : vector<256x1xi32>
    %c16_i32_55 = arith.constant 16 : i32
    %144 = vector.broadcast %c16_i32_55 : i32 to vector<256x1xi32>
    %145 = arith.cmpi slt, %143, %144 : vector<256x1xi32>
    %146 = arith.andi %141, %145 : vector<256x1xi1>
    %c1_i32_56 = arith.constant 1 : i32
    %147 = vector.broadcast %c1_i32_56 : i32 to vector<256x1xi32>
    %148 = arith.addi %4, %147 : vector<256x1xi32>
    %c0_i32_57 = arith.constant 0 : i32
    %149 = vector.broadcast %c0_i32_57 : i32 to vector<256x1xi32>
    %150 = arith.cmpi sge, %148, %149 : vector<256x1xi32>
    %151 = arith.andi %146, %150 : vector<256x1xi1>
    %c1_i32_58 = arith.constant 1 : i32
    %152 = vector.broadcast %c1_i32_58 : i32 to vector<256x1xi32>
    %153 = arith.addi %4, %152 : vector<256x1xi32>
    %c16_i32_59 = arith.constant 16 : i32
    %154 = vector.broadcast %c16_i32_59 : i32 to vector<256x1xi32>
    %155 = arith.cmpi slt, %153, %154 : vector<256x1xi32>
    %156 = arith.andi %151, %155 : vector<256x1xi1>
    %c0 = arith.constant 0 : index
    %c0_60 = arith.constant 0 : index
    %c0_61 = arith.constant 0 : index
    %157 = vector.load %arg1[%c0, %c0_60, %c0_61] : memref<1x256x32xf32, #tpu.memory_space<vmem>>, vector<1x256x32xf32>
    %158 = vector.shape_cast %157 : vector<1x256x32xf32> to vector<256x32xf32>
    %c0_62 = arith.constant 0 : index
    %c0_63 = arith.constant 0 : index
    %159 = vector.load %arg2[%c0_62, %c0_63] : memref<32x32xf32, #tpu.memory_space<vmem>>, vector<32x32xf32>
    %c0_64 = arith.constant 0 : index
    %c0_65 = arith.constant 0 : index
    %160 = vector.load %arg3[%c0_64, %c0_65] : memref<32x32xf32, #tpu.memory_space<vmem>>, vector<32x32xf32>
    %cst = arith.constant dense<0.000000e+00> : vector<32xf32>
    %161 = vector.multi_reduction <add>, %158, %cst [0] : vector<256x32xf32> to vector<32xf32>
    %162 = vector.shape_cast %161 : vector<32xf32> to vector<1x32xf32>
    %cst_66 = arith.constant dense<0.000000e+00> : vector<1x32xf32>
    %163 = tpu.matmul %162, %159, %cst_66 {dimension_numbers = #tpu.dot_dimension_numbers<[1], [0], [0], [1], [0, 0, 1, 1], [], []>} : vector<1x32xf32>, vector<32x32xf32>, vector<1x32xf32> -> vector<1x32xf32>
    %cst_67 = arith.constant dense<0.000000e+00> : vector<1x32xf32>
    %164 = tpu.matmul %163, %160, %cst_67 {dimension_numbers = #tpu.dot_dimension_numbers<[1], [0], [0], [1], [0, 0, 1, 1], [], []>} : vector<1x32xf32>, vector<32x32xf32>, vector<1x32xf32> -> vector<1x32xf32>
    %165 = vector.broadcast %164 : vector<1x32xf32> to vector<256x32xf32>
    %166 = arith.subf %158, %165 : vector<256x32xf32>
    %167 = arith.mulf %166, %166 : vector<256x32xf32>
    %cst_68 = arith.constant dense<0.000000e+00> : vector<32xf32>
    %168 = vector.multi_reduction <add>, %167, %cst_68 [0] : vector<256x32xf32> to vector<32xf32>
    %169 = vector.shape_cast %168 : vector<32xf32> to vector<1x32xf32>
    %cst_69 = arith.constant dense<0.000000e+00> : vector<1x32xf32>
    %170 = tpu.matmul %169, %159, %cst_69 {dimension_numbers = #tpu.dot_dimension_numbers<[1], [0], [0], [1], [0, 0, 1, 1], [], []>} : vector<1x32xf32>, vector<32x32xf32>, vector<1x32xf32> -> vector<1x32xf32>
    %cst_70 = arith.constant dense<0.000000e+00> : vector<1x32xf32>
    %171 = tpu.matmul %170, %160, %cst_70 {dimension_numbers = #tpu.dot_dimension_numbers<[1], [0], [0], [1], [0, 0, 1, 1], [], []>} : vector<1x32xf32>, vector<32x32xf32>, vector<1x32xf32> -> vector<1x32xf32>
    %cst_71 = arith.constant 9.99999974E-6 : f32
    %172 = vector.broadcast %cst_71 : f32 to vector<1x32xf32>
    %173 = arith.addf %171, %172 : vector<1x32xf32>
    %174 = math.rsqrt %173 : vector<1x32xf32>
    %175 = vector.broadcast %174 : vector<1x32xf32> to vector<256x32xf32>
    %176 = arith.mulf %166, %175 : vector<256x32xf32>
    %c0_72 = arith.constant 0 : index
    %c0_73 = arith.constant 0 : index
    %177 = vector.load %arg4[%c0_72, %c0_73] : memref<1x32xf32, #tpu.memory_space<vmem>>, vector<1x32xf32>
    %178 = vector.broadcast %177 : vector<1x32xf32> to vector<256x32xf32>
    %179 = arith.mulf %176, %178 : vector<256x32xf32>
    %c0_74 = arith.constant 0 : index
    %c0_75 = arith.constant 0 : index
    %180 = vector.load %arg5[%c0_74, %c0_75] : memref<1x32xf32, #tpu.memory_space<vmem>>, vector<1x32xf32>
    %181 = vector.broadcast %180 : vector<1x32xf32> to vector<256x32xf32>
    %182 = arith.addf %179, %181 : vector<256x32xf32>
    %cst_76 = arith.constant 0.000000e+00 : f32
    %183 = vector.broadcast %cst_76 : f32 to vector<256x32xf32>
    %184 = arith.maximumf %182, %183 : vector<256x32xf32>
    %c0_77 = arith.constant 0 : index
    %c0_78 = arith.constant 0 : index
    %c0_79 = arith.constant 0 : index
    %185 = vector.load %arg6[%c0_77, %c0_78, %c0_79] : memref<9x1x32xf32, #tpu.memory_space<vmem>>, vector<9x1x32xf32>
    %cst_80 = arith.constant 0.000000e+00 : f32
    %186 = vector.broadcast %cst_80 : f32 to vector<256x32xf32>
    %c17_i32 = arith.constant 17 : i32
    %187 = tpu.dynamic_rotate %184 by %c17_i32 dim 0 : vector<256x32xf32>, i32 -> vector<256x32xf32>
    %cst_81 = arith.constant 0.000000e+00 : f32
    %188 = vector.shape_cast %23 : vector<256x1xi1> to vector<256x1xi1>
    %189 = vector.broadcast %188 : vector<256x1xi1> to vector<256x32xi1>
    %190 = vector.broadcast %cst_81 : f32 to vector<256x32xf32>
    %191 = arith.select %189, %187, %190 : vector<256x32xi1>, vector<256x32xf32>
    %192 = vector.extract_strided_slice %185 {offsets = [0, 0, 0], sizes = [1, 1, 32], strides = [1, 1, 1]} : vector<9x1x32xf32> to vector<1x1x32xf32>
    %193 = vector.shape_cast %192 : vector<1x1x32xf32> to vector<1x32xf32>
    %194 = vector.broadcast %193 : vector<1x32xf32> to vector<256x32xf32>
    %195 = arith.mulf %191, %194 : vector<256x32xf32>
    %196 = arith.addf %186, %195 : vector<256x32xf32>
    %c16_i32_82 = arith.constant 16 : i32
    %197 = tpu.dynamic_rotate %184 by %c16_i32_82 dim 0 : vector<256x32xf32>, i32 -> vector<256x32xf32>
    %cst_83 = arith.constant 0.000000e+00 : f32
    %198 = vector.shape_cast %42 : vector<256x1xi1> to vector<256x1xi1>
    %199 = vector.broadcast %198 : vector<256x1xi1> to vector<256x32xi1>
    %200 = vector.broadcast %cst_83 : f32 to vector<256x32xf32>
    %201 = arith.select %199, %197, %200 : vector<256x32xi1>, vector<256x32xf32>
    %202 = vector.extract_strided_slice %185 {offsets = [1, 0, 0], sizes = [1, 1, 32], strides = [1, 1, 1]} : vector<9x1x32xf32> to vector<1x1x32xf32>
    %203 = vector.shape_cast %202 : vector<1x1x32xf32> to vector<1x32xf32>
    %204 = vector.broadcast %203 : vector<1x32xf32> to vector<256x32xf32>
    %205 = arith.mulf %201, %204 : vector<256x32xf32>
    %206 = arith.addf %196, %205 : vector<256x32xf32>
    %c15_i32_84 = arith.constant 15 : i32
    %207 = tpu.dynamic_rotate %184 by %c15_i32_84 dim 0 : vector<256x32xf32>, i32 -> vector<256x32xf32>
    %cst_85 = arith.constant 0.000000e+00 : f32
    %208 = vector.shape_cast %61 : vector<256x1xi1> to vector<256x1xi1>
    %209 = vector.broadcast %208 : vector<256x1xi1> to vector<256x32xi1>
    %210 = vector.broadcast %cst_85 : f32 to vector<256x32xf32>
    %211 = arith.select %209, %207, %210 : vector<256x32xi1>, vector<256x32xf32>
    %212 = vector.extract_strided_slice %185 {offsets = [2, 0, 0], sizes = [1, 1, 32], strides = [1, 1, 1]} : vector<9x1x32xf32> to vector<1x1x32xf32>
    %213 = vector.shape_cast %212 : vector<1x1x32xf32> to vector<1x32xf32>
    %214 = vector.broadcast %213 : vector<1x32xf32> to vector<256x32xf32>
    %215 = arith.mulf %211, %214 : vector<256x32xf32>
    %216 = arith.addf %206, %215 : vector<256x32xf32>
    %c1_i32_86 = arith.constant 1 : i32
    %217 = tpu.dynamic_rotate %184 by %c1_i32_86 dim 0 : vector<256x32xf32>, i32 -> vector<256x32xf32>
    %cst_87 = arith.constant 0.000000e+00 : f32
    %218 = vector.shape_cast %80 : vector<256x1xi1> to vector<256x1xi1>
    %219 = vector.broadcast %218 : vector<256x1xi1> to vector<256x32xi1>
    %220 = vector.broadcast %cst_87 : f32 to vector<256x32xf32>
    %221 = arith.select %219, %217, %220 : vector<256x32xi1>, vector<256x32xf32>
    %222 = vector.extract_strided_slice %185 {offsets = [3, 0, 0], sizes = [1, 1, 32], strides = [1, 1, 1]} : vector<9x1x32xf32> to vector<1x1x32xf32>
    %223 = vector.shape_cast %222 : vector<1x1x32xf32> to vector<1x32xf32>
    %224 = vector.broadcast %223 : vector<1x32xf32> to vector<256x32xf32>
    %225 = arith.mulf %221, %224 : vector<256x32xf32>
    %226 = arith.addf %216, %225 : vector<256x32xf32>
    %227 = vector.extract_strided_slice %185 {offsets = [4, 0, 0], sizes = [1, 1, 32], strides = [1, 1, 1]} : vector<9x1x32xf32> to vector<1x1x32xf32>
    %228 = vector.shape_cast %227 : vector<1x1x32xf32> to vector<1x32xf32>
    %229 = vector.broadcast %228 : vector<1x32xf32> to vector<256x32xf32>
    %230 = arith.mulf %184, %229 : vector<256x32xf32>
    %231 = arith.addf %226, %230 : vector<256x32xf32>
    %c255_i32 = arith.constant 255 : i32
    %232 = tpu.dynamic_rotate %184 by %c255_i32 dim 0 : vector<256x32xf32>, i32 -> vector<256x32xf32>
    %cst_88 = arith.constant 0.000000e+00 : f32
    %233 = vector.shape_cast %99 : vector<256x1xi1> to vector<256x1xi1>
    %234 = vector.broadcast %233 : vector<256x1xi1> to vector<256x32xi1>
    %235 = vector.broadcast %cst_88 : f32 to vector<256x32xf32>
    %236 = arith.select %234, %232, %235 : vector<256x32xi1>, vector<256x32xf32>
    %237 = vector.extract_strided_slice %185 {offsets = [5, 0, 0], sizes = [1, 1, 32], strides = [1, 1, 1]} : vector<9x1x32xf32> to vector<1x1x32xf32>
    %238 = vector.shape_cast %237 : vector<1x1x32xf32> to vector<1x32xf32>
    %239 = vector.broadcast %238 : vector<1x32xf32> to vector<256x32xf32>
    %240 = arith.mulf %236, %239 : vector<256x32xf32>
    %241 = arith.addf %231, %240 : vector<256x32xf32>
    %c241_i32 = arith.constant 241 : i32
    %242 = tpu.dynamic_rotate %184 by %c241_i32 dim 0 : vector<256x32xf32>, i32 -> vector<256x32xf32>
    %cst_89 = arith.constant 0.000000e+00 : f32
    %243 = vector.shape_cast %118 : vector<256x1xi1> to vector<256x1xi1>
    %244 = vector.broadcast %243 : vector<256x1xi1> to vector<256x32xi1>
    %245 = vector.broadcast %cst_89 : f32 to vector<256x32xf32>
    %246 = arith.select %244, %242, %245 : vector<256x32xi1>, vector<256x32xf32>
    %247 = vector.extract_strided_slice %185 {offsets = [6, 0, 0], sizes = [1, 1, 32], strides = [1, 1, 1]} : vector<9x1x32xf32> to vector<1x1x32xf32>
    %248 = vector.shape_cast %247 : vector<1x1x32xf32> to vector<1x32xf32>
    %249 = vector.broadcast %248 : vector<1x32xf32> to vector<256x32xf32>
    %250 = arith.mulf %246, %249 : vector<256x32xf32>
    %251 = arith.addf %241, %250 : vector<256x32xf32>
    %c240_i32 = arith.constant 240 : i32
    %252 = tpu.dynamic_rotate %184 by %c240_i32 dim 0 : vector<256x32xf32>, i32 -> vector<256x32xf32>
    %cst_90 = arith.constant 0.000000e+00 : f32
    %253 = vector.shape_cast %137 : vector<256x1xi1> to vector<256x1xi1>
    %254 = vector.broadcast %253 : vector<256x1xi1> to vector<256x32xi1>
    %255 = vector.broadcast %cst_90 : f32 to vector<256x32xf32>
    %256 = arith.select %254, %252, %255 : vector<256x32xi1>, vector<256x32xf32>
    %257 = vector.extract_strided_slice %185 {offsets = [7, 0, 0], sizes = [1, 1, 32], strides = [1, 1, 1]} : vector<9x1x32xf32> to vector<1x1x32xf32>
    %258 = vector.shape_cast %257 : vector<1x1x32xf32> to vector<1x32xf32>
    %259 = vector.broadcast %258 : vector<1x32xf32> to vector<256x32xf32>
    %260 = arith.mulf %256, %259 : vector<256x32xf32>
    %261 = arith.addf %251, %260 : vector<256x32xf32>
    %c239_i32 = arith.constant 239 : i32
    %262 = tpu.dynamic_rotate %184 by %c239_i32 dim 0 : vector<256x32xf32>, i32 -> vector<256x32xf32>
    %cst_91 = arith.constant 0.000000e+00 : f32
    %263 = vector.shape_cast %156 : vector<256x1xi1> to vector<256x1xi1>
    %264 = vector.broadcast %263 : vector<256x1xi1> to vector<256x32xi1>
    %265 = vector.broadcast %cst_91 : f32 to vector<256x32xf32>
    %266 = arith.select %264, %262, %265 : vector<256x32xi1>, vector<256x32xf32>
    %267 = vector.extract_strided_slice %185 {offsets = [8, 0, 0], sizes = [1, 1, 32], strides = [1, 1, 1]} : vector<9x1x32xf32> to vector<1x1x32xf32>
    %268 = vector.shape_cast %267 : vector<1x1x32xf32> to vector<1x32xf32>
    %269 = vector.broadcast %268 : vector<1x32xf32> to vector<256x32xf32>
    %270 = arith.mulf %266, %269 : vector<256x32xf32>
    %271 = arith.addf %261, %270 : vector<256x32xf32>
    %c0_92 = arith.constant 0 : index
    %c0_93 = arith.constant 0 : index
    %272 = vector.load %arg7[%c0_92, %c0_93] : memref<1x32xf32, #tpu.memory_space<vmem>>, vector<1x32xf32>
    %273 = vector.broadcast %272 : vector<1x32xf32> to vector<256x32xf32>
    %274 = arith.addf %271, %273 : vector<256x32xf32>
    %275 = arith.truncf %274 : vector<256x32xf32> to vector<256x32xbf16>
    %c0_94 = arith.constant 0 : index
    %c0_95 = arith.constant 0 : index
    %276 = vector.load %arg8[%c0_94, %c0_95] : memref<32x128xbf16, #tpu.memory_space<vmem>>, vector<32x128xbf16>
    %cst_96 = arith.constant dense<0.000000e+00> : vector<256x128xf32>
    %277 = tpu.matmul %275, %276, %cst_96 {dimension_numbers = #tpu.dot_dimension_numbers<[1], [0], [0], [1], [0, 0, 1, 1], [], []>} : vector<256x32xbf16>, vector<32x128xbf16>, vector<256x128xf32> -> vector<256x128xf32>
    %c0_97 = arith.constant 0 : index
    %c0_98 = arith.constant 0 : index
    %278 = vector.load %arg9[%c0_97, %c0_98] : memref<1x128xf32, #tpu.memory_space<vmem>>, vector<1x128xf32>
    %279 = vector.broadcast %278 : vector<1x128xf32> to vector<256x128xf32>
    %280 = arith.addf %277, %279 : vector<256x128xf32>
    %c0_99 = arith.constant 0 : index
    %c0_100 = arith.constant 0 : index
    %281 = vector.load %arg10[%c0_99, %c0_100] : memref<128x32xf32, #tpu.memory_space<vmem>>, vector<128x32xf32>
    %c0_101 = arith.constant 0 : index
    %c0_102 = arith.constant 0 : index
    %282 = vector.load %arg11[%c0_101, %c0_102] : memref<32x128xf32, #tpu.memory_space<vmem>>, vector<32x128xf32>
    %cst_103 = arith.constant dense<0.000000e+00> : vector<128xf32>
    %283 = vector.multi_reduction <add>, %280, %cst_103 [0] : vector<256x128xf32> to vector<128xf32>
    %284 = vector.shape_cast %283 : vector<128xf32> to vector<1x128xf32>
    %cst_104 = arith.constant dense<0.000000e+00> : vector<1x32xf32>
    %285 = tpu.matmul %284, %281, %cst_104 {dimension_numbers = #tpu.dot_dimension_numbers<[1], [0], [0], [1], [0, 0, 1, 1], [], []>} : vector<1x128xf32>, vector<128x32xf32>, vector<1x32xf32> -> vector<1x32xf32>
    %cst_105 = arith.constant dense<0.000000e+00> : vector<1x128xf32>
    %286 = tpu.matmul %285, %282, %cst_105 {dimension_numbers = #tpu.dot_dimension_numbers<[1], [0], [0], [1], [0, 0, 1, 1], [], []>} : vector<1x32xf32>, vector<32x128xf32>, vector<1x128xf32> -> vector<1x128xf32>
    %287 = vector.broadcast %286 : vector<1x128xf32> to vector<256x128xf32>
    %288 = arith.subf %280, %287 : vector<256x128xf32>
    %289 = arith.mulf %288, %288 : vector<256x128xf32>
    %cst_106 = arith.constant dense<0.000000e+00> : vector<128xf32>
    %290 = vector.multi_reduction <add>, %289, %cst_106 [0] : vector<256x128xf32> to vector<128xf32>
    %291 = vector.shape_cast %290 : vector<128xf32> to vector<1x128xf32>
    %cst_107 = arith.constant dense<0.000000e+00> : vector<1x32xf32>
    %292 = tpu.matmul %291, %281, %cst_107 {dimension_numbers = #tpu.dot_dimension_numbers<[1], [0], [0], [1], [0, 0, 1, 1], [], []>} : vector<1x128xf32>, vector<128x32xf32>, vector<1x32xf32> -> vector<1x32xf32>
    %cst_108 = arith.constant dense<0.000000e+00> : vector<1x128xf32>
    %293 = tpu.matmul %292, %282, %cst_108 {dimension_numbers = #tpu.dot_dimension_numbers<[1], [0], [0], [1], [0, 0, 1, 1], [], []>} : vector<1x32xf32>, vector<32x128xf32>, vector<1x128xf32> -> vector<1x128xf32>
    %cst_109 = arith.constant 9.99999974E-6 : f32
    %294 = vector.broadcast %cst_109 : f32 to vector<1x128xf32>
    %295 = arith.addf %293, %294 : vector<1x128xf32>
    %296 = math.rsqrt %295 : vector<1x128xf32>
    %297 = vector.broadcast %296 : vector<1x128xf32> to vector<256x128xf32>
    %298 = arith.mulf %288, %297 : vector<256x128xf32>
    %c0_110 = arith.constant 0 : index
    %c0_111 = arith.constant 0 : index
    %299 = vector.load %arg12[%c0_110, %c0_111] : memref<1x128xf32, #tpu.memory_space<vmem>>, vector<1x128xf32>
    %300 = vector.broadcast %299 : vector<1x128xf32> to vector<256x128xf32>
    %301 = arith.mulf %298, %300 : vector<256x128xf32>
    %c0_112 = arith.constant 0 : index
    %c0_113 = arith.constant 0 : index
    %302 = vector.load %arg13[%c0_112, %c0_113] : memref<1x128xf32, #tpu.memory_space<vmem>>, vector<1x128xf32>
    %303 = vector.broadcast %302 : vector<1x128xf32> to vector<256x128xf32>
    %304 = arith.addf %301, %303 : vector<256x128xf32>
    %cst_114 = arith.constant 0.000000e+00 : f32
    %305 = vector.broadcast %cst_114 : f32 to vector<256x128xf32>
    %306 = arith.maximumf %304, %305 : vector<256x128xf32>
    %c0_115 = arith.constant 0 : index
    %c0_116 = arith.constant 0 : index
    %c0_117 = arith.constant 0 : index
    %307 = vector.load %arg14[%c0_115, %c0_116, %c0_117] : memref<9x1x128xf32, #tpu.memory_space<vmem>>, vector<9x1x128xf32>
    %cst_118 = arith.constant 0.000000e+00 : f32
    %308 = vector.broadcast %cst_118 : f32 to vector<256x128xf32>
    %c17_i32_119 = arith.constant 17 : i32
    %309 = tpu.dynamic_rotate %306 by %c17_i32_119 dim 0 : vector<256x128xf32>, i32 -> vector<256x128xf32>
    %cst_120 = arith.constant 0.000000e+00 : f32
    %310 = vector.shape_cast %23 : vector<256x1xi1> to vector<256x1xi1>
    %311 = vector.broadcast %310 : vector<256x1xi1> to vector<256x128xi1>
    %312 = vector.broadcast %cst_120 : f32 to vector<256x128xf32>
    %313 = arith.select %311, %309, %312 : vector<256x128xi1>, vector<256x128xf32>
    %314 = vector.extract_strided_slice %307 {offsets = [0, 0, 0], sizes = [1, 1, 128], strides = [1, 1, 1]} : vector<9x1x128xf32> to vector<1x1x128xf32>
    %315 = vector.shape_cast %314 : vector<1x1x128xf32> to vector<1x128xf32>
    %316 = vector.broadcast %315 : vector<1x128xf32> to vector<256x128xf32>
    %317 = arith.mulf %313, %316 : vector<256x128xf32>
    %318 = arith.addf %308, %317 : vector<256x128xf32>
    %c16_i32_121 = arith.constant 16 : i32
    %319 = tpu.dynamic_rotate %306 by %c16_i32_121 dim 0 : vector<256x128xf32>, i32 -> vector<256x128xf32>
    %cst_122 = arith.constant 0.000000e+00 : f32
    %320 = vector.shape_cast %42 : vector<256x1xi1> to vector<256x1xi1>
    %321 = vector.broadcast %320 : vector<256x1xi1> to vector<256x128xi1>
    %322 = vector.broadcast %cst_122 : f32 to vector<256x128xf32>
    %323 = arith.select %321, %319, %322 : vector<256x128xi1>, vector<256x128xf32>
    %324 = vector.extract_strided_slice %307 {offsets = [1, 0, 0], sizes = [1, 1, 128], strides = [1, 1, 1]} : vector<9x1x128xf32> to vector<1x1x128xf32>
    %325 = vector.shape_cast %324 : vector<1x1x128xf32> to vector<1x128xf32>
    %326 = vector.broadcast %325 : vector<1x128xf32> to vector<256x128xf32>
    %327 = arith.mulf %323, %326 : vector<256x128xf32>
    %328 = arith.addf %318, %327 : vector<256x128xf32>
    %c15_i32_123 = arith.constant 15 : i32
    %329 = tpu.dynamic_rotate %306 by %c15_i32_123 dim 0 : vector<256x128xf32>, i32 -> vector<256x128xf32>
    %cst_124 = arith.constant 0.000000e+00 : f32
    %330 = vector.shape_cast %61 : vector<256x1xi1> to vector<256x1xi1>
    %331 = vector.broadcast %330 : vector<256x1xi1> to vector<256x128xi1>
    %332 = vector.broadcast %cst_124 : f32 to vector<256x128xf32>
    %333 = arith.select %331, %329, %332 : vector<256x128xi1>, vector<256x128xf32>
    %334 = vector.extract_strided_slice %307 {offsets = [2, 0, 0], sizes = [1, 1, 128], strides = [1, 1, 1]} : vector<9x1x128xf32> to vector<1x1x128xf32>
    %335 = vector.shape_cast %334 : vector<1x1x128xf32> to vector<1x128xf32>
    %336 = vector.broadcast %335 : vector<1x128xf32> to vector<256x128xf32>
    %337 = arith.mulf %333, %336 : vector<256x128xf32>
    %338 = arith.addf %328, %337 : vector<256x128xf32>
    %c1_i32_125 = arith.constant 1 : i32
    %339 = tpu.dynamic_rotate %306 by %c1_i32_125 dim 0 : vector<256x128xf32>, i32 -> vector<256x128xf32>
    %cst_126 = arith.constant 0.000000e+00 : f32
    %340 = vector.shape_cast %80 : vector<256x1xi1> to vector<256x1xi1>
    %341 = vector.broadcast %340 : vector<256x1xi1> to vector<256x128xi1>
    %342 = vector.broadcast %cst_126 : f32 to vector<256x128xf32>
    %343 = arith.select %341, %339, %342 : vector<256x128xi1>, vector<256x128xf32>
    %344 = vector.extract_strided_slice %307 {offsets = [3, 0, 0], sizes = [1, 1, 128], strides = [1, 1, 1]} : vector<9x1x128xf32> to vector<1x1x128xf32>
    %345 = vector.shape_cast %344 : vector<1x1x128xf32> to vector<1x128xf32>
    %346 = vector.broadcast %345 : vector<1x128xf32> to vector<256x128xf32>
    %347 = arith.mulf %343, %346 : vector<256x128xf32>
    %348 = arith.addf %338, %347 : vector<256x128xf32>
    %349 = vector.extract_strided_slice %307 {offsets = [4, 0, 0], sizes = [1, 1, 128], strides = [1, 1, 1]} : vector<9x1x128xf32> to vector<1x1x128xf32>
    %350 = vector.shape_cast %349 : vector<1x1x128xf32> to vector<1x128xf32>
    %351 = vector.broadcast %350 : vector<1x128xf32> to vector<256x128xf32>
    %352 = arith.mulf %306, %351 : vector<256x128xf32>
    %353 = arith.addf %348, %352 : vector<256x128xf32>
    %c255_i32_127 = arith.constant 255 : i32
    %354 = tpu.dynamic_rotate %306 by %c255_i32_127 dim 0 : vector<256x128xf32>, i32 -> vector<256x128xf32>
    %cst_128 = arith.constant 0.000000e+00 : f32
    %355 = vector.shape_cast %99 : vector<256x1xi1> to vector<256x1xi1>
    %356 = vector.broadcast %355 : vector<256x1xi1> to vector<256x128xi1>
    %357 = vector.broadcast %cst_128 : f32 to vector<256x128xf32>
    %358 = arith.select %356, %354, %357 : vector<256x128xi1>, vector<256x128xf32>
    %359 = vector.extract_strided_slice %307 {offsets = [5, 0, 0], sizes = [1, 1, 128], strides = [1, 1, 1]} : vector<9x1x128xf32> to vector<1x1x128xf32>
    %360 = vector.shape_cast %359 : vector<1x1x128xf32> to vector<1x128xf32>
    %361 = vector.broadcast %360 : vector<1x128xf32> to vector<256x128xf32>
    %362 = arith.mulf %358, %361 : vector<256x128xf32>
    %363 = arith.addf %353, %362 : vector<256x128xf32>
    %c241_i32_129 = arith.constant 241 : i32
    %364 = tpu.dynamic_rotate %306 by %c241_i32_129 dim 0 : vector<256x128xf32>, i32 -> vector<256x128xf32>
    %cst_130 = arith.constant 0.000000e+00 : f32
    %365 = vector.shape_cast %118 : vector<256x1xi1> to vector<256x1xi1>
    %366 = vector.broadcast %365 : vector<256x1xi1> to vector<256x128xi1>
    %367 = vector.broadcast %cst_130 : f32 to vector<256x128xf32>
    %368 = arith.select %366, %364, %367 : vector<256x128xi1>, vector<256x128xf32>
    %369 = vector.extract_strided_slice %307 {offsets = [6, 0, 0], sizes = [1, 1, 128], strides = [1, 1, 1]} : vector<9x1x128xf32> to vector<1x1x128xf32>
    %370 = vector.shape_cast %369 : vector<1x1x128xf32> to vector<1x128xf32>
    %371 = vector.broadcast %370 : vector<1x128xf32> to vector<256x128xf32>
    %372 = arith.mulf %368, %371 : vector<256x128xf32>
    %373 = arith.addf %363, %372 : vector<256x128xf32>
    %c240_i32_131 = arith.constant 240 : i32
    %374 = tpu.dynamic_rotate %306 by %c240_i32_131 dim 0 : vector<256x128xf32>, i32 -> vector<256x128xf32>
    %cst_132 = arith.constant 0.000000e+00 : f32
    %375 = vector.shape_cast %137 : vector<256x1xi1> to vector<256x1xi1>
    %376 = vector.broadcast %375 : vector<256x1xi1> to vector<256x128xi1>
    %377 = vector.broadcast %cst_132 : f32 to vector<256x128xf32>
    %378 = arith.select %376, %374, %377 : vector<256x128xi1>, vector<256x128xf32>
    %379 = vector.extract_strided_slice %307 {offsets = [7, 0, 0], sizes = [1, 1, 128], strides = [1, 1, 1]} : vector<9x1x128xf32> to vector<1x1x128xf32>
    %380 = vector.shape_cast %379 : vector<1x1x128xf32> to vector<1x128xf32>
    %381 = vector.broadcast %380 : vector<1x128xf32> to vector<256x128xf32>
    %382 = arith.mulf %378, %381 : vector<256x128xf32>
    %383 = arith.addf %373, %382 : vector<256x128xf32>
    %c239_i32_133 = arith.constant 239 : i32
    %384 = tpu.dynamic_rotate %306 by %c239_i32_133 dim 0 : vector<256x128xf32>, i32 -> vector<256x128xf32>
    %cst_134 = arith.constant 0.000000e+00 : f32
    %385 = vector.shape_cast %156 : vector<256x1xi1> to vector<256x1xi1>
    %386 = vector.broadcast %385 : vector<256x1xi1> to vector<256x128xi1>
    %387 = vector.broadcast %cst_134 : f32 to vector<256x128xf32>
    %388 = arith.select %386, %384, %387 : vector<256x128xi1>, vector<256x128xf32>
    %389 = vector.extract_strided_slice %307 {offsets = [8, 0, 0], sizes = [1, 1, 128], strides = [1, 1, 1]} : vector<9x1x128xf32> to vector<1x1x128xf32>
    %390 = vector.shape_cast %389 : vector<1x1x128xf32> to vector<1x128xf32>
    %391 = vector.broadcast %390 : vector<1x128xf32> to vector<256x128xf32>
    %392 = arith.mulf %388, %391 : vector<256x128xf32>
    %393 = arith.addf %383, %392 : vector<256x128xf32>
    %c0_135 = arith.constant 0 : index
    %c0_136 = arith.constant 0 : index
    %394 = vector.load %arg15[%c0_135, %c0_136] : memref<1x128xf32, #tpu.memory_space<vmem>>, vector<1x128xf32>
    %395 = vector.broadcast %394 : vector<1x128xf32> to vector<256x128xf32>
    %396 = arith.addf %393, %395 : vector<256x128xf32>
    %397 = arith.truncf %396 : vector<256x128xf32> to vector<256x128xbf16>
    %c0_137 = arith.constant 0 : index
    %c0_138 = arith.constant 0 : index
    %398 = vector.load %arg16[%c0_137, %c0_138] : memref<128x128xbf16, #tpu.memory_space<vmem>>, vector<128x128xbf16>
    %cst_139 = arith.constant dense<0.000000e+00> : vector<256x128xf32>
    %399 = tpu.matmul %397, %398, %cst_139 {dimension_numbers = #tpu.dot_dimension_numbers<[1], [0], [0], [1], [0, 0, 1, 1], [], []>} : vector<256x128xbf16>, vector<128x128xbf16>, vector<256x128xf32> -> vector<256x128xf32>
    %c0_140 = arith.constant 0 : index
    %c0_141 = arith.constant 0 : index
    %400 = vector.load %arg17[%c0_140, %c0_141] : memref<1x128xf32, #tpu.memory_space<vmem>>, vector<1x128xf32>
    %401 = vector.broadcast %400 : vector<1x128xf32> to vector<256x128xf32>
    %402 = arith.addf %399, %401 : vector<256x128xf32>
    %c0_142 = arith.constant 0 : index
    %c0_143 = arith.constant 0 : index
    %c0_144 = arith.constant 0 : index
    %403 = vector.load %arg18[%c0_142, %c0_143, %c0_144] : memref<9x1x32xf32, #tpu.memory_space<vmem>>, vector<9x1x32xf32>
    %cst_145 = arith.constant 0.000000e+00 : f32
    %404 = vector.broadcast %cst_145 : f32 to vector<256x32xf32>
    %c17_i32_146 = arith.constant 17 : i32
    %405 = tpu.dynamic_rotate %158 by %c17_i32_146 dim 0 : vector<256x32xf32>, i32 -> vector<256x32xf32>
    %cst_147 = arith.constant 0.000000e+00 : f32
    %406 = vector.shape_cast %23 : vector<256x1xi1> to vector<256x1xi1>
    %407 = vector.broadcast %406 : vector<256x1xi1> to vector<256x32xi1>
    %408 = vector.broadcast %cst_147 : f32 to vector<256x32xf32>
    %409 = arith.select %407, %405, %408 : vector<256x32xi1>, vector<256x32xf32>
    %410 = vector.extract_strided_slice %403 {offsets = [0, 0, 0], sizes = [1, 1, 32], strides = [1, 1, 1]} : vector<9x1x32xf32> to vector<1x1x32xf32>
    %411 = vector.shape_cast %410 : vector<1x1x32xf32> to vector<1x32xf32>
    %412 = vector.broadcast %411 : vector<1x32xf32> to vector<256x32xf32>
    %413 = arith.mulf %409, %412 : vector<256x32xf32>
    %414 = arith.addf %404, %413 : vector<256x32xf32>
    %c16_i32_148 = arith.constant 16 : i32
    %415 = tpu.dynamic_rotate %158 by %c16_i32_148 dim 0 : vector<256x32xf32>, i32 -> vector<256x32xf32>
    %cst_149 = arith.constant 0.000000e+00 : f32
    %416 = vector.shape_cast %42 : vector<256x1xi1> to vector<256x1xi1>
    %417 = vector.broadcast %416 : vector<256x1xi1> to vector<256x32xi1>
    %418 = vector.broadcast %cst_149 : f32 to vector<256x32xf32>
    %419 = arith.select %417, %415, %418 : vector<256x32xi1>, vector<256x32xf32>
    %420 = vector.extract_strided_slice %403 {offsets = [1, 0, 0], sizes = [1, 1, 32], strides = [1, 1, 1]} : vector<9x1x32xf32> to vector<1x1x32xf32>
    %421 = vector.shape_cast %420 : vector<1x1x32xf32> to vector<1x32xf32>
    %422 = vector.broadcast %421 : vector<1x32xf32> to vector<256x32xf32>
    %423 = arith.mulf %419, %422 : vector<256x32xf32>
    %424 = arith.addf %414, %423 : vector<256x32xf32>
    %c15_i32_150 = arith.constant 15 : i32
    %425 = tpu.dynamic_rotate %158 by %c15_i32_150 dim 0 : vector<256x32xf32>, i32 -> vector<256x32xf32>
    %cst_151 = arith.constant 0.000000e+00 : f32
    %426 = vector.shape_cast %61 : vector<256x1xi1> to vector<256x1xi1>
    %427 = vector.broadcast %426 : vector<256x1xi1> to vector<256x32xi1>
    %428 = vector.broadcast %cst_151 : f32 to vector<256x32xf32>
    %429 = arith.select %427, %425, %428 : vector<256x32xi1>, vector<256x32xf32>
    %430 = vector.extract_strided_slice %403 {offsets = [2, 0, 0], sizes = [1, 1, 32], strides = [1, 1, 1]} : vector<9x1x32xf32> to vector<1x1x32xf32>
    %431 = vector.shape_cast %430 : vector<1x1x32xf32> to vector<1x32xf32>
    %432 = vector.broadcast %431 : vector<1x32xf32> to vector<256x32xf32>
    %433 = arith.mulf %429, %432 : vector<256x32xf32>
    %434 = arith.addf %424, %433 : vector<256x32xf32>
    %c1_i32_152 = arith.constant 1 : i32
    %435 = tpu.dynamic_rotate %158 by %c1_i32_152 dim 0 : vector<256x32xf32>, i32 -> vector<256x32xf32>
    %cst_153 = arith.constant 0.000000e+00 : f32
    %436 = vector.shape_cast %80 : vector<256x1xi1> to vector<256x1xi1>
    %437 = vector.broadcast %436 : vector<256x1xi1> to vector<256x32xi1>
    %438 = vector.broadcast %cst_153 : f32 to vector<256x32xf32>
    %439 = arith.select %437, %435, %438 : vector<256x32xi1>, vector<256x32xf32>
    %440 = vector.extract_strided_slice %403 {offsets = [3, 0, 0], sizes = [1, 1, 32], strides = [1, 1, 1]} : vector<9x1x32xf32> to vector<1x1x32xf32>
    %441 = vector.shape_cast %440 : vector<1x1x32xf32> to vector<1x32xf32>
    %442 = vector.broadcast %441 : vector<1x32xf32> to vector<256x32xf32>
    %443 = arith.mulf %439, %442 : vector<256x32xf32>
    %444 = arith.addf %434, %443 : vector<256x32xf32>
    %445 = vector.extract_strided_slice %403 {offsets = [4, 0, 0], sizes = [1, 1, 32], strides = [1, 1, 1]} : vector<9x1x32xf32> to vector<1x1x32xf32>
    %446 = vector.shape_cast %445 : vector<1x1x32xf32> to vector<1x32xf32>
    %447 = vector.broadcast %446 : vector<1x32xf32> to vector<256x32xf32>
    %448 = arith.mulf %158, %447 : vector<256x32xf32>
    %449 = arith.addf %444, %448 : vector<256x32xf32>
    %c255_i32_154 = arith.constant 255 : i32
    %450 = tpu.dynamic_rotate %158 by %c255_i32_154 dim 0 : vector<256x32xf32>, i32 -> vector<256x32xf32>
    %cst_155 = arith.constant 0.000000e+00 : f32
    %451 = vector.shape_cast %99 : vector<256x1xi1> to vector<256x1xi1>
    %452 = vector.broadcast %451 : vector<256x1xi1> to vector<256x32xi1>
    %453 = vector.broadcast %cst_155 : f32 to vector<256x32xf32>
    %454 = arith.select %452, %450, %453 : vector<256x32xi1>, vector<256x32xf32>
    %455 = vector.extract_strided_slice %403 {offsets = [5, 0, 0], sizes = [1, 1, 32], strides = [1, 1, 1]} : vector<9x1x32xf32> to vector<1x1x32xf32>
    %456 = vector.shape_cast %455 : vector<1x1x32xf32> to vector<1x32xf32>
    %457 = vector.broadcast %456 : vector<1x32xf32> to vector<256x32xf32>
    %458 = arith.mulf %454, %457 : vector<256x32xf32>
    %459 = arith.addf %449, %458 : vector<256x32xf32>
    %c241_i32_156 = arith.constant 241 : i32
    %460 = tpu.dynamic_rotate %158 by %c241_i32_156 dim 0 : vector<256x32xf32>, i32 -> vector<256x32xf32>
    %cst_157 = arith.constant 0.000000e+00 : f32
    %461 = vector.shape_cast %118 : vector<256x1xi1> to vector<256x1xi1>
    %462 = vector.broadcast %461 : vector<256x1xi1> to vector<256x32xi1>
    %463 = vector.broadcast %cst_157 : f32 to vector<256x32xf32>
    %464 = arith.select %462, %460, %463 : vector<256x32xi1>, vector<256x32xf32>
    %465 = vector.extract_strided_slice %403 {offsets = [6, 0, 0], sizes = [1, 1, 32], strides = [1, 1, 1]} : vector<9x1x32xf32> to vector<1x1x32xf32>
    %466 = vector.shape_cast %465 : vector<1x1x32xf32> to vector<1x32xf32>
    %467 = vector.broadcast %466 : vector<1x32xf32> to vector<256x32xf32>
    %468 = arith.mulf %464, %467 : vector<256x32xf32>
    %469 = arith.addf %459, %468 : vector<256x32xf32>
    %c240_i32_158 = arith.constant 240 : i32
    %470 = tpu.dynamic_rotate %158 by %c240_i32_158 dim 0 : vector<256x32xf32>, i32 -> vector<256x32xf32>
    %cst_159 = arith.constant 0.000000e+00 : f32
    %471 = vector.shape_cast %137 : vector<256x1xi1> to vector<256x1xi1>
    %472 = vector.broadcast %471 : vector<256x1xi1> to vector<256x32xi1>
    %473 = vector.broadcast %cst_159 : f32 to vector<256x32xf32>
    %474 = arith.select %472, %470, %473 : vector<256x32xi1>, vector<256x32xf32>
    %475 = vector.extract_strided_slice %403 {offsets = [7, 0, 0], sizes = [1, 1, 32], strides = [1, 1, 1]} : vector<9x1x32xf32> to vector<1x1x32xf32>
    %476 = vector.shape_cast %475 : vector<1x1x32xf32> to vector<1x32xf32>
    %477 = vector.broadcast %476 : vector<1x32xf32> to vector<256x32xf32>
    %478 = arith.mulf %474, %477 : vector<256x32xf32>
    %479 = arith.addf %469, %478 : vector<256x32xf32>
    %c239_i32_160 = arith.constant 239 : i32
    %480 = tpu.dynamic_rotate %158 by %c239_i32_160 dim 0 : vector<256x32xf32>, i32 -> vector<256x32xf32>
    %cst_161 = arith.constant 0.000000e+00 : f32
    %481 = vector.shape_cast %156 : vector<256x1xi1> to vector<256x1xi1>
    %482 = vector.broadcast %481 : vector<256x1xi1> to vector<256x32xi1>
    %483 = vector.broadcast %cst_161 : f32 to vector<256x32xf32>
    %484 = arith.select %482, %480, %483 : vector<256x32xi1>, vector<256x32xf32>
    %485 = vector.extract_strided_slice %403 {offsets = [8, 0, 0], sizes = [1, 1, 32], strides = [1, 1, 1]} : vector<9x1x32xf32> to vector<1x1x32xf32>
    %486 = vector.shape_cast %485 : vector<1x1x32xf32> to vector<1x32xf32>
    %487 = vector.broadcast %486 : vector<1x32xf32> to vector<256x32xf32>
    %488 = arith.mulf %484, %487 : vector<256x32xf32>
    %489 = arith.addf %479, %488 : vector<256x32xf32>
    %c0_162 = arith.constant 0 : index
    %c0_163 = arith.constant 0 : index
    %490 = vector.load %arg19[%c0_162, %c0_163] : memref<1x32xf32, #tpu.memory_space<vmem>>, vector<1x32xf32>
    %491 = vector.broadcast %490 : vector<1x32xf32> to vector<256x32xf32>
    %492 = arith.addf %489, %491 : vector<256x32xf32>
    %493 = arith.truncf %492 : vector<256x32xf32> to vector<256x32xbf16>
    %c0_164 = arith.constant 0 : index
    %c0_165 = arith.constant 0 : index
    %494 = vector.load %arg20[%c0_164, %c0_165] : memref<32x128xbf16, #tpu.memory_space<vmem>>, vector<32x128xbf16>
    %cst_166 = arith.constant dense<0.000000e+00> : vector<256x128xf32>
    %495 = tpu.matmul %493, %494, %cst_166 {dimension_numbers = #tpu.dot_dimension_numbers<[1], [0], [0], [1], [0, 0, 1, 1], [], []>} : vector<256x32xbf16>, vector<32x128xbf16>, vector<256x128xf32> -> vector<256x128xf32>
    %c0_167 = arith.constant 0 : index
    %c0_168 = arith.constant 0 : index
    %496 = vector.load %arg21[%c0_167, %c0_168] : memref<1x128xf32, #tpu.memory_space<vmem>>, vector<1x128xf32>
    %497 = vector.broadcast %496 : vector<1x128xf32> to vector<256x128xf32>
    %498 = arith.addf %495, %497 : vector<256x128xf32>
    %499 = arith.addf %402, %498 : vector<256x128xf32>
    %c0_169 = arith.constant 0 : index
    %c0_170 = arith.constant 0 : index
    %c0_171 = arith.constant 0 : index
    %500 = vector.load %arg22[%c0_169, %c0_170, %c0_171] : memref<1x256x128xf32, #tpu.memory_space<vmem>>, vector<1x256x128xf32>
    %501 = vector.shape_cast %500 : vector<1x256x128xf32> to vector<256x128xf32>
    %502 = vector.shape_cast %499 : vector<256x128xf32> to vector<1x256x128xf32>
    tpu.vector_store %arg22[%c0_169, %c0_170, %c0_171], %502 {strides = array<i32>} : memref<1x256x128xf32, #tpu.memory_space<vmem>>, vector<1x256x128xf32>,
    return
  }
  func.func @transform_0(%arg0: i32) -> (i32, i32, i32) {
    %c0_i32 = arith.constant 0 : i32
    %c0_i32_0 = arith.constant 0 : i32
    %c0_i32_1 = arith.constant 0 : i32
    return %arg0, %c0_i32, %c0_i32_0 : i32, i32, i32
  }
  func.func @transform_1(%arg0: i32) -> (i32, i32) {
    %c0_i32 = arith.constant 0 : i32
    %c0_i32_0 = arith.constant 0 : i32
    %c0_i32_1 = arith.constant 0 : i32
    return %c0_i32, %c0_i32_0 : i32, i32
  }
  func.func @transform_2(%arg0: i32) -> (i32, i32) {
    %c0_i32 = arith.constant 0 : i32
    %c0_i32_0 = arith.constant 0 : i32
    %c0_i32_1 = arith.constant 0 : i32
    return %c0_i32, %c0_i32_0 : i32, i32
  }
  func.func @transform_3(%arg0: i32) -> (i32, i32) {
    %c0_i32 = arith.constant 0 : i32
    %c0_i32_0 = arith.constant 0 : i32
    %c0_i32_1 = arith.constant 0 : i32
    return %c0_i32, %c0_i32_0 : i32, i32
  }
  func.func @transform_4(%arg0: i32) -> (i32, i32) {
    %c0_i32 = arith.constant 0 : i32
    %c0_i32_0 = arith.constant 0 : i32
    %c0_i32_1 = arith.constant 0 : i32
    return %c0_i32, %c0_i32_0 : i32, i32
  }
  func.func @transform_5(%arg0: i32) -> (i32, i32, i32) {
    %c0_i32 = arith.constant 0 : i32
    %c0_i32_0 = arith.constant 0 : i32
    %c0_i32_1 = arith.constant 0 : i32
    %c0_i32_2 = arith.constant 0 : i32
    return %c0_i32, %c0_i32_0, %c0_i32_1 : i32, i32, i32
  }
  func.func @transform_6(%arg0: i32) -> (i32, i32) {
    %c0_i32 = arith.constant 0 : i32
    %c0_i32_0 = arith.constant 0 : i32
    %c0_i32_1 = arith.constant 0 : i32
    return %c0_i32, %c0_i32_0 : i32, i32
  }
  func.func @transform_7(%arg0: i32) -> (i32, i32) {
    %c0_i32 = arith.constant 0 : i32
    %c0_i32_0 = arith.constant 0 : i32
    %c0_i32_1 = arith.constant 0 : i32
    return %c0_i32, %c0_i32_0 : i32, i32
  }
  func.func @transform_8(%arg0: i32) -> (i32, i32) {
    %c0_i32 = arith.constant 0 : i32
    %c0_i32_0 = arith.constant 0 : i32
    %c0_i32_1 = arith.constant 0 : i32
    return %c0_i32, %c0_i32_0 : i32, i32
  }
  func.func @transform_9(%arg0: i32) -> (i32, i32) {
    %c0_i32 = arith.constant 0 : i32
    %c0_i32_0 = arith.constant 0 : i32
    %c0_i32_1 = arith.constant 0 : i32
    return %c0_i32, %c0_i32_0 : i32, i32
  }
  func.func @transform_10(%arg0: i32) -> (i32, i32) {
    %c0_i32 = arith.constant 0 : i32
    %c0_i32_0 = arith.constant 0 : i32
    %c0_i32_1 = arith.constant 0 : i32
    return %c0_i32, %c0_i32_0 : i32, i32
  }
  func.func @transform_11(%arg0: i32) -> (i32, i32) {
    %c0_i32 = arith.constant 0 : i32
    %c0_i32_0 = arith.constant 0 : i32
    %c0_i32_1 = arith.constant 0 : i32
    return %c0_i32, %c0_i32_0 : i32, i32
  }
  func.func @transform_12(%arg0: i32) -> (i32, i32) {
    %c0_i32 = arith.constant 0 : i32
    %c0_i32_0 = arith.constant 0 : i32
    %c0_i32_1 = arith.constant 0 : i32
    return %c0_i32, %c0_i32_0 : i32, i32
  }
  func.func @transform_13(%arg0: i32) -> (i32, i32, i32) {
    %c0_i32 = arith.constant 0 : i32
    %c0_i32_0 = arith.constant 0 : i32
    %c0_i32_1 = arith.constant 0 : i32
    %c0_i32_2 = arith.constant 0 : i32
    return %c0_i32, %c0_i32_0, %c0_i32_1 : i32, i32, i32
  }
  func.func @transform_14(%arg0: i32) -> (i32, i32) {
    %c0_i32 = arith.constant 0 : i32
    %c0_i32_0 = arith.constant 0 : i32
    %c0_i32_1 = arith.constant 0 : i32
    return %c0_i32, %c0_i32_0 : i32, i32
  }
  func.func @transform_15(%arg0: i32) -> (i32, i32) {
    %c0_i32 = arith.constant 0 : i32
    %c0_i32_0 = arith.constant 0 : i32
    %c0_i32_1 = arith.constant 0 : i32
    return %c0_i32, %c0_i32_0 : i32, i32
  }
  func.func @transform_16(%arg0: i32) -> (i32, i32) {
    %c0_i32 = arith.constant 0 : i32
    %c0_i32_0 = arith.constant 0 : i32
    %c0_i32_1 = arith.constant 0 : i32
    return %c0_i32, %c0_i32_0 : i32, i32
  }
  func.func @transform_17(%arg0: i32) -> (i32, i32, i32) {
    %c0_i32 = arith.constant 0 : i32
    %c0_i32_0 = arith.constant 0 : i32
    %c0_i32_1 = arith.constant 0 : i32
    %c0_i32_2 = arith.constant 0 : i32
    return %c0_i32, %c0_i32_0, %c0_i32_1 : i32, i32, i32
  }
  func.func @transform_18(%arg0: i32) -> (i32, i32) {
    %c0_i32 = arith.constant 0 : i32
    %c0_i32_0 = arith.constant 0 : i32
    %c0_i32_1 = arith.constant 0 : i32
    return %c0_i32, %c0_i32_0 : i32, i32
  }
  func.func @transform_19(%arg0: i32) -> (i32, i32) {
    %c0_i32 = arith.constant 0 : i32
    %c0_i32_0 = arith.constant 0 : i32
    %c0_i32_1 = arith.constant 0 : i32
    return %c0_i32, %c0_i32_0 : i32, i32
  }
  func.func @transform_20(%arg0: i32) -> (i32, i32) {
    %c0_i32 = arith.constant 0 : i32
    %c0_i32_0 = arith.constant 0 : i32
    %c0_i32_1 = arith.constant 0 : i32
    return %c0_i32, %c0_i32_0 : i32, i32
  }
  func.func @transform_21(%arg0: i32) -> (i32, i32, i32) {
    %c0_i32 = arith.constant 0 : i32
    %c0_i32_0 = arith.constant 0 : i32
    %c0_i32_1 = arith.constant 0 : i32
    return %arg0, %c0_i32, %c0_i32_0 : i32, i32, i32
  }
}

</mosaic_0001>

<llo_original>
// kernel: depthwise_separable_residual_block.1
$region0: #{depthwise_separable_residual_block.1}
  #allocation0 [shape = 'u32[]', space=smem, size = 0x4, offset = 0x4, fixed_abs, tag = 'smem constant byte address 0x4 - core index']
  #allocation1 [shape = 'u32[144,128]{1,0:T(1,128)}', space=vmem, size = 0x12000, scoped, tag = 'internal scratch']
  %s0 = inlined_call_operand.vmem [shape: f32[2,256,32], index: 0, kind: input, shape index: {}]
  %s1 = inlined_call_operand.vmem [shape: f32[32,32], index: 1, kind: input, shape index: {}]
  %s2 = inlined_call_operand.vmem [shape: f32[32,32], index: 2, kind: input, shape index: {}]
  %s3 = inlined_call_operand.vmem [shape: f32[1,32], index: 3, kind: input, shape index: {}]
  %s4 = inlined_call_operand.vmem [shape: f32[1,32], index: 4, kind: input, shape index: {}]
  %s5 = inlined_call_operand.vmem [shape: f32[9,1,32], index: 5, kind: input, shape index: {}]
  %s6 = inlined_call_operand.vmem [shape: f32[1,32], index: 6, kind: input, shape index: {}]
  %s7 = inlined_call_operand.vmem [shape: bf16[32,128], index: 7, kind: input, shape index: {}]
  %s8 = inlined_call_operand.vmem [shape: f32[1,128], index: 8, kind: input, shape index: {}]
  %s9 = inlined_call_operand.vmem [shape: f32[128,32], index: 9, kind: input, shape index: {}]
  %s10 = inlined_call_operand.vmem [shape: f32[32,128], index: 10, kind: input, shape index: {}]
  %s11 = inlined_call_operand.vmem [shape: f32[1,128], index: 11, kind: input, shape index: {}]
  %s12 = inlined_call_operand.vmem [shape: f32[1,128], index: 12, kind: input, shape index: {}]
  %s13 = inlined_call_operand.vmem [shape: f32[9,1,128], index: 13, kind: input, shape index: {}]
  %s14 = inlined_call_operand.vmem [shape: f32[1,128], index: 14, kind: input, shape index: {}]
  %s15 = inlined_call_operand.vmem [shape: bf16[128,128], index: 15, kind: input, shape index: {}]
  %s16 = inlined_call_operand.vmem [shape: f32[1,128], index: 16, kind: input, shape index: {}]
  %s17 = inlined_call_operand.vmem [shape: f32[9,1,32], index: 17, kind: input, shape index: {}]
  %s18 = inlined_call_operand.vmem [shape: f32[1,32], index: 18, kind: input, shape index: {}]
  %s19 = inlined_call_operand.vmem [shape: bf16[32,128], index: 19, kind: input, shape index: {}]
  %s20 = inlined_call_operand.vmem [shape: f32[1,128], index: 20, kind: input, shape index: {}]
  %s21 = inlined_call_operand.hbm [shape: f32[2,256,128], index: 21, kind: output, shape index: {}]
  %s22 = sld [smem:[#allocation0]]
  $region117: #{depthwise_separable_residual_block.1} parent=0
    _
  %s24 = ssub.s32 1, %s22
  %s25 = scalar_select 0, %s24, %s22
  $region1: #{depthwise_separable_residual_block.1} parent=0
    #allocation2 [shape = 'u8[262144]{0}', space=vmem, size = 0x40000, scoped, tag = 'output window, operand 0']
    #allocation3 [shape = 's32[2]{0}', space=sflag, size = 0x8, scoped, tag = 'scoped memory for depthwise_separable_residual_block.1']
    %26 = vsyncpa [#allocation3], 0
    %s27 = scalar_lea.sflag [#allocation3], 1
    %28 = vsyncpa %s27, 0
    loop: start=0, step=1, limit=4
    $region2: #{depthwise_separable_residual_block.1} parent=1 // loop_pre_header
      _
    $region3: #{depthwise_separable_residual_block.1} parent=1 // loop_header
      %s30 = sphi 0, %s34
      %p31 = scmp.ge.s32.totalorder %s30, 4
      %s40 = sphi 0, %s42
      %s43 = sphi 0, %s40
      %s44 = sphi 0, %s43
      %s60 = sphi 0, %s44
      %s64 = sphi 0, %s64
      %s66 = sphi 0, %s64
      %s67 = sphi 0, %s66
      %s81 = sphi 0, %s67
      %s85 = sphi 0, %s85
      %s87 = sphi 0, %s85
      %s88 = sphi 0, %s87
      %s102 = sphi 0, %s88
      %s106 = sphi 0, %s106
      %s108 = sphi 0, %s106
      %s109 = sphi 0, %s108
      %s123 = sphi 0, %s109
      %s127 = sphi 0, %s127
      %s129 = sphi 0, %s127
      %s130 = sphi 0, %s129
      %s144 = sphi 0, %s130
      %s148 = sphi 0, %s148
      %s150 = sphi 0, %s148
      %s151 = sphi 0, %s150
      %s165 = sphi 0, %s151
      %s169 = sphi 0, %s169
      %s171 = sphi 0, %s169
      %s172 = sphi 0, %s171
      %s186 = sphi 0, %s172
      %s190 = sphi 0, %s190
      %s192 = sphi 0, %s190
      %s193 = sphi 0, %s192
      %s207 = sphi 0, %s193
      %s211 = sphi 0, %s211
      %s213 = sphi 0, %s211
      %s214 = sphi 0, %s213
      %s228 = sphi 0, %s214
      %s232 = sphi 0, %s232
      %s234 = sphi 0, %s232
      %s235 = sphi 0, %s234
      %s249 = sphi 0, %s235
      %s253 = sphi 0, %s253
      %s255 = sphi 0, %s253
      %s256 = sphi 0, %s255
      %s270 = sphi 0, %s256
      %s274 = sphi 0, %s274
      %s276 = sphi 0, %s274
      %s277 = sphi 0, %s276
      %s291 = sphi 0, %s277
      %s295 = sphi 0, %s295
      %s297 = sphi 0, %s295
      %s298 = sphi 0, %s297
      %s312 = sphi 0, %s298
      %s316 = sphi 0, %s316
      %s318 = sphi 0, %s316
      %s319 = sphi 0, %s318
      %s333 = sphi 0, %s319
      %s337 = sphi 0, %s337
      %s339 = sphi 0, %s337
      %s340 = sphi 0, %s339
      %s354 = sphi 0, %s340
      %s358 = sphi 0, %s358
      %s360 = sphi 0, %s358
      %s361 = sphi 0, %s360
      %s375 = sphi 0, %s361
      %s379 = sphi 0, %s379
      %s381 = sphi 0, %s379
      %s382 = sphi 0, %s381
      %s396 = sphi 0, %s382
      %s400 = sphi 0, %s400
      %s402 = sphi 0, %s400
      %s403 = sphi 0, %s402
      %s417 = sphi 0, %s403
      %s421 = sphi 0, %s421
      %s423 = sphi 0, %s421
      %s424 = sphi 0, %s423
      %s438 = sphi 0, %s424
      %s442 = sphi 0, %s442
      %s444 = sphi 0, %s442
      %s445 = sphi 0, %s444
      %s459 = sphi 0, %s445
      %s463 = sphi 0, %s463
      %s465 = sphi 0, %s463
      %s466 = sphi 0, %s465
      %s480 = sphi 0, %s466
      %s486 = sphi 0, %s488
      %s489 = sphi 0, %s486
      %s490 = sphi 0, %s489
      %s506 = sphi 0, %s490
    $region4: #{depthwise_separable_residual_block.1} parent=1 // loop_header_branch
      %33 = sbr.rel (%p31) target = $region8
    $region5: #{depthwise_separable_residual_block.1} parent=1 // loop_body
      %s35 = ssub.s32 %s30, 1
      %s36 = ssub.s32 %s30, 2
      %s37 = sadd.s32 %s30, 1
      %s38 = ssub.s32 %s30, %s37
      %p39 = scmp.eq.s32.totalorder %s38, 0
      %s41 = sadd.s32 %s40, 1
      %s42 = scalar_select %p39, %s40, %s41
      %p45 = pneg %p39
      %p46 = scmp.eq.s32.totalorder %s30, 1
      %p47 = por %p45, %p46
      %p48 = scmp.ne.s32.totalorder %s40, %s43
      %p49 = scmp.eq.s32.totalorder %s30, 0
      %p50 = por %p48, %p49
      %p51 = scmp.ne.s32.totalorder %s40, %s43
      %p52 = scmp.eq.s32.totalorder %s35, 1
      %p53 = por %p51, %p52
      %p54 = scmp.ne.s32.totalorder %s43, %s44
      %p55 = scmp.eq.s32.totalorder %s35, 0
      %p56 = por %p54, %p55
      %p57 = scmp.ne.s32.totalorder %s43, %s44
      %p58 = scmp.eq.s32.totalorder %s36, 1
      %p59 = por %p57, %p58
      %p61 = scmp.ne.s32.totalorder %s44, %s60
      %p62 = scmp.eq.s32.totalorder %s36, 0
      %p63 = por %p61, %p62
      %s65 = sadd.s32 %s64, 1
      %p68 = scmp.eq.s32.totalorder %s30, 1
      %p69 = scmp.ne.s32.totalorder %s64, %s66
      %p70 = scmp.eq.s32.totalorder %s30, 0
      %p71 = por %p69, %p70
      %p72 = scmp.ne.s32.totalorder %s64, %s66
      %p73 = scmp.eq.s32.totalorder %s35, 1
      %p74 = por %p72, %p73
      %p75 = scmp.ne.s32.totalorder %s66, %s67
      %p76 = scmp.eq.s32.totalorder %s35, 0
      %p77 = por %p75, %p76
      %p78 = scmp.ne.s32.totalorder %s66, %s67
      %p79 = scmp.eq.s32.totalorder %s36, 1
      %p80 = por %p78, %p79
      %p82 = scmp.ne.s32.totalorder %s67, %s81
      %p83 = scmp.eq.s32.totalorder %s36, 0
      %p84 = por %p82, %p83
      %s86 = sadd.s32 %s85, 1
      %p89 = scmp.eq.s32.totalorder %s30, 1
      %p90 = scmp.ne.s32.totalorder %s85, %s87
      %p91 = scmp.eq.s32.totalorder %s30, 0
      %p92 = por %p90, %p91
      %p93 = scmp.ne.s32.totalorder %s85, %s87
      %p94 = scmp.eq.s32.totalorder %s35, 1
      %p95 = por %p93, %p94
      %p96 = scmp.ne.s32.totalorder %s87, %s88
      %p97 = scmp.eq.s32.totalorder %s35, 0
      %p98 = por %p96, %p97
      %p99 = scmp.ne.s32.totalorder %s87, %s88
      %p100 = scmp.eq.s32.totalorder %s36, 1
      %p101 = por %p99, %p100
      %p103 = scmp.ne.s32.totalorder %s88, %s102
      %p104 = scmp.eq.s32.totalorder %s36, 0
      %p105 = por %p103, %p104
      %s107 = sadd.s32 %s106, 1
      %p110 = scmp.eq.s32.totalorder %s30, 1
      %p111 = scmp.ne.s32.totalorder %s106, %s108
      %p112 = scmp.eq.s32.totalorder %s30, 0
      %p113 = por %p111, %p112
      %p114 = scmp.ne.s32.totalorder %s106, %s108
      %p115 = scmp.eq.s32.totalorder %s35, 1
      %p116 = por %p114, %p115
      %p117 = scmp.ne.s32.totalorder %s108, %s109
      %p118 = scmp.eq.s32.totalorder %s35, 0
      %p119 = por %p117, %p118
      %p120 = scmp.ne.s32.totalorder %s108, %s109
      %p121 = scmp.eq.s32.totalorder %s36, 1
      %p122 = por %p120, %p121
      %p124 = scmp.ne.s32.totalorder %s109, %s123
      %p125 = scmp.eq.s32.totalorder %s36, 0
      %p126 = por %p124, %p125
      %s128 = sadd.s32 %s127, 1
      %p131 = scmp.eq.s32.totalorder %s30, 1
      %p132 = scmp.ne.s32.totalorder %s127, %s129
      %p133 = scmp.eq.s32.totalorder %s30, 0
      %p134 = por %p132, %p133
      %p135 = scmp.ne.s32.totalorder %s127, %s129
      %p136 = scmp.eq.s32.totalorder %s35, 1
      %p137 = por %p135, %p136
      %p138 = scmp.ne.s32.totalorder %s129, %s130
      %p139 = scmp.eq.s32.totalorder %s35, 0
      %p140 = por %p138, %p139
      %p141 = scmp.ne.s32.totalorder %s129, %s130
      %p142 = scmp.eq.s32.totalorder %s36, 1
      %p143 = por %p141, %p142
      %p145 = scmp.ne.s32.totalorder %s130, %s144
      %p146 = scmp.eq.s32.totalorder %s36, 0
      %p147 = por %p145, %p146
      %s149 = sadd.s32 %s148, 1
      %p152 = scmp.eq.s32.totalorder %s30, 1
      %p153 = scmp.ne.s32.totalorder %s148, %s150
      %p154 = scmp.eq.s32.totalorder %s30, 0
      %p155 = por %p153, %p154
      %p156 = scmp.ne.s32.totalorder %s148, %s150
      %p157 = scmp.eq.s32.totalorder %s35, 1
      %p158 = por %p156, %p157
      %p159 = scmp.ne.s32.totalorder %s150, %s151
      %p160 = scmp.eq.s32.totalorder %s35, 0
      %p161 = por %p159, %p160
      %p162 = scmp.ne.s32.totalorder %s150, %s151
      %p163 = scmp.eq.s32.totalorder %s36, 1
      %p164 = por %p162, %p163
      %p166 = scmp.ne.s32.totalorder %s151, %s165
      %p167 = scmp.eq.s32.totalorder %s36, 0
      %p168 = por %p166, %p167
      %s170 = sadd.s32 %s169, 1
      %p173 = scmp.eq.s32.totalorder %s30, 1
      %p174 = scmp.ne.s32.totalorder %s169, %s171
      %p175 = scmp.eq.s32.totalorder %s30, 0
      %p176 = por %p174, %p175
      %p177 = scmp.ne.s32.totalorder %s169, %s171
      %p178 = scmp.eq.s32.totalorder %s35, 1
      %p179 = por %p177, %p178
      %p180 = scmp.ne.s32.totalorder %s171, %s172
      %p181 = scmp.eq.s32.totalorder %s35, 0
      %p182 = por %p180, %p181
      %p183 = scmp.ne.s32.totalorder %s171, %s172
      %p184 = scmp.eq.s32.totalorder %s36, 1
      %p185 = por %p183, %p184
      %p187 = scmp.ne.s32.totalorder %s172, %s186
      %p188 = scmp.eq.s32.totalorder %s36, 0
      %p189 = por %p187, %p188
      %s191 = sadd.s32 %s190, 1
      %p194 = scmp.eq.s32.totalorder %s30, 1
      %p195 = scmp.ne.s32.totalorder %s190, %s192
      %p196 = scmp.eq.s32.totalorder %s30, 0
      %p197 = por %p195, %p196
      %p198 = scmp.ne.s32.totalorder %s190, %s192
      %p199 = scmp.eq.s32.totalorder %s35, 1
      %p200 = por %p198, %p199
      %p201 = scmp.ne.s32.totalorder %s192, %s193
      %p202 = scmp.eq.s32.totalorder %s35, 0
      %p203 = por %p201, %p202
      %p204 = scmp.ne.s32.totalorder %s192, %s193
      %p205 = scmp.eq.s32.totalorder %s36, 1
      %p206 = por %p204, %p205
      %p208 = scmp.ne.s32.totalorder %s193, %s207
      %p209 = scmp.eq.s32.totalorder %s36, 0
      %p210 = por %p208, %p209
      %s212 = sadd.s32 %s211, 1
      %p215 = scmp.eq.s32.totalorder %s30, 1
      %p216 = scmp.ne.s32.totalorder %s211, %s213
      %p217 = scmp.eq.s32.totalorder %s30, 0
      %p218 = por %p216, %p217
      %p219 = scmp.ne.s32.totalorder %s211, %s213
      %p220 = scmp.eq.s32.totalorder %s35, 1
      %p221 = por %p219, %p220
      %p222 = scmp.ne.s32.totalorder %s213, %s214
      %p223 = scmp.eq.s32.totalorder %s35, 0
      %p224 = por %p222, %p223
      %p225 = scmp.ne.s32.totalorder %s213, %s214
      %p226 = scmp.eq.s32.totalorder %s36, 1
      %p227 = por %p225, %p226
      %p229 = scmp.ne.s32.totalorder %s214, %s228
      %p230 = scmp.eq.s32.totalorder %s36, 0
      %p231 = por %p229, %p230
      %s233 = sadd.s32 %s232, 1
      %p236 = scmp.eq.s32.totalorder %s30, 1
      %p237 = scmp.ne.s32.totalorder %s232, %s234
      %p238 = scmp.eq.s32.totalorder %s30, 0
      %p239 = por %p237, %p238
      %p240 = scmp.ne.s32.totalorder %s232, %s234
      %p241 = scmp.eq.s32.totalorder %s35, 1
      %p242 = por %p240, %p241
      %p243 = scmp.ne.s32.totalorder %s234, %s235
      %p244 = scmp.eq.s32.totalorder %s35, 0
      %p245 = por %p243, %p244
      %p246 = scmp.ne.s32.totalorder %s234, %s235
      %p247 = scmp.eq.s32.totalorder %s36, 1
      %p248 = por %p246, %p247
      %p250 = scmp.ne.s32.totalorder %s235, %s249
      %p251 = scmp.eq.s32.totalorder %s36, 0
      %p252 = por %p250, %p251
      %s254 = sadd.s32 %s253, 1
      %p257 = scmp.eq.s32.totalorder %s30, 1
      %p258 = scmp.ne.s32.totalorder %s253, %s255
      %p259 = scmp.eq.s32.totalorder %s30, 0
      %p260 = por %p258, %p259
      %p261 = scmp.ne.s32.totalorder %s253, %s255
      %p262 = scmp.eq.s32.totalorder %s35, 1
      %p263 = por %p261, %p262
      %p264 = scmp.ne.s32.totalorder %s255, %s256
      %p265 = scmp.eq.s32.totalorder %s35, 0
      %p266 = por %p264, %p265
      %p267 = scmp.ne.s32.totalorder %s255, %s256
      %p268 = scmp.eq.s32.totalorder %s36, 1
      %p269 = por %p267, %p268
      %p271 = scmp.ne.s32.totalorder %s256, %s270
      %p272 = scmp.eq.s32.totalorder %s36, 0
      %p273 = por %p271, %p272
      %s275 = sadd.s32 %s274, 1
      %p278 = scmp.eq.s32.totalorder %s30, 1
      %p279 = scmp.ne.s32.totalorder %s274, %s276
      %p280 = scmp.eq.s32.totalorder %s30, 0
      %p281 = por %p279, %p280
      %p282 = scmp.ne.s32.totalorder %s274, %s276
      %p283 = scmp.eq.s32.totalorder %s35, 1
      %p284 = por %p282, %p283
      %p285 = scmp.ne.s32.totalorder %s276, %s277
      %p286 = scmp.eq.s32.totalorder %s35, 0
      %p287 = por %p285, %p286
      %p288 = scmp.ne.s32.totalorder %s276, %s277
      %p289 = scmp.eq.s32.totalorder %s36, 1
      %p290 = por %p288, %p289
      %p292 = scmp.ne.s32.totalorder %s277, %s291
      %p293 = scmp.eq.s32.totalorder %s36, 0
      %p294 = por %p292, %p293
      %s296 = sadd.s32 %s295, 1
      %p299 = scmp.eq.s32.totalorder %s30, 1
      %p300 = scmp.ne.s32.totalorder %s295, %s297
      %p301 = scmp.eq.s32.totalorder %s30, 0
      %p302 = por %p300, %p301
      %p303 = scmp.ne.s32.totalorder %s295, %s297
      %p304 = scmp.eq.s32.totalorder %s35, 1
      %p305 = por %p303, %p304
      %p306 = scmp.ne.s32.totalorder %s297, %s298
      %p307 = scmp.eq.s32.totalorder %s35, 0
      %p308 = por %p306, %p307
      %p309 = scmp.ne.s32.totalorder %s297, %s298
      %p310 = scmp.eq.s32.totalorder %s36, 1
      %p311 = por %p309, %p310
      %p313 = scmp.ne.s32.totalorder %s298, %s312
      %p314 = scmp.eq.s32.totalorder %s36, 0
      %p315 = por %p313, %p314
      %s317 = sadd.s32 %s316, 1
      %p320 = scmp.eq.s32.totalorder %s30, 1
      %p321 = scmp.ne.s32.totalorder %s316, %s318
      %p322 = scmp.eq.s32.totalorder %s30, 0
      %p323 = por %p321, %p322
      %p324 = scmp.ne.s32.totalorder %s316, %s318
      %p325 = scmp.eq.s32.totalorder %s35, 1
      %p326 = por %p324, %p325
      %p327 = scmp.ne.s32.totalorder %s318, %s319
      %p328 = scmp.eq.s32.totalorder %s35, 0
      %p329 = por %p327, %p328
      %p330 = scmp.ne.s32.totalorder %s318, %s319
      %p331 = scmp.eq.s32.totalorder %s36, 1
      %p332 = por %p330, %p331
      %p334 = scmp.ne.s32.totalorder %s319, %s333
      %p335 = scmp.eq.s32.totalorder %s36, 0
      %p336 = por %p334, %p335
      %s338 = sadd.s32 %s337, 1
      %p341 = scmp.eq.s32.totalorder %s30, 1
      %p342 = scmp.ne.s32.totalorder %s337, %s339
      %p343 = scmp.eq.s32.totalorder %s30, 0
      %p344 = por %p342, %p343
      %p345 = scmp.ne.s32.totalorder %s337, %s339
      %p346 = scmp.eq.s32.totalorder %s35, 1
      %p347 = por %p345, %p346
      %p348 = scmp.ne.s32.totalorder %s339, %s340
      %p349 = scmp.eq.s32.totalorder %s35, 0
      %p350 = por %p348, %p349
      %p351 = scmp.ne.s32.totalorder %s339, %s340
      %p352 = scmp.eq.s32.totalorder %s36, 1
      %p353 = por %p351, %p352
      %p355 = scmp.ne.s32.totalorder %s340, %s354
      %p356 = scmp.eq.s32.totalorder %s36, 0
      %p357 = por %p355, %p356
      %s359 = sadd.s32 %s358, 1
      %p362 = scmp.eq.s32.totalorder %s30, 1
      %p363 = scmp.ne.s32.totalorder %s358, %s360
      %p364 = scmp.eq.s32.totalorder %s30, 0
      %p365 = por %p363, %p364
      %p366 = scmp.ne.s32.totalorder %s358, %s360
      %p367 = scmp.eq.s32.totalorder %s35, 1
      %p368 = por %p366, %p367
      %p369 = scmp.ne.s32.totalorder %s360, %s361
      %p370 = scmp.eq.s32.totalorder %s35, 0
      %p371 = por %p369, %p370
      %p372 = scmp.ne.s32.totalorder %s360, %s361
      %p373 = scmp.eq.s32.totalorder %s36, 1
      %p374 = por %p372, %p373
      %p376 = scmp.ne.s32.totalorder %s361, %s375
      %p377 = scmp.eq.s32.totalorder %s36, 0
      %p378 = por %p376, %p377
      %s380 = sadd.s32 %s379, 1
      %p383 = scmp.eq.s32.totalorder %s30, 1
      %p384 = scmp.ne.s32.totalorder %s379, %s381
      %p385 = scmp.eq.s32.totalorder %s30, 0
      %p386 = por %p384, %p385
      %p387 = scmp.ne.s32.totalorder %s379, %s381
      %p388 = scmp.eq.s32.totalorder %s35, 1
      %p389 = por %p387, %p388
      %p390 = scmp.ne.s32.totalorder %s381, %s382
      %p391 = scmp.eq.s32.totalorder %s35, 0
      %p392 = por %p390, %p391
      %p393 = scmp.ne.s32.totalorder %s381, %s382
      %p394 = scmp.eq.s32.totalorder %s36, 1
      %p395 = por %p393, %p394
      %p397 = scmp.ne.s32.totalorder %s382, %s396
      %p398 = scmp.eq.s32.totalorder %s36, 0
      %p399 = por %p397, %p398
      %s401 = sadd.s32 %s400, 1
      %p404 = scmp.eq.s32.totalorder %s30, 1
      %p405 = scmp.ne.s32.totalorder %s400, %s402
      %p406 = scmp.eq.s32.totalorder %s30, 0
      %p407 = por %p405, %p406
      %p408 = scmp.ne.s32.totalorder %s400, %s402
      %p409 = scmp.eq.s32.totalorder %s35, 1
      %p410 = por %p408, %p409
      %p411 = scmp.ne.s32.totalorder %s402, %s403
      %p412 = scmp.eq.s32.totalorder %s35, 0
      %p413 = por %p411, %p412
      %p414 = scmp.ne.s32.totalorder %s402, %s403
      %p415 = scmp.eq.s32.totalorder %s36, 1
      %p416 = por %p414, %p415
      %p418 = scmp.ne.s32.totalorder %s403, %s417
      %p419 = scmp.eq.s32.totalorder %s36, 0
      %p420 = por %p418, %p419
      %s422 = sadd.s32 %s421, 1
      %p425 = scmp.eq.s32.totalorder %s30, 1
      %p426 = scmp.ne.s32.totalorder %s421, %s423
      %p427 = scmp.eq.s32.totalorder %s30, 0
      %p428 = por %p426, %p427
      %p429 = scmp.ne.s32.totalorder %s421, %s423
      %p430 = scmp.eq.s32.totalorder %s35, 1
      %p431 = por %p429, %p430
      %p432 = scmp.ne.s32.totalorder %s423, %s424
      %p433 = scmp.eq.s32.totalorder %s35, 0
      %p434 = por %p432, %p433
      %p435 = scmp.ne.s32.totalorder %s423, %s424
      %p436 = scmp.eq.s32.totalorder %s36, 1
      %p437 = por %p435, %p436
      %p439 = scmp.ne.s32.totalorder %s424, %s438
      %p440 = scmp.eq.s32.totalorder %s36, 0
      %p441 = por %p439, %p440
      %s443 = sadd.s32 %s442, 1
      %p446 = scmp.eq.s32.totalorder %s30, 1
      %p447 = scmp.ne.s32.totalorder %s442, %s444
      %p448 = scmp.eq.s32.totalorder %s30, 0
      %p449 = por %p447, %p448
      %p450 = scmp.ne.s32.totalorder %s442, %s444
      %p451 = scmp.eq.s32.totalorder %s35, 1
      %p452 = por %p450, %p451
      %p453 = scmp.ne.s32.totalorder %s444, %s445
      %p454 = scmp.eq.s32.totalorder %s35, 0
      %p455 = por %p453, %p454
      %p456 = scmp.ne.s32.totalorder %s444, %s445
      %p457 = scmp.eq.s32.totalorder %s36, 1
      %p458 = por %p456, %p457
      %p460 = scmp.ne.s32.totalorder %s445, %s459
      %p461 = scmp.eq.s32.totalorder %s36, 0
      %p462 = por %p460, %p461
      %s464 = sadd.s32 %s463, 1
      %p467 = scmp.eq.s32.totalorder %s30, 1
      %p468 = scmp.ne.s32.totalorder %s463, %s465
      %p469 = scmp.eq.s32.totalorder %s30, 0
      %p470 = por %p468, %p469
      %p471 = scmp.ne.s32.totalorder %s463, %s465
      %p472 = scmp.eq.s32.totalorder %s35, 1
      %p473 = por %p471, %p472
      %p474 = scmp.ne.s32.totalorder %s465, %s466
      %p475 = scmp.eq.s32.totalorder %s35, 0
      %p476 = por %p474, %p475
      %p477 = scmp.ne.s32.totalorder %s465, %s466
      %p478 = scmp.eq.s32.totalorder %s36, 1
      %p479 = por %p477, %p478
      %p481 = scmp.ne.s32.totalorder %s466, %s480
      %p482 = scmp.eq.s32.totalorder %s36, 0
      %p483 = por %p481, %p482
      %s484 = ssub.s32 %s30, %s37
      %p485 = scmp.eq.s32.totalorder %s484, 0
      %s487 = sadd.s32 %s486, 1
      %s488 = scalar_select %p485, %s486, %s487
      %p491 = pneg %p485
      %p492 = scmp.eq.s32.totalorder %s30, 1
      %p493 = por %p491, %p492
      %p494 = scmp.ne.s32.totalorder %s486, %s489
      %p495 = scmp.eq.s32.totalorder %s30, 0
      %p496 = por %p494, %p495
      %p497 = scmp.ne.s32.totalorder %s486, %s489
      %p498 = scmp.eq.s32.totalorder %s35, 1
      %p499 = por %p497, %p498
      %p500 = scmp.ne.s32.totalorder %s489, %s490
      %p501 = scmp.eq.s32.totalorder %s35, 0
      %p502 = por %p500, %p501
      %p503 = scmp.ne.s32.totalorder %s489, %s490
      %p504 = scmp.eq.s32.totalorder %s36, 1
      %p505 = por %p503, %p504
      %p507 = scmp.ne.s32.totalorder %s490, %s506
      %p508 = scmp.eq.s32.totalorder %s36, 0
      %p509 = por %p507, %p508
      %p510 = scmp.le.s32.totalorder 1, %s30
      %p511 = scmp.lt.s32.totalorder %s30, 3
      %p512 = pnand %p510, %p511
      %p513 = pneg %p512
      // Predicated region
      $region9: #{depthwise_separable_residual_block.1} parent=5 // pred_check
        _
      $region10: #{depthwise_separable_residual_block.1} parent=5 // pred_check_branch
        %515 = sbr.rel (%p512) target = $region12
      $region11: #{depthwise_separable_residual_block.1} parent=5 // pred_region
        %s516 = ssub.s32 %s30, 1
        // Predicated region
        $region13: #{depthwise_separable_residual_block.1} parent=11 // pred_check
          %p517 = pneg %p77
        $region14: #{depthwise_separable_residual_block.1} parent=11 // pred_check_branch
          %519 = sbr.rel (%p517) target = $region16
        $region15: #{depthwise_separable_residual_block.1} parent=11 // pred_region
          _
        $region16: #{depthwise_separable_residual_block.1} parent=11 // pred_fallthru
          _
        // Predicated region
        $region17: #{depthwise_separable_residual_block.1} parent=11 // pred_check
          %p520 = pneg %p98
        $region18: #{depthwise_separable_residual_block.1} parent=11 // pred_check_branch
          %522 = sbr.rel (%p520) target = $region20
        $region19: #{depthwise_separable_residual_block.1} parent=11 // pred_region
          _
        $region20: #{depthwise_separable_residual_block.1} parent=11 // pred_fallthru
          _
        // Predicated region
        $region21: #{depthwise_separable_residual_block.1} parent=11 // pred_check
          %p523 = pneg %p119
        $region22: #{depthwise_separable_residual_block.1} parent=11 // pred_check_branch
          %525 = sbr.rel (%p523) target = $region24
        $region23: #{depthwise_separable_residual_block.1} parent=11 // pred_region
          _
        $region24: #{depthwise_separable_residual_block.1} parent=11 // pred_fallthru
          _
        // Predicated region
        $region25: #{depthwise_separable_residual_block.1} parent=11 // pred_check
          %p526 = pneg %p140
        $region26: #{depthwise_separable_residual_block.1} parent=11 // pred_check_branch
          %528 = sbr.rel (%p526) target = $region28
        $region27: #{depthwise_separable_residual_block.1} parent=11 // pred_region
          _
        $region28: #{depthwise_separable_residual_block.1} parent=11 // pred_fallthru
          _
        // Predicated region
        $region29: #{depthwise_separable_residual_block.1} parent=11 // pred_check
          %p529 = pneg %p161
        $region30: #{depthwise_separable_residual_block.1} parent=11 // pred_check_branch
          %531 = sbr.rel (%p529) target = $region32
        $region31: #{depthwise_separable_residual_block.1} parent=11 // pred_region
          _
        $region32: #{depthwise_separable_residual_block.1} parent=11 // pred_fallthru
          _
        // Predicated region
        $region33: #{depthwise_separable_residual_block.1} parent=11 // pred_check
          %p532 = pneg %p182
        $region34: #{depthwise_separable_residual_block.1} parent=11 // pred_check_branch
          %534 = sbr.rel (%p532) target = $region36
        $region35: #{depthwise_separable_residual_block.1} parent=11 // pred_region
          _
        $region36: #{depthwise_separable_residual_block.1} parent=11 // pred_fallthru
          _
        // Predicated region
        $region37: #{depthwise_separable_residual_block.1} parent=11 // pred_check
          %p535 = pneg %p203
        $region38: #{depthwise_separable_residual_block.1} parent=11 // pred_check_branch
          %537 = sbr.rel (%p535) target = $region40
        $region39: #{depthwise_separable_residual_block.1} parent=11 // pred_region
          _
        $region40: #{depthwise_separable_residual_block.1} parent=11 // pred_fallthru
          _
        // Predicated region
        $region41: #{depthwise_separable_residual_block.1} parent=11 // pred_check
          %p538 = pneg %p224
        $region42: #{depthwise_separable_residual_block.1} parent=11 // pred_check_branch
          %540 = sbr.rel (%p538) target = $region44
        $region43: #{depthwise_separable_residual_block.1} parent=11 // pred_region
          _
        $region44: #{depthwise_separable_residual_block.1} parent=11 // pred_fallthru
          _
        // Predicated region
        $region45: #{depthwise_separable_residual_block.1} parent=11 // pred_check
          %p541 = pneg %p245
        $region46: #{depthwise_separable_residual_block.1} parent=11 // pred_check_branch
          %543 = sbr.rel (%p541) target = $region48
        $region47: #{depthwise_separable_residual_block.1} parent=11 // pred_region
          _
        $region48: #{depthwise_separable_residual_block.1} parent=11 // pred_fallthru
          _
        // Predicated region
        $region49: #{depthwise_separable_residual_block.1} parent=11 // pred_check
          %p544 = pneg %p266
        $region50: #{depthwise_separable_residual_block.1} parent=11 // pred_check_branch
          %546 = sbr.rel (%p544) target = $region52
        $region51: #{depthwise_separable_residual_block.1} parent=11 // pred_region
          _
        $region52: #{depthwise_separable_residual_block.1} parent=11 // pred_fallthru
          _
        // Predicated region
        $region53: #{depthwise_separable_residual_block.1} parent=11 // pred_check
          %p547 = pneg %p287
        $region54: #{depthwise_separable_residual_block.1} parent=11 // pred_check_branch
          %549 = sbr.rel (%p547) target = $region56
        $region55: #{depthwise_separable_residual_block.1} parent=11 // pred_region
          _
        $region56: #{depthwise_separable_residual_block.1} parent=11 // pred_fallthru
          _
        // Predicated region
        $region57: #{depthwise_separable_residual_block.1} parent=11 // pred_check
          %p550 = pneg %p308
        $region58: #{depthwise_separable_residual_block.1} parent=11 // pred_check_branch
          %552 = sbr.rel (%p550) target = $region60
        $region59: #{depthwise_separable_residual_block.1} parent=11 // pred_region
          _
        $region60: #{depthwise_separable_residual_block.1} parent=11 // pred_fallthru
          _
        // Predicated region
        $region61: #{depthwise_separable_residual_block.1} parent=11 // pred_check
          %p553 = pneg %p329
        $region62: #{depthwise_separable_residual_block.1} parent=11 // pred_check_branch
          %555 = sbr.rel (%p553) target = $region64
        $region63: #{depthwise_separable_residual_block.1} parent=11 // pred_region
          _
        $region64: #{depthwise_separable_residual_block.1} parent=11 // pred_fallthru
          _
        // Predicated region
        $region65: #{depthwise_separable_residual_block.1} parent=11 // pred_check
          %p556 = pneg %p350
        $region66: #{depthwise_separable_residual_block.1} parent=11 // pred_check_branch
          %558 = sbr.rel (%p556) target = $region68
        $region67: #{depthwise_separable_residual_block.1} parent=11 // pred_region
          _
        $region68: #{depthwise_separable_residual_block.1} parent=11 // pred_fallthru
          _
        // Predicated region
        $region69: #{depthwise_separable_residual_block.1} parent=11 // pred_check
          %p559 = pneg %p371
        $region70: #{depthwise_separable_residual_block.1} parent=11 // pred_check_branch
          %561 = sbr.rel (%p559) target = $region72
        $region71: #{depthwise_separable_residual_block.1} parent=11 // pred_region
          _
        $region72: #{depthwise_separable_residual_block.1} parent=11 // pred_fallthru
          _
        // Predicated region
        $region73: #{depthwise_separable_residual_block.1} parent=11 // pred_check
          %p562 = pneg %p392
        $region74: #{depthwise_separable_residual_block.1} parent=11 // pred_check_branch
          %564 = sbr.rel (%p562) target = $region76
        $region75: #{depthwise_separable_residual_block.1} parent=11 // pred_region
          _
        $region76: #{depthwise_separable_residual_block.1} parent=11 // pred_fallthru
          _
        // Predicated region
        $region77: #{depthwise_separable_residual_block.1} parent=11 // pred_check
          %p565 = pneg %p413
        $region78: #{depthwise_separable_residual_block.1} parent=11 // pred_check_branch
          %567 = sbr.rel (%p565) target = $region80
        $region79: #{depthwise_separable_residual_block.1} parent=11 // pred_region
          _
        $region80: #{depthwise_separable_residual_block.1} parent=11 // pred_fallthru
          _
        // Predicated region
        $region81: #{depthwise_separable_residual_block.1} parent=11 // pred_check
          %p568 = pneg %p434
        $region82: #{depthwise_separable_residual_block.1} parent=11 // pred_check_branch
          %570 = sbr.rel (%p568) target = $region84
        $region83: #{depthwise_separable_residual_block.1} parent=11 // pred_region
          _
        $region84: #{depthwise_separable_residual_block.1} parent=11 // pred_fallthru
          _
        // Predicated region
        $region85: #{depthwise_separable_residual_block.1} parent=11 // pred_check
          %p571 = pneg %p455
        $region86: #{depthwise_separable_residual_block.1} parent=11 // pred_check_branch
          %573 = sbr.rel (%p571) target = $region88
        $region87: #{depthwise_separable_residual_block.1} parent=11 // pred_region
          _
        $region88: #{depthwise_separable_residual_block.1} parent=11 // pred_fallthru
          _
        // Predicated region
        $region89: #{depthwise_separable_residual_block.1} parent=11 // pred_check
          %p574 = pneg %p476
        $region90: #{depthwise_separable_residual_block.1} parent=11 // pred_check_branch
          %576 = sbr.rel (%p574) target = $region92
        $region91: #{depthwise_separable_residual_block.1} parent=11 // pred_region
          _
        $region92: #{depthwise_separable_residual_block.1} parent=11 // pred_fallthru
          _
      $region12: #{depthwise_separable_residual_block.1} parent=5 // pred_fallthru
        _
      %p577 = scmp.lt.s32.totalorder %s30, 2
      // Predicated region
      $region93: #{depthwise_separable_residual_block.1} parent=5 // pred_check
        %p578 = pneg %p577
      $region94: #{depthwise_separable_residual_block.1} parent=5 // pred_check_branch
        %580 = sbr.rel (%p578) target = $region96
      $region95: #{depthwise_separable_residual_block.1} parent=5 // pred_region
        // Predicated region
        $region97: #{depthwise_separable_residual_block.1} parent=95 // pred_check
          %p581 = pneg %p50
        $region98: #{depthwise_separable_residual_block.1} parent=95 // pred_check_branch
          %583 = sbr.rel (%p581) target = $region100
        $region99: #{depthwise_separable_residual_block.1} parent=95 // pred_region
          %p584 = scmp.lt.s32.totalorder %s30, 1
          %s585 = scalar_select %p584, %s30, 1
          %s586 = smul.addr %s585, 32
          %s587 = smul.addr %s586, 8
          %s588 = scalar_lea.vmem %s0, %s587
        $region100: #{depthwise_separable_residual_block.1} parent=95 // pred_fallthru
          _
      $region96: #{depthwise_separable_residual_block.1} parent=5 // pred_fallthru
        _
      %p589 = scmp.le.s32.totalorder 1, %s30
      %p590 = scmp.lt.s32.totalorder %s30, 3
      %p591 = pnand %p589, %p590
      %p592 = pneg %p591
      // Predicated region
      $region101: #{depthwise_separable_residual_block.1} parent=5 // pred_check
        _
      $region102: #{depthwise_separable_residual_block.1} parent=5 // pred_check_branch
        %594 = sbr.rel (%p591) target = $region104
      $region103: #{depthwise_separable_residual_block.1} parent=5 // pred_region
        %s595 = ssub.s32 %s30, 1
        %p596 = scmp.lt.s32.totalorder %s35, 1
        %s597 = scalar_select %p596, %s35, 1
        %s598 = smul.addr %s597, 32
        %s599 = smul.addr %s598, 8
        %s600 = scalar_lea.vmem %s0, %s599
        %p601 = pneg %p56
        %p602 = pneg %p53
        %p603 = pneg %p77
        %p604 = pneg %p74
        %p605 = pneg %p98
        %p606 = pneg %p95
        %p607 = pneg %p119
        %p608 = pneg %p116
        %p609 = pneg %p140
        %p610 = pneg %p137
        %p611 = pneg %p161
        %p612 = pneg %p158
        %p613 = pneg %p182
        %p614 = pneg %p179
        %p615 = pneg %p203
        %p616 = pneg %p200
        %p617 = pneg %p224
        %p618 = pneg %p221
        %p619 = pneg %p245
        %p620 = pneg %p242
        %p621 = pneg %p266
        %p622 = pneg %p263
        %p623 = pneg %p287
        %p624 = pneg %p284
        %p625 = pneg %p308
        %p626 = pneg %p305
        %p627 = pneg %p329
        %p628 = pneg %p326
        %p629 = pneg %p350
        %p630 = pneg %p347
        %p631 = pneg %p371
        %p632 = pneg %p368
        %p633 = pneg %p392
        %p634 = pneg %p389
        %p635 = pneg %p413
        %p636 = pneg %p410
        %p637 = pneg %p434
        %p638 = pneg %p431
        %p639 = pneg %p455
        %p640 = pneg %p452
        %p641 = pneg %p476
        %p642 = pneg %p473
        %p643 = pneg %p502
        %p644 = pneg %p499
        %s645 = sand.u32 %s489, 1
        %s646 = scalar_lea.sflag [#allocation3], %s645
        %s647 = sand.u32 %s489, 1
        %s648 = smul.addr %s647, 256
        %s649 = scalar_lea.vmem [#allocation2], %s648
        %p650 = scmp.lt.s32.totalorder %s35, 1
        %s651 = scalar_select %p650, %s35, 1
        %s652 = smul.addr %s651, 32
        %s653 = smul.addr %s652, 8
        %s654 = scalar_lea.vmem %s0, %s653
        %v656 = vlaneseq
        %v657 = vshrl.u32 %v656, 7
        %v658 = vadd.s32 %v657, 8
        %v659 = vadd.s32 %v657, 16
        %v660 = vadd.s32 %v657, 24
        %v661 = vadd.s32 %v657, 32
        %v662 = vadd.s32 %v657, 40
        %v663 = vadd.s32 %v657, 48
        %v664 = vadd.s32 %v657, 56
        %v665 = vadd.s32 %v657, 64
        %v666 = vadd.s32 %v657, 72
        %v667 = vadd.s32 %v657, 80
        %v668 = vadd.s32 %v657, 88
        %v669 = vadd.s32 %v657, 96
        %v670 = vadd.s32 %v657, 104
        %v671 = vadd.s32 %v657, 112
        %v672 = vadd.s32 %v657, 120
        %v673 = vadd.s32 %v657, 128
        %v674 = vadd.s32 %v657, 136
        %v675 = vadd.s32 %v657, 144
        %v676 = vadd.s32 %v657, 152
        %v677 = vadd.s32 %v657, 160
        %v678 = vadd.s32 %v657, 168
        %v679 = vadd.s32 %v657, 176
        %v680 = vadd.s32 %v657, 184
        %v681 = vadd.s32 %v657, 192
        %v682 = vadd.s32 %v657, 200
        %v683 = vadd.s32 %v657, 208
        %v684 = vadd.s32 %v657, 216
        %v685 = vadd.s32 %v657, 224
        %v686 = vadd.s32 %v657, 232
        %v687 = vadd.s32 %v657, 240
        %v688 = vadd.s32 %v657, 248
        %v689 = vand.u32 %v657, 15
        %v690 = vand.u32 %v658, 15
        %v691 = vand.u32 %v659, 15
        %v692 = vand.u32 %v660, 15
        %v693 = vand.u32 %v661, 15
        %v694 = vand.u32 %v662, 15
        %v695 = vand.u32 %v663, 15
        %v696 = vand.u32 %v664, 15
        %v697 = vand.u32 %v665, 15
        %v698 = vand.u32 %v666, 15
        %v699 = vand.u32 %v667, 15
        %v700 = vand.u32 %v668, 15
        %v701 = vand.u32 %v669, 15
        %v702 = vand.u32 %v670, 15
        %v703 = vand.u32 %v671, 15
        %v704 = vand.u32 %v672, 15
        %v705 = vand.u32 %v673, 15
        %v706 = vand.u32 %v674, 15
        %v707 = vand.u32 %v675, 15
        %v708 = vand.u32 %v676, 15
        %v709 = vand.u32 %v677, 15
        %v710 = vand.u32 %v678, 15
        %v711 = vand.u32 %v679, 15
        %v712 = vand.u32 %v680, 15
        %v713 = vand.u32 %v681, 15
        %v714 = vand.u32 %v682, 15
        %v715 = vand.u32 %v683, 15
        %v716 = vand.u32 %v684, 15
        %v717 = vand.u32 %v685, 15
        %v718 = vand.u32 %v686, 15
        %v719 = vand.u32 %v687, 15
        %v720 = vand.u32 %v688, 15
        %v721 = vshra.s32 %v657, 4
        %v722 = vshra.s32 %v658, 4
        %v723 = vshra.s32 %v659, 4
        %v724 = vshra.s32 %v660, 4
        %v725 = vshra.s32 %v661, 4
        %v726 = vshra.s32 %v662, 4
        %v727 = vshra.s32 %v663, 4
        %v728 = vshra.s32 %v664, 4
        %v729 = vshra.s32 %v665, 4
        %v730 = vshra.s32 %v666, 4
        %v731 = vshra.s32 %v667, 4
        %v732 = vshra.s32 %v668, 4
        %v733 = vshra.s32 %v669, 4
        %v734 = vshra.s32 %v670, 4
        %v735 = vshra.s32 %v671, 4
        %v736 = vshra.s32 %v672, 4
        %v737 = vshra.s32 %v673, 4
        %v738 = vshra.s32 %v674, 4
        %v739 = vshra.s32 %v675, 4
        %v740 = vshra.s32 %v676, 4
        %v741 = vshra.s32 %v677, 4
        %v742 = vshra.s32 %v678, 4
        %v743 = vshra.s32 %v679, 4
        %v744 = vshra.s32 %v680, 4
        %v745 = vshra.s32 %v681, 4
        %v746 = vshra.s32 %v682, 4
        %v747 = vshra.s32 %v683, 4
        %v748 = vshra.s32 %v684, 4
        %v749 = vshra.s32 %v685, 4
        %v750 = vshra.s32 %v686, 4
        %v751 = vshra.s32 %v687, 4
        %v752 = vshra.s32 %v688, 4
        %v753 = vadd.s32 %v689, 4294967295
        %v754 = vadd.s32 %v690, 4294967295
        %v755 = vadd.s32 %v691, 4294967295
        %v756 = vadd.s32 %v692, 4294967295
        %v757 = vadd.s32 %v693, 4294967295
        %v758 = vadd.s32 %v694, 4294967295
        %v759 = vadd.s32 %v695, 4294967295
        %v760 = vadd.s32 %v696, 4294967295
        %v761 = vadd.s32 %v697, 4294967295
        %v762 = vadd.s32 %v698, 4294967295
        %v763 = vadd.s32 %v699, 4294967295
        %v764 = vadd.s32 %v700, 4294967295
        %v765 = vadd.s32 %v701, 4294967295
        %v766 = vadd.s32 %v702, 4294967295
        %v767 = vadd.s32 %v703, 4294967295
        %v768 = vadd.s32 %v704, 4294967295
        %v769 = vadd.s32 %v705, 4294967295
        %v770 = vadd.s32 %v706, 4294967295
        %v771 = vadd.s32 %v707, 4294967295
        %v772 = vadd.s32 %v708, 4294967295
        %v773 = vadd.s32 %v709, 4294967295
        %v774 = vadd.s32 %v710, 4294967295
        %v775 = vadd.s32 %v711, 4294967295
        %v776 = vadd.s32 %v712, 4294967295
        %v777 = vadd.s32 %v713, 4294967295
        %v778 = vadd.s32 %v714, 4294967295
        %v779 = vadd.s32 %v715, 4294967295
        %v780 = vadd.s32 %v716, 4294967295
        %v781 = vadd.s32 %v717, 4294967295
        %v782 = vadd.s32 %v718, 4294967295
        %v783 = vadd.s32 %v719, 4294967295
        %v784 = vadd.s32 %v720, 4294967295
        %vm785 = vcmp.ge.s32.totalorder %v753, 0
        %vm786 = vcmp.ge.s32.totalorder %v754, 0
        %vm787 = vcmp.ge.s32.totalorder %v755, 0
        %vm788 = vcmp.ge.s32.totalorder %v756, 0
        %vm789 = vcmp.ge.s32.totalorder %v757, 0
        %vm790 = vcmp.ge.s32.totalorder %v758, 0
        %vm791 = vcmp.ge.s32.totalorder %v759, 0
        %vm792 = vcmp.ge.s32.totalorder %v760, 0
        %vm793 = vcmp.ge.s32.totalorder %v761, 0
        %vm794 = vcmp.ge.s32.totalorder %v762, 0
        %vm795 = vcmp.ge.s32.totalorder %v763, 0
        %vm796 = vcmp.ge.s32.totalorder %v764, 0
        %vm797 = vcmp.ge.s32.totalorder %v765, 0
        %vm798 = vcmp.ge.s32.totalorder %v766, 0
        %vm799 = vcmp.ge.s32.totalorder %v767, 0
        %vm800 = vcmp.ge.s32.totalorder %v768, 0
        %vm801 = vcmp.ge.s32.totalorder %v769, 0
        %vm802 = vcmp.ge.s32.totalorder %v770, 0
        %vm803 = vcmp.ge.s32.totalorder %v771, 0
        %vm804 = vcmp.ge.s32.totalorder %v772, 0
        %vm805 = vcmp.ge.s32.totalorder %v773, 0
        %vm806 = vcmp.ge.s32.totalorder %v774, 0
        %vm807 = vcmp.ge.s32.totalorder %v775, 0
        %vm808 = vcmp.ge.s32.totalorder %v776, 0
        %vm809 = vcmp.ge.s32.totalorder %v777, 0
        %vm810 = vcmp.ge.s32.totalorder %v778, 0
        %vm811 = vcmp.ge.s32.totalorder %v779, 0
        %vm812 = vcmp.ge.s32.totalorder %v780, 0
        %vm813 = vcmp.ge.s32.totalorder %v781, 0
        %vm814 = vcmp.ge.s32.totalorder %v782, 0
        %vm815 = vcmp.ge.s32.totalorder %v783, 0
        %vm816 = vcmp.ge.s32.totalorder %v784, 0
        %vm817 = vcmp.lt.s32.totalorder %v753, 16
        %vm818 = vcmp.lt.s32.totalorder %v754, 16
        %vm819 = vcmp.lt.s32.totalorder %v755, 16
        %vm820 = vcmp.lt.s32.totalorder %v756, 16
        %vm821 = vcmp.lt.s32.totalorder %v757, 16
        %vm822 = vcmp.lt.s32.totalorder %v758, 16
        %vm823 = vcmp.lt.s32.totalorder %v759, 16
        %vm824 = vcmp.lt.s32.totalorder %v760, 16
        %vm825 = vcmp.lt.s32.totalorder %v761, 16
        %vm826 = vcmp.lt.s32.totalorder %v762, 16
        %vm827 = vcmp.lt.s32.totalorder %v763, 16
        %vm828 = vcmp.lt.s32.totalorder %v764, 16
        %vm829 = vcmp.lt.s32.totalorder %v765, 16
        %vm830 = vcmp.lt.s32.totalorder %v766, 16
        %vm831 = vcmp.lt.s32.totalorder %v767, 16
        %vm832 = vcmp.lt.s32.totalorder %v768, 16
        %vm833 = vcmp.lt.s32.totalorder %v769, 16
        %vm834 = vcmp.lt.s32.totalorder %v770, 16
        %vm835 = vcmp.lt.s32.totalorder %v771, 16
        %vm836 = vcmp.lt.s32.totalorder %v772, 16
        %vm837 = vcmp.lt.s32.totalorder %v773, 16
        %vm838 = vcmp.lt.s32.totalorder %v774, 16
        %vm839 = vcmp.lt.s32.totalorder %v775, 16
        %vm840 = vcmp.lt.s32.totalorder %v776, 16
        %vm841 = vcmp.lt.s32.totalorder %v777, 16
        %vm842 = vcmp.lt.s32.totalorder %v778, 16
        %vm843 = vcmp.lt.s32.totalorder %v779, 16
        %vm844 = vcmp.lt.s32.totalorder %v780, 16
        %vm845 = vcmp.lt.s32.totalorder %v781, 16
        %vm846 = vcmp.lt.s32.totalorder %v782, 16
        %vm847 = vcmp.lt.s32.totalorder %v783, 16
        %vm848 = vcmp.lt.s32.totalorder %v784, 16
        %vm849 = vmand %vm785, %vm817
        %vm850 = vmand %vm786, %vm818
        %vm851 = vmand %vm787, %vm819
        %vm852 = vmand %vm788, %vm820
        %vm853 = vmand %vm789, %vm821
        %vm854 = vmand %vm790, %vm822
        %vm855 = vmand %vm791, %vm823
        %vm856 = vmand %vm792, %vm824
        %vm857 = vmand %vm793, %vm825
        %vm858 = vmand %vm794, %vm826
        %vm859 = vmand %vm795, %vm827
        %vm860 = vmand %vm796, %vm828
        %vm861 = vmand %vm797, %vm829
        %vm862 = vmand %vm798, %vm830
        %vm863 = vmand %vm799, %vm831
        %vm864 = vmand %vm800, %vm832
        %vm865 = vmand %vm801, %vm833
        %vm866 = vmand %vm802, %vm834
        %vm867 = vmand %vm803, %vm835
        %vm868 = vmand %vm804, %vm836
        %vm869 = vmand %vm805, %vm837
        %vm870 = vmand %vm806, %vm838
        %vm871 = vmand %vm807, %vm839
        %vm872 = vmand %vm808, %vm840
        %vm873 = vmand %vm809, %vm841
        %vm874 = vmand %vm810, %vm842
        %vm875 = vmand %vm811, %vm843
        %vm876 = vmand %vm812, %vm844
        %vm877 = vmand %vm813, %vm845
        %vm878 = vmand %vm814, %vm846
        %vm879 = vmand %vm815, %vm847
        %vm880 = vmand %vm816, %vm848
        %v881 = vadd.s32 %v721, 4294967295
        %v882 = vadd.s32 %v722, 4294967295
        %v883 = vadd.s32 %v723, 4294967295
        %v884 = vadd.s32 %v724, 4294967295
        %v885 = vadd.s32 %v725, 4294967295
        %v886 = vadd.s32 %v726, 4294967295
        %v887 = vadd.s32 %v727, 4294967295
        %v888 = vadd.s32 %v728, 4294967295
        %v889 = vadd.s32 %v729, 4294967295
        %v890 = vadd.s32 %v730, 4294967295
        %v891 = vadd.s32 %v731, 4294967295
        %v892 = vadd.s32 %v732, 4294967295
        %v893 = vadd.s32 %v733, 4294967295
        %v894 = vadd.s32 %v734, 4294967295
        %v895 = vadd.s32 %v735, 4294967295
        %v896 = vadd.s32 %v736, 4294967295
        %v897 = vadd.s32 %v737, 4294967295
        %v898 = vadd.s32 %v738, 4294967295
        %v899 = vadd.s32 %v739, 4294967295
        %v900 = vadd.s32 %v740, 4294967295
        %v901 = vadd.s32 %v741, 4294967295
        %v902 = vadd.s32 %v742, 4294967295
        %v903 = vadd.s32 %v743, 4294967295
        %v904 = vadd.s32 %v744, 4294967295
        %v905 = vadd.s32 %v745, 4294967295
        %v906 = vadd.s32 %v746, 4294967295
        %v907 = vadd.s32 %v747, 4294967295
        %v908 = vadd.s32 %v748, 4294967295
        %v909 = vadd.s32 %v749, 4294967295
        %v910 = vadd.s32 %v750, 4294967295
        %v911 = vadd.s32 %v751, 4294967295
        %v912 = vadd.s32 %v752, 4294967295
        %vm913 = vcmp.ge.s32.totalorder %v881, 0
        %vm914 = vcmp.ge.s32.totalorder %v882, 0
        %vm915 = vcmp.ge.s32.totalorder %v883, 0
        %vm916 = vcmp.ge.s32.totalorder %v884, 0
        %vm917 = vcmp.ge.s32.totalorder %v885, 0
        %vm918 = vcmp.ge.s32.totalorder %v886, 0
        %vm919 = vcmp.ge.s32.totalorder %v887, 0
        %vm920 = vcmp.ge.s32.totalorder %v888, 0
        %vm921 = vcmp.ge.s32.totalorder %v889, 0
        %vm922 = vcmp.ge.s32.totalorder %v890, 0
        %vm923 = vcmp.ge.s32.totalorder %v891, 0
        %vm924 = vcmp.ge.s32.totalorder %v892, 0
        %vm925 = vcmp.ge.s32.totalorder %v893, 0
        %vm926 = vcmp.ge.s32.totalorder %v894, 0
        %vm927 = vcmp.ge.s32.totalorder %v895, 0
        %vm928 = vcmp.ge.s32.totalorder %v896, 0
        %vm929 = vcmp.ge.s32.totalorder %v897, 0
        %vm930 = vcmp.ge.s32.totalorder %v898, 0
        %vm931 = vcmp.ge.s32.totalorder %v899, 0
        %vm932 = vcmp.ge.s32.totalorder %v900, 0
        %vm933 = vcmp.ge.s32.totalorder %v901, 0
        %vm934 = vcmp.ge.s32.totalorder %v902, 0
        %vm935 = vcmp.ge.s32.totalorder %v903, 0
        %vm936 = vcmp.ge.s32.totalorder %v904, 0
        %vm937 = vcmp.ge.s32.totalorder %v905, 0
        %vm938 = vcmp.ge.s32.totalorder %v906, 0
        %vm939 = vcmp.ge.s32.totalorder %v907, 0
        %vm940 = vcmp.ge.s32.totalorder %v908, 0
        %vm941 = vcmp.ge.s32.totalorder %v909, 0
        %vm942 = vcmp.ge.s32.totalorder %v910, 0
        %vm943 = vcmp.ge.s32.totalorder %v911, 0
        %vm944 = vcmp.ge.s32.totalorder %v912, 0
        %vm945 = vmand %vm849, %vm913
        %vm946 = vmand %vm850, %vm914
        %vm947 = vmand %vm851, %vm915
        %vm948 = vmand %vm852, %vm916
        %vm949 = vmand %vm853, %vm917
        %vm950 = vmand %vm854, %vm918
        %vm951 = vmand %vm855, %vm919
        %vm952 = vmand %vm856, %vm920
        %vm953 = vmand %vm857, %vm921
        %vm954 = vmand %vm858, %vm922
        %vm955 = vmand %vm859, %vm923
        %vm956 = vmand %vm860, %vm924
        %vm957 = vmand %vm861, %vm925
        %vm958 = vmand %vm862, %vm926
        %vm959 = vmand %vm863, %vm927
        %vm960 = vmand %vm864, %vm928
        %vm961 = vmand %vm865, %vm929
        %vm962 = vmand %vm866, %vm930
        %vm963 = vmand %vm867, %vm931
        %vm964 = vmand %vm868, %vm932
        %vm965 = vmand %vm869, %vm933
        %vm966 = vmand %vm870, %vm934
        %vm967 = vmand %vm871, %vm935
        %vm968 = vmand %vm872, %vm936
        %vm969 = vmand %vm873, %vm937
        %vm970 = vmand %vm874, %vm938
        %vm971 = vmand %vm875, %vm939
        %vm972 = vmand %vm876, %vm940
        %vm973 = vmand %vm877, %vm941
        %vm974 = vmand %vm878, %vm942
        %vm975 = vmand %vm879, %vm943
        %vm976 = vmand %vm880, %vm944
        %vm977 = vcmp.lt.s32.totalorder %v881, 16
        %vm978 = vcmp.lt.s32.totalorder %v882, 16
        %vm979 = vcmp.lt.s32.totalorder %v883, 16
        %vm980 = vcmp.lt.s32.totalorder %v884, 16
        %vm981 = vcmp.lt.s32.totalorder %v885, 16
        %vm982 = vcmp.lt.s32.totalorder %v886, 16
        %vm983 = vcmp.lt.s32.totalorder %v887, 16
        %vm984 = vcmp.lt.s32.totalorder %v888, 16
        %vm985 = vcmp.lt.s32.totalorder %v889, 16
        %vm986 = vcmp.lt.s32.totalorder %v890, 16
        %vm987 = vcmp.lt.s32.totalorder %v891, 16
        %vm988 = vcmp.lt.s32.totalorder %v892, 16
        %vm989 = vcmp.lt.s32.totalorder %v893, 16
        %vm990 = vcmp.lt.s32.totalorder %v894, 16
        %vm991 = vcmp.lt.s32.totalorder %v895, 16
        %vm992 = vcmp.lt.s32.totalorder %v896, 16
        %vm993 = vcmp.lt.s32.totalorder %v897, 16
        %vm994 = vcmp.lt.s32.totalorder %v898, 16
        %vm995 = vcmp.lt.s32.totalorder %v899, 16
        %vm996 = vcmp.lt.s32.totalorder %v900, 16
        %vm997 = vcmp.lt.s32.totalorder %v901, 16
        %vm998 = vcmp.lt.s32.totalorder %v902, 16
        %vm999 = vcmp.lt.s32.totalorder %v903, 16
        %vm1000 = vcmp.lt.s32.totalorder %v904, 16
        %vm1001 = vcmp.lt.s32.totalorder %v905, 16
        %vm1002 = vcmp.lt.s32.totalorder %v906, 16
        %vm1003 = vcmp.lt.s32.totalorder %v907, 16
        %vm1004 = vcmp.lt.s32.totalorder %v908, 16
        %vm1005 = vcmp.lt.s32.totalorder %v909, 16
        %vm1006 = vcmp.lt.s32.totalorder %v910, 16
        %vm1007 = vcmp.lt.s32.totalorder %v911, 16
        %vm1008 = vcmp.lt.s32.totalorder %v912, 16
        %vm1009 = vmand %vm945, %vm977
        %vm1010 = vmand %vm946, %vm978
        %vm1011 = vmand %vm947, %vm979
        %vm1012 = vmand %vm948, %vm980
        %vm1013 = vmand %vm949, %vm981
        %vm1014 = vmand %vm950, %vm982
        %vm1015 = vmand %vm951, %vm983
        %vm1016 = vmand %vm952, %vm984
        %vm1017 = vmand %vm953, %vm985
        %vm1018 = vmand %vm954, %vm986
        %vm1019 = vmand %vm955, %vm987
        %vm1020 = vmand %vm956, %vm988
        %vm1021 = vmand %vm957, %vm989
        %vm1022 = vmand %vm958, %vm990
        %vm1023 = vmand %vm959, %vm991
        %vm1024 = vmand %vm960, %vm992
        %vm1025 = vmand %vm961, %vm993
        %vm1026 = vmand %vm962, %vm994
        %vm1027 = vmand %vm963, %vm995
        %vm1028 = vmand %vm964, %vm996
        %vm1029 = vmand %vm965, %vm997
        %vm1030 = vmand %vm966, %vm998
        %vm1031 = vmand %vm967, %vm999
        %vm1032 = vmand %vm968, %vm1000
        %vm1033 = vmand %vm969, %vm1001
        %vm1034 = vmand %vm970, %vm1002
        %vm1035 = vmand %vm971, %vm1003
        %vm1036 = vmand %vm972, %vm1004
        %vm1037 = vmand %vm973, %vm1005
        %vm1038 = vmand %vm974, %vm1006
        %vm1039 = vmand %vm975, %vm1007
        %vm1040 = vmand %vm976, %vm1008
        %vm1041 = vcmp.ge.s32.totalorder %v689, 0
        %vm1042 = vcmp.ge.s32.totalorder %v690, 0
        %vm1043 = vcmp.ge.s32.totalorder %v691, 0
        %vm1044 = vcmp.ge.s32.totalorder %v692, 0
        %vm1045 = vcmp.ge.s32.totalorder %v693, 0
        %vm1046 = vcmp.ge.s32.totalorder %v694, 0
        %vm1047 = vcmp.ge.s32.totalorder %v695, 0
        %vm1048 = vcmp.ge.s32.totalorder %v696, 0
        %vm1049 = vcmp.ge.s32.totalorder %v697, 0
        %vm1050 = vcmp.ge.s32.totalorder %v698, 0
        %vm1051 = vcmp.ge.s32.totalorder %v699, 0
        %vm1052 = vcmp.ge.s32.totalorder %v700, 0
        %vm1053 = vcmp.ge.s32.totalorder %v701, 0
        %vm1054 = vcmp.ge.s32.totalorder %v702, 0
        %vm1055 = vcmp.ge.s32.totalorder %v703, 0
        %vm1056 = vcmp.ge.s32.totalorder %v704, 0
        %vm1057 = vcmp.ge.s32.totalorder %v705, 0
        %vm1058 = vcmp.ge.s32.totalorder %v706, 0
        %vm1059 = vcmp.ge.s32.totalorder %v707, 0
        %vm1060 = vcmp.ge.s32.totalorder %v708, 0
        %vm1061 = vcmp.ge.s32.totalorder %v709, 0
        %vm1062 = vcmp.ge.s32.totalorder %v710, 0
        %vm1063 = vcmp.ge.s32.totalorder %v711, 0
        %vm1064 = vcmp.ge.s32.totalorder %v712, 0
        %vm1065 = vcmp.ge.s32.totalorder %v713, 0
        %vm1066 = vcmp.ge.s32.totalorder %v714, 0
        %vm1067 = vcmp.ge.s32.totalorder %v715, 0
        %vm1068 = vcmp.ge.s32.totalorder %v716, 0
        %vm1069 = vcmp.ge.s32.totalorder %v717, 0
        %vm1070 = vcmp.ge.s32.totalorder %v718, 0
        %vm1071 = vcmp.ge.s32.totalorder %v719, 0
        %vm1072 = vcmp.ge.s32.totalorder %v720, 0
        %vm1073 = vcmp.lt.s32.totalorder %v689, 16
        %vm1074 = vcmp.lt.s32.totalorder %v690, 16
        %vm1075 = vcmp.lt.s32.totalorder %v691, 16
        %vm1076 = vcmp.lt.s32.totalorder %v692, 16
        %vm1077 = vcmp.lt.s32.totalorder %v693, 16
        %vm1078 = vcmp.lt.s32.totalorder %v694, 16
        %vm1079 = vcmp.lt.s32.totalorder %v695, 16
        %vm1080 = vcmp.lt.s32.totalorder %v696, 16
        %vm1081 = vcmp.lt.s32.totalorder %v697, 16
        %vm1082 = vcmp.lt.s32.totalorder %v698, 16
        %vm1083 = vcmp.lt.s32.totalorder %v699, 16
        %vm1084 = vcmp.lt.s32.totalorder %v700, 16
        %vm1085 = vcmp.lt.s32.totalorder %v701, 16
        %vm1086 = vcmp.lt.s32.totalorder %v702, 16
        %vm1087 = vcmp.lt.s32.totalorder %v703, 16
        %vm1088 = vcmp.lt.s32.totalorder %v704, 16
        %vm1089 = vcmp.lt.s32.totalorder %v705, 16
        %vm1090 = vcmp.lt.s32.totalorder %v706, 16
        %vm1091 = vcmp.lt.s32.totalorder %v707, 16
        %vm1092 = vcmp.lt.s32.totalorder %v708, 16
        %vm1093 = vcmp.lt.s32.totalorder %v709, 16
        %vm1094 = vcmp.lt.s32.totalorder %v710, 16
        %vm1095 = vcmp.lt.s32.totalorder %v711, 16
        %vm1096 = vcmp.lt.s32.totalorder %v712, 16
        %vm1097 = vcmp.lt.s32.totalorder %v713, 16
        %vm1098 = vcmp.lt.s32.totalorder %v714, 16
        %vm1099 = vcmp.lt.s32.totalorder %v715, 16
        %vm1100 = vcmp.lt.s32.totalorder %v716, 16
        %vm1101 = vcmp.lt.s32.totalorder %v717, 16
        %vm1102 = vcmp.lt.s32.totalorder %v718, 16
        %vm1103 = vcmp.lt.s32.totalorder %v719, 16
        %vm1104 = vcmp.lt.s32.totalorder %v720, 16
        %vm1105 = vmand %vm1041, %vm1073
        %vm1106 = vmand %vm1042, %vm1074
        %vm1107 = vmand %vm1043, %vm1075
        %vm1108 = vmand %vm1044, %vm1076
        %vm1109 = vmand %vm1045, %vm1077
        %vm1110 = vmand %vm1046, %vm1078
        %vm1111 = vmand %vm1047, %vm1079
        %vm1112 = vmand %vm1048, %vm1080
        %vm1113 = vmand %vm1049, %vm1081
        %vm1114 = vmand %vm1050, %vm1082
        %vm1115 = vmand %vm1051, %vm1083
        %vm1116 = vmand %vm1052, %vm1084
        %vm1117 = vmand %vm1053, %vm1085
        %vm1118 = vmand %vm1054, %vm1086
        %vm1119 = vmand %vm1055, %vm1087
        %vm1120 = vmand %vm1056, %vm1088
        %vm1121 = vmand %vm1057, %vm1089
        %vm1122 = vmand %vm1058, %vm1090
        %vm1123 = vmand %vm1059, %vm1091
        %vm1124 = vmand %vm1060, %vm1092
        %vm1125 = vmand %vm1061, %vm1093
        %vm1126 = vmand %vm1062, %vm1094
        %vm1127 = vmand %vm1063, %vm1095
        %vm1128 = vmand %vm1064, %vm1096
        %vm1129 = vmand %vm1065, %vm1097
        %vm1130 = vmand %vm1066, %vm1098
        %vm1131 = vmand %vm1067, %vm1099
        %vm1132 = vmand %vm1068, %vm1100
        %vm1133 = vmand %vm1069, %vm1101
        %vm1134 = vmand %vm1070, %vm1102
        %vm1135 = vmand %vm1071, %vm1103
        %vm1136 = vmand %vm1072, %vm1104
        %vm1137 = vmand %vm1105, %vm913
        %vm1138 = vmand %vm1106, %vm914
        %vm1139 = vmand %vm1107, %vm915
        %vm1140 = vmand %vm1108, %vm916
        %vm1141 = vmand %vm1109, %vm917
        %vm1142 = vmand %vm1110, %vm918
        %vm1143 = vmand %vm1111, %vm919
        %vm1144 = vmand %vm1112, %vm920
        %vm1145 = vmand %vm1113, %vm921
        %vm1146 = vmand %vm1114, %vm922
        %vm1147 = vmand %vm1115, %vm923
        %vm1148 = vmand %vm1116, %vm924
        %vm1149 = vmand %vm1117, %vm925
        %vm1150 = vmand %vm1118, %vm926
        %vm1151 = vmand %vm1119, %vm927
        %vm1152 = vmand %vm1120, %vm928
        %vm1153 = vmand %vm1121, %vm929
        %vm1154 = vmand %vm1122, %vm930
        %vm1155 = vmand %vm1123, %vm931
        %vm1156 = vmand %vm1124, %vm932
        %vm1157 = vmand %vm1125, %vm933
        %vm1158 = vmand %vm1126, %vm934
        %vm1159 = vmand %vm1127, %vm935
        %vm1160 = vmand %vm1128, %vm936
        %vm1161 = vmand %vm1129, %vm937
        %vm1162 = vmand %vm1130, %vm938
        %vm1163 = vmand %vm1131, %vm939
        %vm1164 = vmand %vm1132, %vm940
        %vm1165 = vmand %vm1133, %vm941
        %vm1166 = vmand %vm1134, %vm942
        %vm1167 = vmand %vm1135, %vm943
        %vm1168 = vmand %vm1136, %vm944
        %vm1169 = vmand %vm1137, %vm977
        %vm1170 = vmand %vm1138, %vm978
        %vm1171 = vmand %vm1139, %vm979
        %vm1172 = vmand %vm1140, %vm980
        %vm1173 = vmand %vm1141, %vm981
        %vm1174 = vmand %vm1142, %vm982
        %vm1175 = vmand %vm1143, %vm983
        %vm1176 = vmand %vm1144, %vm984
        %vm1177 = vmand %vm1145, %vm985
        %vm1178 = vmand %vm1146, %vm986
        %vm1179 = vmand %vm1147, %vm987
        %vm1180 = vmand %vm1148, %vm988
        %vm1181 = vmand %vm1149, %vm989
        %vm1182 = vmand %vm1150, %vm990
        %vm1183 = vmand %vm1151, %vm991
        %vm1184 = vmand %vm1152, %vm992
        %vm1185 = vmand %vm1153, %vm993
        %vm1186 = vmand %vm1154, %vm994
        %vm1187 = vmand %vm1155, %vm995
        %vm1188 = vmand %vm1156, %vm996
        %vm1189 = vmand %vm1157, %vm997
        %vm1190 = vmand %vm1158, %vm998
        %vm1191 = vmand %vm1159, %vm999
        %vm1192 = vmand %vm1160, %vm1000
        %vm1193 = vmand %vm1161, %vm1001
        %vm1194 = vmand %vm1162, %vm1002
        %vm1195 = vmand %vm1163, %vm1003
        %vm1196 = vmand %vm1164, %vm1004
        %vm1197 = vmand %vm1165, %vm1005
        %vm1198 = vmand %vm1166, %vm1006
        %vm1199 = vmand %vm1167, %vm1007
        %vm1200 = vmand %vm1168, %vm1008
        %v1201 = vadd.s32 %v689, 1
        %v1202 = vadd.s32 %v690, 1
        %v1203 = vadd.s32 %v691, 1
        %v1204 = vadd.s32 %v692, 1
        %v1205 = vadd.s32 %v693, 1
        %v1206 = vadd.s32 %v694, 1
        %v1207 = vadd.s32 %v695, 1
        %v1208 = vadd.s32 %v696, 1
        %v1209 = vadd.s32 %v697, 1
        %v1210 = vadd.s32 %v698, 1
        %v1211 = vadd.s32 %v699, 1
        %v1212 = vadd.s32 %v700, 1
        %v1213 = vadd.s32 %v701, 1
        %v1214 = vadd.s32 %v702, 1
        %v1215 = vadd.s32 %v703, 1
        %v1216 = vadd.s32 %v704, 1
        %v1217 = vadd.s32 %v705, 1
        %v1218 = vadd.s32 %v706, 1
        %v1219 = vadd.s32 %v707, 1
        %v1220 = vadd.s32 %v708, 1
        %v1221 = vadd.s32 %v709, 1
        %v1222 = vadd.s32 %v710, 1
        %v1223 = vadd.s32 %v711, 1
        %v1224 = vadd.s32 %v712, 1
        %v1225 = vadd.s32 %v713, 1
        %v1226 = vadd.s32 %v714, 1
        %v1227 = vadd.s32 %v715, 1
        %v1228 = vadd.s32 %v716, 1
        %v1229 = vadd.s32 %v717, 1
        %v1230 = vadd.s32 %v718, 1
        %v1231 = vadd.s32 %v719, 1
        %v1232 = vadd.s32 %v720, 1
        %vm1233 = vcmp.ge.s32.totalorder %v1201, 0
        %vm1234 = vcmp.ge.s32.totalorder %v1202, 0
        %vm1235 = vcmp.ge.s32.totalorder %v1203, 0
        %vm1236 = vcmp.ge.s32.totalorder %v1204, 0
        %vm1237 = vcmp.ge.s32.totalorder %v1205, 0
        %vm1238 = vcmp.ge.s32.totalorder %v1206, 0
        %vm1239 = vcmp.ge.s32.totalorder %v1207, 0
        %vm1240 = vcmp.ge.s32.totalorder %v1208, 0
        %vm1241 = vcmp.ge.s32.totalorder %v1209, 0
        %vm1242 = vcmp.ge.s32.totalorder %v1210, 0
        %vm1243 = vcmp.ge.s32.totalorder %v1211, 0
        %vm1244 = vcmp.ge.s32.totalorder %v1212, 0
        %vm1245 = vcmp.ge.s32.totalorder %v1213, 0
        %vm1246 = vcmp.ge.s32.totalorder %v1214, 0
        %vm1247 = vcmp.ge.s32.totalorder %v1215, 0
        %vm1248 = vcmp.ge.s32.totalorder %v1216, 0
        %vm1249 = vcmp.ge.s32.totalorder %v1217, 0
        %vm1250 = vcmp.ge.s32.totalorder %v1218, 0
        %vm1251 = vcmp.ge.s32.totalorder %v1219, 0
        %vm1252 = vcmp.ge.s32.totalorder %v1220, 0
        %vm1253 = vcmp.ge.s32.totalorder %v1221, 0
        %vm1254 = vcmp.ge.s32.totalorder %v1222, 0
        %vm1255 = vcmp.ge.s32.totalorder %v1223, 0
        %vm1256 = vcmp.ge.s32.totalorder %v1224, 0
        %vm1257 = vcmp.ge.s32.totalorder %v1225, 0
        %vm1258 = vcmp.ge.s32.totalorder %v1226, 0
        %vm1259 = vcmp.ge.s32.totalorder %v1227, 0
        %vm1260 = vcmp.ge.s32.totalorder %v1228, 0
        %vm1261 = vcmp.ge.s32.totalorder %v1229, 0
        %vm1262 = vcmp.ge.s32.totalorder %v1230, 0
        %vm1263 = vcmp.ge.s32.totalorder %v1231, 0
        %vm1264 = vcmp.ge.s32.totalorder %v1232, 0
        %vm1265 = vcmp.lt.s32.totalorder %v1201, 16
        %vm1266 = vcmp.lt.s32.totalorder %v1202, 16
        %vm1267 = vcmp.lt.s32.totalorder %v1203, 16
        %vm1268 = vcmp.lt.s32.totalorder %v1204, 16
        %vm1269 = vcmp.lt.s32.totalorder %v1205, 16
        %vm1270 = vcmp.lt.s32.totalorder %v1206, 16
        %vm1271 = vcmp.lt.s32.totalorder %v1207, 16
        %vm1272 = vcmp.lt.s32.totalorder %v1208, 16
        %vm1273 = vcmp.lt.s32.totalorder %v1209, 16
        %vm1274 = vcmp.lt.s32.totalorder %v1210, 16
        %vm1275 = vcmp.lt.s32.totalorder %v1211, 16
        %vm1276 = vcmp.lt.s32.totalorder %v1212, 16
        %vm1277 = vcmp.lt.s32.totalorder %v1213, 16
        %vm1278 = vcmp.lt.s32.totalorder %v1214, 16
        %vm1279 = vcmp.lt.s32.totalorder %v1215, 16
        %vm1280 = vcmp.lt.s32.totalorder %v1216, 16
        %vm1281 = vcmp.lt.s32.totalorder %v1217, 16
        %vm1282 = vcmp.lt.s32.totalorder %v1218, 16
        %vm1283 = vcmp.lt.s32.totalorder %v1219, 16
        %vm1284 = vcmp.lt.s32.totalorder %v1220, 16
        %vm1285 = vcmp.lt.s32.totalorder %v1221, 16
        %vm1286 = vcmp.lt.s32.totalorder %v1222, 16
        %vm1287 = vcmp.lt.s32.totalorder %v1223, 16
        %vm1288 = vcmp.lt.s32.totalorder %v1224, 16
        %vm1289 = vcmp.lt.s32.totalorder %v1225, 16
        %vm1290 = vcmp.lt.s32.totalorder %v1226, 16
        %vm1291 = vcmp.lt.s32.totalorder %v1227, 16
        %vm1292 = vcmp.lt.s32.totalorder %v1228, 16
        %vm1293 = vcmp.lt.s32.totalorder %v1229, 16
        %vm1294 = vcmp.lt.s32.totalorder %v1230, 16
        %vm1295 = vcmp.lt.s32.totalorder %v1231, 16
        %vm1296 = vcmp.lt.s32.totalorder %v1232, 16
        %vm1297 = vmand %vm1233, %vm1265
        %vm1298 = vmand %vm1234, %vm1266
        %vm1299 = vmand %vm1235, %vm1267
        %vm1300 = vmand %vm1236, %vm1268
        %vm1301 = vmand %vm1237, %vm1269
        %vm1302 = vmand %vm1238, %vm1270
        %vm1303 = vmand %vm1239, %vm1271
        %vm1304 = vmand %vm1240, %vm1272
        %vm1305 = vmand %vm1241, %vm1273
        %vm1306 = vmand %vm1242, %vm1274
        %vm1307 = vmand %vm1243, %vm1275
        %vm1308 = vmand %vm1244, %vm1276
        %vm1309 = vmand %vm1245, %vm1277
        %vm1310 = vmand %vm1246, %vm1278
        %vm1311 = vmand %vm1247, %vm1279
        %vm1312 = vmand %vm1248, %vm1280
        %vm1313 = vmand %vm1249, %vm1281
        %vm1314 = vmand %vm1250, %vm1282
        %vm1315 = vmand %vm1251, %vm1283
        %vm1316 = vmand %vm1252, %vm1284
        %vm1317 = vmand %vm1253, %vm1285
        %vm1318 = vmand %vm1254, %vm1286
        %vm1319 = vmand %vm1255, %vm1287
        %vm1320 = vmand %vm1256, %vm1288
        %vm1321 = vmand %vm1257, %vm1289
        %vm1322 = vmand %vm1258, %vm1290
        %vm1323 = vmand %vm1259, %vm1291
        %vm1324 = vmand %vm1260, %vm1292
        %vm1325 = vmand %vm1261, %vm1293
        %vm1326 = vmand %vm1262, %vm1294
        %vm1327 = vmand %vm1263, %vm1295
        %vm1328 = vmand %vm1264, %vm1296
        %vm1329 = vmand %vm1297, %vm913
        %vm1330 = vmand %vm1298, %vm914
        %vm1331 = vmand %vm1299, %vm915
        %vm1332 = vmand %vm1300, %vm916
        %vm1333 = vmand %vm1301, %vm917
        %vm1334 = vmand %vm1302, %vm918
        %vm1335 = vmand %vm1303, %vm919
        %vm1336 = vmand %vm1304, %vm920
        %vm1337 = vmand %vm1305, %vm921
        %vm1338 = vmand %vm1306, %vm922
        %vm1339 = vmand %vm1307, %vm923
        %vm1340 = vmand %vm1308, %vm924
        %vm1341 = vmand %vm1309, %vm925
        %vm1342 = vmand %vm1310, %vm926
        %vm1343 = vmand %vm1311, %vm927
        %vm1344 = vmand %vm1312, %vm928
        %vm1345 = vmand %vm1313, %vm929
        %vm1346 = vmand %vm1314, %vm930
        %vm1347 = vmand %vm1315, %vm931
        %vm1348 = vmand %vm1316, %vm932
        %vm1349 = vmand %vm1317, %vm933
        %vm1350 = vmand %vm1318, %vm934
        %vm1351 = vmand %vm1319, %vm935
        %vm1352 = vmand %vm1320, %vm936
        %vm1353 = vmand %vm1321, %vm937
        %vm1354 = vmand %vm1322, %vm938
        %vm1355 = vmand %vm1323, %vm939
        %vm1356 = vmand %vm1324, %vm940
        %vm1357 = vmand %vm1325, %vm941
        %vm1358 = vmand %vm1326, %vm942
        %vm1359 = vmand %vm1327, %vm943
        %vm1360 = vmand %vm1328, %vm944
        %vm1361 = vmand %vm1329, %vm977
        %vm1362 = vmand %vm1330, %vm978
        %vm1363 = vmand %vm1331, %vm979
        %vm1364 = vmand %vm1332, %vm980
        %vm1365 = vmand %vm1333, %vm981
        %vm1366 = vmand %vm1334, %vm982
        %vm1367 = vmand %vm1335, %vm983
        %vm1368 = vmand %vm1336, %vm984
        %vm1369 = vmand %vm1337, %vm985
        %vm1370 = vmand %vm1338, %vm986
        %vm1371 = vmand %vm1339, %vm987
        %vm1372 = vmand %vm1340, %vm988
        %vm1373 = vmand %vm1341, %vm989
        %vm1374 = vmand %vm1342, %vm990
        %vm1375 = vmand %vm1343, %vm991
        %vm1376 = vmand %vm1344, %vm992
        %vm1377 = vmand %vm1345, %vm993
        %vm1378 = vmand %vm1346, %vm994
        %vm1379 = vmand %vm1347, %vm995
        %vm1380 = vmand %vm1348, %vm996
        %vm1381 = vmand %vm1349, %vm997
        %vm1382 = vmand %vm1350, %vm998
        %vm1383 = vmand %vm1351, %vm999
        %vm1384 = vmand %vm1352, %vm1000
        %vm1385 = vmand %vm1353, %vm1001
        %vm1386 = vmand %vm1354, %vm1002
        %vm1387 = vmand %vm1355, %vm1003
        %vm1388 = vmand %vm1356, %vm1004
        %vm1389 = vmand %vm1357, %vm1005
        %vm1390 = vmand %vm1358, %vm1006
        %vm1391 = vmand %vm1359, %vm1007
        %vm1392 = vmand %vm1360, %vm1008
        %vm1393 = vcmp.ge.s32.totalorder %v721, 0
        %vm1394 = vcmp.ge.s32.totalorder %v722, 0
        %vm1395 = vcmp.ge.s32.totalorder %v723, 0
        %vm1396 = vcmp.ge.s32.totalorder %v724, 0
        %vm1397 = vcmp.ge.s32.totalorder %v725, 0
        %vm1398 = vcmp.ge.s32.totalorder %v726, 0
        %vm1399 = vcmp.ge.s32.totalorder %v727, 0
        %vm1400 = vcmp.ge.s32.totalorder %v728, 0
        %vm1401 = vcmp.ge.s32.totalorder %v729, 0
        %vm1402 = vcmp.ge.s32.totalorder %v730, 0
        %vm1403 = vcmp.ge.s32.totalorder %v731, 0
        %vm1404 = vcmp.ge.s32.totalorder %v732, 0
        %vm1405 = vcmp.ge.s32.totalorder %v733, 0
        %vm1406 = vcmp.ge.s32.totalorder %v734, 0
        %vm1407 = vcmp.ge.s32.totalorder %v735, 0
        %vm1408 = vcmp.ge.s32.totalorder %v736, 0
        %vm1409 = vcmp.ge.s32.totalorder %v737, 0
        %vm1410 = vcmp.ge.s32.totalorder %v738, 0
        %vm1411 = vcmp.ge.s32.totalorder %v739, 0
        %vm1412 = vcmp.ge.s32.totalorder %v740, 0
        %vm1413 = vcmp.ge.s32.totalorder %v741, 0
        %vm1414 = vcmp.ge.s32.totalorder %v742, 0
        %vm1415 = vcmp.ge.s32.totalorder %v743, 0
        %vm1416 = vcmp.ge.s32.totalorder %v744, 0
        %vm1417 = vcmp.ge.s32.totalorder %v745, 0
        %vm1418 = vcmp.ge.s32.totalorder %v746, 0
        %vm1419 = vcmp.ge.s32.totalorder %v747, 0
        %vm1420 = vcmp.ge.s32.totalorder %v748, 0
        %vm1421 = vcmp.ge.s32.totalorder %v749, 0
        %vm1422 = vcmp.ge.s32.totalorder %v750, 0
        %vm1423 = vcmp.ge.s32.totalorder %v751, 0
        %vm1424 = vcmp.ge.s32.totalorder %v752, 0
        %vm1425 = vmand %vm849, %vm1393
        %vm1426 = vmand %vm850, %vm1394
        %vm1427 = vmand %vm851, %vm1395
        %vm1428 = vmand %vm852, %vm1396
        %vm1429 = vmand %vm853, %vm1397
        %vm1430 = vmand %vm854, %vm1398
        %vm1431 = vmand %vm855, %vm1399
        %vm1432 = vmand %vm856, %vm1400
        %vm1433 = vmand %vm857, %vm1401
        %vm1434 = vmand %vm858, %vm1402
        %vm1435 = vmand %vm859, %vm1403
        %vm1436 = vmand %vm860, %vm1404
        %vm1437 = vmand %vm861, %vm1405
        %vm1438 = vmand %vm862, %vm1406
        %vm1439 = vmand %vm863, %vm1407
        %vm1440 = vmand %vm864, %vm1408
        %vm1441 = vmand %vm865, %vm1409
        %vm1442 = vmand %vm866, %vm1410
        %vm1443 = vmand %vm867, %vm1411
        %vm1444 = vmand %vm868, %vm1412
        %vm1445 = vmand %vm869, %vm1413
        %vm1446 = vmand %vm870, %vm1414
        %vm1447 = vmand %vm871, %vm1415
        %vm1448 = vmand %vm872, %vm1416
        %vm1449 = vmand %vm873, %vm1417
        %vm1450 = vmand %vm874, %vm1418
        %vm1451 = vmand %vm875, %vm1419
        %vm1452 = vmand %vm876, %vm1420
        %vm1453 = vmand %vm877, %vm1421
        %vm1454 = vmand %vm878, %vm1422
        %vm1455 = vmand %vm879, %vm1423
        %vm1456 = vmand %vm880, %vm1424
        %vm1457 = vcmp.lt.s32.totalorder %v721, 16
        %vm1458 = vcmp.lt.s32.totalorder %v722, 16
        %vm1459 = vcmp.lt.s32.totalorder %v723, 16
        %vm1460 = vcmp.lt.s32.totalorder %v724, 16
        %vm1461 = vcmp.lt.s32.totalorder %v725, 16
        %vm1462 = vcmp.lt.s32.totalorder %v726, 16
        %vm1463 = vcmp.lt.s32.totalorder %v727, 16
        %vm1464 = vcmp.lt.s32.totalorder %v728, 16
        %vm1465 = vcmp.lt.s32.totalorder %v729, 16
        %vm1466 = vcmp.lt.s32.totalorder %v730, 16
        %vm1467 = vcmp.lt.s32.totalorder %v731, 16
        %vm1468 = vcmp.lt.s32.totalorder %v732, 16
        %vm1469 = vcmp.lt.s32.totalorder %v733, 16
        %vm1470 = vcmp.lt.s32.totalorder %v734, 16
        %vm1471 = vcmp.lt.s32.totalorder %v735, 16
        %vm1472 = vcmp.lt.s32.totalorder %v736, 16
        %vm1473 = vcmp.lt.s32.totalorder %v737, 16
        %vm1474 = vcmp.lt.s32.totalorder %v738, 16
        %vm1475 = vcmp.lt.s32.totalorder %v739, 16
        %vm1476 = vcmp.lt.s32.totalorder %v740, 16
        %vm1477 = vcmp.lt.s32.totalorder %v741, 16
        %vm1478 = vcmp.lt.s32.totalorder %v742, 16
        %vm1479 = vcmp.lt.s32.totalorder %v743, 16
        %vm1480 = vcmp.lt.s32.totalorder %v744, 16
        %vm1481 = vcmp.lt.s32.totalorder %v745, 16
        %vm1482 = vcmp.lt.s32.totalorder %v746, 16
        %vm1483 = vcmp.lt.s32.totalorder %v747, 16
        %vm1484 = vcmp.lt.s32.totalorder %v748, 16
        %vm1485 = vcmp.lt.s32.totalorder %v749, 16
        %vm1486 = vcmp.lt.s32.totalorder %v750, 16
        %vm1487 = vcmp.lt.s32.totalorder %v751, 16
        %vm1488 = vcmp.lt.s32.totalorder %v752, 16
        %vm1489 = vmand %vm1425, %vm1457
        %vm1490 = vmand %vm1426, %vm1458
        %vm1491 = vmand %vm1427, %vm1459
        %vm1492 = vmand %vm1428, %vm1460
        %vm1493 = vmand %vm1429, %vm1461
        %vm1494 = vmand %vm1430, %vm1462
        %vm1495 = vmand %vm1431, %vm1463
        %vm1496 = vmand %vm1432, %vm1464
        %vm1497 = vmand %vm1433, %vm1465
        %vm1498 = vmand %vm1434, %vm1466
        %vm1499 = vmand %vm1435, %vm1467
        %vm1500 = vmand %vm1436, %vm1468
        %vm1501 = vmand %vm1437, %vm1469
        %vm1502 = vmand %vm1438, %vm1470
        %vm1503 = vmand %vm1439, %vm1471
        %vm1504 = vmand %vm1440, %vm1472
        %vm1505 = vmand %vm1441, %vm1473
        %vm1506 = vmand %vm1442, %vm1474
        %vm1507 = vmand %vm1443, %vm1475
        %vm1508 = vmand %vm1444, %vm1476
        %vm1509 = vmand %vm1445, %vm1477
        %vm1510 = vmand %vm1446, %vm1478
        %vm1511 = vmand %vm1447, %vm1479
        %vm1512 = vmand %vm1448, %vm1480
        %vm1513 = vmand %vm1449, %vm1481
        %vm1514 = vmand %vm1450, %vm1482
        %vm1515 = vmand %vm1451, %vm1483
        %vm1516 = vmand %vm1452, %vm1484
        %vm1517 = vmand %vm1453, %vm1485
        %vm1518 = vmand %vm1454, %vm1486
        %vm1519 = vmand %vm1455, %vm1487
        %vm1520 = vmand %vm1456, %vm1488
        %vm1521 = vmand %vm1297, %vm1393
        %vm1522 = vmand %vm1298, %vm1394
        %vm1523 = vmand %vm1299, %vm1395
        %vm1524 = vmand %vm1300, %vm1396
        %vm1525 = vmand %vm1301, %vm1397
        %vm1526 = vmand %vm1302, %vm1398
        %vm1527 = vmand %vm1303, %vm1399
        %vm1528 = vmand %vm1304, %vm1400
        %vm1529 = vmand %vm1305, %vm1401
        %vm1530 = vmand %vm1306, %vm1402
        %vm1531 = vmand %vm1307, %vm1403
        %vm1532 = vmand %vm1308, %vm1404
        %vm1533 = vmand %vm1309, %vm1405
        %vm1534 = vmand %vm1310, %vm1406
        %vm1535 = vmand %vm1311, %vm1407
        %vm1536 = vmand %vm1312, %vm1408
        %vm1537 = vmand %vm1313, %vm1409
        %vm1538 = vmand %vm1314, %vm1410
        %vm1539 = vmand %vm1315, %vm1411
        %vm1540 = vmand %vm1316, %vm1412
        %vm1541 = vmand %vm1317, %vm1413
        %vm1542 = vmand %vm1318, %vm1414
        %vm1543 = vmand %vm1319, %vm1415
        %vm1544 = vmand %vm1320, %vm1416
        %vm1545 = vmand %vm1321, %vm1417
        %vm1546 = vmand %vm1322, %vm1418
        %vm1547 = vmand %vm1323, %vm1419
        %vm1548 = vmand %vm1324, %vm1420
        %vm1549 = vmand %vm1325, %vm1421
        %vm1550 = vmand %vm1326, %vm1422
        %vm1551 = vmand %vm1327, %vm1423
        %vm1552 = vmand %vm1328, %vm1424
        %vm1553 = vmand %vm1521, %vm1457
        %vm1554 = vmand %vm1522, %vm1458
        %vm1555 = vmand %vm1523, %vm1459
        %vm1556 = vmand %vm1524, %vm1460
        %vm1557 = vmand %vm1525, %vm1461
        %vm1558 = vmand %vm1526, %vm1462
        %vm1559 = vmand %vm1527, %vm1463
        %vm1560 = vmand %vm1528, %vm1464
        %vm1561 = vmand %vm1529, %vm1465
        %vm1562 = vmand %vm1530, %vm1466
        %vm1563 = vmand %vm1531, %vm1467
        %vm1564 = vmand %vm1532, %vm1468
        %vm1565 = vmand %vm1533, %vm1469
        %vm1566 = vmand %vm1534, %vm1470
        %vm1567 = vmand %vm1535, %vm1471
        %vm1568 = vmand %vm1536, %vm1472
        %vm1569 = vmand %vm1537, %vm1473
        %vm1570 = vmand %vm1538, %vm1474
        %vm1571 = vmand %vm1539, %vm1475
        %vm1572 = vmand %vm1540, %vm1476
        %vm1573 = vmand %vm1541, %vm1477
        %vm1574 = vmand %vm1542, %vm1478
        %vm1575 = vmand %vm1543, %vm1479
        %vm1576 = vmand %vm1544, %vm1480
        %vm1577 = vmand %vm1545, %vm1481
        %vm1578 = vmand %vm1546, %vm1482
        %vm1579 = vmand %vm1547, %vm1483
        %vm1580 = vmand %vm1548, %vm1484
        %vm1581 = vmand %vm1549, %vm1485
        %vm1582 = vmand %vm1550, %vm1486
        %vm1583 = vmand %vm1551, %vm1487
        %vm1584 = vmand %vm1552, %vm1488
        %v1585 = vadd.s32 %v721, 1
        %v1586 = vadd.s32 %v722, 1
        %v1587 = vadd.s32 %v723, 1
        %v1588 = vadd.s32 %v724, 1
        %v1589 = vadd.s32 %v725, 1
        %v1590 = vadd.s32 %v726, 1
        %v1591 = vadd.s32 %v727, 1
        %v1592 = vadd.s32 %v728, 1
        %v1593 = vadd.s32 %v729, 1
        %v1594 = vadd.s32 %v730, 1
        %v1595 = vadd.s32 %v731, 1
        %v1596 = vadd.s32 %v732, 1
        %v1597 = vadd.s32 %v733, 1
        %v1598 = vadd.s32 %v734, 1
        %v1599 = vadd.s32 %v735, 1
        %v1600 = vadd.s32 %v736, 1
        %v1601 = vadd.s32 %v737, 1
        %v1602 = vadd.s32 %v738, 1
        %v1603 = vadd.s32 %v739, 1
        %v1604 = vadd.s32 %v740, 1
        %v1605 = vadd.s32 %v741, 1
        %v1606 = vadd.s32 %v742, 1
        %v1607 = vadd.s32 %v743, 1
        %v1608 = vadd.s32 %v744, 1
        %v1609 = vadd.s32 %v745, 1
        %v1610 = vadd.s32 %v746, 1
        %v1611 = vadd.s32 %v747, 1
        %v1612 = vadd.s32 %v748, 1
        %v1613 = vadd.s32 %v749, 1
        %v1614 = vadd.s32 %v750, 1
        %v1615 = vadd.s32 %v751, 1
        %v1616 = vadd.s32 %v752, 1
        %vm1617 = vcmp.ge.s32.totalorder %v1585, 0
        %vm1618 = vcmp.ge.s32.totalorder %v1586, 0
        %vm1619 = vcmp.ge.s32.totalorder %v1587, 0
        %vm1620 = vcmp.ge.s32.totalorder %v1588, 0
        %vm1621 = vcmp.ge.s32.totalorder %v1589, 0
        %vm1622 = vcmp.ge.s32.totalorder %v1590, 0
        %vm1623 = vcmp.ge.s32.totalorder %v1591, 0
        %vm1624 = vcmp.ge.s32.totalorder %v1592, 0
        %vm1625 = vcmp.ge.s32.totalorder %v1593, 0
        %vm1626 = vcmp.ge.s32.totalorder %v1594, 0
        %vm1627 = vcmp.ge.s32.totalorder %v1595, 0
        %vm1628 = vcmp.ge.s32.totalorder %v1596, 0
        %vm1629 = vcmp.ge.s32.totalorder %v1597, 0
        %vm1630 = vcmp.ge.s32.totalorder %v1598, 0
        %vm1631 = vcmp.ge.s32.totalorder %v1599, 0
        %vm1632 = vcmp.ge.s32.totalorder %v1600, 0
        %vm1633 = vcmp.ge.s32.totalorder %v1601, 0
        %vm1634 = vcmp.ge.s32.totalorder %v1602, 0
        %vm1635 = vcmp.ge.s32.totalorder %v1603, 0
        %vm1636 = vcmp.ge.s32.totalorder %v1604, 0
        %vm1637 = vcmp.ge.s32.totalorder %v1605, 0
        %vm1638 = vcmp.ge.s32.totalorder %v1606, 0
        %vm1639 = vcmp.ge.s32.totalorder %v1607, 0
        %vm1640 = vcmp.ge.s32.totalorder %v1608, 0
        %vm1641 = vcmp.ge.s32.totalorder %v1609, 0
        %vm1642 = vcmp.ge.s32.totalorder %v1610, 0
        %vm1643 = vcmp.ge.s32.totalorder %v1611, 0
        %vm1644 = vcmp.ge.s32.totalorder %v1612, 0
        %vm1645 = vcmp.ge.s32.totalorder %v1613, 0
        %vm1646 = vcmp.ge.s32.totalorder %v1614, 0
        %vm1647 = vcmp.ge.s32.totalorder %v1615, 0
        %vm1648 = vcmp.ge.s32.totalorder %v1616, 0
        %vm1649 = vmand %vm849, %vm1617
        %vm1650 = vmand %vm850, %vm1618
        %vm1651 = vmand %vm851, %vm1619
        %vm1652 = vmand %vm852, %vm1620
        %vm1653 = vmand %vm853, %vm1621
        %vm1654 = vmand %vm854, %vm1622
        %vm1655 = vmand %vm855, %vm1623
        %vm1656 = vmand %vm856, %vm1624
        %vm1657 = vmand %vm857, %vm1625
        %vm1658 = vmand %vm858, %vm1626
        %vm1659 = vmand %vm859, %vm1627
        %vm1660 = vmand %vm860, %vm1628
        %vm1661 = vmand %vm861, %vm1629
        %vm1662 = vmand %vm862, %vm1630
        %vm1663 = vmand %vm863, %vm1631
        %vm1664 = vmand %vm864, %vm1632
        %vm1665 = vmand %vm865, %vm1633
        %vm1666 = vmand %vm866, %vm1634
        %vm1667 = vmand %vm867, %vm1635
        %vm1668 = vmand %vm868, %vm1636
        %vm1669 = vmand %vm869, %vm1637
        %vm1670 = vmand %vm870, %vm1638
        %vm1671 = vmand %vm871, %vm1639
        %vm1672 = vmand %vm872, %vm1640
        %vm1673 = vmand %vm873, %vm1641
        %vm1674 = vmand %vm874, %vm1642
        %vm1675 = vmand %vm875, %vm1643
        %vm1676 = vmand %vm876, %vm1644
        %vm1677 = vmand %vm877, %vm1645
        %vm1678 = vmand %vm878, %vm1646
        %vm1679 = vmand %vm879, %vm1647
        %vm1680 = vmand %vm880, %vm1648
        %vm1681 = vcmp.lt.s32.totalorder %v1585, 16
        %vm1682 = vcmp.lt.s32.totalorder %v1586, 16
        %vm1683 = vcmp.lt.s32.totalorder %v1587, 16
        %vm1684 = vcmp.lt.s32.totalorder %v1588, 16
        %vm1685 = vcmp.lt.s32.totalorder %v1589, 16
        %vm1686 = vcmp.lt.s32.totalorder %v1590, 16
        %vm1687 = vcmp.lt.s32.totalorder %v1591, 16
        %vm1688 = vcmp.lt.s32.totalorder %v1592, 16
        %vm1689 = vcmp.lt.s32.totalorder %v1593, 16
        %vm1690 = vcmp.lt.s32.totalorder %v1594, 16
        %vm1691 = vcmp.lt.s32.totalorder %v1595, 16
        %vm1692 = vcmp.lt.s32.totalorder %v1596, 16
        %vm1693 = vcmp.lt.s32.totalorder %v1597, 16
        %vm1694 = vcmp.lt.s32.totalorder %v1598, 16
        %vm1695 = vcmp.lt.s32.totalorder %v1599, 16
        %vm1696 = vcmp.lt.s32.totalorder %v1600, 16
        %vm1697 = vcmp.lt.s32.totalorder %v1601, 16
        %vm1698 = vcmp.lt.s32.totalorder %v1602, 16
        %vm1699 = vcmp.lt.s32.totalorder %v1603, 16
        %vm1700 = vcmp.lt.s32.totalorder %v1604, 16
        %vm1701 = vcmp.lt.s32.totalorder %v1605, 16
        %vm1702 = vcmp.lt.s32.totalorder %v1606, 16
        %vm1703 = vcmp.lt.s32.totalorder %v1607, 16
        %vm1704 = vcmp.lt.s32.totalorder %v1608, 16
        %vm1705 = vcmp.lt.s32.totalorder %v1609, 16
        %vm1706 = vcmp.lt.s32.totalorder %v1610, 16
        %vm1707 = vcmp.lt.s32.totalorder %v1611, 16
        %vm1708 = vcmp.lt.s32.totalorder %v1612, 16
        %vm1709 = vcmp.lt.s32.totalorder %v1613, 16
        %vm1710 = vcmp.lt.s32.totalorder %v1614, 16
        %vm1711 = vcmp.lt.s32.totalorder %v1615, 16
        %vm1712 = vcmp.lt.s32.totalorder %v1616, 16
        %vm1713 = vmand %vm1649, %vm1681
        %vm1714 = vmand %vm1650, %vm1682
        %vm1715 = vmand %vm1651, %vm1683
        %vm1716 = vmand %vm1652, %vm1684
        %vm1717 = vmand %vm1653, %vm1685
        %vm1718 = vmand %vm1654, %vm1686
        %vm1719 = vmand %vm1655, %vm1687
        %vm1720 = vmand %vm1656, %vm1688
        %vm1721 = vmand %vm1657, %vm1689
        %vm1722 = vmand %vm1658, %vm1690
        %vm1723 = vmand %vm1659, %vm1691
        %vm1724 = vmand %vm1660, %vm1692
        %vm1725 = vmand %vm1661, %vm1693
        %vm1726 = vmand %vm1662, %vm1694
        %vm1727 = vmand %vm1663, %vm1695
        %vm1728 = vmand %vm1664, %vm1696
        %vm1729 = vmand %vm1665, %vm1697
        %vm1730 = vmand %vm1666, %vm1698
        %vm1731 = vmand %vm1667, %vm1699
        %vm1732 = vmand %vm1668, %vm1700
        %vm1733 = vmand %vm1669, %vm1701
        %vm1734 = vmand %vm1670, %vm1702
        %vm1735 = vmand %vm1671, %vm1703
        %vm1736 = vmand %vm1672, %vm1704
        %vm1737 = vmand %vm1673, %vm1705
        %vm1738 = vmand %vm1674, %vm1706
        %vm1739 = vmand %vm1675, %vm1707
        %vm1740 = vmand %vm1676, %vm1708
        %vm1741 = vmand %vm1677, %vm1709
        %vm1742 = vmand %vm1678, %vm1710
        %vm1743 = vmand %vm1679, %vm1711
        %vm1744 = vmand %vm1680, %vm1712
        %vm1745 = vmand %vm1105, %vm1617
        %vm1746 = vmand %vm1106, %vm1618
        %vm1747 = vmand %vm1107, %vm1619
        %vm1748 = vmand %vm1108, %vm1620
        %vm1749 = vmand %vm1109, %vm1621
        %vm1750 = vmand %vm1110, %vm1622
        %vm1751 = vmand %vm1111, %vm1623
        %vm1752 = vmand %vm1112, %vm1624
        %vm1753 = vmand %vm1113, %vm1625
        %vm1754 = vmand %vm1114, %vm1626
        %vm1755 = vmand %vm1115, %vm1627
        %vm1756 = vmand %vm1116, %vm1628
        %vm1757 = vmand %vm1117, %vm1629
        %vm1758 = vmand %vm1118, %vm1630
        %vm1759 = vmand %vm1119, %vm1631
        %vm1760 = vmand %vm1120, %vm1632
        %vm1761 = vmand %vm1121, %vm1633
        %vm1762 = vmand %vm1122, %vm1634
        %vm1763 = vmand %vm1123, %vm1635
        %vm1764 = vmand %vm1124, %vm1636
        %vm1765 = vmand %vm1125, %vm1637
        %vm1766 = vmand %vm1126, %vm1638
        %vm1767 = vmand %vm1127, %vm1639
        %vm1768 = vmand %vm1128, %vm1640
        %vm1769 = vmand %vm1129, %vm1641
        %vm1770 = vmand %vm1130, %vm1642
        %vm1771 = vmand %vm1131, %vm1643
        %vm1772 = vmand %vm1132, %vm1644
        %vm1773 = vmand %vm1133, %vm1645
        %vm1774 = vmand %vm1134, %vm1646
        %vm1775 = vmand %vm1135, %vm1647
        %vm1776 = vmand %vm1136, %vm1648
        %vm1777 = vmand %vm1745, %vm1681
        %vm1778 = vmand %vm1746, %vm1682
        %vm1779 = vmand %vm1747, %vm1683
        %vm1780 = vmand %vm1748, %vm1684
        %vm1781 = vmand %vm1749, %vm1685
        %vm1782 = vmand %vm1750, %vm1686
        %vm1783 = vmand %vm1751, %vm1687
        %vm1784 = vmand %vm1752, %vm1688
        %vm1785 = vmand %vm1753, %vm1689
        %vm1786 = vmand %vm1754, %vm1690
        %vm1787 = vmand %vm1755, %vm1691
        %vm1788 = vmand %vm1756, %vm1692
        %vm1789 = vmand %vm1757, %vm1693
        %vm1790 = vmand %vm1758, %vm1694
        %vm1791 = vmand %vm1759, %vm1695
        %vm1792 = vmand %vm1760, %vm1696
        %vm1793 = vmand %vm1761, %vm1697
        %vm1794 = vmand %vm1762, %vm1698
        %vm1795 = vmand %vm1763, %vm1699
        %vm1796 = vmand %vm1764, %vm1700
        %vm1797 = vmand %vm1765, %vm1701
        %vm1798 = vmand %vm1766, %vm1702
        %vm1799 = vmand %vm1767, %vm1703
        %vm1800 = vmand %vm1768, %vm1704
        %vm1801 = vmand %vm1769, %vm1705
        %vm1802 = vmand %vm1770, %vm1706
        %vm1803 = vmand %vm1771, %vm1707
        %vm1804 = vmand %vm1772, %vm1708
        %vm1805 = vmand %vm1773, %vm1709
        %vm1806 = vmand %vm1774, %vm1710
        %vm1807 = vmand %vm1775, %vm1711
        %vm1808 = vmand %vm1776, %vm1712
        %vm1809 = vmand %vm1297, %vm1617
        %vm1810 = vmand %vm1298, %vm1618
        %vm1811 = vmand %vm1299, %vm1619
        %vm1812 = vmand %vm1300, %vm1620
        %vm1813 = vmand %vm1301, %vm1621
        %vm1814 = vmand %vm1302, %vm1622
        %vm1815 = vmand %vm1303, %vm1623
        %vm1816 = vmand %vm1304, %vm1624
        %vm1817 = vmand %vm1305, %vm1625
        %vm1818 = vmand %vm1306, %vm1626
        %vm1819 = vmand %vm1307, %vm1627
        %vm1820 = vmand %vm1308, %vm1628
        %vm1821 = vmand %vm1309, %vm1629
        %vm1822 = vmand %vm1310, %vm1630
        %vm1823 = vmand %vm1311, %vm1631
        %vm1824 = vmand %vm1312, %vm1632
        %vm1825 = vmand %vm1313, %vm1633
        %vm1826 = vmand %vm1314, %vm1634
        %vm1827 = vmand %vm1315, %vm1635
        %vm1828 = vmand %vm1316, %vm1636
        %vm1829 = vmand %vm1317, %vm1637
        %vm1830 = vmand %vm1318, %vm1638
        %vm1831 = vmand %vm1319, %vm1639
        %vm1832 = vmand %vm1320, %vm1640
        %vm1833 = vmand %vm1321, %vm1641
        %vm1834 = vmand %vm1322, %vm1642
        %vm1835 = vmand %vm1323, %vm1643
        %vm1836 = vmand %vm1324, %vm1644
        %vm1837 = vmand %vm1325, %vm1645
        %vm1838 = vmand %vm1326, %vm1646
        %vm1839 = vmand %vm1327, %vm1647
        %vm1840 = vmand %vm1328, %vm1648
        %vm1841 = vmand %vm1809, %vm1681
        %vm1842 = vmand %vm1810, %vm1682
        %vm1843 = vmand %vm1811, %vm1683
        %vm1844 = vmand %vm1812, %vm1684
        %vm1845 = vmand %vm1813, %vm1685
        %vm1846 = vmand %vm1814, %vm1686
        %vm1847 = vmand %vm1815, %vm1687
        %vm1848 = vmand %vm1816, %vm1688
        %vm1849 = vmand %vm1817, %vm1689
        %vm1850 = vmand %vm1818, %vm1690
        %vm1851 = vmand %vm1819, %vm1691
        %vm1852 = vmand %vm1820, %vm1692
        %vm1853 = vmand %vm1821, %vm1693
        %vm1854 = vmand %vm1822, %vm1694
        %vm1855 = vmand %vm1823, %vm1695
        %vm1856 = vmand %vm1824, %vm1696
        %vm1857 = vmand %vm1825, %vm1697
        %vm1858 = vmand %vm1826, %vm1698
        %vm1859 = vmand %vm1827, %vm1699
        %vm1860 = vmand %vm1828, %vm1700
        %vm1861 = vmand %vm1829, %vm1701
        %vm1862 = vmand %vm1830, %vm1702
        %vm1863 = vmand %vm1831, %vm1703
        %vm1864 = vmand %vm1832, %vm1704
        %vm1865 = vmand %vm1833, %vm1705
        %vm1866 = vmand %vm1834, %vm1706
        %vm1867 = vmand %vm1835, %vm1707
        %vm1868 = vmand %vm1836, %vm1708
        %vm1869 = vmand %vm1837, %vm1709
        %vm1870 = vmand %vm1838, %vm1710
        %vm1871 = vmand %vm1839, %vm1711
        %vm1872 = vmand %vm1840, %vm1712
        %v1873 = vld [vmem:[%s654] sm:$0xff]
        %v1874 = vld [vmem:[%s654 + $0x8] sm:$0xff]
        %v1875 = vld [vmem:[%s654 + $0x10] sm:$0xff]
        %v1876 = vld [vmem:[%s654 + $0x18] sm:$0xff]
        %v1877 = vld [vmem:[%s654 + $0x20] sm:$0xff]
        %v1878 = vld [vmem:[%s654 + $0x28] sm:$0xff]
        %v1879 = vld [vmem:[%s654 + $0x30] sm:$0xff]
        %v1880 = vld [vmem:[%s654 + $0x38] sm:$0xff]
        %v1881 = vld [vmem:[%s654 + $0x40] sm:$0xff]
        %v1882 = vld [vmem:[%s654 + $0x48] sm:$0xff]
        %v1883 = vld [vmem:[%s654 + $0x50] sm:$0xff]
        %v1884 = vld [vmem:[%s654 + $0x58] sm:$0xff]
        %v1885 = vld [vmem:[%s654 + $0x60] sm:$0xff]
        %v1886 = vld [vmem:[%s654 + $0x68] sm:$0xff]
        %v1887 = vld [vmem:[%s654 + $0x70] sm:$0xff]
        %v1888 = vld [vmem:[%s654 + $0x78] sm:$0xff]
        %v1889 = vld [vmem:[%s654 + $0x80] sm:$0xff]
        %v1890 = vld [vmem:[%s654 + $0x88] sm:$0xff]
        %v1891 = vld [vmem:[%s654 + $0x90] sm:$0xff]
        %v1892 = vld [vmem:[%s654 + $0x98] sm:$0xff]
        %v1893 = vld [vmem:[%s654 + $0xa0] sm:$0xff]
        %v1894 = vld [vmem:[%s654 + $0xa8] sm:$0xff]
        %v1895 = vld [vmem:[%s654 + $0xb0] sm:$0xff]
        %v1896 = vld [vmem:[%s654 + $0xb8] sm:$0xff]
        %v1897 = vld [vmem:[%s654 + $0xc0] sm:$0xff]
        %v1898 = vld [vmem:[%s654 + $0xc8] sm:$0xff]
        %v1899 = vld [vmem:[%s654 + $0xd0] sm:$0xff]
        %v1900 = vld [vmem:[%s654 + $0xd8] sm:$0xff]
        %v1901 = vld [vmem:[%s654 + $0xe0] sm:$0xff]
        %v1902 = vld [vmem:[%s654 + $0xe8] sm:$0xff]
        %v1903 = vld [vmem:[%s654 + $0xf0] sm:$0xff]
        %v1904 = vld [vmem:[%s654 + $0xf8] sm:$0xff]
        %v1905 = vld [vmem:[%s1] sm:$0xff]
        %v1906 = vld [vmem:[%s1 + $0x8] sm:$0xff]
        %v1907 = vld [vmem:[%s1 + $0x10] sm:$0xff]
        %v1908 = vld [vmem:[%s1 + $0x18] sm:$0xff]
        %v1909 = vld [vmem:[%s2] sm:$0xff]
        %v1910 = vld [vmem:[%s2 + $0x8] sm:$0xff]
        %v1911 = vld [vmem:[%s2 + $0x10] sm:$0xff]
        %v1912 = vld [vmem:[%s2 + $0x18] sm:$0xff]
        %vm1913 = vcmask 261120
        %v1914 = vsel %vm1913, %v1873, 0.0
        %v1915 = vsel %vm1913, %v1874, 0.0
        %v1916 = vadd.f32 %v1914, %v1915
        %v1917 = vsel %vm1913, %v1875, 0.0
        %v1918 = vadd.f32 %v1916, %v1917
        %v1919 = vsel %vm1913, %v1876, 0.0
        %v1920 = vadd.f32 %v1918, %v1919
        %v1921 = vsel %vm1913, %v1877, 0.0
        %v1922 = vadd.f32 %v1920, %v1921
        %v1923 = vsel %vm1913, %v1878, 0.0
        %v1924 = vadd.f32 %v1922, %v1923
        %v1925 = vsel %vm1913, %v1879, 0.0
        %v1926 = vadd.f32 %v1924, %v1925
        %v1927 = vsel %vm1913, %v1880, 0.0
        %v1928 = vadd.f32 %v1926, %v1927
        %v1929 = vsel %vm1913, %v1881, 0.0
        %v1930 = vadd.f32 %v1928, %v1929
        %v1931 = vsel %vm1913, %v1882, 0.0
        %v1932 = vadd.f32 %v1930, %v1931
        %v1933 = vsel %vm1913, %v1883, 0.0
        %v1934 = vadd.f32 %v1932, %v1933
        %v1935 = vsel %vm1913, %v1884, 0.0
        %v1936 = vadd.f32 %v1934, %v1935
        %v1937 = vsel %vm1913, %v1885, 0.0
        %v1938 = vadd.f32 %v1936, %v1937
        %v1939 = vsel %vm1913, %v1886, 0.0
        %v1940 = vadd.f32 %v1938, %v1939
        %v1941 = vsel %vm1913, %v1887, 0.0
        %v1942 = vadd.f32 %v1940, %v1941
        %v1943 = vsel %vm1913, %v1888, 0.0
        %v1944 = vadd.f32 %v1942, %v1943
        %v1945 = vsel %vm1913, %v1889, 0.0
        %v1946 = vadd.f32 %v1944, %v1945
        %v1947 = vsel %vm1913, %v1890, 0.0
        %v1948 = vadd.f32 %v1946, %v1947
        %v1949 = vsel %vm1913, %v1891, 0.0
        %v1950 = vadd.f32 %v1948, %v1949
        %v1951 = vsel %vm1913, %v1892, 0.0
        %v1952 = vadd.f32 %v1950, %v1951
        %v1953 = vsel %vm1913, %v1893, 0.0
        %v1954 = vadd.f32 %v1952, %v1953
        %v1955 = vsel %vm1913, %v1894, 0.0
        %v1956 = vadd.f32 %v1954, %v1955
        %v1957 = vsel %vm1913, %v1895, 0.0
        %v1958 = vadd.f32 %v1956, %v1957
        %v1959 = vsel %vm1913, %v1896, 0.0
        %v1960 = vadd.f32 %v1958, %v1959
        %v1961 = vsel %vm1913, %v1897, 0.0
        %v1962 = vadd.f32 %v1960, %v1961
        %v1963 = vsel %vm1913, %v1898, 0.0
        %v1964 = vadd.f32 %v1962, %v1963
        %v1965 = vsel %vm1913, %v1899, 0.0
        %v1966 = vadd.f32 %v1964, %v1965
        %v1967 = vsel %vm1913, %v1900, 0.0
        %v1968 = vadd.f32 %v1966, %v1967
        %v1969 = vsel %vm1913, %v1901, 0.0
        %v1970 = vadd.f32 %v1968, %v1969
        %v1971 = vsel %vm1913, %v1902, 0.0
        %v1972 = vadd.f32 %v1970, %v1971
        %v1973 = vsel %vm1913, %v1903, 0.0
        %v1974 = vadd.f32 %v1972, %v1973
        %v1975 = vsel %vm1913, %v1904, 0.0
        %v1976 = vadd.f32 %v1974, %v1975
        %v1977 = vrot.slane %v1976, 4
        %v1978 = vadd.f32 %v1976, %v1977
        %v1979 = vrot.slane %v1978, 2
        %v1980 = vadd.f32 %v1978, %v1979
        %v1981 = vrot.slane %v1980, 1
        %v1982 = vadd.f32 %v1980, %v1981
        %v1984 = vsel %vm1913, %v1982, 0
        %1986 = vmatprep.subr.mxu0 0.0
        %1987 = vmatpush1.msra.mxu0 %v1905
        %1988 = vmatprep.subr.mxu0 0.0
        %1989 = vmatpush1.msra.mxu0 %v1906
        %1990 = vmatprep.subr.mxu0 0.0
        %1991 = vmatpush1.msra.mxu0 %v1907
        %1992 = vmatprep.subr.mxu0 0.0
        %1993 = vmatpush1.msra.mxu0 %v1908
        %1994 = vmatprep.subr.mxu0 0.0
        %1995 = vmatpush1.msra.mxu0 0.0
        %1996 = vmatprep.subr.mxu0 0.0
        %1997 = vmatpush1.msra.mxu0 0.0
        %1998 = vmatprep.subr.mxu0 0.0
        %1999 = vmatpush1.msra.mxu0 0.0
        %2000 = vmatprep.subr.mxu0 0.0
        %2001 = vmatpush1.msra.mxu0 0.0
        %2002 = vmatprep.subr.mxu0 0.0
        %2003 = vmatpush1.msra.mxu0 0.0
        %2004 = vmatprep.subr.mxu0 0.0
        %2005 = vmatpush1.msra.mxu0 0.0
        %2006 = vmatprep.subr.mxu0 0.0
        %2007 = vmatpush1.msra.mxu0 0.0
        %2008 = vmatprep.subr.mxu0 0.0
        %2009 = vmatpush1.msra.mxu0 0.0
        %2010 = vmatprep.subr.mxu0 0.0
        %2011 = vmatpush1.msra.mxu0 0.0
        %2012 = vmatprep.subr.mxu0 0.0
        %2013 = vmatpush1.msra.mxu0 0.0
        %2014 = vmatprep.subr.mxu0 0.0
        %2015 = vmatpush1.msra.mxu0 0.0
        %2016 = vmatprep.subr.mxu0 0.0
        %2017 = vmatpush1.msra.mxu0 0.0
        %2018 = vmatprep.subr.mxu0 0.0
        %2019 = vmatpush1.msra.mxu0 0.0
        %2020 = vmatprep.subr.mxu0 0.0
        %2021 = vmatpush1.msra.mxu0 0.0
        %2022 = vmatprep.subr.mxu0 0.0
        %2023 = vmatpush1.msra.mxu0 0.0
        %2024 = vmatprep.subr.mxu0 0.0
        %2025 = vmatpush1.msra.mxu0 0.0
        %2026 = vmatprep.subr.mxu0 0.0
        %2027 = vmatpush1.msra.mxu0 0.0
        %2028 = vmatprep.subr.mxu0 0.0
        %2029 = vmatpush1.msra.mxu0 0.0
        %2030 = vmatprep.subr.mxu0 0.0
        %2031 = vmatpush1.msra.mxu0 0.0
        %2032 = vmatprep.subr.mxu0 0.0
        %2033 = vmatpush1.msra.mxu0 0.0
        %2034 = vmatprep.subr.mxu0 0.0
        %2035 = vmatpush1.msra.mxu0 0.0
        %2036 = vmatprep.subr.mxu0 0.0
        %2037 = vmatpush1.msra.mxu0 0.0
        %2038 = vmatprep.subr.mxu0 0.0
        %2039 = vmatpush1.msra.mxu0 0.0
        %2040 = vmatprep.subr.mxu0 0.0
        %2041 = vmatpush1.msra.mxu0 0.0
        %2042 = vmatprep.subr.mxu0 0.0
        %2043 = vmatpush1.msra.mxu0 0.0
        %2044 = vmatprep.subr.mxu0 0.0
        %2045 = vmatpush1.msra.mxu0 0.0
        %2046 = vmatprep.subr.mxu0 0.0
        %2047 = vmatpush1.msra.mxu0 0.0
        %2048 = vmatprep.subr.mxu0 0.0
        %2049 = vmatpush1.msra.mxu0 0.0
        %2050 = vmatprep.mubr.f32.mxu0 0.0
        %2051 = vmatmul.mubr.f32.gmra.mrb[0].mxu0 %v1984
        %v2052 = vpop.f32.mrb[0].mxu0
        %v2053 = vadd.f32 0.0, %v2052
        %v2054 = vpop.f32.mrb[0].mxu0
        %2055 = vdwg.mxu0
        %v2057 = vsel %vm1913, %v2053, 0
        %2059 = vmatprep.subr.mxu0 0.0
        %2060 = vmatpush1.msra.mxu0 %v1909
        %2061 = vmatprep.subr.mxu0 0.0
        %2062 = vmatpush1.msra.mxu0 %v1910
        %2063 = vmatprep.subr.mxu0 0.0
        %2064 = vmatpush1.msra.mxu0 %v1911
        %2065 = vmatprep.subr.mxu0 0.0
        %2066 = vmatpush1.msra.mxu0 %v1912
        %2067 = vmatprep.subr.mxu0 0.0
        %2068 = vmatpush1.msra.mxu0 0.0
        %2069 = vmatprep.subr.mxu0 0.0
        %2070 = vmatpush1.msra.mxu0 0.0
        %2071 = vmatprep.subr.mxu0 0.0
        %2072 = vmatpush1.msra.mxu0 0.0
        %2073 = vmatprep.subr.mxu0 0.0
        %2074 = vmatpush1.msra.mxu0 0.0
        %2075 = vmatprep.subr.mxu0 0.0
        %2076 = vmatpush1.msra.mxu0 0.0
        %2077 = vmatprep.subr.mxu0 0.0
        %2078 = vmatpush1.msra.mxu0 0.0
        %2079 = vmatprep.subr.mxu0 0.0
        %2080 = vmatpush1.msra.mxu0 0.0
        %2081 = vmatprep.subr.mxu0 0.0
        %2082 = vmatpush1.msra.mxu0 0.0
        %2083 = vmatprep.subr.mxu0 0.0
        %2084 = vmatpush1.msra.mxu0 0.0
        %2085 = vmatprep.subr.mxu0 0.0
        %2086 = vmatpush1.msra.mxu0 0.0
        %2087 = vmatprep.subr.mxu0 0.0
        %2088 = vmatpush1.msra.mxu0 0.0
        %2089 = vmatprep.subr.mxu0 0.0
        %2090 = vmatpush1.msra.mxu0 0.0
        %2091 = vmatprep.subr.mxu0 0.0
        %2092 = vmatpush1.msra.mxu0 0.0
        %2093 = vmatprep.subr.mxu0 0.0
        %2094 = vmatpush1.msra.mxu0 0.0
        %2095 = vmatprep.subr.mxu0 0.0
        %2096 = vmatpush1.msra.mxu0 0.0
        %2097 = vmatprep.subr.mxu0 0.0
        %2098 = vmatpush1.msra.mxu0 0.0
        %2099 = vmatprep.subr.mxu0 0.0
        %2100 = vmatpush1.msra.mxu0 0.0
        %2101 = vmatprep.subr.mxu0 0.0
        %2102 = vmatpush1.msra.mxu0 0.0
        %2103 = vmatprep.subr.mxu0 0.0
        %2104 = vmatpush1.msra.mxu0 0.0
        %2105 = vmatprep.subr.mxu0 0.0
        %2106 = vmatpush1.msra.mxu0 0.0
        %2107 = vmatprep.subr.mxu0 0.0
        %2108 = vmatpush1.msra.mxu0 0.0
        %2109 = vmatprep.subr.mxu0 0.0
        %2110 = vmatpush1.msra.mxu0 0.0
        %2111 = vmatprep.subr.mxu0 0.0
        %2112 = vmatpush1.msra.mxu0 0.0
        %2113 = vmatprep.subr.mxu0 0.0
        %2114 = vmatpush1.msra.mxu0 0.0
        %2115 = vmatprep.subr.mxu0 0.0
        %2116 = vmatpush1.msra.mxu0 0.0
        %2117 = vmatprep.subr.mxu0 0.0
        %2118 = vmatpush1.msra.mxu0 0.0
        %2119 = vmatprep.subr.mxu0 0.0
        %2120 = vmatpush1.msra.mxu0 0.0
        %2121 = vmatprep.subr.mxu0 0.0
        %2122 = vmatpush1.msra.mxu0 0.0
        %2123 = vmatprep.mubr.f32.mxu0 0.0
        %2124 = vmatmul.mubr.f32.gmra.mrb[0].mxu0 %v2057
        %v2125 = vpop.f32.mrb[0].mxu0
        %v2126 = vadd.f32 0.0, %v2125
        %v2127 = vpop.f32.mrb[0].mxu0
        %2128 = vdwg.mxu0
        %v2129 = vlaneseq
        %v2130 = vshrl.u32 %v2129, 7
        %v2131 = vsub.s32 0, %v2130
        %v2132 = vrot.slane %v2126, %v2131
        %v2133 = vsub.f32 %v1873, %v2132
        %v2134 = vsub.f32 %v1874, %v2132
        %v2135 = vsub.f32 %v1875, %v2132
        %v2136 = vsub.f32 %v1876, %v2132
        %v2137 = vsub.f32 %v1877, %v2132
        %v2138 = vsub.f32 %v1878, %v2132
        %v2139 = vsub.f32 %v1879, %v2132
        %v2140 = vsub.f32 %v1880, %v2132
        %v2141 = vsub.f32 %v1881, %v2132
        %v2142 = vsub.f32 %v1882, %v2132
        %v2143 = vsub.f32 %v1883, %v2132
        %v2144 = vsub.f32 %v1884, %v2132
        %v2145 = vsub.f32 %v1885, %v2132
        %v2146 = vsub.f32 %v1886, %v2132
        %v2147 = vsub.f32 %v1887, %v2132
        %v2148 = vsub.f32 %v1888, %v2132
        %v2149 = vsub.f32 %v1889, %v2132
        %v2150 = vsub.f32 %v1890, %v2132
        %v2151 = vsub.f32 %v1891, %v2132
        %v2152 = vsub.f32 %v1892, %v2132
        %v2153 = vsub.f32 %v1893, %v2132
        %v2154 = vsub.f32 %v1894, %v2132
        %v2155 = vsub.f32 %v1895, %v2132
        %v2156 = vsub.f32 %v1896, %v2132
        %v2157 = vsub.f32 %v1897, %v2132
        %v2158 = vsub.f32 %v1898, %v2132
        %v2159 = vsub.f32 %v1899, %v2132
        %v2160 = vsub.f32 %v1900, %v2132
        %v2161 = vsub.f32 %v1901, %v2132
        %v2162 = vsub.f32 %v1902, %v2132
        %v2163 = vsub.f32 %v1903, %v2132
        %v2164 = vsub.f32 %v1904, %v2132
        %v2165 = vmul.f32 %v2133, %v2133
        %v2166 = vmul.f32 %v2134, %v2134
        %v2167 = vmul.f32 %v2135, %v2135
        %v2168 = vmul.f32 %v2136, %v2136
        %v2169 = vmul.f32 %v2137, %v2137
        %v2170 = vmul.f32 %v2138, %v2138
        %v2171 = vmul.f32 %v2139, %v2139
        %v2172 = vmul.f32 %v2140, %v2140
        %v2173 = vmul.f32 %v2141, %v2141
        %v2174 = vmul.f32 %v2142, %v2142
        %v2175 = vmul.f32 %v2143, %v2143
        %v2176 = vmul.f32 %v2144, %v2144
        %v2177 = vmul.f32 %v2145, %v2145
        %v2178 = vmul.f32 %v2146, %v2146
        %v2179 = vmul.f32 %v2147, %v2147
        %v2180 = vmul.f32 %v2148, %v2148
        %v2181 = vmul.f32 %v2149, %v2149
        %v2182 = vmul.f32 %v2150, %v2150
        %v2183 = vmul.f32 %v2151, %v2151
        %v2184 = vmul.f32 %v2152, %v2152
        %v2185 = vmul.f32 %v2153, %v2153
        %v2186 = vmul.f32 %v2154, %v2154
        %v2187 = vmul.f32 %v2155, %v2155
        %v2188 = vmul.f32 %v2156, %v2156
        %v2189 = vmul.f32 %v2157, %v2157
        %v2190 = vmul.f32 %v2158, %v2158
        %v2191 = vmul.f32 %v2159, %v2159
        %v2192 = vmul.f32 %v2160, %v2160
        %v2193 = vmul.f32 %v2161, %v2161
        %v2194 = vmul.f32 %v2162, %v2162
        %v2195 = vmul.f32 %v2163, %v2163
        %v2196 = vmul.f32 %v2164, %v2164
        %v2197 = vsel %vm1913, %v2165, 0.0
        %v2198 = vsel %vm1913, %v2166, 0.0
        %v2199 = vadd.f32 %v2197, %v2198
        %v2200 = vsel %vm1913, %v2167, 0.0
        %v2201 = vadd.f32 %v2199, %v2200
        %v2202 = vsel %vm1913, %v2168, 0.0
        %v2203 = vadd.f32 %v2201, %v2202
        %v2204 = vsel %vm1913, %v2169, 0.0
        %v2205 = vadd.f32 %v2203, %v2204
        %v2206 = vsel %vm1913, %v2170, 0.0
        %v2207 = vadd.f32 %v2205, %v2206
        %v2208 = vsel %vm1913, %v2171, 0.0
        %v2209 = vadd.f32 %v2207, %v2208
        %v2210 = vsel %vm1913, %v2172, 0.0
        %v2211 = vadd.f32 %v2209, %v2210
        %v2212 = vsel %vm1913, %v2173, 0.0
        %v2213 = vadd.f32 %v2211, %v2212
        %v2214 = vsel %vm1913, %v2174, 0.0
        %v2215 = vadd.f32 %v2213, %v2214
        %v2216 = vsel %vm1913, %v2175, 0.0
        %v2217 = vadd.f32 %v2215, %v2216
        %v2218 = vsel %vm1913, %v2176, 0.0
        %v2219 = vadd.f32 %v2217, %v2218
        %v2220 = vsel %vm1913, %v2177, 0.0
        %v2221 = vadd.f32 %v2219, %v2220
        %v2222 = vsel %vm1913, %v2178, 0.0
        %v2223 = vadd.f32 %v2221, %v2222
        %v2224 = vsel %vm1913, %v2179, 0.0
        %v2225 = vadd.f32 %v2223, %v2224
        %v2226 = vsel %vm1913, %v2180, 0.0
        %v2227 = vadd.f32 %v2225, %v2226
        %v2228 = vsel %vm1913, %v2181, 0.0
        %v2229 = vadd.f32 %v2227, %v2228
        %v2230 = vsel %vm1913, %v2182, 0.0
        %v2231 = vadd.f32 %v2229, %v2230
        %v2232 = vsel %vm1913, %v2183, 0.0
        %v2233 = vadd.f32 %v2231, %v2232
        %v2234 = vsel %vm1913, %v2184, 0.0
        %v2235 = vadd.f32 %v2233, %v2234
        %v2236 = vsel %vm1913, %v2185, 0.0
        %v2237 = vadd.f32 %v2235, %v2236
        %v2238 = vsel %vm1913, %v2186, 0.0
        %v2239 = vadd.f32 %v2237, %v2238
        %v2240 = vsel %vm1913, %v2187, 0.0
        %v2241 = vadd.f32 %v2239, %v2240
        %v2242 = vsel %vm1913, %v2188, 0.0
        %v2243 = vadd.f32 %v2241, %v2242
        %v2244 = vsel %vm1913, %v2189, 0.0
        %v2245 = vadd.f32 %v2243, %v2244
        %v2246 = vsel %vm1913, %v2190, 0.0
        %v2247 = vadd.f32 %v2245, %v2246
        %v2248 = vsel %vm1913, %v2191, 0.0
        %v2249 = vadd.f32 %v2247, %v2248
        %v2250 = vsel %vm1913, %v2192, 0.0
        %v2251 = vadd.f32 %v2249, %v2250
        %v2252 = vsel %vm1913, %v2193, 0.0
        %v2253 = vadd.f32 %v2251, %v2252
        %v2254 = vsel %vm1913, %v2194, 0.0
        %v2255 = vadd.f32 %v2253, %v2254
        %v2256 = vsel %vm1913, %v2195, 0.0
        %v2257 = vadd.f32 %v2255, %v2256
        %v2258 = vsel %vm1913, %v2196, 0.0
        %v2259 = vadd.f32 %v2257, %v2258
        %v2260 = vrot.slane %v2259, 4
        %v2261 = vadd.f32 %v2259, %v2260
        %v2262 = vrot.slane %v2261, 2
        %v2263 = vadd.f32 %v2261, %v2262
        %v2264 = vrot.slane %v2263, 1
        %v2265 = vadd.f32 %v2263, %v2264
        %v2267 = vsel %vm1913, %v2265, 0
        %2269 = vmatprep.subr.mxu0 0.0
        %2270 = vmatpush1.msra.mxu0 %v1905
        %2271 = vmatprep.subr.mxu0 0.0
        %2272 = vmatpush1.msra.mxu0 %v1906
        %2273 = vmatprep.subr.mxu0 0.0
        %2274 = vmatpush1.msra.mxu0 %v1907
        %2275 = vmatprep.subr.mxu0 0.0
        %2276 = vmatpush1.msra.mxu0 %v1908
        %2277 = vmatprep.subr.mxu0 0.0
        %2278 = vmatpush1.msra.mxu0 0.0
        %2279 = vmatprep.subr.mxu0 0.0
        %2280 = vmatpush1.msra.mxu0 0.0
        %2281 = vmatprep.subr.mxu0 0.0
        %2282 = vmatpush1.msra.mxu0 0.0
        %2283 = vmatprep.subr.mxu0 0.0
        %2284 = vmatpush1.msra.mxu0 0.0
        %2285 = vmatprep.subr.mxu0 0.0
        %2286 = vmatpush1.msra.mxu0 0.0
        %2287 = vmatprep.subr.mxu0 0.0
        %2288 = vmatpush1.msra.mxu0 0.0
        %2289 = vmatprep.subr.mxu0 0.0
        %2290 = vmatpush1.msra.mxu0 0.0
        %2291 = vmatprep.subr.mxu0 0.0
        %2292 = vmatpush1.msra.mxu0 0.0
        %2293 = vmatprep.subr.mxu0 0.0
        %2294 = vmatpush1.msra.mxu0 0.0
        %2295 = vmatprep.subr.mxu0 0.0
        %2296 = vmatpush1.msra.mxu0 0.0
        %2297 = vmatprep.subr.mxu0 0.0
        %2298 = vmatpush1.msra.mxu0 0.0
        %2299 = vmatprep.subr.mxu0 0.0
        %2300 = vmatpush1.msra.mxu0 0.0
        %2301 = vmatprep.subr.mxu0 0.0
        %2302 = vmatpush1.msra.mxu0 0.0
        %2303 = vmatprep.subr.mxu0 0.0
        %2304 = vmatpush1.msra.mxu0 0.0
        %2305 = vmatprep.subr.mxu0 0.0
        %2306 = vmatpush1.msra.mxu0 0.0
        %2307 = vmatprep.subr.mxu0 0.0
        %2308 = vmatpush1.msra.mxu0 0.0
        %2309 = vmatprep.subr.mxu0 0.0
        %2310 = vmatpush1.msra.mxu0 0.0
        %2311 = vmatprep.subr.mxu0 0.0
        %2312 = vmatpush1.msra.mxu0 0.0
        %2313 = vmatprep.subr.mxu0 0.0
        %2314 = vmatpush1.msra.mxu0 0.0
        %2315 = vmatprep.subr.mxu0 0.0
        %2316 = vmatpush1.msra.mxu0 0.0
        %2317 = vmatprep.subr.mxu0 0.0
        %2318 = vmatpush1.msra.mxu0 0.0
        %2319 = vmatprep.subr.mxu0 0.0
        %2320 = vmatpush1.msra.mxu0 0.0
        %2321 = vmatprep.subr.mxu0 0.0
        %2322 = vmatpush1.msra.mxu0 0.0
        %2323 = vmatprep.subr.mxu0 0.0
        %2324 = vmatpush1.msra.mxu0 0.0
        %2325 = vmatprep.subr.mxu0 0.0
        %2326 = vmatpush1.msra.mxu0 0.0
        %2327 = vmatprep.subr.mxu0 0.0
        %2328 = vmatpush1.msra.mxu0 0.0
        %2329 = vmatprep.subr.mxu0 0.0
        %2330 = vmatpush1.msra.mxu0 0.0
        %2331 = vmatprep.subr.mxu0 0.0
        %2332 = vmatpush1.msra.mxu0 0.0
        %2333 = vmatprep.mubr.f32.mxu0 0.0
        %2334 = vmatmul.mubr.f32.gmra.mrb[0].mxu0 %v2267
        %v2335 = vpop.f32.mrb[0].mxu0
        %v2336 = vadd.f32 0.0, %v2335
        %v2337 = vpop.f32.mrb[0].mxu0
        %2338 = vdwg.mxu0
        %v2340 = vsel %vm1913, %v2336, 0
        %2342 = vmatprep.subr.mxu0 0.0
        %2343 = vmatpush1.msra.mxu0 %v1909
        %2344 = vmatprep.subr.mxu0 0.0
        %2345 = vmatpush1.msra.mxu0 %v1910
        %2346 = vmatprep.subr.mxu0 0.0
        %2347 = vmatpush1.msra.mxu0 %v1911
        %2348 = vmatprep.subr.mxu0 0.0
        %2349 = vmatpush1.msra.mxu0 %v1912
        %2350 = vmatprep.subr.mxu0 0.0
        %2351 = vmatpush1.msra.mxu0 0.0
        %2352 = vmatprep.subr.mxu0 0.0
        %2353 = vmatpush1.msra.mxu0 0.0
        %2354 = vmatprep.subr.mxu0 0.0
        %2355 = vmatpush1.msra.mxu0 0.0
        %2356 = vmatprep.subr.mxu0 0.0
        %2357 = vmatpush1.msra.mxu0 0.0
        %2358 = vmatprep.subr.mxu0 0.0
        %2359 = vmatpush1.msra.mxu0 0.0
        %2360 = vmatprep.subr.mxu0 0.0
        %2361 = vmatpush1.msra.mxu0 0.0
        %2362 = vmatprep.subr.mxu0 0.0
        %2363 = vmatpush1.msra.mxu0 0.0
        %2364 = vmatprep.subr.mxu0 0.0
        %2365 = vmatpush1.msra.mxu0 0.0
        %2366 = vmatprep.subr.mxu0 0.0
        %2367 = vmatpush1.msra.mxu0 0.0
        %2368 = vmatprep.subr.mxu0 0.0
        %2369 = vmatpush1.msra.mxu0 0.0
        %2370 = vmatprep.subr.mxu0 0.0
        %2371 = vmatpush1.msra.mxu0 0.0
        %2372 = vmatprep.subr.mxu0 0.0
        %2373 = vmatpush1.msra.mxu0 0.0
        %2374 = vmatprep.subr.mxu0 0.0
        %2375 = vmatpush1.msra.mxu0 0.0
        %2376 = vmatprep.subr.mxu0 0.0
        %2377 = vmatpush1.msra.mxu0 0.0
        %2378 = vmatprep.subr.mxu0 0.0
        %2379 = vmatpush1.msra.mxu0 0.0
        %2380 = vmatprep.subr.mxu0 0.0
        %2381 = vmatpush1.msra.mxu0 0.0
        %2382 = vmatprep.subr.mxu0 0.0
        %2383 = vmatpush1.msra.mxu0 0.0
        %2384 = vmatprep.subr.mxu0 0.0
        %2385 = vmatpush1.msra.mxu0 0.0
        %2386 = vmatprep.subr.mxu0 0.0
        %2387 = vmatpush1.msra.mxu0 0.0
        %2388 = vmatprep.subr.mxu0 0.0
        %2389 = vmatpush1.msra.mxu0 0.0
        %2390 = vmatprep.subr.mxu0 0.0
        %2391 = vmatpush1.msra.mxu0 0.0
        %2392 = vmatprep.subr.mxu0 0.0
        %2393 = vmatpush1.msra.mxu0 0.0
        %2394 = vmatprep.subr.mxu0 0.0
        %2395 = vmatpush1.msra.mxu0 0.0
        %2396 = vmatprep.subr.mxu0 0.0
        %2397 = vmatpush1.msra.mxu0 0.0
        %2398 = vmatprep.subr.mxu0 0.0
        %2399 = vmatpush1.msra.mxu0 0.0
        %2400 = vmatprep.subr.mxu0 0.0
        %2401 = vmatpush1.msra.mxu0 0.0
        %2402 = vmatprep.subr.mxu0 0.0
        %2403 = vmatpush1.msra.mxu0 0.0
        %2404 = vmatprep.subr.mxu0 0.0
        %2405 = vmatpush1.msra.mxu0 0.0
        %2406 = vmatprep.mubr.f32.mxu0 0.0
        %2407 = vmatmul.mubr.f32.gmra.mrb[0].mxu0 %v2340
        %v2408 = vpop.f32.mrb[0].mxu0
        %v2409 = vadd.f32 1e-05, %v2408
        %v2410 = vpop.f32.mrb[0].mxu0
        %2411 = vdwg.mxu0
        %v2412 = vrsqrt.pop %v2409
        %v2413 = vlaneseq
        %v2414 = vshrl.u32 %v2413, 7
        %v2415 = vsub.s32 0, %v2414
        %v2416 = vrot.slane %v2412, %v2415
        %v2417 = vmul.f32 %v2133, %v2416
        %v2418 = vmul.f32 %v2134, %v2416
        %v2419 = vmul.f32 %v2135, %v2416
        %v2420 = vmul.f32 %v2136, %v2416
        %v2421 = vmul.f32 %v2137, %v2416
        %v2422 = vmul.f32 %v2138, %v2416
        %v2423 = vmul.f32 %v2139, %v2416
        %v2424 = vmul.f32 %v2140, %v2416
        %v2425 = vmul.f32 %v2141, %v2416
        %v2426 = vmul.f32 %v2142, %v2416
        %v2427 = vmul.f32 %v2143, %v2416
        %v2428 = vmul.f32 %v2144, %v2416
        %v2429 = vmul.f32 %v2145, %v2416
        %v2430 = vmul.f32 %v2146, %v2416
        %v2431 = vmul.f32 %v2147, %v2416
        %v2432 = vmul.f32 %v2148, %v2416
        %v2433 = vmul.f32 %v2149, %v2416
        %v2434 = vmul.f32 %v2150, %v2416
        %v2435 = vmul.f32 %v2151, %v2416
        %v2436 = vmul.f32 %v2152, %v2416
        %v2437 = vmul.f32 %v2153, %v2416
        %v2438 = vmul.f32 %v2154, %v2416
        %v2439 = vmul.f32 %v2155, %v2416
        %v2440 = vmul.f32 %v2156, %v2416
        %v2441 = vmul.f32 %v2157, %v2416
        %v2442 = vmul.f32 %v2158, %v2416
        %v2443 = vmul.f32 %v2159, %v2416
        %v2444 = vmul.f32 %v2160, %v2416
        %v2445 = vmul.f32 %v2161, %v2416
        %v2446 = vmul.f32 %v2162, %v2416
        %v2447 = vmul.f32 %v2163, %v2416
        %v2448 = vmul.f32 %v2164, %v2416
        %v2449 = vld [vmem:[%s3] sm:$0x1]
        %v2451 = vlaneseq
        %v2452 = vshrl.u32 %v2451, 7
        %v2453 = vsub.s32 0, %v2452
        %v2454 = vrot.slane %v2449, %v2453
        %v2456 = vmul.f32 %v2417, %v2454
        %v2457 = vmul.f32 %v2418, %v2454
        %v2458 = vmul.f32 %v2419, %v2454
        %v2459 = vmul.f32 %v2420, %v2454
        %v2460 = vmul.f32 %v2421, %v2454
        %v2461 = vmul.f32 %v2422, %v2454
        %v2462 = vmul.f32 %v2423, %v2454
        %v2463 = vmul.f32 %v2424, %v2454
        %v2464 = vmul.f32 %v2425, %v2454
        %v2465 = vmul.f32 %v2426, %v2454
        %v2466 = vmul.f32 %v2427, %v2454
        %v2467 = vmul.f32 %v2428, %v2454
        %v2468 = vmul.f32 %v2429, %v2454
        %v2469 = vmul.f32 %v2430, %v2454
        %v2470 = vmul.f32 %v2431, %v2454
        %v2471 = vmul.f32 %v2432, %v2454
        %v2472 = vmul.f32 %v2433, %v2454
        %v2473 = vmul.f32 %v2434, %v2454
        %v2474 = vmul.f32 %v2435, %v2454
        %v2475 = vmul.f32 %v2436, %v2454
        %v2476 = vmul.f32 %v2437, %v2454
        %v2477 = vmul.f32 %v2438, %v2454
        %v2478 = vmul.f32 %v2439, %v2454
        %v2479 = vmul.f32 %v2440, %v2454
        %v2480 = vmul.f32 %v2441, %v2454
        %v2481 = vmul.f32 %v2442, %v2454
        %v2482 = vmul.f32 %v2443, %v2454
        %v2483 = vmul.f32 %v2444, %v2454
        %v2484 = vmul.f32 %v2445, %v2454
        %v2485 = vmul.f32 %v2446, %v2454
        %v2486 = vmul.f32 %v2447, %v2454
        %v2487 = vmul.f32 %v2448, %v2454
        %v2488 = vld [vmem:[%s4] sm:$0x1]
        %v2490 = vlaneseq
        %v2491 = vshrl.u32 %v2490, 7
        %v2492 = vsub.s32 0, %v2491
        %v2493 = vrot.slane %v2488, %v2492
        %v2495 = vadd.f32 %v2456, %v2493
        %v2496 = vadd.f32 %v2457, %v2493
        %v2497 = vadd.f32 %v2458, %v2493
        %v2498 = vadd.f32 %v2459, %v2493
        %v2499 = vadd.f32 %v2460, %v2493
        %v2500 = vadd.f32 %v2461, %v2493
        %v2501 = vadd.f32 %v2462, %v2493
        %v2502 = vadd.f32 %v2463, %v2493
        %v2503 = vadd.f32 %v2464, %v2493
        %v2504 = vadd.f32 %v2465, %v2493
        %v2505 = vadd.f32 %v2466, %v2493
        %v2506 = vadd.f32 %v2467, %v2493
        %v2507 = vadd.f32 %v2468, %v2493
        %v2508 = vadd.f32 %v2469, %v2493
        %v2509 = vadd.f32 %v2470, %v2493
        %v2510 = vadd.f32 %v2471, %v2493
        %v2511 = vadd.f32 %v2472, %v2493
        %v2512 = vadd.f32 %v2473, %v2493
        %v2513 = vadd.f32 %v2474, %v2493
        %v2514 = vadd.f32 %v2475, %v2493
        %v2515 = vadd.f32 %v2476, %v2493
        %v2516 = vadd.f32 %v2477, %v2493
        %v2517 = vadd.f32 %v2478, %v2493
        %v2518 = vadd.f32 %v2479, %v2493
        %v2519 = vadd.f32 %v2480, %v2493
        %v2520 = vadd.f32 %v2481, %v2493
        %v2521 = vadd.f32 %v2482, %v2493
        %v2522 = vadd.f32 %v2483, %v2493
        %v2523 = vadd.f32 %v2484, %v2493
        %v2524 = vadd.f32 %v2485, %v2493
        %v2525 = vadd.f32 %v2486, %v2493
        %v2526 = vadd.f32 %v2487, %v2493
        %v2527 = vmax.f32 %v2495, 0.0
        %v2528 = vmax.f32 %v2496, 0.0
        %v2529 = vmax.f32 %v2497, 0.0
        %v2530 = vmax.f32 %v2498, 0.0
        %v2531 = vmax.f32 %v2499, 0.0
        %v2532 = vmax.f32 %v2500, 0.0
        %v2533 = vmax.f32 %v2501, 0.0
        %v2534 = vmax.f32 %v2502, 0.0
        %v2535 = vmax.f32 %v2503, 0.0
        %v2536 = vmax.f32 %v2504, 0.0
        %v2537 = vmax.f32 %v2505, 0.0
        %v2538 = vmax.f32 %v2506, 0.0
        %v2539 = vmax.f32 %v2507, 0.0
        %v2540 = vmax.f32 %v2508, 0.0
        %v2541 = vmax.f32 %v2509, 0.0
        %v2542 = vmax.f32 %v2510, 0.0
        %v2543 = vmax.f32 %v2511, 0.0
        %v2544 = vmax.f32 %v2512, 0.0
        %v2545 = vmax.f32 %v2513, 0.0
        %v2546 = vmax.f32 %v2514, 0.0
        %v2547 = vmax.f32 %v2515, 0.0
        %v2548 = vmax.f32 %v2516, 0.0
        %v2549 = vmax.f32 %v2517, 0.0
        %v2550 = vmax.f32 %v2518, 0.0
        %v2551 = vmax.f32 %v2519, 0.0
        %v2552 = vmax.f32 %v2520, 0.0
        %v2553 = vmax.f32 %v2521, 0.0
        %v2554 = vmax.f32 %v2522, 0.0
        %v2555 = vmax.f32 %v2523, 0.0
        %v2556 = vmax.f32 %v2524, 0.0
        %v2557 = vmax.f32 %v2525, 0.0
        %v2558 = vmax.f32 %v2526, 0.0
        %v2559 = vld [vmem:[%s5] sm:$0x1]
        %v2560 = vld [vmem:[%s5 + $0x1] sm:$0x1]
        %v2561 = vld [vmem:[%s5 + $0x2] sm:$0x1]
        %v2562 = vld [vmem:[%s5 + $0x3] sm:$0x1]
        %v2563 = vld [vmem:[%s5 + $0x4] sm:$0x1]
        %v2564 = vld [vmem:[%s5 + $0x5] sm:$0x1]
        %v2565 = vld [vmem:[%s5 + $0x6] sm:$0x1]
        %v2566 = vld [vmem:[%s5 + $0x7] sm:$0x1]
        %v2567 = vld [vmem:[%s5 + $0x8] sm:$0x1]
        %v2568 = vrot.slane %v2527, 7
        %v2569 = vrot.slane %v2528, 7
        %v2570 = vrot.slane %v2529, 7
        %v2571 = vrot.slane %v2530, 7
        %v2572 = vrot.slane %v2531, 7
        %v2573 = vrot.slane %v2532, 7
        %v2574 = vrot.slane %v2533, 7
        %v2575 = vrot.slane %v2534, 7
        %v2576 = vrot.slane %v2535, 7
        %v2577 = vrot.slane %v2536, 7
        %v2578 = vrot.slane %v2537, 7
        %v2579 = vrot.slane %v2538, 7
        %v2580 = vrot.slane %v2539, 7
        %v2581 = vrot.slane %v2540, 7
        %v2582 = vrot.slane %v2541, 7
        %v2583 = vrot.slane %v2542, 7
        %v2584 = vrot.slane %v2543, 7
        %v2585 = vrot.slane %v2544, 7
        %v2586 = vrot.slane %v2545, 7
        %v2587 = vrot.slane %v2546, 7
        %v2588 = vrot.slane %v2547, 7
        %v2589 = vrot.slane %v2548, 7
        %v2590 = vrot.slane %v2549, 7
        %v2591 = vrot.slane %v2550, 7
        %v2592 = vrot.slane %v2551, 7
        %v2593 = vrot.slane %v2552, 7
        %v2594 = vrot.slane %v2553, 7
        %v2595 = vrot.slane %v2554, 7
        %v2596 = vrot.slane %v2555, 7
        %v2597 = vrot.slane %v2556, 7
        %v2598 = vrot.slane %v2557, 7
        %v2599 = vrot.slane %v2558, 7
        %vm2600 = vcmp.lt.s32.totalorder %v657, 1
        %v2601 = vsel %vm2600, %v2598, %v2599
        %v2602 = vsel %vm2600, %v2597, %v2598
        %v2603 = vsel %vm2600, %v2596, %v2597
        %v2604 = vsel %vm2600, %v2595, %v2596
        %v2605 = vsel %vm2600, %v2594, %v2595
        %v2606 = vsel %vm2600, %v2593, %v2594
        %v2607 = vsel %vm2600, %v2592, %v2593
        %v2608 = vsel %vm2600, %v2591, %v2592
        %v2609 = vsel %vm2600, %v2590, %v2591
        %v2610 = vsel %vm2600, %v2589, %v2590
        %v2611 = vsel %vm2600, %v2588, %v2589
        %v2612 = vsel %vm2600, %v2587, %v2588
        %v2613 = vsel %vm2600, %v2586, %v2587
        %v2614 = vsel %vm2600, %v2585, %v2586
        %v2615 = vsel %vm2600, %v2584, %v2585
        %v2616 = vsel %vm2600, %v2583, %v2584
        %v2617 = vsel %vm2600, %v2582, %v2583
        %v2618 = vsel %vm2600, %v2581, %v2582
        %v2619 = vsel %vm2600, %v2580, %v2581
        %v2620 = vsel %vm2600, %v2579, %v2580
        %v2621 = vsel %vm2600, %v2578, %v2579
        %v2622 = vsel %vm2600, %v2577, %v2578
        %v2623 = vsel %vm2600, %v2576, %v2577
        %v2624 = vsel %vm2600, %v2575, %v2576
        %v2625 = vsel %vm2600, %v2574, %v2575
        %v2626 = vsel %vm2600, %v2573, %v2574
        %v2627 = vsel %vm2600, %v2572, %v2573
        %v2628 = vsel %vm2600, %v2571, %v2572
        %v2629 = vsel %vm2600, %v2570, %v2571
        %v2630 = vsel %vm2600, %v2569, %v2570
        %v2631 = vsel %vm2600, %v2568, %v2569
        %v2632 = vsel %vm2600, %v2599, %v2568
        %v2633 = vsel %vm1009, 1, 0
        %v2634 = vsel %vm1010, 1, 0
        %v2635 = vsel %vm1011, 1, 0
        %v2636 = vsel %vm1012, 1, 0
        %v2637 = vsel %vm1013, 1, 0
        %v2638 = vsel %vm1014, 1, 0
        %v2639 = vsel %vm1015, 1, 0
        %v2640 = vsel %vm1016, 1, 0
        %v2641 = vsel %vm1017, 1, 0
        %v2642 = vsel %vm1018, 1, 0
        %v2643 = vsel %vm1019, 1, 0
        %v2644 = vsel %vm1020, 1, 0
        %v2645 = vsel %vm1021, 1, 0
        %v2646 = vsel %vm1022, 1, 0
        %v2647 = vsel %vm1023, 1, 0
        %v2648 = vsel %vm1024, 1, 0
        %v2649 = vsel %vm1025, 1, 0
        %v2650 = vsel %vm1026, 1, 0
        %v2651 = vsel %vm1027, 1, 0
        %v2652 = vsel %vm1028, 1, 0
        %v2653 = vsel %vm1029, 1, 0
        %v2654 = vsel %vm1030, 1, 0
        %v2655 = vsel %vm1031, 1, 0
        %v2656 = vsel %vm1032, 1, 0
        %v2657 = vsel %vm1033, 1, 0
        %v2658 = vsel %vm1034, 1, 0
        %v2659 = vsel %vm1035, 1, 0
        %v2660 = vsel %vm1036, 1, 0
        %v2661 = vsel %vm1037, 1, 0
        %v2662 = vsel %vm1038, 1, 0
        %v2663 = vsel %vm1039, 1, 0
        %v2664 = vsel %vm1040, 1, 0
        %vm2665 = vcmp.eq.s32.totalorder %v2633, 1
        %vm2666 = vcmp.eq.s32.totalorder %v2634, 1
        %vm2667 = vcmp.eq.s32.totalorder %v2635, 1
        %vm2668 = vcmp.eq.s32.totalorder %v2636, 1
        %vm2669 = vcmp.eq.s32.totalorder %v2637, 1
        %vm2670 = vcmp.eq.s32.totalorder %v2638, 1
        %vm2671 = vcmp.eq.s32.totalorder %v2639, 1
        %vm2672 = vcmp.eq.s32.totalorder %v2640, 1
        %vm2673 = vcmp.eq.s32.totalorder %v2641, 1
        %vm2674 = vcmp.eq.s32.totalorder %v2642, 1
        %vm2675 = vcmp.eq.s32.totalorder %v2643, 1
        %vm2676 = vcmp.eq.s32.totalorder %v2644, 1
        %vm2677 = vcmp.eq.s32.totalorder %v2645, 1
        %vm2678 = vcmp.eq.s32.totalorder %v2646, 1
        %vm2679 = vcmp.eq.s32.totalorder %v2647, 1
        %vm2680 = vcmp.eq.s32.totalorder %v2648, 1
        %vm2681 = vcmp.eq.s32.totalorder %v2649, 1
        %vm2682 = vcmp.eq.s32.totalorder %v2650, 1
        %vm2683 = vcmp.eq.s32.totalorder %v2651, 1
        %vm2684 = vcmp.eq.s32.totalorder %v2652, 1
        %vm2685 = vcmp.eq.s32.totalorder %v2653, 1
        %vm2686 = vcmp.eq.s32.totalorder %v2654, 1
        %vm2687 = vcmp.eq.s32.totalorder %v2655, 1
        %vm2688 = vcmp.eq.s32.totalorder %v2656, 1
        %vm2689 = vcmp.eq.s32.totalorder %v2657, 1
        %vm2690 = vcmp.eq.s32.totalorder %v2658, 1
        %vm2691 = vcmp.eq.s32.totalorder %v2659, 1
        %vm2692 = vcmp.eq.s32.totalorder %v2660, 1
        %vm2693 = vcmp.eq.s32.totalorder %v2661, 1
        %vm2694 = vcmp.eq.s32.totalorder %v2662, 1
        %vm2695 = vcmp.eq.s32.totalorder %v2663, 1
        %vm2696 = vcmp.eq.s32.totalorder %v2664, 1
        %v2697 = vsel %vm2665, %v2602, 0.0
        %v2698 = vsel %vm2666, %v2601, 0.0
        %v2699 = vsel %vm2667, %v2632, 0.0
        %v2700 = vsel %vm2668, %v2631, 0.0
        %v2701 = vsel %vm2669, %v2630, 0.0
        %v2702 = vsel %vm2670, %v2629, 0.0
        %v2703 = vsel %vm2671, %v2628, 0.0
        %v2704 = vsel %vm2672, %v2627, 0.0
        %v2705 = vsel %vm2673, %v2626, 0.0
        %v2706 = vsel %vm2674, %v2625, 0.0
        %v2707 = vsel %vm2675, %v2624, 0.0
        %v2708 = vsel %vm2676, %v2623, 0.0
        %v2709 = vsel %vm2677, %v2622, 0.0
        %v2710 = vsel %vm2678, %v2621, 0.0
        %v2711 = vsel %vm2679, %v2620, 0.0
        %v2712 = vsel %vm2680, %v2619, 0.0
        %v2713 = vsel %vm2681, %v2618, 0.0
        %v2714 = vsel %vm2682, %v2617, 0.0
        %v2715 = vsel %vm2683, %v2616, 0.0
        %v2716 = vsel %vm2684, %v2615, 0.0
        %v2717 = vsel %vm2685, %v2614, 0.0
        %v2718 = vsel %vm2686, %v2613, 0.0
        %v2719 = vsel %vm2687, %v2612, 0.0
        %v2720 = vsel %vm2688, %v2611, 0.0
        %v2721 = vsel %vm2689, %v2610, 0.0
        %v2722 = vsel %vm2690, %v2609, 0.0
        %v2723 = vsel %vm2691, %v2608, 0.0
        %v2724 = vsel %vm2692, %v2607, 0.0
        %v2725 = vsel %vm2693, %v2606, 0.0
        %v2726 = vsel %vm2694, %v2605, 0.0
        %v2727 = vsel %vm2695, %v2604, 0.0
        %v2728 = vsel %vm2696, %v2603, 0.0
        %v2730 = vlaneseq
        %v2731 = vshrl.u32 %v2730, 7
        %v2732 = vsub.s32 0, %v2731
        %v2733 = vrot.slane %v2559, %v2732
        %v2735 = vmul.f32 %v2697, %v2733
        %v2736 = vmul.f32 %v2698, %v2733
        %v2737 = vmul.f32 %v2699, %v2733
        %v2738 = vmul.f32 %v2700, %v2733
        %v2739 = vmul.f32 %v2701, %v2733
        %v2740 = vmul.f32 %v2702, %v2733
        %v2741 = vmul.f32 %v2703, %v2733
        %v2742 = vmul.f32 %v2704, %v2733
        %v2743 = vmul.f32 %v2705, %v2733
        %v2744 = vmul.f32 %v2706, %v2733
        %v2745 = vmul.f32 %v2707, %v2733
        %v2746 = vmul.f32 %v2708, %v2733
        %v2747 = vmul.f32 %v2709, %v2733
        %v2748 = vmul.f32 %v2710, %v2733
        %v2749 = vmul.f32 %v2711, %v2733
        %v2750 = vmul.f32 %v2712, %v2733
        %v2751 = vmul.f32 %v2713, %v2733
        %v2752 = vmul.f32 %v2714, %v2733
        %v2753 = vmul.f32 %v2715, %v2733
        %v2754 = vmul.f32 %v2716, %v2733
        %v2755 = vmul.f32 %v2717, %v2733
        %v2756 = vmul.f32 %v2718, %v2733
        %v2757 = vmul.f32 %v2719, %v2733
        %v2758 = vmul.f32 %v2720, %v2733
        %v2759 = vmul.f32 %v2721, %v2733
        %v2760 = vmul.f32 %v2722, %v2733
        %v2761 = vmul.f32 %v2723, %v2733
        %v2762 = vmul.f32 %v2724, %v2733
        %v2763 = vmul.f32 %v2725, %v2733
        %v2764 = vmul.f32 %v2726, %v2733
        %v2765 = vmul.f32 %v2727, %v2733
        %v2766 = vmul.f32 %v2728, %v2733
        %v2767 = vadd.f32 %v2735, 0.0
        %v2768 = vadd.f32 %v2736, 0.0
        %v2769 = vadd.f32 %v2737, 0.0
        %v2770 = vadd.f32 %v2738, 0.0
        %v2771 = vadd.f32 %v2739, 0.0
        %v2772 = vadd.f32 %v2740, 0.0
        %v2773 = vadd.f32 %v2741, 0.0
        %v2774 = vadd.f32 %v2742, 0.0
        %v2775 = vadd.f32 %v2743, 0.0
        %v2776 = vadd.f32 %v2744, 0.0
        %v2777 = vadd.f32 %v2745, 0.0
        %v2778 = vadd.f32 %v2746, 0.0
        %v2779 = vadd.f32 %v2747, 0.0
        %v2780 = vadd.f32 %v2748, 0.0
        %v2781 = vadd.f32 %v2749, 0.0
        %v2782 = vadd.f32 %v2750, 0.0
        %v2783 = vadd.f32 %v2751, 0.0
        %v2784 = vadd.f32 %v2752, 0.0
        %v2785 = vadd.f32 %v2753, 0.0
        %v2786 = vadd.f32 %v2754, 0.0
        %v2787 = vadd.f32 %v2755, 0.0
        %v2788 = vadd.f32 %v2756, 0.0
        %v2789 = vadd.f32 %v2757, 0.0
        %v2790 = vadd.f32 %v2758, 0.0
        %v2791 = vadd.f32 %v2759, 0.0
        %v2792 = vadd.f32 %v2760, 0.0
        %v2793 = vadd.f32 %v2761, 0.0
        %v2794 = vadd.f32 %v2762, 0.0
        %v2795 = vadd.f32 %v2763, 0.0
        %v2796 = vadd.f32 %v2764, 0.0
        %v2797 = vadd.f32 %v2765, 0.0
        %v2798 = vadd.f32 %v2766, 0.0
        %v2799 = vsel %vm1169, 1, 0
        %v2800 = vsel %vm1170, 1, 0
        %v2801 = vsel %vm1171, 1, 0
        %v2802 = vsel %vm1172, 1, 0
        %v2803 = vsel %vm1173, 1, 0
        %v2804 = vsel %vm1174, 1, 0
        %v2805 = vsel %vm1175, 1, 0
        %v2806 = vsel %vm1176, 1, 0
        %v2807 = vsel %vm1177, 1, 0
        %v2808 = vsel %vm1178, 1, 0
        %v2809 = vsel %vm1179, 1, 0
        %v2810 = vsel %vm1180, 1, 0
        %v2811 = vsel %vm1181, 1, 0
        %v2812 = vsel %vm1182, 1, 0
        %v2813 = vsel %vm1183, 1, 0
        %v2814 = vsel %vm1184, 1, 0
        %v2815 = vsel %vm1185, 1, 0
        %v2816 = vsel %vm1186, 1, 0
        %v2817 = vsel %vm1187, 1, 0
        %v2818 = vsel %vm1188, 1, 0
        %v2819 = vsel %vm1189, 1, 0
        %v2820 = vsel %vm1190, 1, 0
        %v2821 = vsel %vm1191, 1, 0
        %v2822 = vsel %vm1192, 1, 0
        %v2823 = vsel %vm1193, 1, 0
        %v2824 = vsel %vm1194, 1, 0
        %v2825 = vsel %vm1195, 1, 0
        %v2826 = vsel %vm1196, 1, 0
        %v2827 = vsel %vm1197, 1, 0
        %v2828 = vsel %vm1198, 1, 0
        %v2829 = vsel %vm1199, 1, 0
        %v2830 = vsel %vm1200, 1, 0
        %vm2831 = vcmp.eq.s32.totalorder %v2799, 1
        %vm2832 = vcmp.eq.s32.totalorder %v2800, 1
        %vm2833 = vcmp.eq.s32.totalorder %v2801, 1
        %vm2834 = vcmp.eq.s32.totalorder %v2802, 1
        %vm2835 = vcmp.eq.s32.totalorder %v2803, 1
        %vm2836 = vcmp.eq.s32.totalorder %v2804, 1
        %vm2837 = vcmp.eq.s32.totalorder %v2805, 1
        %vm2838 = vcmp.eq.s32.totalorder %v2806, 1
        %vm2839 = vcmp.eq.s32.totalorder %v2807, 1
        %vm2840 = vcmp.eq.s32.totalorder %v2808, 1
        %vm2841 = vcmp.eq.s32.totalorder %v2809, 1
        %vm2842 = vcmp.eq.s32.totalorder %v2810, 1
        %vm2843 = vcmp.eq.s32.totalorder %v2811, 1
        %vm2844 = vcmp.eq.s32.totalorder %v2812, 1
        %vm2845 = vcmp.eq.s32.totalorder %v2813, 1
        %vm2846 = vcmp.eq.s32.totalorder %v2814, 1
        %vm2847 = vcmp.eq.s32.totalorder %v2815, 1
        %vm2848 = vcmp.eq.s32.totalorder %v2816, 1
        %vm2849 = vcmp.eq.s32.totalorder %v2817, 1
        %vm2850 = vcmp.eq.s32.totalorder %v2818, 1
        %vm2851 = vcmp.eq.s32.totalorder %v2819, 1
        %vm2852 = vcmp.eq.s32.totalorder %v2820, 1
        %vm2853 = vcmp.eq.s32.totalorder %v2821, 1
        %vm2854 = vcmp.eq.s32.totalorder %v2822, 1
        %vm2855 = vcmp.eq.s32.totalorder %v2823, 1
        %vm2856 = vcmp.eq.s32.totalorder %v2824, 1
        %vm2857 = vcmp.eq.s32.totalorder %v2825, 1
        %vm2858 = vcmp.eq.s32.totalorder %v2826, 1
        %vm2859 = vcmp.eq.s32.totalorder %v2827, 1
        %vm2860 = vcmp.eq.s32.totalorder %v2828, 1
        %vm2861 = vcmp.eq.s32.totalorder %v2829, 1
        %vm2862 = vcmp.eq.s32.totalorder %v2830, 1
        %v2863 = vsel %vm2831, %v2557, 0.0
        %v2864 = vsel %vm2832, %v2558, 0.0
        %v2865 = vsel %vm2833, %v2527, 0.0
        %v2866 = vsel %vm2834, %v2528, 0.0
        %v2867 = vsel %vm2835, %v2529, 0.0
        %v2868 = vsel %vm2836, %v2530, 0.0
        %v2869 = vsel %vm2837, %v2531, 0.0
        %v2870 = vsel %vm2838, %v2532, 0.0
        %v2871 = vsel %vm2839, %v2533, 0.0
        %v2872 = vsel %vm2840, %v2534, 0.0
        %v2873 = vsel %vm2841, %v2535, 0.0
        %v2874 = vsel %vm2842, %v2536, 0.0
        %v2875 = vsel %vm2843, %v2537, 0.0
        %v2876 = vsel %vm2844, %v2538, 0.0
        %v2877 = vsel %vm2845, %v2539, 0.0
        %v2878 = vsel %vm2846, %v2540, 0.0
        %v2879 = vsel %vm2847, %v2541, 0.0
        %v2880 = vsel %vm2848, %v2542, 0.0
        %v2881 = vsel %vm2849, %v2543, 0.0
        %v2882 = vsel %vm2850, %v2544, 0.0
        %v2883 = vsel %vm2851, %v2545, 0.0
        %v2884 = vsel %vm2852, %v2546, 0.0
        %v2885 = vsel %vm2853, %v2547, 0.0
        %v2886 = vsel %vm2854, %v2548, 0.0
        %v2887 = vsel %vm2855, %v2549, 0.0
        %v2888 = vsel %vm2856, %v2550, 0.0
        %v2889 = vsel %vm2857, %v2551, 0.0
        %v2890 = vsel %vm2858, %v2552, 0.0
        %v2891 = vsel %vm2859, %v2553, 0.0
        %v2892 = vsel %vm2860, %v2554, 0.0
        %v2893 = vsel %vm2861, %v2555, 0.0
        %v2894 = vsel %vm2862, %v2556, 0.0
        %v2896 = vlaneseq
        %v2897 = vshrl.u32 %v2896, 7
        %v2898 = vsub.s32 0, %v2897
        %v2899 = vrot.slane %v2560, %v2898
        %v2901 = vmul.f32 %v2863, %v2899
        %v2902 = vmul.f32 %v2864, %v2899
        %v2903 = vmul.f32 %v2865, %v2899
        %v2904 = vmul.f32 %v2866, %v2899
        %v2905 = vmul.f32 %v2867, %v2899
        %v2906 = vmul.f32 %v2868, %v2899
        %v2907 = vmul.f32 %v2869, %v2899
        %v2908 = vmul.f32 %v2870, %v2899
        %v2909 = vmul.f32 %v2871, %v2899
        %v2910 = vmul.f32 %v2872, %v2899
        %v2911 = vmul.f32 %v2873, %v2899
        %v2912 = vmul.f32 %v2874, %v2899
        %v2913 = vmul.f32 %v2875, %v2899
        %v2914 = vmul.f32 %v2876, %v2899
        %v2915 = vmul.f32 %v2877, %v2899
        %v2916 = vmul.f32 %v2878, %v2899
        %v2917 = vmul.f32 %v2879, %v2899
        %v2918 = vmul.f32 %v2880, %v2899
        %v2919 = vmul.f32 %v2881, %v2899
        %v2920 = vmul.f32 %v2882, %v2899
        %v2921 = vmul.f32 %v2883, %v2899
        %v2922 = vmul.f32 %v2884, %v2899
        %v2923 = vmul.f32 %v2885, %v2899
        %v2924 = vmul.f32 %v2886, %v2899
        %v2925 = vmul.f32 %v2887, %v2899
        %v2926 = vmul.f32 %v2888, %v2899
        %v2927 = vmul.f32 %v2889, %v2899
        %v2928 = vmul.f32 %v2890, %v2899
        %v2929 = vmul.f32 %v2891, %v2899
        %v2930 = vmul.f32 %v2892, %v2899
        %v2931 = vmul.f32 %v2893, %v2899
        %v2932 = vmul.f32 %v2894, %v2899
        %v2933 = vadd.f32 %v2767, %v2901
        %v2934 = vadd.f32 %v2768, %v2902
        %v2935 = vadd.f32 %v2769, %v2903
        %v2936 = vadd.f32 %v2770, %v2904
        %v2937 = vadd.f32 %v2771, %v2905
        %v2938 = vadd.f32 %v2772, %v2906
        %v2939 = vadd.f32 %v2773, %v2907
        %v2940 = vadd.f32 %v2774, %v2908
        %v2941 = vadd.f32 %v2775, %v2909
        %v2942 = vadd.f32 %v2776, %v2910
        %v2943 = vadd.f32 %v2777, %v2911
        %v2944 = vadd.f32 %v2778, %v2912
        %v2945 = vadd.f32 %v2779, %v2913
        %v2946 = vadd.f32 %v2780, %v2914
        %v2947 = vadd.f32 %v2781, %v2915
        %v2948 = vadd.f32 %v2782, %v2916
        %v2949 = vadd.f32 %v2783, %v2917
        %v2950 = vadd.f32 %v2784, %v2918
        %v2951 = vadd.f32 %v2785, %v2919
        %v2952 = vadd.f32 %v2786, %v2920
        %v2953 = vadd.f32 %v2787, %v2921
        %v2954 = vadd.f32 %v2788, %v2922
        %v2955 = vadd.f32 %v2789, %v2923
        %v2956 = vadd.f32 %v2790, %v2924
        %v2957 = vadd.f32 %v2791, %v2925
        %v2958 = vadd.f32 %v2792, %v2926
        %v2959 = vadd.f32 %v2793, %v2927
        %v2960 = vadd.f32 %v2794, %v2928
        %v2961 = vadd.f32 %v2795, %v2929
        %v2962 = vadd.f32 %v2796, %v2930
        %v2963 = vadd.f32 %v2797, %v2931
        %v2964 = vadd.f32 %v2798, %v2932
        %v2965 = vrot.slane %v2527, 1
        %v2966 = vrot.slane %v2528, 1
        %v2967 = vrot.slane %v2529, 1
        %v2968 = vrot.slane %v2530, 1
        %v2969 = vrot.slane %v2531, 1
        %v2970 = vrot.slane %v2532, 1
        %v2971 = vrot.slane %v2533, 1
        %v2972 = vrot.slane %v2534, 1
        %v2973 = vrot.slane %v2535, 1
        %v2974 = vrot.slane %v2536, 1
        %v2975 = vrot.slane %v2537, 1
        %v2976 = vrot.slane %v2538, 1
        %v2977 = vrot.slane %v2539, 1
        %v2978 = vrot.slane %v2540, 1
        %v2979 = vrot.slane %v2541, 1
        %v2980 = vrot.slane %v2542, 1
        %v2981 = vrot.slane %v2543, 1
        %v2982 = vrot.slane %v2544, 1
        %v2983 = vrot.slane %v2545, 1
        %v2984 = vrot.slane %v2546, 1
        %v2985 = vrot.slane %v2547, 1
        %v2986 = vrot.slane %v2548, 1
        %v2987 = vrot.slane %v2549, 1
        %v2988 = vrot.slane %v2550, 1
        %v2989 = vrot.slane %v2551, 1
        %v2990 = vrot.slane %v2552, 1
        %v2991 = vrot.slane %v2553, 1
        %v2992 = vrot.slane %v2554, 1
        %v2993 = vrot.slane %v2555, 1
        %v2994 = vrot.slane %v2556, 1
        %v2995 = vrot.slane %v2557, 1
        %v2996 = vrot.slane %v2558, 1
        %vm2997 = vcmp.lt.s32.totalorder %v657, 7
        %v2998 = vsel %vm2997, %v2995, %v2996
        %v2999 = vsel %vm2997, %v2994, %v2995
        %v3000 = vsel %vm2997, %v2993, %v2994
        %v3001 = vsel %vm2997, %v2992, %v2993
        %v3002 = vsel %vm2997, %v2991, %v2992
        %v3003 = vsel %vm2997, %v2990, %v2991
        %v3004 = vsel %vm2997, %v2989, %v2990
        %v3005 = vsel %vm2997, %v2988, %v2989
        %v3006 = vsel %vm2997, %v2987, %v2988
        %v3007 = vsel %vm2997, %v2986, %v2987
        %v3008 = vsel %vm2997, %v2985, %v2986
        %v3009 = vsel %vm2997, %v2984, %v2985
        %v3010 = vsel %vm2997, %v2983, %v2984
        %v3011 = vsel %vm2997, %v2982, %v2983
        %v3012 = vsel %vm2997, %v2981, %v2982
        %v3013 = vsel %vm2997, %v2980, %v2981
        %v3014 = vsel %vm2997, %v2979, %v2980
        %v3015 = vsel %vm2997, %v2978, %v2979
        %v3016 = vsel %vm2997, %v2977, %v2978
        %v3017 = vsel %vm2997, %v2976, %v2977
        %v3018 = vsel %vm2997, %v2975, %v2976
        %v3019 = vsel %vm2997, %v2974, %v2975
        %v3020 = vsel %vm2997, %v2973, %v2974
        %v3021 = vsel %vm2997, %v2972, %v2973
        %v3022 = vsel %vm2997, %v2971, %v2972
        %v3023 = vsel %vm2997, %v2970, %v2971
        %v3024 = vsel %vm2997, %v2969, %v2970
        %v3025 = vsel %vm2997, %v2968, %v2969
        %v3026 = vsel %vm2997, %v2967, %v2968
        %v3027 = vsel %vm2997, %v2966, %v2967
        %v3028 = vsel %vm2997, %v2965, %v2966
        %v3029 = vsel %vm2997, %v2996, %v2965
        %v3030 = vsel %vm1361, 1, 0
        %v3031 = vsel %vm1362, 1, 0
        %v3032 = vsel %vm1363, 1, 0
        %v3033 = vsel %vm1364, 1, 0
        %v3034 = vsel %vm1365, 1, 0
        %v3035 = vsel %vm1366, 1, 0
        %v3036 = vsel %vm1367, 1, 0
        %v3037 = vsel %vm1368, 1, 0
        %v3038 = vsel %vm1369, 1, 0
        %v3039 = vsel %vm1370, 1, 0
        %v3040 = vsel %vm1371, 1, 0
        %v3041 = vsel %vm1372, 1, 0
        %v3042 = vsel %vm1373, 1, 0
        %v3043 = vsel %vm1374, 1, 0
        %v3044 = vsel %vm1375, 1, 0
        %v3045 = vsel %vm1376, 1, 0
        %v3046 = vsel %vm1377, 1, 0
        %v3047 = vsel %vm1378, 1, 0
        %v3048 = vsel %vm1379, 1, 0
        %v3049 = vsel %vm1380, 1, 0
        %v3050 = vsel %vm1381, 1, 0
        %v3051 = vsel %vm1382, 1, 0
        %v3052 = vsel %vm1383, 1, 0
        %v3053 = vsel %vm1384, 1, 0
        %v3054 = vsel %vm1385, 1, 0
        %v3055 = vsel %vm1386, 1, 0
        %v3056 = vsel %vm1387, 1, 0
        %v3057 = vsel %vm1388, 1, 0
        %v3058 = vsel %vm1389, 1, 0
        %v3059 = vsel %vm1390, 1, 0
        %v3060 = vsel %vm1391, 1, 0
        %v3061 = vsel %vm1392, 1, 0
        %vm3062 = vcmp.eq.s32.totalorder %v3030, 1
        %vm3063 = vcmp.eq.s32.totalorder %v3031, 1
        %vm3064 = vcmp.eq.s32.totalorder %v3032, 1
        %vm3065 = vcmp.eq.s32.totalorder %v3033, 1
        %vm3066 = vcmp.eq.s32.totalorder %v3034, 1
        %vm3067 = vcmp.eq.s32.totalorder %v3035, 1
        %vm3068 = vcmp.eq.s32.totalorder %v3036, 1
        %vm3069 = vcmp.eq.s32.totalorder %v3037, 1
        %vm3070 = vcmp.eq.s32.totalorder %v3038, 1
        %vm3071 = vcmp.eq.s32.totalorder %v3039, 1
        %vm3072 = vcmp.eq.s32.totalorder %v3040, 1
        %vm3073 = vcmp.eq.s32.totalorder %v3041, 1
        %vm3074 = vcmp.eq.s32.totalorder %v3042, 1
        %vm3075 = vcmp.eq.s32.totalorder %v3043, 1
        %vm3076 = vcmp.eq.s32.totalorder %v3044, 1
        %vm3077 = vcmp.eq.s32.totalorder %v3045, 1
        %vm3078 = vcmp.eq.s32.totalorder %v3046, 1
        %vm3079 = vcmp.eq.s32.totalorder %v3047, 1
        %vm3080 = vcmp.eq.s32.totalorder %v3048, 1
        %vm3081 = vcmp.eq.s32.totalorder %v3049, 1
        %vm3082 = vcmp.eq.s32.totalorder %v3050, 1
        %vm3083 = vcmp.eq.s32.totalorder %v3051, 1
        %vm3084 = vcmp.eq.s32.totalorder %v3052, 1
        %vm3085 = vcmp.eq.s32.totalorder %v3053, 1
        %vm3086 = vcmp.eq.s32.totalorder %v3054, 1
        %vm3087 = vcmp.eq.s32.totalorder %v3055, 1
        %vm3088 = vcmp.eq.s32.totalorder %v3056, 1
        %vm3089 = vcmp.eq.s32.totalorder %v3057, 1
        %vm3090 = vcmp.eq.s32.totalorder %v3058, 1
        %vm3091 = vcmp.eq.s32.totalorder %v3059, 1
        %vm3092 = vcmp.eq.s32.totalorder %v3060, 1
        %vm3093 = vcmp.eq.s32.totalorder %v3061, 1
        %v3094 = vsel %vm3062, %v2998, 0.0
        %v3095 = vsel %vm3063, %v3029, 0.0
        %v3096 = vsel %vm3064, %v3028, 0.0
        %v3097 = vsel %vm3065, %v3027, 0.0
        %v3098 = vsel %vm3066, %v3026, 0.0
        %v3099 = vsel %vm3067, %v3025, 0.0
        %v3100 = vsel %vm3068, %v3024, 0.0
        %v3101 = vsel %vm3069, %v3023, 0.0
        %v3102 = vsel %vm3070, %v3022, 0.0
        %v3103 = vsel %vm3071, %v3021, 0.0
        %v3104 = vsel %vm3072, %v3020, 0.0
        %v3105 = vsel %vm3073, %v3019, 0.0
        %v3106 = vsel %vm3074, %v3018, 0.0
        %v3107 = vsel %vm3075, %v3017, 0.0
        %v3108 = vsel %vm3076, %v3016, 0.0
        %v3109 = vsel %vm3077, %v3015, 0.0
        %v3110 = vsel %vm3078, %v3014, 0.0
        %v3111 = vsel %vm3079, %v3013, 0.0
        %v3112 = vsel %vm3080, %v3012, 0.0
        %v3113 = vsel %vm3081, %v3011, 0.0
        %v3114 = vsel %vm3082, %v3010, 0.0
        %v3115 = vsel %vm3083, %v3009, 0.0
        %v3116 = vsel %vm3084, %v3008, 0.0
        %v3117 = vsel %vm3085, %v3007, 0.0
        %v3118 = vsel %vm3086, %v3006, 0.0
        %v3119 = vsel %vm3087, %v3005, 0.0
        %v3120 = vsel %vm3088, %v3004, 0.0
        %v3121 = vsel %vm3089, %v3003, 0.0
        %v3122 = vsel %vm3090, %v3002, 0.0
        %v3123 = vsel %vm3091, %v3001, 0.0
        %v3124 = vsel %vm3092, %v3000, 0.0
        %v3125 = vsel %vm3093, %v2999, 0.0
        %v3127 = vlaneseq
        %v3128 = vshrl.u32 %v3127, 7
        %v3129 = vsub.s32 0, %v3128
        %v3130 = vrot.slane %v2561, %v3129
        %v3132 = vmul.f32 %v3094, %v3130
        %v3133 = vmul.f32 %v3095, %v3130
        %v3134 = vmul.f32 %v3096, %v3130
        %v3135 = vmul.f32 %v3097, %v3130
        %v3136 = vmul.f32 %v3098, %v3130
        %v3137 = vmul.f32 %v3099, %v3130
        %v3138 = vmul.f32 %v3100, %v3130
        %v3139 = vmul.f32 %v3101, %v3130
        %v3140 = vmul.f32 %v3102, %v3130
        %v3141 = vmul.f32 %v3103, %v3130
        %v3142 = vmul.f32 %v3104, %v3130
        %v3143 = vmul.f32 %v3105, %v3130
        %v3144 = vmul.f32 %v3106, %v3130
        %v3145 = vmul.f32 %v3107, %v3130
        %v3146 = vmul.f32 %v3108, %v3130
        %v3147 = vmul.f32 %v3109, %v3130
        %v3148 = vmul.f32 %v3110, %v3130
        %v3149 = vmul.f32 %v3111, %v3130
        %v3150 = vmul.f32 %v3112, %v3130
        %v3151 = vmul.f32 %v3113, %v3130
        %v3152 = vmul.f32 %v3114, %v3130
        %v3153 = vmul.f32 %v3115, %v3130
        %v3154 = vmul.f32 %v3116, %v3130
        %v3155 = vmul.f32 %v3117, %v3130
        %v3156 = vmul.f32 %v3118, %v3130
        %v3157 = vmul.f32 %v3119, %v3130
        %v3158 = vmul.f32 %v3120, %v3130
        %v3159 = vmul.f32 %v3121, %v3130
        %v3160 = vmul.f32 %v3122, %v3130
        %v3161 = vmul.f32 %v3123, %v3130
        %v3162 = vmul.f32 %v3124, %v3130
        %v3163 = vmul.f32 %v3125, %v3130
        %v3164 = vadd.f32 %v2933, %v3132
        %v3165 = vadd.f32 %v2934, %v3133
        %v3166 = vadd.f32 %v2935, %v3134
        %v3167 = vadd.f32 %v2936, %v3135
        %v3168 = vadd.f32 %v2937, %v3136
        %v3169 = vadd.f32 %v2938, %v3137
        %v3170 = vadd.f32 %v2939, %v3138
        %v3171 = vadd.f32 %v2940, %v3139
        %v3172 = vadd.f32 %v2941, %v3140
        %v3173 = vadd.f32 %v2942, %v3141
        %v3174 = vadd.f32 %v2943, %v3142
        %v3175 = vadd.f32 %v2944, %v3143
        %v3176 = vadd.f32 %v2945, %v3144
        %v3177 = vadd.f32 %v2946, %v3145
        %v3178 = vadd.f32 %v2947, %v3146
        %v3179 = vadd.f32 %v2948, %v3147
        %v3180 = vadd.f32 %v2949, %v3148
        %v3181 = vadd.f32 %v2950, %v3149
        %v3182 = vadd.f32 %v2951, %v3150
        %v3183 = vadd.f32 %v2952, %v3151
        %v3184 = vadd.f32 %v2953, %v3152
        %v3185 = vadd.f32 %v2954, %v3153
        %v3186 = vadd.f32 %v2955, %v3154
        %v3187 = vadd.f32 %v2956, %v3155
        %v3188 = vadd.f32 %v2957, %v3156
        %v3189 = vadd.f32 %v2958, %v3157
        %v3190 = vadd.f32 %v2959, %v3158
        %v3191 = vadd.f32 %v2960, %v3159
        %v3192 = vadd.f32 %v2961, %v3160
        %v3193 = vadd.f32 %v2962, %v3161
        %v3194 = vadd.f32 %v2963, %v3162
        %v3195 = vadd.f32 %v2964, %v3163
        %v3196 = vsel %vm1489, 1, 0
        %v3197 = vsel %vm1490, 1, 0
        %v3198 = vsel %vm1491, 1, 0
        %v3199 = vsel %vm1492, 1, 0
        %v3200 = vsel %vm1493, 1, 0
        %v3201 = vsel %vm1494, 1, 0
        %v3202 = vsel %vm1495, 1, 0
        %v3203 = vsel %vm1496, 1, 0
        %v3204 = vsel %vm1497, 1, 0
        %v3205 = vsel %vm1498, 1, 0
        %v3206 = vsel %vm1499, 1, 0
        %v3207 = vsel %vm1500, 1, 0
        %v3208 = vsel %vm1501, 1, 0
        %v3209 = vsel %vm1502, 1, 0
        %v3210 = vsel %vm1503, 1, 0
        %v3211 = vsel %vm1504, 1, 0
        %v3212 = vsel %vm1505, 1, 0
        %v3213 = vsel %vm1506, 1, 0
        %v3214 = vsel %vm1507, 1, 0
        %v3215 = vsel %vm1508, 1, 0
        %v3216 = vsel %vm1509, 1, 0
        %v3217 = vsel %vm1510, 1, 0
        %v3218 = vsel %vm1511, 1, 0
        %v3219 = vsel %vm1512, 1, 0
        %v3220 = vsel %vm1513, 1, 0
        %v3221 = vsel %vm1514, 1, 0
        %v3222 = vsel %vm1515, 1, 0
        %v3223 = vsel %vm1516, 1, 0
        %v3224 = vsel %vm1517, 1, 0
        %v3225 = vsel %vm1518, 1, 0
        %v3226 = vsel %vm1519, 1, 0
        %v3227 = vsel %vm1520, 1, 0
        %vm3228 = vcmp.eq.s32.totalorder %v3196, 1
        %vm3229 = vcmp.eq.s32.totalorder %v3197, 1
        %vm3230 = vcmp.eq.s32.totalorder %v3198, 1
        %vm3231 = vcmp.eq.s32.totalorder %v3199, 1
        %vm3232 = vcmp.eq.s32.totalorder %v3200, 1
        %vm3233 = vcmp.eq.s32.totalorder %v3201, 1
        %vm3234 = vcmp.eq.s32.totalorder %v3202, 1
        %vm3235 = vcmp.eq.s32.totalorder %v3203, 1
        %vm3236 = vcmp.eq.s32.totalorder %v3204, 1
        %vm3237 = vcmp.eq.s32.totalorder %v3205, 1
        %vm3238 = vcmp.eq.s32.totalorder %v3206, 1
        %vm3239 = vcmp.eq.s32.totalorder %v3207, 1
        %vm3240 = vcmp.eq.s32.totalorder %v3208, 1
        %vm3241 = vcmp.eq.s32.totalorder %v3209, 1
        %vm3242 = vcmp.eq.s32.totalorder %v3210, 1
        %vm3243 = vcmp.eq.s32.totalorder %v3211, 1
        %vm3244 = vcmp.eq.s32.totalorder %v3212, 1
        %vm3245 = vcmp.eq.s32.totalorder %v3213, 1
        %vm3246 = vcmp.eq.s32.totalorder %v3214, 1
        %vm3247 = vcmp.eq.s32.totalorder %v3215, 1
        %vm3248 = vcmp.eq.s32.totalorder %v3216, 1
        %vm3249 = vcmp.eq.s32.totalorder %v3217, 1
        %vm3250 = vcmp.eq.s32.totalorder %v3218, 1
        %vm3251 = vcmp.eq.s32.totalorder %v3219, 1
        %vm3252 = vcmp.eq.s32.totalorder %v3220, 1
        %vm3253 = vcmp.eq.s32.totalorder %v3221, 1
        %vm3254 = vcmp.eq.s32.totalorder %v3222, 1
        %vm3255 = vcmp.eq.s32.totalorder %v3223, 1
        %vm3256 = vcmp.eq.s32.totalorder %v3224, 1
        %vm3257 = vcmp.eq.s32.totalorder %v3225, 1
        %vm3258 = vcmp.eq.s32.totalorder %v3226, 1
        %vm3259 = vcmp.eq.s32.totalorder %v3227, 1
        %v3260 = vsel %vm3228, %v2632, 0.0
        %v3261 = vsel %vm3229, %v2631, 0.0
        %v3262 = vsel %vm3230, %v2630, 0.0
        %v3263 = vsel %vm3231, %v2629, 0.0
        %v3264 = vsel %vm3232, %v2628, 0.0
        %v3265 = vsel %vm3233, %v2627, 0.0
        %v3266 = vsel %vm3234, %v2626, 0.0
        %v3267 = vsel %vm3235, %v2625, 0.0
        %v3268 = vsel %vm3236, %v2624, 0.0
        %v3269 = vsel %vm3237, %v2623, 0.0
        %v3270 = vsel %vm3238, %v2622, 0.0
        %v3271 = vsel %vm3239, %v2621, 0.0
        %v3272 = vsel %vm3240, %v2620, 0.0
        %v3273 = vsel %vm3241, %v2619, 0.0
        %v3274 = vsel %vm3242, %v2618, 0.0
        %v3275 = vsel %vm3243, %v2617, 0.0
        %v3276 = vsel %vm3244, %v2616, 0.0
        %v3277 = vsel %vm3245, %v2615, 0.0
        %v3278 = vsel %vm3246, %v2614, 0.0
        %v3279 = vsel %vm3247, %v2613, 0.0
        %v3280 = vsel %vm3248, %v2612, 0.0
        %v3281 = vsel %vm3249, %v2611, 0.0
        %v3282 = vsel %vm3250, %v2610, 0.0
        %v3283 = vsel %vm3251, %v2609, 0.0
        %v3284 = vsel %vm3252, %v2608, 0.0
        %v3285 = vsel %vm3253, %v2607, 0.0
        %v3286 = vsel %vm3254, %v2606, 0.0
        %v3287 = vsel %vm3255, %v2605, 0.0
        %v3288 = vsel %vm3256, %v2604, 0.0
        %v3289 = vsel %vm3257, %v2603, 0.0
        %v3290 = vsel %vm3258, %v2602, 0.0
        %v3291 = vsel %vm3259, %v2601, 0.0
        %v3293 = vlaneseq
        %v3294 = vshrl.u32 %v3293, 7
        %v3295 = vsub.s32 0, %v3294
        %v3296 = vrot.slane %v2562, %v3295
        %v3298 = vmul.f32 %v3260, %v3296
        %v3299 = vmul.f32 %v3261, %v3296
        %v3300 = vmul.f32 %v3262, %v3296
        %v3301 = vmul.f32 %v3263, %v3296
        %v3302 = vmul.f32 %v3264, %v3296
        %v3303 = vmul.f32 %v3265, %v3296
        %v3304 = vmul.f32 %v3266, %v3296
        %v3305 = vmul.f32 %v3267, %v3296
        %v3306 = vmul.f32 %v3268, %v3296
        %v3307 = vmul.f32 %v3269, %v3296
        %v3308 = vmul.f32 %v3270, %v3296
        %v3309 = vmul.f32 %v3271, %v3296
        %v3310 = vmul.f32 %v3272, %v3296
        %v3311 = vmul.f32 %v3273, %v3296
        %v3312 = vmul.f32 %v3274, %v3296
        %v3313 = vmul.f32 %v3275, %v3296
        %v3314 = vmul.f32 %v3276, %v3296
        %v3315 = vmul.f32 %v3277, %v3296
        %v3316 = vmul.f32 %v3278, %v3296
        %v3317 = vmul.f32 %v3279, %v3296
        %v3318 = vmul.f32 %v3280, %v3296
        %v3319 = vmul.f32 %v3281, %v3296
        %v3320 = vmul.f32 %v3282, %v3296
        %v3321 = vmul.f32 %v3283, %v3296
        %v3322 = vmul.f32 %v3284, %v3296
        %v3323 = vmul.f32 %v3285, %v3296
        %v3324 = vmul.f32 %v3286, %v3296
        %v3325 = vmul.f32 %v3287, %v3296
        %v3326 = vmul.f32 %v3288, %v3296
        %v3327 = vmul.f32 %v3289, %v3296
        %v3328 = vmul.f32 %v3290, %v3296
        %v3329 = vmul.f32 %v3291, %v3296
        %v3330 = vadd.f32 %v3164, %v3298
        %v3331 = vadd.f32 %v3165, %v3299
        %v3332 = vadd.f32 %v3166, %v3300
        %v3333 = vadd.f32 %v3167, %v3301
        %v3334 = vadd.f32 %v3168, %v3302
        %v3335 = vadd.f32 %v3169, %v3303
        %v3336 = vadd.f32 %v3170, %v3304
        %v3337 = vadd.f32 %v3171, %v3305
        %v3338 = vadd.f32 %v3172, %v3306
        %v3339 = vadd.f32 %v3173, %v3307
        %v3340 = vadd.f32 %v3174, %v3308
        %v3341 = vadd.f32 %v3175, %v3309
        %v3342 = vadd.f32 %v3176, %v3310
        %v3343 = vadd.f32 %v3177, %v3311
        %v3344 = vadd.f32 %v3178, %v3312
        %v3345 = vadd.f32 %v3179, %v3313
        %v3346 = vadd.f32 %v3180, %v3314
        %v3347 = vadd.f32 %v3181, %v3315
        %v3348 = vadd.f32 %v3182, %v3316
        %v3349 = vadd.f32 %v3183, %v3317
        %v3350 = vadd.f32 %v3184, %v3318
        %v3351 = vadd.f32 %v3185, %v3319
        %v3352 = vadd.f32 %v3186, %v3320
        %v3353 = vadd.f32 %v3187, %v3321
        %v3354 = vadd.f32 %v3188, %v3322
        %v3355 = vadd.f32 %v3189, %v3323
        %v3356 = vadd.f32 %v3190, %v3324
        %v3357 = vadd.f32 %v3191, %v3325
        %v3358 = vadd.f32 %v3192, %v3326
        %v3359 = vadd.f32 %v3193, %v3327
        %v3360 = vadd.f32 %v3194, %v3328
        %v3361 = vadd.f32 %v3195, %v3329
        %v3363 = vlaneseq
        %v3364 = vshrl.u32 %v3363, 7
        %v3365 = vsub.s32 0, %v3364
        %v3366 = vrot.slane %v2563, %v3365
        %v3368 = vmul.f32 %v2527, %v3366
        %v3369 = vmul.f32 %v2528, %v3366
        %v3370 = vmul.f32 %v2529, %v3366
        %v3371 = vmul.f32 %v2530, %v3366
        %v3372 = vmul.f32 %v2531, %v3366
        %v3373 = vmul.f32 %v2532, %v3366
        %v3374 = vmul.f32 %v2533, %v3366
        %v3375 = vmul.f32 %v2534, %v3366
        %v3376 = vmul.f32 %v2535, %v3366
        %v3377 = vmul.f32 %v2536, %v3366
        %v3378 = vmul.f32 %v2537, %v3366
        %v3379 = vmul.f32 %v2538, %v3366
        %v3380 = vmul.f32 %v2539, %v3366
        %v3381 = vmul.f32 %v2540, %v3366
        %v3382 = vmul.f32 %v2541, %v3366
        %v3383 = vmul.f32 %v2542, %v3366
        %v3384 = vmul.f32 %v2543, %v3366
        %v3385 = vmul.f32 %v2544, %v3366
        %v3386 = vmul.f32 %v2545, %v3366
        %v3387 = vmul.f32 %v2546, %v3366
        %v3388 = vmul.f32 %v2547, %v3366
        %v3389 = vmul.f32 %v2548, %v3366
        %v3390 = vmul.f32 %v2549, %v3366
        %v3391 = vmul.f32 %v2550, %v3366
        %v3392 = vmul.f32 %v2551, %v3366
        %v3393 = vmul.f32 %v2552, %v3366
        %v3394 = vmul.f32 %v2553, %v3366
        %v3395 = vmul.f32 %v2554, %v3366
        %v3396 = vmul.f32 %v2555, %v3366
        %v3397 = vmul.f32 %v2556, %v3366
        %v3398 = vmul.f32 %v2557, %v3366
        %v3399 = vmul.f32 %v2558, %v3366
        %v3400 = vadd.f32 %v3330, %v3368
        %v3401 = vadd.f32 %v3331, %v3369
        %v3402 = vadd.f32 %v3332, %v3370
        %v3403 = vadd.f32 %v3333, %v3371
        %v3404 = vadd.f32 %v3334, %v3372
        %v3405 = vadd.f32 %v3335, %v3373
        %v3406 = vadd.f32 %v3336, %v3374
        %v3407 = vadd.f32 %v3337, %v3375
        %v3408 = vadd.f32 %v3338, %v3376
        %v3409 = vadd.f32 %v3339, %v3377
        %v3410 = vadd.f32 %v3340, %v3378
        %v3411 = vadd.f32 %v3341, %v3379
        %v3412 = vadd.f32 %v3342, %v3380
        %v3413 = vadd.f32 %v3343, %v3381
        %v3414 = vadd.f32 %v3344, %v3382
        %v3415 = vadd.f32 %v3345, %v3383
        %v3416 = vadd.f32 %v3346, %v3384
        %v3417 = vadd.f32 %v3347, %v3385
        %v3418 = vadd.f32 %v3348, %v3386
        %v3419 = vadd.f32 %v3349, %v3387
        %v3420 = vadd.f32 %v3350, %v3388
        %v3421 = vadd.f32 %v3351, %v3389
        %v3422 = vadd.f32 %v3352, %v3390
        %v3423 = vadd.f32 %v3353, %v3391
        %v3424 = vadd.f32 %v3354, %v3392
        %v3425 = vadd.f32 %v3355, %v3393
        %v3426 = vadd.f32 %v3356, %v3394
        %v3427 = vadd.f32 %v3357, %v3395
        %v3428 = vadd.f32 %v3358, %v3396
        %v3429 = vadd.f32 %v3359, %v3397
        %v3430 = vadd.f32 %v3360, %v3398
        %v3431 = vadd.f32 %v3361, %v3399
        %v3432 = vsel %vm1553, 1, 0
        %v3433 = vsel %vm1554, 1, 0
        %v3434 = vsel %vm1555, 1, 0
        %v3435 = vsel %vm1556, 1, 0
        %v3436 = vsel %vm1557, 1, 0
        %v3437 = vsel %vm1558, 1, 0
        %v3438 = vsel %vm1559, 1, 0
        %v3439 = vsel %vm1560, 1, 0
        %v3440 = vsel %vm1561, 1, 0
        %v3441 = vsel %vm1562, 1, 0
        %v3442 = vsel %vm1563, 1, 0
        %v3443 = vsel %vm1564, 1, 0
        %v3444 = vsel %vm1565, 1, 0
        %v3445 = vsel %vm1566, 1, 0
        %v3446 = vsel %vm1567, 1, 0
        %v3447 = vsel %vm1568, 1, 0
        %v3448 = vsel %vm1569, 1, 0
        %v3449 = vsel %vm1570, 1, 0
        %v3450 = vsel %vm1571, 1, 0
        %v3451 = vsel %vm1572, 1, 0
        %v3452 = vsel %vm1573, 1, 0
        %v3453 = vsel %vm1574, 1, 0
        %v3454 = vsel %vm1575, 1, 0
        %v3455 = vsel %vm1576, 1, 0
        %v3456 = vsel %vm1577, 1, 0
        %v3457 = vsel %vm1578, 1, 0
        %v3458 = vsel %vm1579, 1, 0
        %v3459 = vsel %vm1580, 1, 0
        %v3460 = vsel %vm1581, 1, 0
        %v3461 = vsel %vm1582, 1, 0
        %v3462 = vsel %vm1583, 1, 0
        %v3463 = vsel %vm1584, 1, 0
        %vm3464 = vcmp.eq.s32.totalorder %v3432, 1
        %vm3465 = vcmp.eq.s32.totalorder %v3433, 1
        %vm3466 = vcmp.eq.s32.totalorder %v3434, 1
        %vm3467 = vcmp.eq.s32.totalorder %v3435, 1
        %vm3468 = vcmp.eq.s32.totalorder %v3436, 1
        %vm3469 = vcmp.eq.s32.totalorder %v3437, 1
        %vm3470 = vcmp.eq.s32.totalorder %v3438, 1
        %vm3471 = vcmp.eq.s32.totalorder %v3439, 1
        %vm3472 = vcmp.eq.s32.totalorder %v3440, 1
        %vm3473 = vcmp.eq.s32.totalorder %v3441, 1
        %vm3474 = vcmp.eq.s32.totalorder %v3442, 1
        %vm3475 = vcmp.eq.s32.totalorder %v3443, 1
        %vm3476 = vcmp.eq.s32.totalorder %v3444, 1
        %vm3477 = vcmp.eq.s32.totalorder %v3445, 1
        %vm3478 = vcmp.eq.s32.totalorder %v3446, 1
        %vm3479 = vcmp.eq.s32.totalorder %v3447, 1
        %vm3480 = vcmp.eq.s32.totalorder %v3448, 1
        %vm3481 = vcmp.eq.s32.totalorder %v3449, 1
        %vm3482 = vcmp.eq.s32.totalorder %v3450, 1
        %vm3483 = vcmp.eq.s32.totalorder %v3451, 1
        %vm3484 = vcmp.eq.s32.totalorder %v3452, 1
        %vm3485 = vcmp.eq.s32.totalorder %v3453, 1
        %vm3486 = vcmp.eq.s32.totalorder %v3454, 1
        %vm3487 = vcmp.eq.s32.totalorder %v3455, 1
        %vm3488 = vcmp.eq.s32.totalorder %v3456, 1
        %vm3489 = vcmp.eq.s32.totalorder %v3457, 1
        %vm3490 = vcmp.eq.s32.totalorder %v3458, 1
        %vm3491 = vcmp.eq.s32.totalorder %v3459, 1
        %vm3492 = vcmp.eq.s32.totalorder %v3460, 1
        %vm3493 = vcmp.eq.s32.totalorder %v3461, 1
        %vm3494 = vcmp.eq.s32.totalorder %v3462, 1
        %vm3495 = vcmp.eq.s32.totalorder %v3463, 1
        %v3496 = vsel %vm3464, %v3028, 0.0
        %v3497 = vsel %vm3465, %v3027, 0.0
        %v3498 = vsel %vm3466, %v3026, 0.0
        %v3499 = vsel %vm3467, %v3025, 0.0
        %v3500 = vsel %vm3468, %v3024, 0.0
        %v3501 = vsel %vm3469, %v3023, 0.0
        %v3502 = vsel %vm3470, %v3022, 0.0
        %v3503 = vsel %vm3471, %v3021, 0.0
        %v3504 = vsel %vm3472, %v3020, 0.0
        %v3505 = vsel %vm3473, %v3019, 0.0
        %v3506 = vsel %vm3474, %v3018, 0.0
        %v3507 = vsel %vm3475, %v3017, 0.0
        %v3508 = vsel %vm3476, %v3016, 0.0
        %v3509 = vsel %vm3477, %v3015, 0.0
        %v3510 = vsel %vm3478, %v3014, 0.0
        %v3511 = vsel %vm3479, %v3013, 0.0
        %v3512 = vsel %vm3480, %v3012, 0.0
        %v3513 = vsel %vm3481, %v3011, 0.0
        %v3514 = vsel %vm3482, %v3010, 0.0
        %v3515 = vsel %vm3483, %v3009, 0.0
        %v3516 = vsel %vm3484, %v3008, 0.0
        %v3517 = vsel %vm3485, %v3007, 0.0
        %v3518 = vsel %vm3486, %v3006, 0.0
        %v3519 = vsel %vm3487, %v3005, 0.0
        %v3520 = vsel %vm3488, %v3004, 0.0
        %v3521 = vsel %vm3489, %v3003, 0.0
        %v3522 = vsel %vm3490, %v3002, 0.0
        %v3523 = vsel %vm3491, %v3001, 0.0
        %v3524 = vsel %vm3492, %v3000, 0.0
        %v3525 = vsel %vm3493, %v2999, 0.0
        %v3526 = vsel %vm3494, %v2998, 0.0
        %v3527 = vsel %vm3495, %v3029, 0.0
        %v3529 = vlaneseq
        %v3530 = vshrl.u32 %v3529, 7
        %v3531 = vsub.s32 0, %v3530
        %v3532 = vrot.slane %v2564, %v3531
        %v3534 = vmul.f32 %v3496, %v3532
        %v3535 = vmul.f32 %v3497, %v3532
        %v3536 = vmul.f32 %v3498, %v3532
        %v3537 = vmul.f32 %v3499, %v3532
        %v3538 = vmul.f32 %v3500, %v3532
        %v3539 = vmul.f32 %v3501, %v3532
        %v3540 = vmul.f32 %v3502, %v3532
        %v3541 = vmul.f32 %v3503, %v3532
        %v3542 = vmul.f32 %v3504, %v3532
        %v3543 = vmul.f32 %v3505, %v3532
        %v3544 = vmul.f32 %v3506, %v3532
        %v3545 = vmul.f32 %v3507, %v3532
        %v3546 = vmul.f32 %v3508, %v3532
        %v3547 = vmul.f32 %v3509, %v3532
        %v3548 = vmul.f32 %v3510, %v3532
        %v3549 = vmul.f32 %v3511, %v3532
        %v3550 = vmul.f32 %v3512, %v3532
        %v3551 = vmul.f32 %v3513, %v3532
        %v3552 = vmul.f32 %v3514, %v3532
        %v3553 = vmul.f32 %v3515, %v3532
        %v3554 = vmul.f32 %v3516, %v3532
        %v3555 = vmul.f32 %v3517, %v3532
        %v3556 = vmul.f32 %v3518, %v3532
        %v3557 = vmul.f32 %v3519, %v3532
        %v3558 = vmul.f32 %v3520, %v3532
        %v3559 = vmul.f32 %v3521, %v3532
        %v3560 = vmul.f32 %v3522, %v3532
        %v3561 = vmul.f32 %v3523, %v3532
        %v3562 = vmul.f32 %v3524, %v3532
        %v3563 = vmul.f32 %v3525, %v3532
        %v3564 = vmul.f32 %v3526, %v3532
        %v3565 = vmul.f32 %v3527, %v3532
        %v3566 = vadd.f32 %v3400, %v3534
        %v3567 = vadd.f32 %v3401, %v3535
        %v3568 = vadd.f32 %v3402, %v3536
        %v3569 = vadd.f32 %v3403, %v3537
        %v3570 = vadd.f32 %v3404, %v3538
        %v3571 = vadd.f32 %v3405, %v3539
        %v3572 = vadd.f32 %v3406, %v3540
        %v3573 = vadd.f32 %v3407, %v3541
        %v3574 = vadd.f32 %v3408, %v3542
        %v3575 = vadd.f32 %v3409, %v3543
        %v3576 = vadd.f32 %v3410, %v3544
        %v3577 = vadd.f32 %v3411, %v3545
        %v3578 = vadd.f32 %v3412, %v3546
        %v3579 = vadd.f32 %v3413, %v3547
        %v3580 = vadd.f32 %v3414, %v3548
        %v3581 = vadd.f32 %v3415, %v3549
        %v3582 = vadd.f32 %v3416, %v3550
        %v3583 = vadd.f32 %v3417, %v3551
        %v3584 = vadd.f32 %v3418, %v3552
        %v3585 = vadd.f32 %v3419, %v3553
        %v3586 = vadd.f32 %v3420, %v3554
        %v3587 = vadd.f32 %v3421, %v3555
        %v3588 = vadd.f32 %v3422, %v3556
        %v3589 = vadd.f32 %v3423, %v3557
        %v3590 = vadd.f32 %v3424, %v3558
        %v3591 = vadd.f32 %v3425, %v3559
        %v3592 = vadd.f32 %v3426, %v3560
        %v3593 = vadd.f32 %v3427, %v3561
        %v3594 = vadd.f32 %v3428, %v3562
        %v3595 = vadd.f32 %v3429, %v3563
        %v3596 = vadd.f32 %v3430, %v3564
        %v3597 = vadd.f32 %v3431, %v3565
        %v3598 = vsel %vm1713, 1, 0
        %v3599 = vsel %vm1714, 1, 0
        %v3600 = vsel %vm1715, 1, 0
        %v3601 = vsel %vm1716, 1, 0
        %v3602 = vsel %vm1717, 1, 0
        %v3603 = vsel %vm1718, 1, 0
        %v3604 = vsel %vm1719, 1, 0
        %v3605 = vsel %vm1720, 1, 0
        %v3606 = vsel %vm1721, 1, 0
        %v3607 = vsel %vm1722, 1, 0
        %v3608 = vsel %vm1723, 1, 0
        %v3609 = vsel %vm1724, 1, 0
        %v3610 = vsel %vm1725, 1, 0
        %v3611 = vsel %vm1726, 1, 0
        %v3612 = vsel %vm1727, 1, 0
        %v3613 = vsel %vm1728, 1, 0
        %v3614 = vsel %vm1729, 1, 0
        %v3615 = vsel %vm1730, 1, 0
        %v3616 = vsel %vm1731, 1, 0
        %v3617 = vsel %vm1732, 1, 0
        %v3618 = vsel %vm1733, 1, 0
        %v3619 = vsel %vm1734, 1, 0
        %v3620 = vsel %vm1735, 1, 0
        %v3621 = vsel %vm1736, 1, 0
        %v3622 = vsel %vm1737, 1, 0
        %v3623 = vsel %vm1738, 1, 0
        %v3624 = vsel %vm1739, 1, 0
        %v3625 = vsel %vm1740, 1, 0
        %v3626 = vsel %vm1741, 1, 0
        %v3627 = vsel %vm1742, 1, 0
        %v3628 = vsel %vm1743, 1, 0
        %v3629 = vsel %vm1744, 1, 0
        %vm3630 = vcmp.eq.s32.totalorder %v3598, 1
        %vm3631 = vcmp.eq.s32.totalorder %v3599, 1
        %vm3632 = vcmp.eq.s32.totalorder %v3600, 1
        %vm3633 = vcmp.eq.s32.totalorder %v3601, 1
        %vm3634 = vcmp.eq.s32.totalorder %v3602, 1
        %vm3635 = vcmp.eq.s32.totalorder %v3603, 1
        %vm3636 = vcmp.eq.s32.totalorder %v3604, 1
        %vm3637 = vcmp.eq.s32.totalorder %v3605, 1
        %vm3638 = vcmp.eq.s32.totalorder %v3606, 1
        %vm3639 = vcmp.eq.s32.totalorder %v3607, 1
        %vm3640 = vcmp.eq.s32.totalorder %v3608, 1
        %vm3641 = vcmp.eq.s32.totalorder %v3609, 1
        %vm3642 = vcmp.eq.s32.totalorder %v3610, 1
        %vm3643 = vcmp.eq.s32.totalorder %v3611, 1
        %vm3644 = vcmp.eq.s32.totalorder %v3612, 1
        %vm3645 = vcmp.eq.s32.totalorder %v3613, 1
        %vm3646 = vcmp.eq.s32.totalorder %v3614, 1
        %vm3647 = vcmp.eq.s32.totalorder %v3615, 1
        %vm3648 = vcmp.eq.s32.totalorder %v3616, 1
        %vm3649 = vcmp.eq.s32.totalorder %v3617, 1
        %vm3650 = vcmp.eq.s32.totalorder %v3618, 1
        %vm3651 = vcmp.eq.s32.totalorder %v3619, 1
        %vm3652 = vcmp.eq.s32.totalorder %v3620, 1
        %vm3653 = vcmp.eq.s32.totalorder %v3621, 1
        %vm3654 = vcmp.eq.s32.totalorder %v3622, 1
        %vm3655 = vcmp.eq.s32.totalorder %v3623, 1
        %vm3656 = vcmp.eq.s32.totalorder %v3624, 1
        %vm3657 = vcmp.eq.s32.totalorder %v3625, 1
        %vm3658 = vcmp.eq.s32.totalorder %v3626, 1
        %vm3659 = vcmp.eq.s32.totalorder %v3627, 1
        %vm3660 = vcmp.eq.s32.totalorder %v3628, 1
        %vm3661 = vcmp.eq.s32.totalorder %v3629, 1
        %v3662 = vsel %vm3630, %v2630, 0.0
        %v3663 = vsel %vm3631, %v2629, 0.0
        %v3664 = vsel %vm3632, %v2628, 0.0
        %v3665 = vsel %vm3633, %v2627, 0.0
        %v3666 = vsel %vm3634, %v2626, 0.0
        %v3667 = vsel %vm3635, %v2625, 0.0
        %v3668 = vsel %vm3636, %v2624, 0.0
        %v3669 = vsel %vm3637, %v2623, 0.0
        %v3670 = vsel %vm3638, %v2622, 0.0
        %v3671 = vsel %vm3639, %v2621, 0.0
        %v3672 = vsel %vm3640, %v2620, 0.0
        %v3673 = vsel %vm3641, %v2619, 0.0
        %v3674 = vsel %vm3642, %v2618, 0.0
        %v3675 = vsel %vm3643, %v2617, 0.0
        %v3676 = vsel %vm3644, %v2616, 0.0
        %v3677 = vsel %vm3645, %v2615, 0.0
        %v3678 = vsel %vm3646, %v2614, 0.0
        %v3679 = vsel %vm3647, %v2613, 0.0
        %v3680 = vsel %vm3648, %v2612, 0.0
        %v3681 = vsel %vm3649, %v2611, 0.0
        %v3682 = vsel %vm3650, %v2610, 0.0
        %v3683 = vsel %vm3651, %v2609, 0.0
        %v3684 = vsel %vm3652, %v2608, 0.0
        %v3685 = vsel %vm3653, %v2607, 0.0
        %v3686 = vsel %vm3654, %v2606, 0.0
        %v3687 = vsel %vm3655, %v2605, 0.0
        %v3688 = vsel %vm3656, %v2604, 0.0
        %v3689 = vsel %vm3657, %v2603, 0.0
        %v3690 = vsel %vm3658, %v2602, 0.0
        %v3691 = vsel %vm3659, %v2601, 0.0
        %v3692 = vsel %vm3660, %v2632, 0.0
        %v3693 = vsel %vm3661, %v2631, 0.0
        %v3695 = vlaneseq
        %v3696 = vshrl.u32 %v3695, 7
        %v3697 = vsub.s32 0, %v3696
        %v3698 = vrot.slane %v2565, %v3697
        %v3700 = vmul.f32 %v3662, %v3698
        %v3701 = vmul.f32 %v3663, %v3698
        %v3702 = vmul.f32 %v3664, %v3698
        %v3703 = vmul.f32 %v3665, %v3698
        %v3704 = vmul.f32 %v3666, %v3698
        %v3705 = vmul.f32 %v3667, %v3698
        %v3706 = vmul.f32 %v3668, %v3698
        %v3707 = vmul.f32 %v3669, %v3698
        %v3708 = vmul.f32 %v3670, %v3698
        %v3709 = vmul.f32 %v3671, %v3698
        %v3710 = vmul.f32 %v3672, %v3698
        %v3711 = vmul.f32 %v3673, %v3698
        %v3712 = vmul.f32 %v3674, %v3698
        %v3713 = vmul.f32 %v3675, %v3698
        %v3714 = vmul.f32 %v3676, %v3698
        %v3715 = vmul.f32 %v3677, %v3698
        %v3716 = vmul.f32 %v3678, %v3698
        %v3717 = vmul.f32 %v3679, %v3698
        %v3718 = vmul.f32 %v3680, %v3698
        %v3719 = vmul.f32 %v3681, %v3698
        %v3720 = vmul.f32 %v3682, %v3698
        %v3721 = vmul.f32 %v3683, %v3698
        %v3722 = vmul.f32 %v3684, %v3698
        %v3723 = vmul.f32 %v3685, %v3698
        %v3724 = vmul.f32 %v3686, %v3698
        %v3725 = vmul.f32 %v3687, %v3698
        %v3726 = vmul.f32 %v3688, %v3698
        %v3727 = vmul.f32 %v3689, %v3698
        %v3728 = vmul.f32 %v3690, %v3698
        %v3729 = vmul.f32 %v3691, %v3698
        %v3730 = vmul.f32 %v3692, %v3698
        %v3731 = vmul.f32 %v3693, %v3698
        %v3732 = vadd.f32 %v3566, %v3700
        %v3733 = vadd.f32 %v3567, %v3701
        %v3734 = vadd.f32 %v3568, %v3702
        %v3735 = vadd.f32 %v3569, %v3703
        %v3736 = vadd.f32 %v3570, %v3704
        %v3737 = vadd.f32 %v3571, %v3705
        %v3738 = vadd.f32 %v3572, %v3706
        %v3739 = vadd.f32 %v3573, %v3707
        %v3740 = vadd.f32 %v3574, %v3708
        %v3741 = vadd.f32 %v3575, %v3709
        %v3742 = vadd.f32 %v3576, %v3710
        %v3743 = vadd.f32 %v3577, %v3711
        %v3744 = vadd.f32 %v3578, %v3712
        %v3745 = vadd.f32 %v3579, %v3713
        %v3746 = vadd.f32 %v3580, %v3714
        %v3747 = vadd.f32 %v3581, %v3715
        %v3748 = vadd.f32 %v3582, %v3716
        %v3749 = vadd.f32 %v3583, %v3717
        %v3750 = vadd.f32 %v3584, %v3718
        %v3751 = vadd.f32 %v3585, %v3719
        %v3752 = vadd.f32 %v3586, %v3720
        %v3753 = vadd.f32 %v3587, %v3721
        %v3754 = vadd.f32 %v3588, %v3722
        %v3755 = vadd.f32 %v3589, %v3723
        %v3756 = vadd.f32 %v3590, %v3724
        %v3757 = vadd.f32 %v3591, %v3725
        %v3758 = vadd.f32 %v3592, %v3726
        %v3759 = vadd.f32 %v3593, %v3727
        %v3760 = vadd.f32 %v3594, %v3728
        %v3761 = vadd.f32 %v3595, %v3729
        %v3762 = vadd.f32 %v3596, %v3730
        %v3763 = vadd.f32 %v3597, %v3731
        %v3764 = vsel %vm1777, 1, 0
        %v3765 = vsel %vm1778, 1, 0
        %v3766 = vsel %vm1779, 1, 0
        %v3767 = vsel %vm1780, 1, 0
        %v3768 = vsel %vm1781, 1, 0
        %v3769 = vsel %vm1782, 1, 0
        %v3770 = vsel %vm1783, 1, 0
        %v3771 = vsel %vm1784, 1, 0
        %v3772 = vsel %vm1785, 1, 0
        %v3773 = vsel %vm1786, 1, 0
        %v3774 = vsel %vm1787, 1, 0
        %v3775 = vsel %vm1788, 1, 0
        %v3776 = vsel %vm1789, 1, 0
        %v3777 = vsel %vm1790, 1, 0
        %v3778 = vsel %vm1791, 1, 0
        %v3779 = vsel %vm1792, 1, 0
        %v3780 = vsel %vm1793, 1, 0
        %v3781 = vsel %vm1794, 1, 0
        %v3782 = vsel %vm1795, 1, 0
        %v3783 = vsel %vm1796, 1, 0
        %v3784 = vsel %vm1797, 1, 0
        %v3785 = vsel %vm1798, 1, 0
        %v3786 = vsel %vm1799, 1, 0
        %v3787 = vsel %vm1800, 1, 0
        %v3788 = vsel %vm1801, 1, 0
        %v3789 = vsel %vm1802, 1, 0
        %v3790 = vsel %vm1803, 1, 0
        %v3791 = vsel %vm1804, 1, 0
        %v3792 = vsel %vm1805, 1, 0
        %v3793 = vsel %vm1806, 1, 0
        %v3794 = vsel %vm1807, 1, 0
        %v3795 = vsel %vm1808, 1, 0
        %vm3796 = vcmp.eq.s32.totalorder %v3764, 1
        %vm3797 = vcmp.eq.s32.totalorder %v3765, 1
        %vm3798 = vcmp.eq.s32.totalorder %v3766, 1
        %vm3799 = vcmp.eq.s32.totalorder %v3767, 1
        %vm3800 = vcmp.eq.s32.totalorder %v3768, 1
        %vm3801 = vcmp.eq.s32.totalorder %v3769, 1
        %vm3802 = vcmp.eq.s32.totalorder %v3770, 1
        %vm3803 = vcmp.eq.s32.totalorder %v3771, 1
        %vm3804 = vcmp.eq.s32.totalorder %v3772, 1
        %vm3805 = vcmp.eq.s32.totalorder %v3773, 1
        %vm3806 = vcmp.eq.s32.totalorder %v3774, 1
        %vm3807 = vcmp.eq.s32.totalorder %v3775, 1
        %vm3808 = vcmp.eq.s32.totalorder %v3776, 1
        %vm3809 = vcmp.eq.s32.totalorder %v3777, 1
        %vm3810 = vcmp.eq.s32.totalorder %v3778, 1
        %vm3811 = vcmp.eq.s32.totalorder %v3779, 1
        %vm3812 = vcmp.eq.s32.totalorder %v3780, 1
        %vm3813 = vcmp.eq.s32.totalorder %v3781, 1
        %vm3814 = vcmp.eq.s32.totalorder %v3782, 1
        %vm3815 = vcmp.eq.s32.totalorder %v3783, 1
        %vm3816 = vcmp.eq.s32.totalorder %v3784, 1
        %vm3817 = vcmp.eq.s32.totalorder %v3785, 1
        %vm3818 = vcmp.eq.s32.totalorder %v3786, 1
        %vm3819 = vcmp.eq.s32.totalorder %v3787, 1
        %vm3820 = vcmp.eq.s32.totalorder %v3788, 1
        %vm3821 = vcmp.eq.s32.totalorder %v3789, 1
        %vm3822 = vcmp.eq.s32.totalorder %v3790, 1
        %vm3823 = vcmp.eq.s32.totalorder %v3791, 1
        %vm3824 = vcmp.eq.s32.totalorder %v3792, 1
        %vm3825 = vcmp.eq.s32.totalorder %v3793, 1
        %vm3826 = vcmp.eq.s32.totalorder %v3794, 1
        %vm3827 = vcmp.eq.s32.totalorder %v3795, 1
        %v3828 = vsel %vm3796, %v2529, 0.0
        %v3829 = vsel %vm3797, %v2530, 0.0
        %v3830 = vsel %vm3798, %v2531, 0.0
        %v3831 = vsel %vm3799, %v2532, 0.0
        %v3832 = vsel %vm3800, %v2533, 0.0
        %v3833 = vsel %vm3801, %v2534, 0.0
        %v3834 = vsel %vm3802, %v2535, 0.0
        %v3835 = vsel %vm3803, %v2536, 0.0
        %v3836 = vsel %vm3804, %v2537, 0.0
        %v3837 = vsel %vm3805, %v2538, 0.0
        %v3838 = vsel %vm3806, %v2539, 0.0
        %v3839 = vsel %vm3807, %v2540, 0.0
        %v3840 = vsel %vm3808, %v2541, 0.0
        %v3841 = vsel %vm3809, %v2542, 0.0
        %v3842 = vsel %vm3810, %v2543, 0.0
        %v3843 = vsel %vm3811, %v2544, 0.0
        %v3844 = vsel %vm3812, %v2545, 0.0
        %v3845 = vsel %vm3813, %v2546, 0.0
        %v3846 = vsel %vm3814, %v2547, 0.0
        %v3847 = vsel %vm3815, %v2548, 0.0
        %v3848 = vsel %vm3816, %v2549, 0.0
        %v3849 = vsel %vm3817, %v2550, 0.0
        %v3850 = vsel %vm3818, %v2551, 0.0
        %v3851 = vsel %vm3819, %v2552, 0.0
        %v3852 = vsel %vm3820, %v2553, 0.0
        %v3853 = vsel %vm3821, %v2554, 0.0
        %v3854 = vsel %vm3822, %v2555, 0.0
        %v3855 = vsel %vm3823, %v2556, 0.0
        %v3856 = vsel %vm3824, %v2557, 0.0
        %v3857 = vsel %vm3825, %v2558, 0.0
        %v3858 = vsel %vm3826, %v2527, 0.0
        %v3859 = vsel %vm3827, %v2528, 0.0
        %v3861 = vlaneseq
        %v3862 = vshrl.u32 %v3861, 7
        %v3863 = vsub.s32 0, %v3862
        %v3864 = vrot.slane %v2566, %v3863
        %v3866 = vmul.f32 %v3828, %v3864
        %v3867 = vmul.f32 %v3829, %v3864
        %v3868 = vmul.f32 %v3830, %v3864
        %v3869 = vmul.f32 %v3831, %v3864
        %v3870 = vmul.f32 %v3832, %v3864
        %v3871 = vmul.f32 %v3833, %v3864
        %v3872 = vmul.f32 %v3834, %v3864
        %v3873 = vmul.f32 %v3835, %v3864
        %v3874 = vmul.f32 %v3836, %v3864
        %v3875 = vmul.f32 %v3837, %v3864
        %v3876 = vmul.f32 %v3838, %v3864
        %v3877 = vmul.f32 %v3839, %v3864
        %v3878 = vmul.f32 %v3840, %v3864
        %v3879 = vmul.f32 %v3841, %v3864
        %v3880 = vmul.f32 %v3842, %v3864
        %v3881 = vmul.f32 %v3843, %v3864
        %v3882 = vmul.f32 %v3844, %v3864
        %v3883 = vmul.f32 %v3845, %v3864
        %v3884 = vmul.f32 %v3846, %v3864
        %v3885 = vmul.f32 %v3847, %v3864
        %v3886 = vmul.f32 %v3848, %v3864
        %v3887 = vmul.f32 %v3849, %v3864
        %v3888 = vmul.f32 %v3850, %v3864
        %v3889 = vmul.f32 %v3851, %v3864
        %v3890 = vmul.f32 %v3852, %v3864
        %v3891 = vmul.f32 %v3853, %v3864
        %v3892 = vmul.f32 %v3854, %v3864
        %v3893 = vmul.f32 %v3855, %v3864
        %v3894 = vmul.f32 %v3856, %v3864
        %v3895 = vmul.f32 %v3857, %v3864
        %v3896 = vmul.f32 %v3858, %v3864
        %v3897 = vmul.f32 %v3859, %v3864
        %v3898 = vadd.f32 %v3732, %v3866
        %v3899 = vadd.f32 %v3733, %v3867
        %v3900 = vadd.f32 %v3734, %v3868
        %v3901 = vadd.f32 %v3735, %v3869
        %v3902 = vadd.f32 %v3736, %v3870
        %v3903 = vadd.f32 %v3737, %v3871
        %v3904 = vadd.f32 %v3738, %v3872
        %v3905 = vadd.f32 %v3739, %v3873
        %v3906 = vadd.f32 %v3740, %v3874
        %v3907 = vadd.f32 %v3741, %v3875
        %v3908 = vadd.f32 %v3742, %v3876
        %v3909 = vadd.f32 %v3743, %v3877
        %v3910 = vadd.f32 %v3744, %v3878
        %v3911 = vadd.f32 %v3745, %v3879
        %v3912 = vadd.f32 %v3746, %v3880
        %v3913 = vadd.f32 %v3747, %v3881
        %v3914 = vadd.f32 %v3748, %v3882
        %v3915 = vadd.f32 %v3749, %v3883
        %v3916 = vadd.f32 %v3750, %v3884
        %v3917 = vadd.f32 %v3751, %v3885
        %v3918 = vadd.f32 %v3752, %v3886
        %v3919 = vadd.f32 %v3753, %v3887
        %v3920 = vadd.f32 %v3754, %v3888
        %v3921 = vadd.f32 %v3755, %v3889
        %v3922 = vadd.f32 %v3756, %v3890
        %v3923 = vadd.f32 %v3757, %v3891
        %v3924 = vadd.f32 %v3758, %v3892
        %v3925 = vadd.f32 %v3759, %v3893
        %v3926 = vadd.f32 %v3760, %v3894
        %v3927 = vadd.f32 %v3761, %v3895
        %v3928 = vadd.f32 %v3762, %v3896
        %v3929 = vadd.f32 %v3763, %v3897
        %v3930 = vsel %vm1841, 1, 0
        %v3931 = vsel %vm1842, 1, 0
        %v3932 = vsel %vm1843, 1, 0
        %v3933 = vsel %vm1844, 1, 0
        %v3934 = vsel %vm1845, 1, 0
        %v3935 = vsel %vm1846, 1, 0
        %v3936 = vsel %vm1847, 1, 0
        %v3937 = vsel %vm1848, 1, 0
        %v3938 = vsel %vm1849, 1, 0
        %v3939 = vsel %vm1850, 1, 0
        %v3940 = vsel %vm1851, 1, 0
        %v3941 = vsel %vm1852, 1, 0
        %v3942 = vsel %vm1853, 1, 0
        %v3943 = vsel %vm1854, 1, 0
        %v3944 = vsel %vm1855, 1, 0
        %v3945 = vsel %vm1856, 1, 0
        %v3946 = vsel %vm1857, 1, 0
        %v3947 = vsel %vm1858, 1, 0
        %v3948 = vsel %vm1859, 1, 0
        %v3949 = vsel %vm1860, 1, 0
        %v3950 = vsel %vm1861, 1, 0
        %v3951 = vsel %vm1862, 1, 0
        %v3952 = vsel %vm1863, 1, 0
        %v3953 = vsel %vm1864, 1, 0
        %v3954 = vsel %vm1865, 1, 0
        %v3955 = vsel %vm1866, 1, 0
        %v3956 = vsel %vm1867, 1, 0
        %v3957 = vsel %vm1868, 1, 0
        %v3958 = vsel %vm1869, 1, 0
        %v3959 = vsel %vm1870, 1, 0
        %v3960 = vsel %vm1871, 1, 0
        %v3961 = vsel %vm1872, 1, 0
        %vm3962 = vcmp.eq.s32.totalorder %v3930, 1
        %vm3963 = vcmp.eq.s32.totalorder %v3931, 1
        %vm3964 = vcmp.eq.s32.totalorder %v3932, 1
        %vm3965 = vcmp.eq.s32.totalorder %v3933, 1
        %vm3966 = vcmp.eq.s32.totalorder %v3934, 1
        %vm3967 = vcmp.eq.s32.totalorder %v3935, 1
        %vm3968 = vcmp.eq.s32.totalorder %v3936, 1
        %vm3969 = vcmp.eq.s32.totalorder %v3937, 1
        %vm3970 = vcmp.eq.s32.totalorder %v3938, 1
        %vm3971 = vcmp.eq.s32.totalorder %v3939, 1
        %vm3972 = vcmp.eq.s32.totalorder %v3940, 1
        %vm3973 = vcmp.eq.s32.totalorder %v3941, 1
        %vm3974 = vcmp.eq.s32.totalorder %v3942, 1
        %vm3975 = vcmp.eq.s32.totalorder %v3943, 1
        %vm3976 = vcmp.eq.s32.totalorder %v3944, 1
        %vm3977 = vcmp.eq.s32.totalorder %v3945, 1
        %vm3978 = vcmp.eq.s32.totalorder %v3946, 1
        %vm3979 = vcmp.eq.s32.totalorder %v3947, 1
        %vm3980 = vcmp.eq.s32.totalorder %v3948, 1
        %vm3981 = vcmp.eq.s32.totalorder %v3949, 1
        %vm3982 = vcmp.eq.s32.totalorder %v3950, 1
        %vm3983 = vcmp.eq.s32.totalorder %v3951, 1
        %vm3984 = vcmp.eq.s32.totalorder %v3952, 1
        %vm3985 = vcmp.eq.s32.totalorder %v3953, 1
        %vm3986 = vcmp.eq.s32.totalorder %v3954, 1
        %vm3987 = vcmp.eq.s32.totalorder %v3955, 1
        %vm3988 = vcmp.eq.s32.totalorder %v3956, 1
        %vm3989 = vcmp.eq.s32.totalorder %v3957, 1
        %vm3990 = vcmp.eq.s32.totalorder %v3958, 1
        %vm3991 = vcmp.eq.s32.totalorder %v3959, 1
        %vm3992 = vcmp.eq.s32.totalorder %v3960, 1
        %vm3993 = vcmp.eq.s32.totalorder %v3961, 1
        %v3994 = vsel %vm3962, %v3026, 0.0
        %v3995 = vsel %vm3963, %v3025, 0.0
        %v3996 = vsel %vm3964, %v3024, 0.0
        %v3997 = vsel %vm3965, %v3023, 0.0
        %v3998 = vsel %vm3966, %v3022, 0.0
        %v3999 = vsel %vm3967, %v3021, 0.0
        %v4000 = vsel %vm3968, %v3020, 0.0
        %v4001 = vsel %vm3969, %v3019, 0.0
        %v4002 = vsel %vm3970, %v3018, 0.0
        %v4003 = vsel %vm3971, %v3017, 0.0
        %v4004 = vsel %vm3972, %v3016, 0.0
        %v4005 = vsel %vm3973, %v3015, 0.0
        %v4006 = vsel %vm3974, %v3014, 0.0
        %v4007 = vsel %vm3975, %v3013, 0.0
        %v4008 = vsel %vm3976, %v3012, 0.0
        %v4009 = vsel %vm3977, %v3011, 0.0
        %v4010 = vsel %vm3978, %v3010, 0.0
        %v4011 = vsel %vm3979, %v3009, 0.0
        %v4012 = vsel %vm3980, %v3008, 0.0
        %v4013 = vsel %vm3981, %v3007, 0.0
        %v4014 = vsel %vm3982, %v3006, 0.0
        %v4015 = vsel %vm3983, %v3005, 0.0
        %v4016 = vsel %vm3984, %v3004, 0.0
        %v4017 = vsel %vm3985, %v3003, 0.0
        %v4018 = vsel %vm3986, %v3002, 0.0
        %v4019 = vsel %vm3987, %v3001, 0.0
        %v4020 = vsel %vm3988, %v3000, 0.0
        %v4021 = vsel %vm3989, %v2999, 0.0
        %v4022 = vsel %vm3990, %v2998, 0.0
        %v4023 = vsel %vm3991, %v3029, 0.0
        %v4024 = vsel %vm3992, %v3028, 0.0
        %v4025 = vsel %vm3993, %v3027, 0.0
        %v4027 = vlaneseq
        %v4028 = vshrl.u32 %v4027, 7
        %v4029 = vsub.s32 0, %v4028
        %v4030 = vrot.slane %v2567, %v4029
        %v4032 = vmul.f32 %v3994, %v4030
        %v4033 = vmul.f32 %v3995, %v4030
        %v4034 = vmul.f32 %v3996, %v4030
        %v4035 = vmul.f32 %v3997, %v4030
        %v4036 = vmul.f32 %v3998, %v4030
        %v4037 = vmul.f32 %v3999, %v4030
        %v4038 = vmul.f32 %v4000, %v4030
        %v4039 = vmul.f32 %v4001, %v4030
        %v4040 = vmul.f32 %v4002, %v4030
        %v4041 = vmul.f32 %v4003, %v4030
        %v4042 = vmul.f32 %v4004, %v4030
        %v4043 = vmul.f32 %v4005, %v4030
        %v4044 = vmul.f32 %v4006, %v4030
        %v4045 = vmul.f32 %v4007, %v4030
        %v4046 = vmul.f32 %v4008, %v4030
        %v4047 = vmul.f32 %v4009, %v4030
        %v4048 = vmul.f32 %v4010, %v4030
        %v4049 = vmul.f32 %v4011, %v4030
        %v4050 = vmul.f32 %v4012, %v4030
        %v4051 = vmul.f32 %v4013, %v4030
        %v4052 = vmul.f32 %v4014, %v4030
        %v4053 = vmul.f32 %v4015, %v4030
        %v4054 = vmul.f32 %v4016, %v4030
        %v4055 = vmul.f32 %v4017, %v4030
        %v4056 = vmul.f32 %v4018, %v4030
        %v4057 = vmul.f32 %v4019, %v4030
        %v4058 = vmul.f32 %v4020, %v4030
        %v4059 = vmul.f32 %v4021, %v4030
        %v4060 = vmul.f32 %v4022, %v4030
        %v4061 = vmul.f32 %v4023, %v4030
        %v4062 = vmul.f32 %v4024, %v4030
        %v4063 = vmul.f32 %v4025, %v4030
        %v4064 = vadd.f32 %v3898, %v4032
        %v4065 = vadd.f32 %v3899, %v4033
        %v4066 = vadd.f32 %v3900, %v4034
        %v4067 = vadd.f32 %v3901, %v4035
        %v4068 = vadd.f32 %v3902, %v4036
        %v4069 = vadd.f32 %v3903, %v4037
        %v4070 = vadd.f32 %v3904, %v4038
        %v4071 = vadd.f32 %v3905, %v4039
        %v4072 = vadd.f32 %v3906, %v4040
        %v4073 = vadd.f32 %v3907, %v4041
        %v4074 = vadd.f32 %v3908, %v4042
        %v4075 = vadd.f32 %v3909, %v4043
        %v4076 = vadd.f32 %v3910, %v4044
        %v4077 = vadd.f32 %v3911, %v4045
        %v4078 = vadd.f32 %v3912, %v4046
        %v4079 = vadd.f32 %v3913, %v4047
        %v4080 = vadd.f32 %v3914, %v4048
        %v4081 = vadd.f32 %v3915, %v4049
        %v4082 = vadd.f32 %v3916, %v4050
        %v4083 = vadd.f32 %v3917, %v4051
        %v4084 = vadd.f32 %v3918, %v4052
        %v4085 = vadd.f32 %v3919, %v4053
        %v4086 = vadd.f32 %v3920, %v4054
        %v4087 = vadd.f32 %v3921, %v4055
        %v4088 = vadd.f32 %v3922, %v4056
        %v4089 = vadd.f32 %v3923, %v4057
        %v4090 = vadd.f32 %v3924, %v4058
        %v4091 = vadd.f32 %v3925, %v4059
        %v4092 = vadd.f32 %v3926, %v4060
        %v4093 = vadd.f32 %v3927, %v4061
        %v4094 = vadd.f32 %v3928, %v4062
        %v4095 = vadd.f32 %v3929, %v4063
        %v4096 = vld [vmem:[%s6] sm:$0x1]
        %v4098 = vlaneseq
        %v4099 = vshrl.u32 %v4098, 7
        %v4100 = vsub.s32 0, %v4099
        %v4101 = vrot.slane %v4096, %v4100
        %v4103 = vadd.f32 %v4064, %v4101
        %v4104 = vadd.f32 %v4065, %v4101
        %v4105 = vadd.f32 %v4066, %v4101
        %v4106 = vadd.f32 %v4067, %v4101
        %v4107 = vadd.f32 %v4068, %v4101
        %v4108 = vadd.f32 %v4069, %v4101
        %v4109 = vadd.f32 %v4070, %v4101
        %v4110 = vadd.f32 %v4071, %v4101
        %v4111 = vadd.f32 %v4072, %v4101
        %v4112 = vadd.f32 %v4073, %v4101
        %v4113 = vadd.f32 %v4074, %v4101
        %v4114 = vadd.f32 %v4075, %v4101
        %v4115 = vadd.f32 %v4076, %v4101
        %v4116 = vadd.f32 %v4077, %v4101
        %v4117 = vadd.f32 %v4078, %v4101
        %v4118 = vadd.f32 %v4079, %v4101
        %v4119 = vadd.f32 %v4080, %v4101
        %v4120 = vadd.f32 %v4081, %v4101
        %v4121 = vadd.f32 %v4082, %v4101
        %v4122 = vadd.f32 %v4083, %v4101
        %v4123 = vadd.f32 %v4084, %v4101
        %v4124 = vadd.f32 %v4085, %v4101
        %v4125 = vadd.f32 %v4086, %v4101
        %v4126 = vadd.f32 %v4087, %v4101
        %v4127 = vadd.f32 %v4088, %v4101
        %v4128 = vadd.f32 %v4089, %v4101
        %v4129 = vadd.f32 %v4090, %v4101
        %v4130 = vadd.f32 %v4091, %v4101
        %v4131 = vadd.f32 %v4092, %v4101
        %v4132 = vadd.f32 %v4093, %v4101
        %v4133 = vadd.f32 %v4094, %v4101
        %v4134 = vadd.f32 %v4095, %v4101
        %v4135 = vpack.c.bf16 %v4104, %v4103
        %v4136 = vpack.c.bf16 %v4106, %v4105
        %v4137 = vpack.c.bf16 %v4108, %v4107
        %v4138 = vpack.c.bf16 %v4110, %v4109
        %v4139 = vpack.c.bf16 %v4112, %v4111
        %v4140 = vpack.c.bf16 %v4114, %v4113
        %v4141 = vpack.c.bf16 %v4116, %v4115
        %v4142 = vpack.c.bf16 %v4118, %v4117
        %v4143 = vpack.c.bf16 %v4120, %v4119
        %v4144 = vpack.c.bf16 %v4122, %v4121
        %v4145 = vpack.c.bf16 %v4124, %v4123
        %v4146 = vpack.c.bf16 %v4126, %v4125
        %v4147 = vpack.c.bf16 %v4128, %v4127
        %v4148 = vpack.c.bf16 %v4130, %v4129
        %v4149 = vpack.c.bf16 %v4132, %v4131
        %v4150 = vpack.c.bf16 %v4134, %v4133
        %v4151 = vld [vmem:[%s7] sm:$0xf]
        %v4152 = vld [vmem:[%s7 + $0x4] sm:$0xf]
        %v4153 = vld [vmem:[%s7 + $0x8] sm:$0xf]
        %v4154 = vld [vmem:[%s7 + $0xc] sm:$0xf]
        %v4155 = vld [vmem:[%s8] sm:$0x1]
        %v4157 = vlaneseq
        %v4158 = vshrl.u32 %v4157, 7
        %v4159 = vsub.s32 0, %v4158
        %v4160 = vrot.slane %v4155, %v4159
        %v4166 = vunpack.c.l.b16 %v4151
        %v4167 = vunpack.c.l.b16 %v4152
        %v4168 = vunpack.c.l.b16 %v4153
        %v4169 = vunpack.c.l.b16 %v4154
        %v4170 = vpack.c.b16 %v4167, %v4166
        %v4171 = vpack.c.b16 %v4169, %v4168
        %v4175 = vsel %vm1913, %v4135, 0
        %v4178 = vsel %vm1913, %v4136, 0
        %v4181 = vsel %vm1913, %v4137, 0
        %v4184 = vsel %vm1913, %v4138, 0
        %v4187 = vsel %vm1913, %v4139, 0
        %v4190 = vsel %vm1913, %v4140, 0
        %v4193 = vsel %vm1913, %v4141, 0
        %v4196 = vsel %vm1913, %v4142, 0
        %v4199 = vsel %vm1913, %v4143, 0
        %v4202 = vsel %vm1913, %v4144, 0
        %v4205 = vsel %vm1913, %v4145, 0
        %v4208 = vsel %vm1913, %v4146, 0
        %v4211 = vsel %vm1913, %v4147, 0
        %v4214 = vsel %vm1913, %v4148, 0
        %v4217 = vsel %vm1913, %v4149, 0
        %v4220 = vsel %vm1913, %v4150, 0
        %4222 = vmatprep.subr.bf16.mxu0 0
        %4223 = vmatpush1.bf16.msra.mxu0 %v4170
        %4224 = vmatprep.subr.bf16.mxu0 0
        %4225 = vmatpush1.bf16.msra.mxu0 %v4171
        %4226 = vmatprep.subr.bf16.mxu0 0
        %4227 = vmatpush1.bf16.msra.mxu0 0
        %4228 = vmatprep.subr.bf16.mxu0 0
        %4229 = vmatpush1.bf16.msra.mxu0 0
        %4230 = vmatprep.subr.bf16.mxu0 0
        %4231 = vmatpush1.bf16.msra.mxu0 0
        %4232 = vmatprep.subr.bf16.mxu0 0
        %4233 = vmatpush1.bf16.msra.mxu0 0
        %4234 = vmatprep.subr.bf16.mxu0 0
        %4235 = vmatpush1.bf16.msra.mxu0 0
        %4236 = vmatprep.subr.bf16.mxu0 0
        %4237 = vmatpush1.bf16.msra.mxu0 0
        %4238 = vmatprep.subr.bf16.mxu0 0
        %4239 = vmatpush1.bf16.msra.mxu0 0
        %4240 = vmatprep.subr.bf16.mxu0 0
        %4241 = vmatpush1.bf16.msra.mxu0 0
        %4242 = vmatprep.subr.bf16.mxu0 0
        %4243 = vmatpush1.bf16.msra.mxu0 0
        %4244 = vmatprep.subr.bf16.mxu0 0
        %4245 = vmatpush1.bf16.msra.mxu0 0
        %4246 = vmatprep.subr.bf16.mxu0 0
        %4247 = vmatpush1.bf16.msra.mxu0 0
        %4248 = vmatprep.subr.bf16.mxu0 0
        %4249 = vmatpush1.bf16.msra.mxu0 0
        %4250 = vmatprep.subr.bf16.mxu0 0
        %4251 = vmatpush1.bf16.msra.mxu0 0
        %4252 = vmatprep.subr.bf16.mxu0 0
        %4253 = vmatpush1.bf16.msra.mxu0 0
        %4254 = vmatprep.mubr.bf16.mxu0 0
        %4255 = vmatmul.mubr.bf16.gmra.mrb[0].mxu0 %v4175
        %v4256 = vpop.f32.mrb[0].mxu0
        %v4257 = vadd.f32 %v4160, %v4256
        %v4258 = vpop.f32.mrb[0].mxu0
        %v4259 = vpop.f32.mrb[0].mxu0
        %v4260 = vadd.f32 %v4160, %v4259
        %v4261 = vpop.f32.mrb[0].mxu0
        %4262 = vmatprep.mubr.bf16.mxu0 0
        %4263 = vmatmul.mubr.bf16.gmra.mrb[0].mxu0 %v4178
        %v4264 = vpop.f32.mrb[0].mxu0
        %v4265 = vadd.f32 %v4160, %v4264
        %v4266 = vpop.f32.mrb[0].mxu0
        %v4267 = vpop.f32.mrb[0].mxu0
        %v4268 = vadd.f32 %v4160, %v4267
        %v4269 = vpop.f32.mrb[0].mxu0
        %4270 = vmatprep.mubr.bf16.mxu0 0
        %4271 = vmatmul.mubr.bf16.gmra.mrb[0].mxu0 %v4181
        %v4272 = vpop.f32.mrb[0].mxu0
        %v4273 = vadd.f32 %v4160, %v4272
        %v4274 = vpop.f32.mrb[0].mxu0
        %v4275 = vpop.f32.mrb[0].mxu0
        %v4276 = vadd.f32 %v4160, %v4275
        %v4277 = vpop.f32.mrb[0].mxu0
        %4278 = vmatprep.mubr.bf16.mxu0 0
        %4279 = vmatmul.mubr.bf16.gmra.mrb[0].mxu0 %v4184
        %v4280 = vpop.f32.mrb[0].mxu0
        %v4281 = vadd.f32 %v4160, %v4280
        %v4282 = vpop.f32.mrb[0].mxu0
        %v4283 = vpop.f32.mrb[0].mxu0
        %v4284 = vadd.f32 %v4160, %v4283
        %v4285 = vpop.f32.mrb[0].mxu0
        %4286 = vmatprep.mubr.bf16.mxu0 0
        %4287 = vmatmul.mubr.bf16.gmra.mrb[0].mxu0 %v4187
        %v4288 = vpop.f32.mrb[0].mxu0
        %v4289 = vadd.f32 %v4160, %v4288
        %v4290 = vpop.f32.mrb[0].mxu0
        %v4291 = vpop.f32.mrb[0].mxu0
        %v4292 = vadd.f32 %v4160, %v4291
        %v4293 = vpop.f32.mrb[0].mxu0
        %4294 = vmatprep.mubr.bf16.mxu0 0
        %4295 = vmatmul.mubr.bf16.gmra.mrb[0].mxu0 %v4190
        %v4296 = vpop.f32.mrb[0].mxu0
        %v4297 = vadd.f32 %v4160, %v4296
        %v4298 = vpop.f32.mrb[0].mxu0
        %v4299 = vpop.f32.mrb[0].mxu0
        %v4300 = vadd.f32 %v4160, %v4299
        %v4301 = vpop.f32.mrb[0].mxu0
        %4302 = vmatprep.mubr.bf16.mxu0 0
        %4303 = vmatmul.mubr.bf16.gmra.mrb[0].mxu0 %v4193
        %v4304 = vpop.f32.mrb[0].mxu0
        %v4305 = vadd.f32 %v4160, %v4304
        %v4306 = vpop.f32.mrb[0].mxu0
        %v4307 = vpop.f32.mrb[0].mxu0
        %v4308 = vadd.f32 %v4160, %v4307
        %v4309 = vpop.f32.mrb[0].mxu0
        %4310 = vmatprep.mubr.bf16.mxu0 0
        %4311 = vmatmul.mubr.bf16.gmra.mrb[0].mxu0 %v4196
        %v4312 = vpop.f32.mrb[0].mxu0
        %v4313 = vadd.f32 %v4160, %v4312
        %v4314 = vpop.f32.mrb[0].mxu0
        %v4315 = vpop.f32.mrb[0].mxu0
        %v4316 = vadd.f32 %v4160, %v4315
        %v4317 = vpop.f32.mrb[0].mxu0
        %4318 = vmatprep.mubr.bf16.mxu0 0
        %4319 = vmatmul.mubr.bf16.gmra.mrb[0].mxu0 %v4199
        %v4320 = vpop.f32.mrb[0].mxu0
        %v4321 = vadd.f32 %v4160, %v4320
        %v4322 = vpop.f32.mrb[0].mxu0
        %v4323 = vpop.f32.mrb[0].mxu0
        %v4324 = vadd.f32 %v4160, %v4323
        %v4325 = vpop.f32.mrb[0].mxu0
        %4326 = vmatprep.mubr.bf16.mxu0 0
        %4327 = vmatmul.mubr.bf16.gmra.mrb[0].mxu0 %v4202
        %v4328 = vpop.f32.mrb[0].mxu0
        %v4329 = vadd.f32 %v4160, %v4328
        %v4330 = vpop.f32.mrb[0].mxu0
        %v4331 = vpop.f32.mrb[0].mxu0
        %v4332 = vadd.f32 %v4160, %v4331
        %v4333 = vpop.f32.mrb[0].mxu0
        %4334 = vmatprep.mubr.bf16.mxu0 0
        %4335 = vmatmul.mubr.bf16.gmra.mrb[0].mxu0 %v4205
        %v4336 = vpop.f32.mrb[0].mxu0
        %v4337 = vadd.f32 %v4160, %v4336
        %v4338 = vpop.f32.mrb[0].mxu0
        %v4339 = vpop.f32.mrb[0].mxu0
        %v4340 = vadd.f32 %v4160, %v4339
        %v4341 = vpop.f32.mrb[0].mxu0
        %4342 = vmatprep.mubr.bf16.mxu0 0
        %4343 = vmatmul.mubr.bf16.gmra.mrb[0].mxu0 %v4208
        %v4344 = vpop.f32.mrb[0].mxu0
        %v4345 = vadd.f32 %v4160, %v4344
        %v4346 = vpop.f32.mrb[0].mxu0
        %v4347 = vpop.f32.mrb[0].mxu0
        %v4348 = vadd.f32 %v4160, %v4347
        %v4349 = vpop.f32.mrb[0].mxu0
        %4350 = vmatprep.mubr.bf16.mxu0 0
        %4351 = vmatmul.mubr.bf16.gmra.mrb[0].mxu0 %v4211
        %v4352 = vpop.f32.mrb[0].mxu0
        %v4353 = vadd.f32 %v4160, %v4352
        %v4354 = vpop.f32.mrb[0].mxu0
        %v4355 = vpop.f32.mrb[0].mxu0
        %v4356 = vadd.f32 %v4160, %v4355
        %v4357 = vpop.f32.mrb[0].mxu0
        %4358 = vmatprep.mubr.bf16.mxu0 0
        %4359 = vmatmul.mubr.bf16.gmra.mrb[0].mxu0 %v4214
        %v4360 = vpop.f32.mrb[0].mxu0
        %v4361 = vadd.f32 %v4160, %v4360
        %v4362 = vpop.f32.mrb[0].mxu0
        %v4363 = vpop.f32.mrb[0].mxu0
        %v4364 = vadd.f32 %v4160, %v4363
        %v4365 = vpop.f32.mrb[0].mxu0
        %4366 = vmatprep.mubr.bf16.mxu0 0
        %4367 = vmatmul.mubr.bf16.gmra.mrb[0].mxu0 %v4217
        %v4368 = vpop.f32.mrb[0].mxu0
        %v4369 = vadd.f32 %v4160, %v4368
        %v4370 = vpop.f32.mrb[0].mxu0
        %v4371 = vpop.f32.mrb[0].mxu0
        %v4372 = vadd.f32 %v4160, %v4371
        %v4373 = vpop.f32.mrb[0].mxu0
        %4374 = vmatprep.mubr.bf16.mxu0 0
        %4375 = vmatmul.mubr.bf16.gmra.mrb[0].mxu0 %v4220
        %v4376 = vpop.f32.mrb[0].mxu0
        %v4377 = vadd.f32 %v4160, %v4376
        %v4378 = vpop.f32.mrb[0].mxu0
        %v4379 = vpop.f32.mrb[0].mxu0
        %v4380 = vadd.f32 %v4160, %v4379
        %v4381 = vpop.f32.mrb[0].mxu0
        %4382 = vdwg.mxu0
        %v4383 = vld [vmem:[%s9] sm:$0xff]
        %v4384 = vld [vmem:[%s9 + $0x8] sm:$0xff]
        %v4385 = vld [vmem:[%s9 + $0x10] sm:$0xff]
        %v4386 = vld [vmem:[%s9 + $0x18] sm:$0xff]
        %v4387 = vld [vmem:[%s9 + $0x20] sm:$0xff]
        %v4388 = vld [vmem:[%s9 + $0x28] sm:$0xff]
        %v4389 = vld [vmem:[%s9 + $0x30] sm:$0xff]
        %v4390 = vld [vmem:[%s9 + $0x38] sm:$0xff]
        %v4391 = vld [vmem:[%s9 + $0x40] sm:$0xff]
        %v4392 = vld [vmem:[%s9 + $0x48] sm:$0xff]
        %v4393 = vld [vmem:[%s9 + $0x50] sm:$0xff]
        %v4394 = vld [vmem:[%s9 + $0x58] sm:$0xff]
        %v4395 = vld [vmem:[%s9 + $0x60] sm:$0xff]
        %v4396 = vld [vmem:[%s9 + $0x68] sm:$0xff]
        %v4397 = vld [vmem:[%s9 + $0x70] sm:$0xff]
        %v4398 = vld [vmem:[%s9 + $0x78] sm:$0xff]
        %v4399 = vld [vmem:[%s10] sm:$0xff]
        %v4400 = vld [vmem:[%s10 + $0x8] sm:$0xff]
        %v4401 = vld [vmem:[%s10 + $0x10] sm:$0xff]
        %v4402 = vld [vmem:[%s10 + $0x18] sm:$0xff]
        %v4403 = vadd.f32 %v4257, %v4260
        %v4404 = vadd.f32 %v4403, %v4265
        %v4405 = vadd.f32 %v4404, %v4268
        %v4406 = vadd.f32 %v4405, %v4273
        %v4407 = vadd.f32 %v4406, %v4276
        %v4408 = vadd.f32 %v4407, %v4281
        %v4409 = vadd.f32 %v4408, %v4284
        %v4410 = vadd.f32 %v4409, %v4289
        %v4411 = vadd.f32 %v4410, %v4292
        %v4412 = vadd.f32 %v4411, %v4297
        %v4413 = vadd.f32 %v4412, %v4300
        %v4414 = vadd.f32 %v4413, %v4305
        %v4415 = vadd.f32 %v4414, %v4308
        %v4416 = vadd.f32 %v4415, %v4313
        %v4417 = vadd.f32 %v4416, %v4316
        %v4418 = vadd.f32 %v4417, %v4321
        %v4419 = vadd.f32 %v4418, %v4324
        %v4420 = vadd.f32 %v4419, %v4329
        %v4421 = vadd.f32 %v4420, %v4332
        %v4422 = vadd.f32 %v4421, %v4337
        %v4423 = vadd.f32 %v4422, %v4340
        %v4424 = vadd.f32 %v4423, %v4345
        %v4425 = vadd.f32 %v4424, %v4348
        %v4426 = vadd.f32 %v4425, %v4353
        %v4427 = vadd.f32 %v4426, %v4356
        %v4428 = vadd.f32 %v4427, %v4361
        %v4429 = vadd.f32 %v4428, %v4364
        %v4430 = vadd.f32 %v4429, %v4369
        %v4431 = vadd.f32 %v4430, %v4372
        %v4432 = vadd.f32 %v4431, %v4377
        %v4433 = vadd.f32 %v4432, %v4380
        %v4434 = vrot.slane %v4433, 4
        %v4435 = vadd.f32 %v4433, %v4434
        %v4436 = vrot.slane %v4435, 2
        %v4437 = vadd.f32 %v4435, %v4436
        %v4438 = vrot.slane %v4437, 1
        %v4439 = vadd.f32 %v4437, %v4438
        %4440 = vmatprep.subr.mxu0 0.0
        %4441 = vmatpush1.msra.mxu0 %v4383
        %4442 = vmatprep.subr.mxu0 0.0
        %4443 = vmatpush1.msra.mxu0 %v4384
        %4444 = vmatprep.subr.mxu0 0.0
        %4445 = vmatpush1.msra.mxu0 %v4385
        %4446 = vmatprep.subr.mxu0 0.0
        %4447 = vmatpush1.msra.mxu0 %v4386
        %4448 = vmatprep.subr.mxu0 0.0
        %4449 = vmatpush1.msra.mxu0 %v4387
        %4450 = vmatprep.subr.mxu0 0.0
        %4451 = vmatpush1.msra.mxu0 %v4388
        %4452 = vmatprep.subr.mxu0 0.0
        %4453 = vmatpush1.msra.mxu0 %v4389
        %4454 = vmatprep.subr.mxu0 0.0
        %4455 = vmatpush1.msra.mxu0 %v4390
        %4456 = vmatprep.subr.mxu0 0.0
        %4457 = vmatpush1.msra.mxu0 %v4391
        %4458 = vmatprep.subr.mxu0 0.0
        %4459 = vmatpush1.msra.mxu0 %v4392
        %4460 = vmatprep.subr.mxu0 0.0
        %4461 = vmatpush1.msra.mxu0 %v4393
        %4462 = vmatprep.subr.mxu0 0.0
        %4463 = vmatpush1.msra.mxu0 %v4394
        %4464 = vmatprep.subr.mxu0 0.0
        %4465 = vmatpush1.msra.mxu0 %v4395
        %4466 = vmatprep.subr.mxu0 0.0
        %4467 = vmatpush1.msra.mxu0 %v4396
        %4468 = vmatprep.subr.mxu0 0.0
        %4469 = vmatpush1.msra.mxu0 %v4397
        %4470 = vmatprep.subr.mxu0 0.0
        %4471 = vmatpush1.msra.mxu0 %v4398
        %4472 = vmatprep.subr.mxu0 0.0
        %4473 = vmatpush1.msra.mxu0 0.0
        %4474 = vmatprep.subr.mxu0 0.0
        %4475 = vmatpush1.msra.mxu0 0.0
        %4476 = vmatprep.subr.mxu0 0.0
        %4477 = vmatpush1.msra.mxu0 0.0
        %4478 = vmatprep.subr.mxu0 0.0
        %4479 = vmatpush1.msra.mxu0 0.0
        %4480 = vmatprep.subr.mxu0 0.0
        %4481 = vmatpush1.msra.mxu0 0.0
        %4482 = vmatprep.subr.mxu0 0.0
        %4483 = vmatpush1.msra.mxu0 0.0
        %4484 = vmatprep.subr.mxu0 0.0
        %4485 = vmatpush1.msra.mxu0 0.0
        %4486 = vmatprep.subr.mxu0 0.0
        %4487 = vmatpush1.msra.mxu0 0.0
        %4488 = vmatprep.subr.mxu0 0.0
        %4489 = vmatpush1.msra.mxu0 0.0
        %4490 = vmatprep.subr.mxu0 0.0
        %4491 = vmatpush1.msra.mxu0 0.0
        %4492 = vmatprep.subr.mxu0 0.0
        %4493 = vmatpush1.msra.mxu0 0.0
        %4494 = vmatprep.subr.mxu0 0.0
        %4495 = vmatpush1.msra.mxu0 0.0
        %4496 = vmatprep.subr.mxu0 0.0
        %4497 = vmatpush1.msra.mxu0 0.0
        %4498 = vmatprep.subr.mxu0 0.0
        %4499 = vmatpush1.msra.mxu0 0.0
        %4500 = vmatprep.subr.mxu0 0.0
        %4501 = vmatpush1.msra.mxu0 0.0
        %4502 = vmatprep.subr.mxu0 0.0
        %4503 = vmatpush1.msra.mxu0 0.0
        %4504 = vmatprep.mubr.f32.mxu0 0.0
        %4505 = vmatmul.mubr.f32.gmra.mrb[0].mxu0 %v4439
        %v4506 = vpop.f32.mrb[0].mxu0
        %v4507 = vadd.f32 0.0, %v4506
        %v4508 = vpop.f32.mrb[0].mxu0
        %4509 = vdwg.mxu0
        %v4511 = vsel %vm1913, %v4507, 0
        %4513 = vmatprep.subr.mxu0 0.0
        %4514 = vmatpush1.msra.mxu0 %v4399
        %4515 = vmatprep.subr.mxu0 0.0
        %4516 = vmatpush1.msra.mxu0 %v4400
        %4517 = vmatprep.subr.mxu0 0.0
        %4518 = vmatpush1.msra.mxu0 %v4401
        %4519 = vmatprep.subr.mxu0 0.0
        %4520 = vmatpush1.msra.mxu0 %v4402
        %4521 = vmatprep.subr.mxu0 0.0
        %4522 = vmatpush1.msra.mxu0 0.0
        %4523 = vmatprep.subr.mxu0 0.0
        %4524 = vmatpush1.msra.mxu0 0.0
        %4525 = vmatprep.subr.mxu0 0.0
        %4526 = vmatpush1.msra.mxu0 0.0
        %4527 = vmatprep.subr.mxu0 0.0
        %4528 = vmatpush1.msra.mxu0 0.0
        %4529 = vmatprep.subr.mxu0 0.0
        %4530 = vmatpush1.msra.mxu0 0.0
        %4531 = vmatprep.subr.mxu0 0.0
        %4532 = vmatpush1.msra.mxu0 0.0
        %4533 = vmatprep.subr.mxu0 0.0
        %4534 = vmatpush1.msra.mxu0 0.0
        %4535 = vmatprep.subr.mxu0 0.0
        %4536 = vmatpush1.msra.mxu0 0.0
        %4537 = vmatprep.subr.mxu0 0.0
        %4538 = vmatpush1.msra.mxu0 0.0
        %4539 = vmatprep.subr.mxu0 0.0
        %4540 = vmatpush1.msra.mxu0 0.0
        %4541 = vmatprep.subr.mxu0 0.0
        %4542 = vmatpush1.msra.mxu0 0.0
        %4543 = vmatprep.subr.mxu0 0.0
        %4544 = vmatpush1.msra.mxu0 0.0
        %4545 = vmatprep.subr.mxu0 0.0
        %4546 = vmatpush1.msra.mxu0 0.0
        %4547 = vmatprep.subr.mxu0 0.0
        %4548 = vmatpush1.msra.mxu0 0.0
        %4549 = vmatprep.subr.mxu0 0.0
        %4550 = vmatpush1.msra.mxu0 0.0
        %4551 = vmatprep.subr.mxu0 0.0
        %4552 = vmatpush1.msra.mxu0 0.0
        %4553 = vmatprep.subr.mxu0 0.0
        %4554 = vmatpush1.msra.mxu0 0.0
        %4555 = vmatprep.subr.mxu0 0.0
        %4556 = vmatpush1.msra.mxu0 0.0
        %4557 = vmatprep.subr.mxu0 0.0
        %4558 = vmatpush1.msra.mxu0 0.0
        %4559 = vmatprep.subr.mxu0 0.0
        %4560 = vmatpush1.msra.mxu0 0.0
        %4561 = vmatprep.subr.mxu0 0.0
        %4562 = vmatpush1.msra.mxu0 0.0
        %4563 = vmatprep.subr.mxu0 0.0
        %4564 = vmatpush1.msra.mxu0 0.0
        %4565 = vmatprep.subr.mxu0 0.0
        %4566 = vmatpush1.msra.mxu0 0.0
        %4567 = vmatprep.subr.mxu0 0.0
        %4568 = vmatpush1.msra.mxu0 0.0
        %4569 = vmatprep.subr.mxu0 0.0
        %4570 = vmatpush1.msra.mxu0 0.0
        %4571 = vmatprep.subr.mxu0 0.0
        %4572 = vmatpush1.msra.mxu0 0.0
        %4573 = vmatprep.subr.mxu0 0.0
        %4574 = vmatpush1.msra.mxu0 0.0
        %4575 = vmatprep.subr.mxu0 0.0
        %4576 = vmatpush1.msra.mxu0 0.0
        %4577 = vmatprep.mubr.f32.mxu0 0.0
        %4578 = vmatmul.mubr.f32.gmra.mrb[0].mxu0 %v4511
        %v4579 = vpop.f32.mrb[0].mxu0
        %v4580 = vadd.f32 0.0, %v4579
        %v4581 = vpop.f32.mrb[0].mxu0
        %4582 = vdwg.mxu0
        %v4583 = vlaneseq
        %v4584 = vshrl.u32 %v4583, 7
        %v4585 = vsub.s32 0, %v4584
        %v4586 = vrot.slane %v4580, %v4585
        %v4587 = vsub.f32 %v4257, %v4586
        %v4588 = vsub.f32 %v4260, %v4586
        %v4589 = vsub.f32 %v4265, %v4586
        %v4590 = vsub.f32 %v4268, %v4586
        %v4591 = vsub.f32 %v4273, %v4586
        %v4592 = vsub.f32 %v4276, %v4586
        %v4593 = vsub.f32 %v4281, %v4586
        %v4594 = vsub.f32 %v4284, %v4586
        %v4595 = vsub.f32 %v4289, %v4586
        %v4596 = vsub.f32 %v4292, %v4586
        %v4597 = vsub.f32 %v4297, %v4586
        %v4598 = vsub.f32 %v4300, %v4586
        %v4599 = vsub.f32 %v4305, %v4586
        %v4600 = vsub.f32 %v4308, %v4586
        %v4601 = vsub.f32 %v4313, %v4586
        %v4602 = vsub.f32 %v4316, %v4586
        %v4603 = vsub.f32 %v4321, %v4586
        %v4604 = vsub.f32 %v4324, %v4586
        %v4605 = vsub.f32 %v4329, %v4586
        %v4606 = vsub.f32 %v4332, %v4586
        %v4607 = vsub.f32 %v4337, %v4586
        %v4608 = vsub.f32 %v4340, %v4586
        %v4609 = vsub.f32 %v4345, %v4586
        %v4610 = vsub.f32 %v4348, %v4586
        %v4611 = vsub.f32 %v4353, %v4586
        %v4612 = vsub.f32 %v4356, %v4586
        %v4613 = vsub.f32 %v4361, %v4586
        %v4614 = vsub.f32 %v4364, %v4586
        %v4615 = vsub.f32 %v4369, %v4586
        %v4616 = vsub.f32 %v4372, %v4586
        %v4617 = vsub.f32 %v4377, %v4586
        %v4618 = vsub.f32 %v4380, %v4586
        %v4619 = vmul.f32 %v4587, %v4587
        %v4620 = vmul.f32 %v4588, %v4588
        %v4621 = vmul.f32 %v4589, %v4589
        %v4622 = vmul.f32 %v4590, %v4590
        %v4623 = vmul.f32 %v4591, %v4591
        %v4624 = vmul.f32 %v4592, %v4592
        %v4625 = vmul.f32 %v4593, %v4593
        %v4626 = vmul.f32 %v4594, %v4594
        %v4627 = vmul.f32 %v4595, %v4595
        %v4628 = vmul.f32 %v4596, %v4596
        %v4629 = vmul.f32 %v4597, %v4597
        %v4630 = vmul.f32 %v4598, %v4598
        %v4631 = vmul.f32 %v4599, %v4599
        %v4632 = vmul.f32 %v4600, %v4600
        %v4633 = vmul.f32 %v4601, %v4601
        %v4634 = vmul.f32 %v4602, %v4602
        %v4635 = vmul.f32 %v4603, %v4603
        %v4636 = vmul.f32 %v4604, %v4604
        %v4637 = vmul.f32 %v4605, %v4605
        %v4638 = vmul.f32 %v4606, %v4606
        %v4639 = vmul.f32 %v4607, %v4607
        %v4640 = vmul.f32 %v4608, %v4608
        %v4641 = vmul.f32 %v4609, %v4609
        %v4642 = vmul.f32 %v4610, %v4610
        %v4643 = vmul.f32 %v4611, %v4611
        %v4644 = vmul.f32 %v4612, %v4612
        %v4645 = vmul.f32 %v4613, %v4613
        %v4646 = vmul.f32 %v4614, %v4614
        %v4647 = vmul.f32 %v4615, %v4615
        %v4648 = vmul.f32 %v4616, %v4616
        %v4649 = vmul.f32 %v4617, %v4617
        %v4650 = vmul.f32 %v4618, %v4618
        %v4651 = vadd.f32 %v4619, %v4620
        %v4652 = vadd.f32 %v4651, %v4621
        %v4653 = vadd.f32 %v4652, %v4622
        %v4654 = vadd.f32 %v4653, %v4623
        %v4655 = vadd.f32 %v4654, %v4624
        %v4656 = vadd.f32 %v4655, %v4625
        %v4657 = vadd.f32 %v4656, %v4626
        %v4658 = vadd.f32 %v4657, %v4627
        %v4659 = vadd.f32 %v4658, %v4628
        %v4660 = vadd.f32 %v4659, %v4629
        %v4661 = vadd.f32 %v4660, %v4630
        %v4662 = vadd.f32 %v4661, %v4631
        %v4663 = vadd.f32 %v4662, %v4632
        %v4664 = vadd.f32 %v4663, %v4633
        %v4665 = vadd.f32 %v4664, %v4634
        %v4666 = vadd.f32 %v4665, %v4635
        %v4667 = vadd.f32 %v4666, %v4636
        %v4668 = vadd.f32 %v4667, %v4637
        %v4669 = vadd.f32 %v4668, %v4638
        %v4670 = vadd.f32 %v4669, %v4639
        %v4671 = vadd.f32 %v4670, %v4640
        %v4672 = vadd.f32 %v4671, %v4641
        %v4673 = vadd.f32 %v4672, %v4642
        %v4674 = vadd.f32 %v4673, %v4643
        %v4675 = vadd.f32 %v4674, %v4644
        %v4676 = vadd.f32 %v4675, %v4645
        %v4677 = vadd.f32 %v4676, %v4646
        %v4678 = vadd.f32 %v4677, %v4647
        %v4679 = vadd.f32 %v4678, %v4648
        %v4680 = vadd.f32 %v4679, %v4649
        %v4681 = vadd.f32 %v4680, %v4650
        %v4682 = vrot.slane %v4681, 4
        %v4683 = vadd.f32 %v4681, %v4682
        %v4684 = vrot.slane %v4683, 2
        %v4685 = vadd.f32 %v4683, %v4684
        %v4686 = vrot.slane %v4685, 1
        %v4687 = vadd.f32 %v4685, %v4686
        %4688 = vmatprep.subr.mxu0 0.0
        %4689 = vmatpush1.msra.mxu0 %v4383
        %4690 = vmatprep.subr.mxu0 0.0
        %4691 = vmatpush1.msra.mxu0 %v4384
        %4692 = vmatprep.subr.mxu0 0.0
        %4693 = vmatpush1.msra.mxu0 %v4385
        %4694 = vmatprep.subr.mxu0 0.0
        %4695 = vmatpush1.msra.mxu0 %v4386
        %4696 = vmatprep.subr.mxu0 0.0
        %4697 = vmatpush1.msra.mxu0 %v4387
        %4698 = vmatprep.subr.mxu0 0.0
        %4699 = vmatpush1.msra.mxu0 %v4388
        %4700 = vmatprep.subr.mxu0 0.0
        %4701 = vmatpush1.msra.mxu0 %v4389
        %4702 = vmatprep.subr.mxu0 0.0
        %4703 = vmatpush1.msra.mxu0 %v4390
        %4704 = vmatprep.subr.mxu0 0.0
        %4705 = vmatpush1.msra.mxu0 %v4391
        %4706 = vmatprep.subr.mxu0 0.0
        %4707 = vmatpush1.msra.mxu0 %v4392
        %4708 = vmatprep.subr.mxu0 0.0
        %4709 = vmatpush1.msra.mxu0 %v4393
        %4710 = vmatprep.subr.mxu0 0.0
        %4711 = vmatpush1.msra.mxu0 %v4394
        %4712 = vmatprep.subr.mxu0 0.0
        %4713 = vmatpush1.msra.mxu0 %v4395
        %4714 = vmatprep.subr.mxu0 0.0
        %4715 = vmatpush1.msra.mxu0 %v4396
        %4716 = vmatprep.subr.mxu0 0.0
        %4717 = vmatpush1.msra.mxu0 %v4397
        %4718 = vmatprep.subr.mxu0 0.0
        %4719 = vmatpush1.msra.mxu0 %v4398
        %4720 = vmatprep.subr.mxu0 0.0
        %4721 = vmatpush1.msra.mxu0 0.0
        %4722 = vmatprep.subr.mxu0 0.0
        %4723 = vmatpush1.msra.mxu0 0.0
        %4724 = vmatprep.subr.mxu0 0.0
        %4725 = vmatpush1.msra.mxu0 0.0
        %4726 = vmatprep.subr.mxu0 0.0
        %4727 = vmatpush1.msra.mxu0 0.0
        %4728 = vmatprep.subr.mxu0 0.0
        %4729 = vmatpush1.msra.mxu0 0.0
        %4730 = vmatprep.subr.mxu0 0.0
        %4731 = vmatpush1.msra.mxu0 0.0
        %4732 = vmatprep.subr.mxu0 0.0
        %4733 = vmatpush1.msra.mxu0 0.0
        %4734 = vmatprep.subr.mxu0 0.0
        %4735 = vmatpush1.msra.mxu0 0.0
        %4736 = vmatprep.subr.mxu0 0.0
        %4737 = vmatpush1.msra.mxu0 0.0
        %4738 = vmatprep.subr.mxu0 0.0
        %4739 = vmatpush1.msra.mxu0 0.0
        %4740 = vmatprep.subr.mxu0 0.0
        %4741 = vmatpush1.msra.mxu0 0.0
        %4742 = vmatprep.subr.mxu0 0.0
        %4743 = vmatpush1.msra.mxu0 0.0
        %4744 = vmatprep.subr.mxu0 0.0
        %4745 = vmatpush1.msra.mxu0 0.0
        %4746 = vmatprep.subr.mxu0 0.0
        %4747 = vmatpush1.msra.mxu0 0.0
        %4748 = vmatprep.subr.mxu0 0.0
        %4749 = vmatpush1.msra.mxu0 0.0
        %4750 = vmatprep.subr.mxu0 0.0
        %4751 = vmatpush1.msra.mxu0 0.0
        %4752 = vmatprep.mubr.f32.mxu0 0.0
        %4753 = vmatmul.mubr.f32.gmra.mrb[0].mxu0 %v4687
        %v4754 = vpop.f32.mrb[0].mxu0
        %v4755 = vadd.f32 0.0, %v4754
        %v4756 = vpop.f32.mrb[0].mxu0
        %4757 = vdwg.mxu0
        %v4759 = vsel %vm1913, %v4755, 0
        %4761 = vmatprep.subr.mxu0 0.0
        %4762 = vmatpush1.msra.mxu0 %v4399
        %4763 = vmatprep.subr.mxu0 0.0
        %4764 = vmatpush1.msra.mxu0 %v4400
        %4765 = vmatprep.subr.mxu0 0.0
        %4766 = vmatpush1.msra.mxu0 %v4401
        %4767 = vmatprep.subr.mxu0 0.0
        %4768 = vmatpush1.msra.mxu0 %v4402
        %4769 = vmatprep.subr.mxu0 0.0
        %4770 = vmatpush1.msra.mxu0 0.0
        %4771 = vmatprep.subr.mxu0 0.0
        %4772 = vmatpush1.msra.mxu0 0.0
        %4773 = vmatprep.subr.mxu0 0.0
        %4774 = vmatpush1.msra.mxu0 0.0
        %4775 = vmatprep.subr.mxu0 0.0
        %4776 = vmatpush1.msra.mxu0 0.0
        %4777 = vmatprep.subr.mxu0 0.0
        %4778 = vmatpush1.msra.mxu0 0.0
        %4779 = vmatprep.subr.mxu0 0.0
        %4780 = vmatpush1.msra.mxu0 0.0
        %4781 = vmatprep.subr.mxu0 0.0
        %4782 = vmatpush1.msra.mxu0 0.0
        %4783 = vmatprep.subr.mxu0 0.0
        %4784 = vmatpush1.msra.mxu0 0.0
        %4785 = vmatprep.subr.mxu0 0.0
        %4786 = vmatpush1.msra.mxu0 0.0
        %4787 = vmatprep.subr.mxu0 0.0
        %4788 = vmatpush1.msra.mxu0 0.0
        %4789 = vmatprep.subr.mxu0 0.0
        %4790 = vmatpush1.msra.mxu0 0.0
        %4791 = vmatprep.subr.mxu0 0.0
        %4792 = vmatpush1.msra.mxu0 0.0
        %4793 = vmatprep.subr.mxu0 0.0
        %4794 = vmatpush1.msra.mxu0 0.0
        %4795 = vmatprep.subr.mxu0 0.0
        %4796 = vmatpush1.msra.mxu0 0.0
        %4797 = vmatprep.subr.mxu0 0.0
        %4798 = vmatpush1.msra.mxu0 0.0
        %4799 = vmatprep.subr.mxu0 0.0
        %4800 = vmatpush1.msra.mxu0 0.0
        %4801 = vmatprep.subr.mxu0 0.0
        %4802 = vmatpush1.msra.mxu0 0.0
        %4803 = vmatprep.subr.mxu0 0.0
        %4804 = vmatpush1.msra.mxu0 0.0
        %4805 = vmatprep.subr.mxu0 0.0
        %4806 = vmatpush1.msra.mxu0 0.0
        %4807 = vmatprep.subr.mxu0 0.0
        %4808 = vmatpush1.msra.mxu0 0.0
        %4809 = vmatprep.subr.mxu0 0.0
        %4810 = vmatpush1.msra.mxu0 0.0
        %4811 = vmatprep.subr.mxu0 0.0
        %4812 = vmatpush1.msra.mxu0 0.0
        %4813 = vmatprep.subr.mxu0 0.0
        %4814 = vmatpush1.msra.mxu0 0.0
        %4815 = vmatprep.subr.mxu0 0.0
        %4816 = vmatpush1.msra.mxu0 0.0
        %4817 = vmatprep.subr.mxu0 0.0
        %4818 = vmatpush1.msra.mxu0 0.0
        %4819 = vmatprep.subr.mxu0 0.0
        %4820 = vmatpush1.msra.mxu0 0.0
        %4821 = vmatprep.subr.mxu0 0.0
        %4822 = vmatpush1.msra.mxu0 0.0
        %4823 = vmatprep.subr.mxu0 0.0
        %4824 = vmatpush1.msra.mxu0 0.0
        %4825 = vmatprep.mubr.f32.mxu0 0.0
        %4826 = vmatmul.mubr.f32.gmra.mrb[0].mxu0 %v4759
        %v4827 = vpop.f32.mrb[0].mxu0
        %v4828 = vadd.f32 1e-05, %v4827
        %v4829 = vpop.f32.mrb[0].mxu0
        %4830 = vdwg.mxu0
        %v4831 = vrsqrt.pop %v4828
        %v4832 = vlaneseq
        %v4833 = vshrl.u32 %v4832, 7
        %v4834 = vsub.s32 0, %v4833
        %v4835 = vrot.slane %v4831, %v4834
        %v4836 = vmul.f32 %v4587, %v4835
        %v4837 = vmul.f32 %v4588, %v4835
        %v4838 = vmul.f32 %v4589, %v4835
        %v4839 = vmul.f32 %v4590, %v4835
        %v4840 = vmul.f32 %v4591, %v4835
        %v4841 = vmul.f32 %v4592, %v4835
        %v4842 = vmul.f32 %v4593, %v4835
        %v4843 = vmul.f32 %v4594, %v4835
        %v4844 = vmul.f32 %v4595, %v4835
        %v4845 = vmul.f32 %v4596, %v4835
        %v4846 = vmul.f32 %v4597, %v4835
        %v4847 = vmul.f32 %v4598, %v4835
        %v4848 = vmul.f32 %v4599, %v4835
        %v4849 = vmul.f32 %v4600, %v4835
        %v4850 = vmul.f32 %v4601, %v4835
        %v4851 = vmul.f32 %v4602, %v4835
        %v4852 = vmul.f32 %v4603, %v4835
        %v4853 = vmul.f32 %v4604, %v4835
        %v4854 = vmul.f32 %v4605, %v4835
        %v4855 = vmul.f32 %v4606, %v4835
        %v4856 = vmul.f32 %v4607, %v4835
        %v4857 = vmul.f32 %v4608, %v4835
        %v4858 = vmul.f32 %v4609, %v4835
        %v4859 = vmul.f32 %v4610, %v4835
        %v4860 = vmul.f32 %v4611, %v4835
        %v4861 = vmul.f32 %v4612, %v4835
        %v4862 = vmul.f32 %v4613, %v4835
        %v4863 = vmul.f32 %v4614, %v4835
        %v4864 = vmul.f32 %v4615, %v4835
        %v4865 = vmul.f32 %v4616, %v4835
        %v4866 = vmul.f32 %v4617, %v4835
        %v4867 = vmul.f32 %v4618, %v4835
        %v4868 = vld [vmem:[%s11] sm:$0x1]
        %v4870 = vlaneseq
        %v4871 = vshrl.u32 %v4870, 7
        %v4872 = vsub.s32 0, %v4871
        %v4873 = vrot.slane %v4868, %v4872
        %v4875 = vmul.f32 %v4836, %v4873
        %v4876 = vmul.f32 %v4837, %v4873
        %v4877 = vmul.f32 %v4838, %v4873
        %v4878 = vmul.f32 %v4839, %v4873
        %v4879 = vmul.f32 %v4840, %v4873
        %v4880 = vmul.f32 %v4841, %v4873
        %v4881 = vmul.f32 %v4842, %v4873
        %v4882 = vmul.f32 %v4843, %v4873
        %v4883 = vmul.f32 %v4844, %v4873
        %v4884 = vmul.f32 %v4845, %v4873
        %v4885 = vmul.f32 %v4846, %v4873
        %v4886 = vmul.f32 %v4847, %v4873
        %v4887 = vmul.f32 %v4848, %v4873
        %v4888 = vmul.f32 %v4849, %v4873
        %v4889 = vmul.f32 %v4850, %v4873
        %v4890 = vmul.f32 %v4851, %v4873
        %v4891 = vmul.f32 %v4852, %v4873
        %v4892 = vmul.f32 %v4853, %v4873
        %v4893 = vmul.f32 %v4854, %v4873
        %v4894 = vmul.f32 %v4855, %v4873
        %v4895 = vmul.f32 %v4856, %v4873
        %v4896 = vmul.f32 %v4857, %v4873
        %v4897 = vmul.f32 %v4858, %v4873
        %v4898 = vmul.f32 %v4859, %v4873
        %v4899 = vmul.f32 %v4860, %v4873
        %v4900 = vmul.f32 %v4861, %v4873
        %v4901 = vmul.f32 %v4862, %v4873
        %v4902 = vmul.f32 %v4863, %v4873
        %v4903 = vmul.f32 %v4864, %v4873
        %v4904 = vmul.f32 %v4865, %v4873
        %v4905 = vmul.f32 %v4866, %v4873
        %v4906 = vmul.f32 %v4867, %v4873
        %v4907 = vld [vmem:[%s12] sm:$0x1]
        %v4909 = vlaneseq
        %v4910 = vshrl.u32 %v4909, 7
        %v4911 = vsub.s32 0, %v4910
        %v4912 = vrot.slane %v4907, %v4911
        %v4914 = vadd.f32 %v4875, %v4912
        %v4915 = vadd.f32 %v4876, %v4912
        %v4916 = vadd.f32 %v4877, %v4912
        %v4917 = vadd.f32 %v4878, %v4912
        %v4918 = vadd.f32 %v4879, %v4912
        %v4919 = vadd.f32 %v4880, %v4912
        %v4920 = vadd.f32 %v4881, %v4912
        %v4921 = vadd.f32 %v4882, %v4912
        %v4922 = vadd.f32 %v4883, %v4912
        %v4923 = vadd.f32 %v4884, %v4912
        %v4924 = vadd.f32 %v4885, %v4912
        %v4925 = vadd.f32 %v4886, %v4912
        %v4926 = vadd.f32 %v4887, %v4912
        %v4927 = vadd.f32 %v4888, %v4912
        %v4928 = vadd.f32 %v4889, %v4912
        %v4929 = vadd.f32 %v4890, %v4912
        %v4930 = vadd.f32 %v4891, %v4912
        %v4931 = vadd.f32 %v4892, %v4912
        %v4932 = vadd.f32 %v4893, %v4912
        %v4933 = vadd.f32 %v4894, %v4912
        %v4934 = vadd.f32 %v4895, %v4912
        %v4935 = vadd.f32 %v4896, %v4912
        %v4936 = vadd.f32 %v4897, %v4912
        %v4937 = vadd.f32 %v4898, %v4912
        %v4938 = vadd.f32 %v4899, %v4912
        %v4939 = vadd.f32 %v4900, %v4912
        %v4940 = vadd.f32 %v4901, %v4912
        %v4941 = vadd.f32 %v4902, %v4912
        %v4942 = vadd.f32 %v4903, %v4912
        %v4943 = vadd.f32 %v4904, %v4912
        %v4944 = vadd.f32 %v4905, %v4912
        %v4945 = vadd.f32 %v4906, %v4912
        %v4946 = vmax.f32 %v4914, 0.0
        %v4947 = vmax.f32 %v4915, 0.0
        %v4948 = vmax.f32 %v4916, 0.0
        %v4949 = vmax.f32 %v4917, 0.0
        %v4950 = vmax.f32 %v4918, 0.0
        %v4951 = vmax.f32 %v4919, 0.0
        %v4952 = vmax.f32 %v4920, 0.0
        %v4953 = vmax.f32 %v4921, 0.0
        %v4954 = vmax.f32 %v4922, 0.0
        %v4955 = vmax.f32 %v4923, 0.0
        %v4956 = vmax.f32 %v4924, 0.0
        %v4957 = vmax.f32 %v4925, 0.0
        %v4958 = vmax.f32 %v4926, 0.0
        %v4959 = vmax.f32 %v4927, 0.0
        %v4960 = vmax.f32 %v4928, 0.0
        %v4961 = vmax.f32 %v4929, 0.0
        %v4962 = vmax.f32 %v4930, 0.0
        %v4963 = vmax.f32 %v4931, 0.0
        %v4964 = vmax.f32 %v4932, 0.0
        %v4965 = vmax.f32 %v4933, 0.0
        %v4966 = vmax.f32 %v4934, 0.0
        %v4967 = vmax.f32 %v4935, 0.0
        %v4968 = vmax.f32 %v4936, 0.0
        %v4969 = vmax.f32 %v4937, 0.0
        %v4970 = vmax.f32 %v4938, 0.0
        %v4971 = vmax.f32 %v4939, 0.0
        %v4972 = vmax.f32 %v4940, 0.0
        %v4973 = vmax.f32 %v4941, 0.0
        %v4974 = vmax.f32 %v4942, 0.0
        %v4975 = vmax.f32 %v4943, 0.0
        %v4976 = vmax.f32 %v4944, 0.0
        %v4977 = vmax.f32 %v4945, 0.0
        %v4978 = vld [vmem:[%s13] sm:$0x1]
        %v4979 = vld [vmem:[%s13 + $0x1] sm:$0x1]
        %v4980 = vld [vmem:[%s13 + $0x2] sm:$0x1]
        %v4981 = vld [vmem:[%s13 + $0x3] sm:$0x1]
        %v4982 = vld [vmem:[%s13 + $0x4] sm:$0x1]
        %v4983 = vld [vmem:[%s13 + $0x5] sm:$0x1]
        %v4984 = vld [vmem:[%s13 + $0x6] sm:$0x1]
        %v4985 = vld [vmem:[%s13 + $0x7] sm:$0x1]
        %v4986 = vld [vmem:[%s13 + $0x8] sm:$0x1]
        %v4987 = vrot.slane %v4946, 7
        %v4988 = vrot.slane %v4947, 7
        %v4989 = vrot.slane %v4948, 7
        %v4990 = vrot.slane %v4949, 7
        %v4991 = vrot.slane %v4950, 7
        %v4992 = vrot.slane %v4951, 7
        %v4993 = vrot.slane %v4952, 7
        %v4994 = vrot.slane %v4953, 7
        %v4995 = vrot.slane %v4954, 7
        %v4996 = vrot.slane %v4955, 7
        %v4997 = vrot.slane %v4956, 7
        %v4998 = vrot.slane %v4957, 7
        %v4999 = vrot.slane %v4958, 7
        %v5000 = vrot.slane %v4959, 7
        %v5001 = vrot.slane %v4960, 7
        %v5002 = vrot.slane %v4961, 7
        %v5003 = vrot.slane %v4962, 7
        %v5004 = vrot.slane %v4963, 7
        %v5005 = vrot.slane %v4964, 7
        %v5006 = vrot.slane %v4965, 7
        %v5007 = vrot.slane %v4966, 7
        %v5008 = vrot.slane %v4967, 7
        %v5009 = vrot.slane %v4968, 7
        %v5010 = vrot.slane %v4969, 7
        %v5011 = vrot.slane %v4970, 7
        %v5012 = vrot.slane %v4971, 7
        %v5013 = vrot.slane %v4972, 7
        %v5014 = vrot.slane %v4973, 7
        %v5015 = vrot.slane %v4974, 7
        %v5016 = vrot.slane %v4975, 7
        %v5017 = vrot.slane %v4976, 7
        %v5018 = vrot.slane %v4977, 7
        %v5019 = vsel %vm2600, %v5017, %v5018
        %v5020 = vsel %vm2600, %v5016, %v5017
        %v5021 = vsel %vm2600, %v5015, %v5016
        %v5022 = vsel %vm2600, %v5014, %v5015
        %v5023 = vsel %vm2600, %v5013, %v5014
        %v5024 = vsel %vm2600, %v5012, %v5013
        %v5025 = vsel %vm2600, %v5011, %v5012
        %v5026 = vsel %vm2600, %v5010, %v5011
        %v5027 = vsel %vm2600, %v5009, %v5010
        %v5028 = vsel %vm2600, %v5008, %v5009
        %v5029 = vsel %vm2600, %v5007, %v5008
        %v5030 = vsel %vm2600, %v5006, %v5007
        %v5031 = vsel %vm2600, %v5005, %v5006
        %v5032 = vsel %vm2600, %v5004, %v5005
        %v5033 = vsel %vm2600, %v5003, %v5004
        %v5034 = vsel %vm2600, %v5002, %v5003
        %v5035 = vsel %vm2600, %v5001, %v5002
        %v5036 = vsel %vm2600, %v5000, %v5001
        %v5037 = vsel %vm2600, %v4999, %v5000
        %v5038 = vsel %vm2600, %v4998, %v4999
        %v5039 = vsel %vm2600, %v4997, %v4998
        %v5040 = vsel %vm2600, %v4996, %v4997
        %v5041 = vsel %vm2600, %v4995, %v4996
        %v5042 = vsel %vm2600, %v4994, %v4995
        %v5043 = vsel %vm2600, %v4993, %v4994
        %v5044 = vsel %vm2600, %v4992, %v4993
        %v5045 = vsel %vm2600, %v4991, %v4992
        %v5046 = vsel %vm2600, %v4990, %v4991
        %v5047 = vsel %vm2600, %v4989, %v4990
        %v5048 = vsel %vm2600, %v4988, %v4989
        %v5049 = vsel %vm2600, %v4987, %v4988
        %v5050 = vsel %vm2600, %v5018, %v4987
        %v5051 = vsel %vm2665, %v5020, 0.0
        %v5052 = vsel %vm2666, %v5019, 0.0
        %v5053 = vsel %vm2667, %v5050, 0.0
        %v5054 = vsel %vm2668, %v5049, 0.0
        %v5055 = vsel %vm2669, %v5048, 0.0
        %v5056 = vsel %vm2670, %v5047, 0.0
        %v5057 = vsel %vm2671, %v5046, 0.0
        %v5058 = vsel %vm2672, %v5045, 0.0
        %v5059 = vsel %vm2673, %v5044, 0.0
        %v5060 = vsel %vm2674, %v5043, 0.0
        %v5061 = vsel %vm2675, %v5042, 0.0
        %v5062 = vsel %vm2676, %v5041, 0.0
        %v5063 = vsel %vm2677, %v5040, 0.0
        %v5064 = vsel %vm2678, %v5039, 0.0
        %v5065 = vsel %vm2679, %v5038, 0.0
        %v5066 = vsel %vm2680, %v5037, 0.0
        %v5067 = vsel %vm2681, %v5036, 0.0
        %v5068 = vsel %vm2682, %v5035, 0.0
        %v5069 = vsel %vm2683, %v5034, 0.0
        %v5070 = vsel %vm2684, %v5033, 0.0
        %v5071 = vsel %vm2685, %v5032, 0.0
        %v5072 = vsel %vm2686, %v5031, 0.0
        %v5073 = vsel %vm2687, %v5030, 0.0
        %v5074 = vsel %vm2688, %v5029, 0.0
        %v5075 = vsel %vm2689, %v5028, 0.0
        %v5076 = vsel %vm2690, %v5027, 0.0
        %v5077 = vsel %vm2691, %v5026, 0.0
        %v5078 = vsel %vm2692, %v5025, 0.0
        %v5079 = vsel %vm2693, %v5024, 0.0
        %v5080 = vsel %vm2694, %v5023, 0.0
        %v5081 = vsel %vm2695, %v5022, 0.0
        %v5082 = vsel %vm2696, %v5021, 0.0
        %v5084 = vlaneseq
        %v5085 = vshrl.u32 %v5084, 7
        %v5086 = vsub.s32 0, %v5085
        %v5087 = vrot.slane %v4978, %v5086
        %v5089 = vmul.f32 %v5051, %v5087
        %v5090 = vmul.f32 %v5052, %v5087
        %v5091 = vmul.f32 %v5053, %v5087
        %v5092 = vmul.f32 %v5054, %v5087
        %v5093 = vmul.f32 %v5055, %v5087
        %v5094 = vmul.f32 %v5056, %v5087
        %v5095 = vmul.f32 %v5057, %v5087
        %v5096 = vmul.f32 %v5058, %v5087
        %v5097 = vmul.f32 %v5059, %v5087
        %v5098 = vmul.f32 %v5060, %v5087
        %v5099 = vmul.f32 %v5061, %v5087
        %v5100 = vmul.f32 %v5062, %v5087
        %v5101 = vmul.f32 %v5063, %v5087
        %v5102 = vmul.f32 %v5064, %v5087
        %v5103 = vmul.f32 %v5065, %v5087
        %v5104 = vmul.f32 %v5066, %v5087
        %v5105 = vmul.f32 %v5067, %v5087
        %v5106 = vmul.f32 %v5068, %v5087
        %v5107 = vmul.f32 %v5069, %v5087
        %v5108 = vmul.f32 %v5070, %v5087
        %v5109 = vmul.f32 %v5071, %v5087
        %v5110 = vmul.f32 %v5072, %v5087
        %v5111 = vmul.f32 %v5073, %v5087
        %v5112 = vmul.f32 %v5074, %v5087
        %v5113 = vmul.f32 %v5075, %v5087
        %v5114 = vmul.f32 %v5076, %v5087
        %v5115 = vmul.f32 %v5077, %v5087
        %v5116 = vmul.f32 %v5078, %v5087
        %v5117 = vmul.f32 %v5079, %v5087
        %v5118 = vmul.f32 %v5080, %v5087
        %v5119 = vmul.f32 %v5081, %v5087
        %v5120 = vmul.f32 %v5082, %v5087
        %v5121 = vadd.f32 %v5089, 0.0
        %v5122 = vadd.f32 %v5090, 0.0
        %v5123 = vadd.f32 %v5091, 0.0
        %v5124 = vadd.f32 %v5092, 0.0
        %v5125 = vadd.f32 %v5093, 0.0
        %v5126 = vadd.f32 %v5094, 0.0
        %v5127 = vadd.f32 %v5095, 0.0
        %v5128 = vadd.f32 %v5096, 0.0
        %v5129 = vadd.f32 %v5097, 0.0
        %v5130 = vadd.f32 %v5098, 0.0
        %v5131 = vadd.f32 %v5099, 0.0
        %v5132 = vadd.f32 %v5100, 0.0
        %v5133 = vadd.f32 %v5101, 0.0
        %v5134 = vadd.f32 %v5102, 0.0
        %v5135 = vadd.f32 %v5103, 0.0
        %v5136 = vadd.f32 %v5104, 0.0
        %v5137 = vadd.f32 %v5105, 0.0
        %v5138 = vadd.f32 %v5106, 0.0
        %v5139 = vadd.f32 %v5107, 0.0
        %v5140 = vadd.f32 %v5108, 0.0
        %v5141 = vadd.f32 %v5109, 0.0
        %v5142 = vadd.f32 %v5110, 0.0
        %v5143 = vadd.f32 %v5111, 0.0
        %v5144 = vadd.f32 %v5112, 0.0
        %v5145 = vadd.f32 %v5113, 0.0
        %v5146 = vadd.f32 %v5114, 0.0
        %v5147 = vadd.f32 %v5115, 0.0
        %v5148 = vadd.f32 %v5116, 0.0
        %v5149 = vadd.f32 %v5117, 0.0
        %v5150 = vadd.f32 %v5118, 0.0
        %v5151 = vadd.f32 %v5119, 0.0
        %v5152 = vadd.f32 %v5120, 0.0
        %v5153 = vsel %vm2831, %v4976, 0.0
        %v5154 = vsel %vm2832, %v4977, 0.0
        %v5155 = vsel %vm2833, %v4946, 0.0
        %v5156 = vsel %vm2834, %v4947, 0.0
        %v5157 = vsel %vm2835, %v4948, 0.0
        %v5158 = vsel %vm2836, %v4949, 0.0
        %v5159 = vsel %vm2837, %v4950, 0.0
        %v5160 = vsel %vm2838, %v4951, 0.0
        %v5161 = vsel %vm2839, %v4952, 0.0
        %v5162 = vsel %vm2840, %v4953, 0.0
        %v5163 = vsel %vm2841, %v4954, 0.0
        %v5164 = vsel %vm2842, %v4955, 0.0
        %v5165 = vsel %vm2843, %v4956, 0.0
        %v5166 = vsel %vm2844, %v4957, 0.0
        %v5167 = vsel %vm2845, %v4958, 0.0
        %v5168 = vsel %vm2846, %v4959, 0.0
        %v5169 = vsel %vm2847, %v4960, 0.0
        %v5170 = vsel %vm2848, %v4961, 0.0
        %v5171 = vsel %vm2849, %v4962, 0.0
        %v5172 = vsel %vm2850, %v4963, 0.0
        %v5173 = vsel %vm2851, %v4964, 0.0
        %v5174 = vsel %vm2852, %v4965, 0.0
        %v5175 = vsel %vm2853, %v4966, 0.0
        %v5176 = vsel %vm2854, %v4967, 0.0
        %v5177 = vsel %vm2855, %v4968, 0.0
        %v5178 = vsel %vm2856, %v4969, 0.0
        %v5179 = vsel %vm2857, %v4970, 0.0
        %v5180 = vsel %vm2858, %v4971, 0.0
        %v5181 = vsel %vm2859, %v4972, 0.0
        %v5182 = vsel %vm2860, %v4973, 0.0
        %v5183 = vsel %vm2861, %v4974, 0.0
        %v5184 = vsel %vm2862, %v4975, 0.0
        %v5186 = vlaneseq
        %v5187 = vshrl.u32 %v5186, 7
        %v5188 = vsub.s32 0, %v5187
        %v5189 = vrot.slane %v4979, %v5188
        %v5191 = vmul.f32 %v5153, %v5189
        %v5192 = vmul.f32 %v5154, %v5189
        %v5193 = vmul.f32 %v5155, %v5189
        %v5194 = vmul.f32 %v5156, %v5189
        %v5195 = vmul.f32 %v5157, %v5189
        %v5196 = vmul.f32 %v5158, %v5189
        %v5197 = vmul.f32 %v5159, %v5189
        %v5198 = vmul.f32 %v5160, %v5189
        %v5199 = vmul.f32 %v5161, %v5189
        %v5200 = vmul.f32 %v5162, %v5189
        %v5201 = vmul.f32 %v5163, %v5189
        %v5202 = vmul.f32 %v5164, %v5189
        %v5203 = vmul.f32 %v5165, %v5189
        %v5204 = vmul.f32 %v5166, %v5189
        %v5205 = vmul.f32 %v5167, %v5189
        %v5206 = vmul.f32 %v5168, %v5189
        %v5207 = vmul.f32 %v5169, %v5189
        %v5208 = vmul.f32 %v5170, %v5189
        %v5209 = vmul.f32 %v5171, %v5189
        %v5210 = vmul.f32 %v5172, %v5189
        %v5211 = vmul.f32 %v5173, %v5189
        %v5212 = vmul.f32 %v5174, %v5189
        %v5213 = vmul.f32 %v5175, %v5189
        %v5214 = vmul.f32 %v5176, %v5189
        %v5215 = vmul.f32 %v5177, %v5189
        %v5216 = vmul.f32 %v5178, %v5189
        %v5217 = vmul.f32 %v5179, %v5189
        %v5218 = vmul.f32 %v5180, %v5189
        %v5219 = vmul.f32 %v5181, %v5189
        %v5220 = vmul.f32 %v5182, %v5189
        %v5221 = vmul.f32 %v5183, %v5189
        %v5222 = vmul.f32 %v5184, %v5189
        %v5223 = vadd.f32 %v5121, %v5191
        %v5224 = vadd.f32 %v5122, %v5192
        %v5225 = vadd.f32 %v5123, %v5193
        %v5226 = vadd.f32 %v5124, %v5194
        %v5227 = vadd.f32 %v5125, %v5195
        %v5228 = vadd.f32 %v5126, %v5196
        %v5229 = vadd.f32 %v5127, %v5197
        %v5230 = vadd.f32 %v5128, %v5198
        %v5231 = vadd.f32 %v5129, %v5199
        %v5232 = vadd.f32 %v5130, %v5200
        %v5233 = vadd.f32 %v5131, %v5201
        %v5234 = vadd.f32 %v5132, %v5202
        %v5235 = vadd.f32 %v5133, %v5203
        %v5236 = vadd.f32 %v5134, %v5204
        %v5237 = vadd.f32 %v5135, %v5205
        %v5238 = vadd.f32 %v5136, %v5206
        %v5239 = vadd.f32 %v5137, %v5207
        %v5240 = vadd.f32 %v5138, %v5208
        %v5241 = vadd.f32 %v5139, %v5209
        %v5242 = vadd.f32 %v5140, %v5210
        %v5243 = vadd.f32 %v5141, %v5211
        %v5244 = vadd.f32 %v5142, %v5212
        %v5245 = vadd.f32 %v5143, %v5213
        %v5246 = vadd.f32 %v5144, %v5214
        %v5247 = vadd.f32 %v5145, %v5215
        %v5248 = vadd.f32 %v5146, %v5216
        %v5249 = vadd.f32 %v5147, %v5217
        %v5250 = vadd.f32 %v5148, %v5218
        %v5251 = vadd.f32 %v5149, %v5219
        %v5252 = vadd.f32 %v5150, %v5220
        %v5253 = vadd.f32 %v5151, %v5221
        %v5254 = vadd.f32 %v5152, %v5222
        %v5255 = vrot.slane %v4946, 1
        %v5256 = vrot.slane %v4947, 1
        %v5257 = vrot.slane %v4948, 1
        %v5258 = vrot.slane %v4949, 1
        %v5259 = vrot.slane %v4950, 1
        %v5260 = vrot.slane %v4951, 1
        %v5261 = vrot.slane %v4952, 1
        %v5262 = vrot.slane %v4953, 1
        %v5263 = vrot.slane %v4954, 1
        %v5264 = vrot.slane %v4955, 1
        %v5265 = vrot.slane %v4956, 1
        %v5266 = vrot.slane %v4957, 1
        %v5267 = vrot.slane %v4958, 1
        %v5268 = vrot.slane %v4959, 1
        %v5269 = vrot.slane %v4960, 1
        %v5270 = vrot.slane %v4961, 1
        %v5271 = vrot.slane %v4962, 1
        %v5272 = vrot.slane %v4963, 1
        %v5273 = vrot.slane %v4964, 1
        %v5274 = vrot.slane %v4965, 1
        %v5275 = vrot.slane %v4966, 1
        %v5276 = vrot.slane %v4967, 1
        %v5277 = vrot.slane %v4968, 1
        %v5278 = vrot.slane %v4969, 1
        %v5279 = vrot.slane %v4970, 1
        %v5280 = vrot.slane %v4971, 1
        %v5281 = vrot.slane %v4972, 1
        %v5282 = vrot.slane %v4973, 1
        %v5283 = vrot.slane %v4974, 1
        %v5284 = vrot.slane %v4975, 1
        %v5285 = vrot.slane %v4976, 1
        %v5286 = vrot.slane %v4977, 1
        %v5287 = vsel %vm2997, %v5285, %v5286
        %v5288 = vsel %vm2997, %v5284, %v5285
        %v5289 = vsel %vm2997, %v5283, %v5284
        %v5290 = vsel %vm2997, %v5282, %v5283
        %v5291 = vsel %vm2997, %v5281, %v5282
        %v5292 = vsel %vm2997, %v5280, %v5281
        %v5293 = vsel %vm2997, %v5279, %v5280
        %v5294 = vsel %vm2997, %v5278, %v5279
        %v5295 = vsel %vm2997, %v5277, %v5278
        %v5296 = vsel %vm2997, %v5276, %v5277
        %v5297 = vsel %vm2997, %v5275, %v5276
        %v5298 = vsel %vm2997, %v5274, %v5275
        %v5299 = vsel %vm2997, %v5273, %v5274
        %v5300 = vsel %vm2997, %v5272, %v5273
        %v5301 = vsel %vm2997, %v5271, %v5272
        %v5302 = vsel %vm2997, %v5270, %v5271
        %v5303 = vsel %vm2997, %v5269, %v5270
        %v5304 = vsel %vm2997, %v5268, %v5269
        %v5305 = vsel %vm2997, %v5267, %v5268
        %v5306 = vsel %vm2997, %v5266, %v5267
        %v5307 = vsel %vm2997, %v5265, %v5266
        %v5308 = vsel %vm2997, %v5264, %v5265
        %v5309 = vsel %vm2997, %v5263, %v5264
        %v5310 = vsel %vm2997, %v5262, %v5263
        %v5311 = vsel %vm2997, %v5261, %v5262
        %v5312 = vsel %vm2997, %v5260, %v5261
        %v5313 = vsel %vm2997, %v5259, %v5260
        %v5314 = vsel %vm2997, %v5258, %v5259
        %v5315 = vsel %vm2997, %v5257, %v5258
        %v5316 = vsel %vm2997, %v5256, %v5257
        %v5317 = vsel %vm2997, %v5255, %v5256
        %v5318 = vsel %vm2997, %v5286, %v5255
        %v5319 = vsel %vm3062, %v5287, 0.0
        %v5320 = vsel %vm3063, %v5318, 0.0
        %v5321 = vsel %vm3064, %v5317, 0.0
        %v5322 = vsel %vm3065, %v5316, 0.0
        %v5323 = vsel %vm3066, %v5315, 0.0
        %v5324 = vsel %vm3067, %v5314, 0.0
        %v5325 = vsel %vm3068, %v5313, 0.0
        %v5326 = vsel %vm3069, %v5312, 0.0
        %v5327 = vsel %vm3070, %v5311, 0.0
        %v5328 = vsel %vm3071, %v5310, 0.0
        %v5329 = vsel %vm3072, %v5309, 0.0
        %v5330 = vsel %vm3073, %v5308, 0.0
        %v5331 = vsel %vm3074, %v5307, 0.0
        %v5332 = vsel %vm3075, %v5306, 0.0
        %v5333 = vsel %vm3076, %v5305, 0.0
        %v5334 = vsel %vm3077, %v5304, 0.0
        %v5335 = vsel %vm3078, %v5303, 0.0
        %v5336 = vsel %vm3079, %v5302, 0.0
        %v5337 = vsel %vm3080, %v5301, 0.0
        %v5338 = vsel %vm3081, %v5300, 0.0
        %v5339 = vsel %vm3082, %v5299, 0.0
        %v5340 = vsel %vm3083, %v5298, 0.0
        %v5341 = vsel %vm3084, %v5297, 0.0
        %v5342 = vsel %vm3085, %v5296, 0.0
        %v5343 = vsel %vm3086, %v5295, 0.0
        %v5344 = vsel %vm3087, %v5294, 0.0
        %v5345 = vsel %vm3088, %v5293, 0.0
        %v5346 = vsel %vm3089, %v5292, 0.0
        %v5347 = vsel %vm3090, %v5291, 0.0
        %v5348 = vsel %vm3091, %v5290, 0.0
        %v5349 = vsel %vm3092, %v5289, 0.0
        %v5350 = vsel %vm3093, %v5288, 0.0
        %v5352 = vlaneseq
        %v5353 = vshrl.u32 %v5352, 7
        %v5354 = vsub.s32 0, %v5353
        %v5355 = vrot.slane %v4980, %v5354
        %v5357 = vmul.f32 %v5319, %v5355
        %v5358 = vmul.f32 %v5320, %v5355
        %v5359 = vmul.f32 %v5321, %v5355
        %v5360 = vmul.f32 %v5322, %v5355
        %v5361 = vmul.f32 %v5323, %v5355
        %v5362 = vmul.f32 %v5324, %v5355
        %v5363 = vmul.f32 %v5325, %v5355
        %v5364 = vmul.f32 %v5326, %v5355
        %v5365 = vmul.f32 %v5327, %v5355
        %v5366 = vmul.f32 %v5328, %v5355
        %v5367 = vmul.f32 %v5329, %v5355
        %v5368 = vmul.f32 %v5330, %v5355
        %v5369 = vmul.f32 %v5331, %v5355
        %v5370 = vmul.f32 %v5332, %v5355
        %v5371 = vmul.f32 %v5333, %v5355
        %v5372 = vmul.f32 %v5334, %v5355
        %v5373 = vmul.f32 %v5335, %v5355
        %v5374 = vmul.f32 %v5336, %v5355
        %v5375 = vmul.f32 %v5337, %v5355
        %v5376 = vmul.f32 %v5338, %v5355
        %v5377 = vmul.f32 %v5339, %v5355
        %v5378 = vmul.f32 %v5340, %v5355
        %v5379 = vmul.f32 %v5341, %v5355
        %v5380 = vmul.f32 %v5342, %v5355
        %v5381 = vmul.f32 %v5343, %v5355
        %v5382 = vmul.f32 %v5344, %v5355
        %v5383 = vmul.f32 %v5345, %v5355
        %v5384 = vmul.f32 %v5346, %v5355
        %v5385 = vmul.f32 %v5347, %v5355
        %v5386 = vmul.f32 %v5348, %v5355
        %v5387 = vmul.f32 %v5349, %v5355
        %v5388 = vmul.f32 %v5350, %v5355
        %v5389 = vadd.f32 %v5223, %v5357
        %v5390 = vadd.f32 %v5224, %v5358
        %v5391 = vadd.f32 %v5225, %v5359
        %v5392 = vadd.f32 %v5226, %v5360
        %v5393 = vadd.f32 %v5227, %v5361
        %v5394 = vadd.f32 %v5228, %v5362
        %v5395 = vadd.f32 %v5229, %v5363
        %v5396 = vadd.f32 %v5230, %v5364
        %v5397 = vadd.f32 %v5231, %v5365
        %v5398 = vadd.f32 %v5232, %v5366
        %v5399 = vadd.f32 %v5233, %v5367
        %v5400 = vadd.f32 %v5234, %v5368
        %v5401 = vadd.f32 %v5235, %v5369
        %v5402 = vadd.f32 %v5236, %v5370
        %v5403 = vadd.f32 %v5237, %v5371
        %v5404 = vadd.f32 %v5238, %v5372
        %v5405 = vadd.f32 %v5239, %v5373
        %v5406 = vadd.f32 %v5240, %v5374
        %v5407 = vadd.f32 %v5241, %v5375
        %v5408 = vadd.f32 %v5242, %v5376
        %v5409 = vadd.f32 %v5243, %v5377
        %v5410 = vadd.f32 %v5244, %v5378
        %v5411 = vadd.f32 %v5245, %v5379
        %v5412 = vadd.f32 %v5246, %v5380
        %v5413 = vadd.f32 %v5247, %v5381
        %v5414 = vadd.f32 %v5248, %v5382
        %v5415 = vadd.f32 %v5249, %v5383
        %v5416 = vadd.f32 %v5250, %v5384
        %v5417 = vadd.f32 %v5251, %v5385
        %v5418 = vadd.f32 %v5252, %v5386
        %v5419 = vadd.f32 %v5253, %v5387
        %v5420 = vadd.f32 %v5254, %v5388
        %v5421 = vsel %vm3228, %v5050, 0.0
        %v5422 = vsel %vm3229, %v5049, 0.0
        %v5423 = vsel %vm3230, %v5048, 0.0
        %v5424 = vsel %vm3231, %v5047, 0.0
        %v5425 = vsel %vm3232, %v5046, 0.0
        %v5426 = vsel %vm3233, %v5045, 0.0
        %v5427 = vsel %vm3234, %v5044, 0.0
        %v5428 = vsel %vm3235, %v5043, 0.0
        %v5429 = vsel %vm3236, %v5042, 0.0
        %v5430 = vsel %vm3237, %v5041, 0.0
        %v5431 = vsel %vm3238, %v5040, 0.0
        %v5432 = vsel %vm3239, %v5039, 0.0
        %v5433 = vsel %vm3240, %v5038, 0.0
        %v5434 = vsel %vm3241, %v5037, 0.0
        %v5435 = vsel %vm3242, %v5036, 0.0
        %v5436 = vsel %vm3243, %v5035, 0.0
        %v5437 = vsel %vm3244, %v5034, 0.0
        %v5438 = vsel %vm3245, %v5033, 0.0
        %v5439 = vsel %vm3246, %v5032, 0.0
        %v5440 = vsel %vm3247, %v5031, 0.0
        %v5441 = vsel %vm3248, %v5030, 0.0
        %v5442 = vsel %vm3249, %v5029, 0.0
        %v5443 = vsel %vm3250, %v5028, 0.0
        %v5444 = vsel %vm3251, %v5027, 0.0
        %v5445 = vsel %vm3252, %v5026, 0.0
        %v5446 = vsel %vm3253, %v5025, 0.0
        %v5447 = vsel %vm3254, %v5024, 0.0
        %v5448 = vsel %vm3255, %v5023, 0.0
        %v5449 = vsel %vm3256, %v5022, 0.0
        %v5450 = vsel %vm3257, %v5021, 0.0
        %v5451 = vsel %vm3258, %v5020, 0.0
        %v5452 = vsel %vm3259, %v5019, 0.0
        %v5454 = vlaneseq
        %v5455 = vshrl.u32 %v5454, 7
        %v5456 = vsub.s32 0, %v5455
        %v5457 = vrot.slane %v4981, %v5456
        %v5459 = vmul.f32 %v5421, %v5457
        %v5460 = vmul.f32 %v5422, %v5457
        %v5461 = vmul.f32 %v5423, %v5457
        %v5462 = vmul.f32 %v5424, %v5457
        %v5463 = vmul.f32 %v5425, %v5457
        %v5464 = vmul.f32 %v5426, %v5457
        %v5465 = vmul.f32 %v5427, %v5457
        %v5466 = vmul.f32 %v5428, %v5457
        %v5467 = vmul.f32 %v5429, %v5457
        %v5468 = vmul.f32 %v5430, %v5457
        %v5469 = vmul.f32 %v5431, %v5457
        %v5470 = vmul.f32 %v5432, %v5457
        %v5471 = vmul.f32 %v5433, %v5457
        %v5472 = vmul.f32 %v5434, %v5457
        %v5473 = vmul.f32 %v5435, %v5457
        %v5474 = vmul.f32 %v5436, %v5457
        %v5475 = vmul.f32 %v5437, %v5457
        %v5476 = vmul.f32 %v5438, %v5457
        %v5477 = vmul.f32 %v5439, %v5457
        %v5478 = vmul.f32 %v5440, %v5457
        %v5479 = vmul.f32 %v5441, %v5457
        %v5480 = vmul.f32 %v5442, %v5457
        %v5481 = vmul.f32 %v5443, %v5457
        %v5482 = vmul.f32 %v5444, %v5457
        %v5483 = vmul.f32 %v5445, %v5457
        %v5484 = vmul.f32 %v5446, %v5457
        %v5485 = vmul.f32 %v5447, %v5457
        %v5486 = vmul.f32 %v5448, %v5457
        %v5487 = vmul.f32 %v5449, %v5457
        %v5488 = vmul.f32 %v5450, %v5457
        %v5489 = vmul.f32 %v5451, %v5457
        %v5490 = vmul.f32 %v5452, %v5457
        %v5491 = vadd.f32 %v5389, %v5459
        %v5492 = vadd.f32 %v5390, %v5460
        %v5493 = vadd.f32 %v5391, %v5461
        %v5494 = vadd.f32 %v5392, %v5462
        %v5495 = vadd.f32 %v5393, %v5463
        %v5496 = vadd.f32 %v5394, %v5464
        %v5497 = vadd.f32 %v5395, %v5465
        %v5498 = vadd.f32 %v5396, %v5466
        %v5499 = vadd.f32 %v5397, %v5467
        %v5500 = vadd.f32 %v5398, %v5468
        %v5501 = vadd.f32 %v5399, %v5469
        %v5502 = vadd.f32 %v5400, %v5470
        %v5503 = vadd.f32 %v5401, %v5471
        %v5504 = vadd.f32 %v5402, %v5472
        %v5505 = vadd.f32 %v5403, %v5473
        %v5506 = vadd.f32 %v5404, %v5474
        %v5507 = vadd.f32 %v5405, %v5475
        %v5508 = vadd.f32 %v5406, %v5476
        %v5509 = vadd.f32 %v5407, %v5477
        %v5510 = vadd.f32 %v5408, %v5478
        %v5511 = vadd.f32 %v5409, %v5479
        %v5512 = vadd.f32 %v5410, %v5480
        %v5513 = vadd.f32 %v5411, %v5481
        %v5514 = vadd.f32 %v5412, %v5482
        %v5515 = vadd.f32 %v5413, %v5483
        %v5516 = vadd.f32 %v5414, %v5484
        %v5517 = vadd.f32 %v5415, %v5485
        %v5518 = vadd.f32 %v5416, %v5486
        %v5519 = vadd.f32 %v5417, %v5487
        %v5520 = vadd.f32 %v5418, %v5488
        %v5521 = vadd.f32 %v5419, %v5489
        %v5522 = vadd.f32 %v5420, %v5490
        %v5524 = vlaneseq
        %v5525 = vshrl.u32 %v5524, 7
        %v5526 = vsub.s32 0, %v5525
        %v5527 = vrot.slane %v4982, %v5526
        %v5529 = vmul.f32 %v4946, %v5527
        %v5530 = vmul.f32 %v4947, %v5527
        %v5531 = vmul.f32 %v4948, %v5527
        %v5532 = vmul.f32 %v4949, %v5527
        %v5533 = vmul.f32 %v4950, %v5527
        %v5534 = vmul.f32 %v4951, %v5527
        %v5535 = vmul.f32 %v4952, %v5527
        %v5536 = vmul.f32 %v4953, %v5527
        %v5537 = vmul.f32 %v4954, %v5527
        %v5538 = vmul.f32 %v4955, %v5527
        %v5539 = vmul.f32 %v4956, %v5527
        %v5540 = vmul.f32 %v4957, %v5527
        %v5541 = vmul.f32 %v4958, %v5527
        %v5542 = vmul.f32 %v4959, %v5527
        %v5543 = vmul.f32 %v4960, %v5527
        %v5544 = vmul.f32 %v4961, %v5527
        %v5545 = vmul.f32 %v4962, %v5527
        %v5546 = vmul.f32 %v4963, %v5527
        %v5547 = vmul.f32 %v4964, %v5527
        %v5548 = vmul.f32 %v4965, %v5527
        %v5549 = vmul.f32 %v4966, %v5527
        %v5550 = vmul.f32 %v4967, %v5527
        %v5551 = vmul.f32 %v4968, %v5527
        %v5552 = vmul.f32 %v4969, %v5527
        %v5553 = vmul.f32 %v4970, %v5527
        %v5554 = vmul.f32 %v4971, %v5527
        %v5555 = vmul.f32 %v4972, %v5527
        %v5556 = vmul.f32 %v4973, %v5527
        %v5557 = vmul.f32 %v4974, %v5527
        %v5558 = vmul.f32 %v4975, %v5527
        %v5559 = vmul.f32 %v4976, %v5527
        %v5560 = vmul.f32 %v4977, %v5527
        %v5561 = vadd.f32 %v5491, %v5529
        %v5562 = vadd.f32 %v5492, %v5530
        %v5563 = vadd.f32 %v5493, %v5531
        %v5564 = vadd.f32 %v5494, %v5532
        %v5565 = vadd.f32 %v5495, %v5533
        %v5566 = vadd.f32 %v5496, %v5534
        %v5567 = vadd.f32 %v5497, %v5535
        %v5568 = vadd.f32 %v5498, %v5536
        %v5569 = vadd.f32 %v5499, %v5537
        %v5570 = vadd.f32 %v5500, %v5538
        %v5571 = vadd.f32 %v5501, %v5539
        %v5572 = vadd.f32 %v5502, %v5540
        %v5573 = vadd.f32 %v5503, %v5541
        %v5574 = vadd.f32 %v5504, %v5542
        %v5575 = vadd.f32 %v5505, %v5543
        %v5576 = vadd.f32 %v5506, %v5544
        %v5577 = vadd.f32 %v5507, %v5545
        %v5578 = vadd.f32 %v5508, %v5546
        %v5579 = vadd.f32 %v5509, %v5547
        %v5580 = vadd.f32 %v5510, %v5548
        %v5581 = vadd.f32 %v5511, %v5549
        %v5582 = vadd.f32 %v5512, %v5550
        %v5583 = vadd.f32 %v5513, %v5551
        %v5584 = vadd.f32 %v5514, %v5552
        %v5585 = vadd.f32 %v5515, %v5553
        %v5586 = vadd.f32 %v5516, %v5554
        %v5587 = vadd.f32 %v5517, %v5555
        %v5588 = vadd.f32 %v5518, %v5556
        %v5589 = vadd.f32 %v5519, %v5557
        %v5590 = vadd.f32 %v5520, %v5558
        %v5591 = vadd.f32 %v5521, %v5559
        %v5592 = vadd.f32 %v5522, %v5560
        %v5593 = vsel %vm3464, %v5317, 0.0
        %v5594 = vsel %vm3465, %v5316, 0.0
        %v5595 = vsel %vm3466, %v5315, 0.0
        %v5596 = vsel %vm3467, %v5314, 0.0
        %v5597 = vsel %vm3468, %v5313, 0.0
        %v5598 = vsel %vm3469, %v5312, 0.0
        %v5599 = vsel %vm3470, %v5311, 0.0
        %v5600 = vsel %vm3471, %v5310, 0.0
        %v5601 = vsel %vm3472, %v5309, 0.0
        %v5602 = vsel %vm3473, %v5308, 0.0
        %v5603 = vsel %vm3474, %v5307, 0.0
        %v5604 = vsel %vm3475, %v5306, 0.0
        %v5605 = vsel %vm3476, %v5305, 0.0
        %v5606 = vsel %vm3477, %v5304, 0.0
        %v5607 = vsel %vm3478, %v5303, 0.0
        %v5608 = vsel %vm3479, %v5302, 0.0
        %v5609 = vsel %vm3480, %v5301, 0.0
        %v5610 = vsel %vm3481, %v5300, 0.0
        %v5611 = vsel %vm3482, %v5299, 0.0
        %v5612 = vsel %vm3483, %v5298, 0.0
        %v5613 = vsel %vm3484, %v5297, 0.0
        %v5614 = vsel %vm3485, %v5296, 0.0
        %v5615 = vsel %vm3486, %v5295, 0.0
        %v5616 = vsel %vm3487, %v5294, 0.0
        %v5617 = vsel %vm3488, %v5293, 0.0
        %v5618 = vsel %vm3489, %v5292, 0.0
        %v5619 = vsel %vm3490, %v5291, 0.0
        %v5620 = vsel %vm3491, %v5290, 0.0
        %v5621 = vsel %vm3492, %v5289, 0.0
        %v5622 = vsel %vm3493, %v5288, 0.0
        %v5623 = vsel %vm3494, %v5287, 0.0
        %v5624 = vsel %vm3495, %v5318, 0.0
        %v5626 = vlaneseq
        %v5627 = vshrl.u32 %v5626, 7
        %v5628 = vsub.s32 0, %v5627
        %v5629 = vrot.slane %v4983, %v5628
        %v5631 = vmul.f32 %v5593, %v5629
        %v5632 = vmul.f32 %v5594, %v5629
        %v5633 = vmul.f32 %v5595, %v5629
        %v5634 = vmul.f32 %v5596, %v5629
        %v5635 = vmul.f32 %v5597, %v5629
        %v5636 = vmul.f32 %v5598, %v5629
        %v5637 = vmul.f32 %v5599, %v5629
        %v5638 = vmul.f32 %v5600, %v5629
        %v5639 = vmul.f32 %v5601, %v5629
        %v5640 = vmul.f32 %v5602, %v5629
        %v5641 = vmul.f32 %v5603, %v5629
        %v5642 = vmul.f32 %v5604, %v5629
        %v5643 = vmul.f32 %v5605, %v5629
        %v5644 = vmul.f32 %v5606, %v5629
        %v5645 = vmul.f32 %v5607, %v5629
        %v5646 = vmul.f32 %v5608, %v5629
        %v5647 = vmul.f32 %v5609, %v5629
        %v5648 = vmul.f32 %v5610, %v5629
        %v5649 = vmul.f32 %v5611, %v5629
        %v5650 = vmul.f32 %v5612, %v5629
        %v5651 = vmul.f32 %v5613, %v5629
        %v5652 = vmul.f32 %v5614, %v5629
        %v5653 = vmul.f32 %v5615, %v5629
        %v5654 = vmul.f32 %v5616, %v5629
        %v5655 = vmul.f32 %v5617, %v5629
        %v5656 = vmul.f32 %v5618, %v5629
        %v5657 = vmul.f32 %v5619, %v5629
        %v5658 = vmul.f32 %v5620, %v5629
        %v5659 = vmul.f32 %v5621, %v5629
        %v5660 = vmul.f32 %v5622, %v5629
        %v5661 = vmul.f32 %v5623, %v5629
        %v5662 = vmul.f32 %v5624, %v5629
        %v5663 = vadd.f32 %v5561, %v5631
        %v5664 = vadd.f32 %v5562, %v5632
        %v5665 = vadd.f32 %v5563, %v5633
        %v5666 = vadd.f32 %v5564, %v5634
        %v5667 = vadd.f32 %v5565, %v5635
        %v5668 = vadd.f32 %v5566, %v5636
        %v5669 = vadd.f32 %v5567, %v5637
        %v5670 = vadd.f32 %v5568, %v5638
        %v5671 = vadd.f32 %v5569, %v5639
        %v5672 = vadd.f32 %v5570, %v5640
        %v5673 = vadd.f32 %v5571, %v5641
        %v5674 = vadd.f32 %v5572, %v5642
        %v5675 = vadd.f32 %v5573, %v5643
        %v5676 = vadd.f32 %v5574, %v5644
        %v5677 = vadd.f32 %v5575, %v5645
        %v5678 = vadd.f32 %v5576, %v5646
        %v5679 = vadd.f32 %v5577, %v5647
        %v5680 = vadd.f32 %v5578, %v5648
        %v5681 = vadd.f32 %v5579, %v5649
        %v5682 = vadd.f32 %v5580, %v5650
        %v5683 = vadd.f32 %v5581, %v5651
        %v5684 = vadd.f32 %v5582, %v5652
        %v5685 = vadd.f32 %v5583, %v5653
        %v5686 = vadd.f32 %v5584, %v5654
        %v5687 = vadd.f32 %v5585, %v5655
        %v5688 = vadd.f32 %v5586, %v5656
        %v5689 = vadd.f32 %v5587, %v5657
        %v5690 = vadd.f32 %v5588, %v5658
        %v5691 = vadd.f32 %v5589, %v5659
        %v5692 = vadd.f32 %v5590, %v5660
        %v5693 = vadd.f32 %v5591, %v5661
        %v5694 = vadd.f32 %v5592, %v5662
        %v5695 = vsel %vm3630, %v5048, 0.0
        %v5696 = vsel %vm3631, %v5047, 0.0
        %v5697 = vsel %vm3632, %v5046, 0.0
        %v5698 = vsel %vm3633, %v5045, 0.0
        %v5699 = vsel %vm3634, %v5044, 0.0
        %v5700 = vsel %vm3635, %v5043, 0.0
        %v5701 = vsel %vm3636, %v5042, 0.0
        %v5702 = vsel %vm3637, %v5041, 0.0
        %v5703 = vsel %vm3638, %v5040, 0.0
        %v5704 = vsel %vm3639, %v5039, 0.0
        %v5705 = vsel %vm3640, %v5038, 0.0
        %v5706 = vsel %vm3641, %v5037, 0.0
        %v5707 = vsel %vm3642, %v5036, 0.0
        %v5708 = vsel %vm3643, %v5035, 0.0
        %v5709 = vsel %vm3644, %v5034, 0.0
        %v5710 = vsel %vm3645, %v5033, 0.0
        %v5711 = vsel %vm3646, %v5032, 0.0
        %v5712 = vsel %vm3647, %v5031, 0.0
        %v5713 = vsel %vm3648, %v5030, 0.0
        %v5714 = vsel %vm3649, %v5029, 0.0
        %v5715 = vsel %vm3650, %v5028, 0.0
        %v5716 = vsel %vm3651, %v5027, 0.0
        %v5717 = vsel %vm3652, %v5026, 0.0
        %v5718 = vsel %vm3653, %v5025, 0.0
        %v5719 = vsel %vm3654, %v5024, 0.0
        %v5720 = vsel %vm3655, %v5023, 0.0
        %v5721 = vsel %vm3656, %v5022, 0.0
        %v5722 = vsel %vm3657, %v5021, 0.0
        %v5723 = vsel %vm3658, %v5020, 0.0
        %v5724 = vsel %vm3659, %v5019, 0.0
        %v5725 = vsel %vm3660, %v5050, 0.0
        %v5726 = vsel %vm3661, %v5049, 0.0
        %v5728 = vlaneseq
        %v5729 = vshrl.u32 %v5728, 7
        %v5730 = vsub.s32 0, %v5729
        %v5731 = vrot.slane %v4984, %v5730
        %v5733 = vmul.f32 %v5695, %v5731
        %v5734 = vmul.f32 %v5696, %v5731
        %v5735 = vmul.f32 %v5697, %v5731
        %v5736 = vmul.f32 %v5698, %v5731
        %v5737 = vmul.f32 %v5699, %v5731
        %v5738 = vmul.f32 %v5700, %v5731
        %v5739 = vmul.f32 %v5701, %v5731
        %v5740 = vmul.f32 %v5702, %v5731
        %v5741 = vmul.f32 %v5703, %v5731
        %v5742 = vmul.f32 %v5704, %v5731
        %v5743 = vmul.f32 %v5705, %v5731
        %v5744 = vmul.f32 %v5706, %v5731
        %v5745 = vmul.f32 %v5707, %v5731
        %v5746 = vmul.f32 %v5708, %v5731
        %v5747 = vmul.f32 %v5709, %v5731
        %v5748 = vmul.f32 %v5710, %v5731
        %v5749 = vmul.f32 %v5711, %v5731
        %v5750 = vmul.f32 %v5712, %v5731
        %v5751 = vmul.f32 %v5713, %v5731
        %v5752 = vmul.f32 %v5714, %v5731
        %v5753 = vmul.f32 %v5715, %v5731
        %v5754 = vmul.f32 %v5716, %v5731
        %v5755 = vmul.f32 %v5717, %v5731
        %v5756 = vmul.f32 %v5718, %v5731
        %v5757 = vmul.f32 %v5719, %v5731
        %v5758 = vmul.f32 %v5720, %v5731
        %v5759 = vmul.f32 %v5721, %v5731
        %v5760 = vmul.f32 %v5722, %v5731
        %v5761 = vmul.f32 %v5723, %v5731
        %v5762 = vmul.f32 %v5724, %v5731
        %v5763 = vmul.f32 %v5725, %v5731
        %v5764 = vmul.f32 %v5726, %v5731
        %v5765 = vadd.f32 %v5663, %v5733
        %v5766 = vadd.f32 %v5664, %v5734
        %v5767 = vadd.f32 %v5665, %v5735
        %v5768 = vadd.f32 %v5666, %v5736
        %v5769 = vadd.f32 %v5667, %v5737
        %v5770 = vadd.f32 %v5668, %v5738
        %v5771 = vadd.f32 %v5669, %v5739
        %v5772 = vadd.f32 %v5670, %v5740
        %v5773 = vadd.f32 %v5671, %v5741
        %v5774 = vadd.f32 %v5672, %v5742
        %v5775 = vadd.f32 %v5673, %v5743
        %v5776 = vadd.f32 %v5674, %v5744
        %v5777 = vadd.f32 %v5675, %v5745
        %v5778 = vadd.f32 %v5676, %v5746
        %v5779 = vadd.f32 %v5677, %v5747
        %v5780 = vadd.f32 %v5678, %v5748
        %v5781 = vadd.f32 %v5679, %v5749
        %v5782 = vadd.f32 %v5680, %v5750
        %v5783 = vadd.f32 %v5681, %v5751
        %v5784 = vadd.f32 %v5682, %v5752
        %v5785 = vadd.f32 %v5683, %v5753
        %v5786 = vadd.f32 %v5684, %v5754
        %v5787 = vadd.f32 %v5685, %v5755
        %v5788 = vadd.f32 %v5686, %v5756
        %v5789 = vadd.f32 %v5687, %v5757
        %v5790 = vadd.f32 %v5688, %v5758
        %v5791 = vadd.f32 %v5689, %v5759
        %v5792 = vadd.f32 %v5690, %v5760
        %v5793 = vadd.f32 %v5691, %v5761
        %v5794 = vadd.f32 %v5692, %v5762
        %v5795 = vadd.f32 %v5693, %v5763
        %v5796 = vadd.f32 %v5694, %v5764
        %v5797 = vsel %vm3796, %v4948, 0.0
        %v5798 = vsel %vm3797, %v4949, 0.0
        %v5799 = vsel %vm3798, %v4950, 0.0
        %v5800 = vsel %vm3799, %v4951, 0.0
        %v5801 = vsel %vm3800, %v4952, 0.0
        %v5802 = vsel %vm3801, %v4953, 0.0
        %v5803 = vsel %vm3802, %v4954, 0.0
        %v5804 = vsel %vm3803, %v4955, 0.0
        %v5805 = vsel %vm3804, %v4956, 0.0
        %v5806 = vsel %vm3805, %v4957, 0.0
        %v5807 = vsel %vm3806, %v4958, 0.0
        %v5808 = vsel %vm3807, %v4959, 0.0
        %v5809 = vsel %vm3808, %v4960, 0.0
        %v5810 = vsel %vm3809, %v4961, 0.0
        %v5811 = vsel %vm3810, %v4962, 0.0
        %v5812 = vsel %vm3811, %v4963, 0.0
        %v5813 = vsel %vm3812, %v4964, 0.0
        %v5814 = vsel %vm3813, %v4965, 0.0
        %v5815 = vsel %vm3814, %v4966, 0.0
        %v5816 = vsel %vm3815, %v4967, 0.0
        %v5817 = vsel %vm3816, %v4968, 0.0
        %v5818 = vsel %vm3817, %v4969, 0.0
        %v5819 = vsel %vm3818, %v4970, 0.0
        %v5820 = vsel %vm3819, %v4971, 0.0
        %v5821 = vsel %vm3820, %v4972, 0.0
        %v5822 = vsel %vm3821, %v4973, 0.0
        %v5823 = vsel %vm3822, %v4974, 0.0
        %v5824 = vsel %vm3823, %v4975, 0.0
        %v5825 = vsel %vm3824, %v4976, 0.0
        %v5826 = vsel %vm3825, %v4977, 0.0
        %v5827 = vsel %vm3826, %v4946, 0.0
        %v5828 = vsel %vm3827, %v4947, 0.0
        %v5830 = vlaneseq
        %v5831 = vshrl.u32 %v5830, 7
        %v5832 = vsub.s32 0, %v5831
        %v5833 = vrot.slane %v4985, %v5832
        %v5835 = vmul.f32 %v5797, %v5833
        %v5836 = vmul.f32 %v5798, %v5833
        %v5837 = vmul.f32 %v5799, %v5833
        %v5838 = vmul.f32 %v5800, %v5833
        %v5839 = vmul.f32 %v5801, %v5833
        %v5840 = vmul.f32 %v5802, %v5833
        %v5841 = vmul.f32 %v5803, %v5833
        %v5842 = vmul.f32 %v5804, %v5833
        %v5843 = vmul.f32 %v5805, %v5833
        %v5844 = vmul.f32 %v5806, %v5833
        %v5845 = vmul.f32 %v5807, %v5833
        %v5846 = vmul.f32 %v5808, %v5833
        %v5847 = vmul.f32 %v5809, %v5833
        %v5848 = vmul.f32 %v5810, %v5833
        %v5849 = vmul.f32 %v5811, %v5833
        %v5850 = vmul.f32 %v5812, %v5833
        %v5851 = vmul.f32 %v5813, %v5833
        %v5852 = vmul.f32 %v5814, %v5833
        %v5853 = vmul.f32 %v5815, %v5833
        %v5854 = vmul.f32 %v5816, %v5833
        %v5855 = vmul.f32 %v5817, %v5833
        %v5856 = vmul.f32 %v5818, %v5833
        %v5857 = vmul.f32 %v5819, %v5833
        %v5858 = vmul.f32 %v5820, %v5833
        %v5859 = vmul.f32 %v5821, %v5833
        %v5860 = vmul.f32 %v5822, %v5833
        %v5861 = vmul.f32 %v5823, %v5833
        %v5862 = vmul.f32 %v5824, %v5833
        %v5863 = vmul.f32 %v5825, %v5833
        %v5864 = vmul.f32 %v5826, %v5833
        %v5865 = vmul.f32 %v5827, %v5833
        %v5866 = vmul.f32 %v5828, %v5833
        %v5867 = vadd.f32 %v5765, %v5835
        %v5868 = vadd.f32 %v5766, %v5836
        %v5869 = vadd.f32 %v5767, %v5837
        %v5870 = vadd.f32 %v5768, %v5838
        %v5871 = vadd.f32 %v5769, %v5839
        %v5872 = vadd.f32 %v5770, %v5840
        %v5873 = vadd.f32 %v5771, %v5841
        %v5874 = vadd.f32 %v5772, %v5842
        %v5875 = vadd.f32 %v5773, %v5843
        %v5876 = vadd.f32 %v5774, %v5844
        %v5877 = vadd.f32 %v5775, %v5845
        %v5878 = vadd.f32 %v5776, %v5846
        %v5879 = vadd.f32 %v5777, %v5847
        %v5880 = vadd.f32 %v5778, %v5848
        %v5881 = vadd.f32 %v5779, %v5849
        %v5882 = vadd.f32 %v5780, %v5850
        %v5883 = vadd.f32 %v5781, %v5851
        %v5884 = vadd.f32 %v5782, %v5852
        %v5885 = vadd.f32 %v5783, %v5853
        %v5886 = vadd.f32 %v5784, %v5854
        %v5887 = vadd.f32 %v5785, %v5855
        %v5888 = vadd.f32 %v5786, %v5856
        %v5889 = vadd.f32 %v5787, %v5857
        %v5890 = vadd.f32 %v5788, %v5858
        %v5891 = vadd.f32 %v5789, %v5859
        %v5892 = vadd.f32 %v5790, %v5860
        %v5893 = vadd.f32 %v5791, %v5861
        %v5894 = vadd.f32 %v5792, %v5862
        %v5895 = vadd.f32 %v5793, %v5863
        %v5896 = vadd.f32 %v5794, %v5864
        %v5897 = vadd.f32 %v5795, %v5865
        %v5898 = vadd.f32 %v5796, %v5866
        %v5899 = vsel %vm3962, %v5315, 0.0
        %v5900 = vsel %vm3963, %v5314, 0.0
        %v5901 = vsel %vm3964, %v5313, 0.0
        %v5902 = vsel %vm3965, %v5312, 0.0
        %v5903 = vsel %vm3966, %v5311, 0.0
        %v5904 = vsel %vm3967, %v5310, 0.0
        %v5905 = vsel %vm3968, %v5309, 0.0
        %v5906 = vsel %vm3969, %v5308, 0.0
        %v5907 = vsel %vm3970, %v5307, 0.0
        %v5908 = vsel %vm3971, %v5306, 0.0
        %v5909 = vsel %vm3972, %v5305, 0.0
        %v5910 = vsel %vm3973, %v5304, 0.0
        %v5911 = vsel %vm3974, %v5303, 0.0
        %v5912 = vsel %vm3975, %v5302, 0.0
        %v5913 = vsel %vm3976, %v5301, 0.0
        %v5914 = vsel %vm3977, %v5300, 0.0
        %v5915 = vsel %vm3978, %v5299, 0.0
        %v5916 = vsel %vm3979, %v5298, 0.0
        %v5917 = vsel %vm3980, %v5297, 0.0
        %v5918 = vsel %vm3981, %v5296, 0.0
        %v5919 = vsel %vm3982, %v5295, 0.0
        %v5920 = vsel %vm3983, %v5294, 0.0
        %v5921 = vsel %vm3984, %v5293, 0.0
        %v5922 = vsel %vm3985, %v5292, 0.0
        %v5923 = vsel %vm3986, %v5291, 0.0
        %v5924 = vsel %vm3987, %v5290, 0.0
        %v5925 = vsel %vm3988, %v5289, 0.0
        %v5926 = vsel %vm3989, %v5288, 0.0
        %v5927 = vsel %vm3990, %v5287, 0.0
        %v5928 = vsel %vm3991, %v5318, 0.0
        %v5929 = vsel %vm3992, %v5317, 0.0
        %v5930 = vsel %vm3993, %v5316, 0.0
        %v5932 = vlaneseq
        %v5933 = vshrl.u32 %v5932, 7
        %v5934 = vsub.s32 0, %v5933
        %v5935 = vrot.slane %v4986, %v5934
        %v5937 = vmul.f32 %v5899, %v5935
        %v5938 = vmul.f32 %v5900, %v5935
        %v5939 = vmul.f32 %v5901, %v5935
        %v5940 = vmul.f32 %v5902, %v5935
        %v5941 = vmul.f32 %v5903, %v5935
        %v5942 = vmul.f32 %v5904, %v5935
        %v5943 = vmul.f32 %v5905, %v5935
        %v5944 = vmul.f32 %v5906, %v5935
        %v5945 = vmul.f32 %v5907, %v5935
        %v5946 = vmul.f32 %v5908, %v5935
        %v5947 = vmul.f32 %v5909, %v5935
        %v5948 = vmul.f32 %v5910, %v5935
        %v5949 = vmul.f32 %v5911, %v5935
        %v5950 = vmul.f32 %v5912, %v5935
        %v5951 = vmul.f32 %v5913, %v5935
        %v5952 = vmul.f32 %v5914, %v5935
        %v5953 = vmul.f32 %v5915, %v5935
        %v5954 = vmul.f32 %v5916, %v5935
        %v5955 = vmul.f32 %v5917, %v5935
        %v5956 = vmul.f32 %v5918, %v5935
        %v5957 = vmul.f32 %v5919, %v5935
        %v5958 = vmul.f32 %v5920, %v5935
        %v5959 = vmul.f32 %v5921, %v5935
        %v5960 = vmul.f32 %v5922, %v5935
        %v5961 = vmul.f32 %v5923, %v5935
        %v5962 = vmul.f32 %v5924, %v5935
        %v5963 = vmul.f32 %v5925, %v5935
        %v5964 = vmul.f32 %v5926, %v5935
        %v5965 = vmul.f32 %v5927, %v5935
        %v5966 = vmul.f32 %v5928, %v5935
        %v5967 = vmul.f32 %v5929, %v5935
        %v5968 = vmul.f32 %v5930, %v5935
        %v5969 = vadd.f32 %v5867, %v5937
        %v5970 = vadd.f32 %v5868, %v5938
        %v5971 = vadd.f32 %v5869, %v5939
        %v5972 = vadd.f32 %v5870, %v5940
        %v5973 = vadd.f32 %v5871, %v5941
        %v5974 = vadd.f32 %v5872, %v5942
        %v5975 = vadd.f32 %v5873, %v5943
        %v5976 = vadd.f32 %v5874, %v5944
        %v5977 = vadd.f32 %v5875, %v5945
        %v5978 = vadd.f32 %v5876, %v5946
        %v5979 = vadd.f32 %v5877, %v5947
        %v5980 = vadd.f32 %v5878, %v5948
        %v5981 = vadd.f32 %v5879, %v5949
        %v5982 = vadd.f32 %v5880, %v5950
        %v5983 = vadd.f32 %v5881, %v5951
        %v5984 = vadd.f32 %v5882, %v5952
        %v5985 = vadd.f32 %v5883, %v5953
        %v5986 = vadd.f32 %v5884, %v5954
        %v5987 = vadd.f32 %v5885, %v5955
        %v5988 = vadd.f32 %v5886, %v5956
        %v5989 = vadd.f32 %v5887, %v5957
        %v5990 = vadd.f32 %v5888, %v5958
        %v5991 = vadd.f32 %v5889, %v5959
        %v5992 = vadd.f32 %v5890, %v5960
        %v5993 = vadd.f32 %v5891, %v5961
        %v5994 = vadd.f32 %v5892, %v5962
        %v5995 = vadd.f32 %v5893, %v5963
        %v5996 = vadd.f32 %v5894, %v5964
        %v5997 = vadd.f32 %v5895, %v5965
        %v5998 = vadd.f32 %v5896, %v5966
        %v5999 = vadd.f32 %v5897, %v5967
        %v6000 = vadd.f32 %v5898, %v5968
        %v6001 = vld [vmem:[%s14] sm:$0x1]
        %v6003 = vlaneseq
        %v6004 = vshrl.u32 %v6003, 7
        %v6005 = vsub.s32 0, %v6004
        %v6006 = vrot.slane %v6001, %v6005
        %v6008 = vadd.f32 %v5969, %v6006
        %v6009 = vadd.f32 %v5970, %v6006
        %v6010 = vadd.f32 %v5971, %v6006
        %v6011 = vadd.f32 %v5972, %v6006
        %v6012 = vadd.f32 %v5973, %v6006
        %v6013 = vadd.f32 %v5974, %v6006
        %v6014 = vadd.f32 %v5975, %v6006
        %v6015 = vadd.f32 %v5976, %v6006
        %v6016 = vadd.f32 %v5977, %v6006
        %v6017 = vadd.f32 %v5978, %v6006
        %v6018 = vadd.f32 %v5979, %v6006
        %v6019 = vadd.f32 %v5980, %v6006
        %v6020 = vadd.f32 %v5981, %v6006
        %v6021 = vadd.f32 %v5982, %v6006
        %v6022 = vadd.f32 %v5983, %v6006
        %v6023 = vadd.f32 %v5984, %v6006
        %v6024 = vadd.f32 %v5985, %v6006
        %v6025 = vadd.f32 %v5986, %v6006
        %v6026 = vadd.f32 %v5987, %v6006
        %v6027 = vadd.f32 %v5988, %v6006
        %v6028 = vadd.f32 %v5989, %v6006
        %v6029 = vadd.f32 %v5990, %v6006
        %v6030 = vadd.f32 %v5991, %v6006
        %v6031 = vadd.f32 %v5992, %v6006
        %v6032 = vadd.f32 %v5993, %v6006
        %v6033 = vadd.f32 %v5994, %v6006
        %v6034 = vadd.f32 %v5995, %v6006
        %v6035 = vadd.f32 %v5996, %v6006
        %v6036 = vadd.f32 %v5997, %v6006
        %v6037 = vadd.f32 %v5998, %v6006
        %v6038 = vadd.f32 %v5999, %v6006
        %v6039 = vadd.f32 %v6000, %v6006
        %v6040 = vpack.c.bf16 %v6009, %v6008
        %v6041 = vpack.c.bf16 %v6011, %v6010
        %v6042 = vpack.c.bf16 %v6013, %v6012
        %v6043 = vpack.c.bf16 %v6015, %v6014
        %v6044 = vpack.c.bf16 %v6017, %v6016
        %v6045 = vpack.c.bf16 %v6019, %v6018
        %v6046 = vpack.c.bf16 %v6021, %v6020
        %v6047 = vpack.c.bf16 %v6023, %v6022
        %v6048 = vpack.c.bf16 %v6025, %v6024
        %v6049 = vpack.c.bf16 %v6027, %v6026
        %v6050 = vpack.c.bf16 %v6029, %v6028
        %v6051 = vpack.c.bf16 %v6031, %v6030
        %v6052 = vpack.c.bf16 %v6033, %v6032
        %v6053 = vpack.c.bf16 %v6035, %v6034
        %v6054 = vpack.c.bf16 %v6037, %v6036
        %v6055 = vpack.c.bf16 %v6039, %v6038
        %v6056 = vld [vmem:[%s15] sm:$0xf]
        %v6057 = vld [vmem:[%s15 + $0x4] sm:$0xf]
        %v6058 = vld [vmem:[%s15 + $0x8] sm:$0xf]
        %v6059 = vld [vmem:[%s15 + $0xc] sm:$0xf]
        %v6060 = vld [vmem:[%s15 + $0x10] sm:$0xf]
        %v6061 = vld [vmem:[%s15 + $0x14] sm:$0xf]
        %v6062 = vld [vmem:[%s15 + $0x18] sm:$0xf]
        %v6063 = vld [vmem:[%s15 + $0x1c] sm:$0xf]
        %v6064 = vld [vmem:[%s15 + $0x20] sm:$0xf]
        %v6065 = vld [vmem:[%s15 + $0x24] sm:$0xf]
        %v6066 = vld [vmem:[%s15 + $0x28] sm:$0xf]
        %v6067 = vld [vmem:[%s15 + $0x2c] sm:$0xf]
        %v6068 = vld [vmem:[%s15 + $0x30] sm:$0xf]
        %v6069 = vld [vmem:[%s15 + $0x34] sm:$0xf]
        %v6070 = vld [vmem:[%s15 + $0x38] sm:$0xf]
        %v6071 = vld [vmem:[%s15 + $0x3c] sm:$0xf]
        %v6072 = vld [vmem:[%s16] sm:$0x1]
        %v6074 = vlaneseq
        %v6075 = vshrl.u32 %v6074, 7
        %v6076 = vsub.s32 0, %v6075
        %v6077 = vrot.slane %v6072, %v6076
        %v6095 = vunpack.c.l.b16 %v6056
        %v6096 = vunpack.c.l.b16 %v6057
        %v6097 = vunpack.c.l.b16 %v6058
        %v6098 = vunpack.c.l.b16 %v6059
        %v6099 = vunpack.c.l.b16 %v6060
        %v6100 = vunpack.c.l.b16 %v6061
        %v6101 = vunpack.c.l.b16 %v6062
        %v6102 = vunpack.c.l.b16 %v6063
        %v6103 = vunpack.c.l.b16 %v6064
        %v6104 = vunpack.c.l.b16 %v6065
        %v6105 = vunpack.c.l.b16 %v6066
        %v6106 = vunpack.c.l.b16 %v6067
        %v6107 = vunpack.c.l.b16 %v6068
        %v6108 = vunpack.c.l.b16 %v6069
        %v6109 = vunpack.c.l.b16 %v6070
        %v6110 = vunpack.c.l.b16 %v6071
        %v6111 = vpack.c.b16 %v6096, %v6095
        %v6112 = vpack.c.b16 %v6098, %v6097
        %v6113 = vpack.c.b16 %v6100, %v6099
        %v6114 = vpack.c.b16 %v6102, %v6101
        %v6115 = vpack.c.b16 %v6104, %v6103
        %v6116 = vpack.c.b16 %v6106, %v6105
        %v6117 = vpack.c.b16 %v6108, %v6107
        %v6118 = vpack.c.b16 %v6110, %v6109
        %6127 = vmatprep.subr.bf16.mxu0 0
        %6128 = vmatpush1.bf16.msra.mxu0 %v6111
        %6129 = vmatprep.subr.bf16.mxu0 0
        %6130 = vmatpush1.bf16.msra.mxu0 %v6112
        %6131 = vmatprep.subr.bf16.mxu0 0
        %6132 = vmatpush1.bf16.msra.mxu0 %v6113
        %6133 = vmatprep.subr.bf16.mxu0 0
        %6134 = vmatpush1.bf16.msra.mxu0 %v6114
        %6135 = vmatprep.subr.bf16.mxu0 0
        %6136 = vmatpush1.bf16.msra.mxu0 %v6115
        %6137 = vmatprep.subr.bf16.mxu0 0
        %6138 = vmatpush1.bf16.msra.mxu0 %v6116
        %6139 = vmatprep.subr.bf16.mxu0 0
        %6140 = vmatpush1.bf16.msra.mxu0 %v6117
        %6141 = vmatprep.subr.bf16.mxu0 0
        %6142 = vmatpush1.bf16.msra.mxu0 %v6118
        %6143 = vmatprep.subr.bf16.mxu0 0
        %6144 = vmatpush1.bf16.msra.mxu0 0
        %6145 = vmatprep.subr.bf16.mxu0 0
        %6146 = vmatpush1.bf16.msra.mxu0 0
        %6147 = vmatprep.subr.bf16.mxu0 0
        %6148 = vmatpush1.bf16.msra.mxu0 0
        %6149 = vmatprep.subr.bf16.mxu0 0
        %6150 = vmatpush1.bf16.msra.mxu0 0
        %6151 = vmatprep.subr.bf16.mxu0 0
        %6152 = vmatpush1.bf16.msra.mxu0 0
        %6153 = vmatprep.subr.bf16.mxu0 0
        %6154 = vmatpush1.bf16.msra.mxu0 0
        %6155 = vmatprep.subr.bf16.mxu0 0
        %6156 = vmatpush1.bf16.msra.mxu0 0
        %6157 = vmatprep.subr.bf16.mxu0 0
        %6158 = vmatpush1.bf16.msra.mxu0 0
        %6159 = vmatprep.mubr.bf16.mxu0 0
        %6160 = vmatmul.mubr.bf16.gmra.mrb[0].mxu0 %v6040
        %v6161 = vpop.f32.mrb[0].mxu0
        %v6162 = vadd.f32 %v6077, %v6161
        %v6163 = vpop.f32.mrb[0].mxu0
        %v6164 = vpop.f32.mrb[0].mxu0
        %v6165 = vadd.f32 %v6077, %v6164
        %v6166 = vpop.f32.mrb[0].mxu0
        %6167 = vmatprep.mubr.bf16.mxu0 0
        %6168 = vmatmul.mubr.bf16.gmra.mrb[0].mxu0 %v6041
        %v6169 = vpop.f32.mrb[0].mxu0
        %v6170 = vadd.f32 %v6077, %v6169
        %v6171 = vpop.f32.mrb[0].mxu0
        %v6172 = vpop.f32.mrb[0].mxu0
        %v6173 = vadd.f32 %v6077, %v6172
        %v6174 = vpop.f32.mrb[0].mxu0
        %6175 = vmatprep.mubr.bf16.mxu0 0
        %6176 = vmatmul.mubr.bf16.gmra.mrb[0].mxu0 %v6042
        %v6177 = vpop.f32.mrb[0].mxu0
        %v6178 = vadd.f32 %v6077, %v6177
        %v6179 = vpop.f32.mrb[0].mxu0
        %v6180 = vpop.f32.mrb[0].mxu0
        %v6181 = vadd.f32 %v6077, %v6180
        %v6182 = vpop.f32.mrb[0].mxu0
        %6183 = vmatprep.mubr.bf16.mxu0 0
        %6184 = vmatmul.mubr.bf16.gmra.mrb[0].mxu0 %v6043
        %v6185 = vpop.f32.mrb[0].mxu0
        %v6186 = vadd.f32 %v6077, %v6185
        %v6187 = vpop.f32.mrb[0].mxu0
        %v6188 = vpop.f32.mrb[0].mxu0
        %v6189 = vadd.f32 %v6077, %v6188
        %v6190 = vpop.f32.mrb[0].mxu0
        %6191 = vmatprep.mubr.bf16.mxu0 0
        %6192 = vmatmul.mubr.bf16.gmra.mrb[0].mxu0 %v6044
        %v6193 = vpop.f32.mrb[0].mxu0
        %v6194 = vadd.f32 %v6077, %v6193
        %v6195 = vpop.f32.mrb[0].mxu0
        %v6196 = vpop.f32.mrb[0].mxu0
        %v6197 = vadd.f32 %v6077, %v6196
        %v6198 = vpop.f32.mrb[0].mxu0
        %6199 = vmatprep.mubr.bf16.mxu0 0
        %6200 = vmatmul.mubr.bf16.gmra.mrb[0].mxu0 %v6045
        %v6201 = vpop.f32.mrb[0].mxu0
        %v6202 = vadd.f32 %v6077, %v6201
        %v6203 = vpop.f32.mrb[0].mxu0
        %v6204 = vpop.f32.mrb[0].mxu0
        %v6205 = vadd.f32 %v6077, %v6204
        %v6206 = vpop.f32.mrb[0].mxu0
        %6207 = vmatprep.mubr.bf16.mxu0 0
        %6208 = vmatmul.mubr.bf16.gmra.mrb[0].mxu0 %v6046
        %v6209 = vpop.f32.mrb[0].mxu0
        %v6210 = vadd.f32 %v6077, %v6209
        %v6211 = vpop.f32.mrb[0].mxu0
        %v6212 = vpop.f32.mrb[0].mxu0
        %v6213 = vadd.f32 %v6077, %v6212
        %v6214 = vpop.f32.mrb[0].mxu0
        %6215 = vmatprep.mubr.bf16.mxu0 0
        %6216 = vmatmul.mubr.bf16.gmra.mrb[0].mxu0 %v6047
        %v6217 = vpop.f32.mrb[0].mxu0
        %v6218 = vadd.f32 %v6077, %v6217
        %v6219 = vpop.f32.mrb[0].mxu0
        %v6220 = vpop.f32.mrb[0].mxu0
        %v6221 = vadd.f32 %v6077, %v6220
        %v6222 = vpop.f32.mrb[0].mxu0
        %6223 = vmatprep.mubr.bf16.mxu0 0
        %6224 = vmatmul.mubr.bf16.gmra.mrb[0].mxu0 %v6048
        %v6225 = vpop.f32.mrb[0].mxu0
        %v6226 = vadd.f32 %v6077, %v6225
        %v6227 = vpop.f32.mrb[0].mxu0
        %v6228 = vpop.f32.mrb[0].mxu0
        %v6229 = vadd.f32 %v6077, %v6228
        %v6230 = vpop.f32.mrb[0].mxu0
        %6231 = vmatprep.mubr.bf16.mxu0 0
        %6232 = vmatmul.mubr.bf16.gmra.mrb[0].mxu0 %v6049
        %v6233 = vpop.f32.mrb[0].mxu0
        %v6234 = vadd.f32 %v6077, %v6233
        %v6235 = vpop.f32.mrb[0].mxu0
        %v6236 = vpop.f32.mrb[0].mxu0
        %v6237 = vadd.f32 %v6077, %v6236
        %v6238 = vpop.f32.mrb[0].mxu0
        %6239 = vmatprep.mubr.bf16.mxu0 0
        %6240 = vmatmul.mubr.bf16.gmra.mrb[0].mxu0 %v6050
        %v6241 = vpop.f32.mrb[0].mxu0
        %v6242 = vadd.f32 %v6077, %v6241
        %v6243 = vpop.f32.mrb[0].mxu0
        %v6244 = vpop.f32.mrb[0].mxu0
        %v6245 = vadd.f32 %v6077, %v6244
        %v6246 = vpop.f32.mrb[0].mxu0
        %6247 = vmatprep.mubr.bf16.mxu0 0
        %6248 = vmatmul.mubr.bf16.gmra.mrb[0].mxu0 %v6051
        %v6249 = vpop.f32.mrb[0].mxu0
        %v6250 = vadd.f32 %v6077, %v6249
        %v6251 = vpop.f32.mrb[0].mxu0
        %v6252 = vpop.f32.mrb[0].mxu0
        %v6253 = vadd.f32 %v6077, %v6252
        %v6254 = vpop.f32.mrb[0].mxu0
        %6255 = vmatprep.mubr.bf16.mxu0 0
        %6256 = vmatmul.mubr.bf16.gmra.mrb[0].mxu0 %v6052
        %v6257 = vpop.f32.mrb[0].mxu0
        %v6258 = vadd.f32 %v6077, %v6257
        %v6259 = vpop.f32.mrb[0].mxu0
        %v6260 = vpop.f32.mrb[0].mxu0
        %v6261 = vadd.f32 %v6077, %v6260
        %v6262 = vpop.f32.mrb[0].mxu0
        %6263 = vmatprep.mubr.bf16.mxu0 0
        %6264 = vmatmul.mubr.bf16.gmra.mrb[0].mxu0 %v6053
        %v6265 = vpop.f32.mrb[0].mxu0
        %v6266 = vadd.f32 %v6077, %v6265
        %v6267 = vpop.f32.mrb[0].mxu0
        %v6268 = vpop.f32.mrb[0].mxu0
        %v6269 = vadd.f32 %v6077, %v6268
        %v6270 = vpop.f32.mrb[0].mxu0
        %6271 = vmatprep.mubr.bf16.mxu0 0
        %6272 = vmatmul.mubr.bf16.gmra.mrb[0].mxu0 %v6054
        %v6273 = vpop.f32.mrb[0].mxu0
        %v6274 = vadd.f32 %v6077, %v6273
        %v6275 = vpop.f32.mrb[0].mxu0
        %v6276 = vpop.f32.mrb[0].mxu0
        %v6277 = vadd.f32 %v6077, %v6276
        %v6278 = vpop.f32.mrb[0].mxu0
        %6279 = vmatprep.mubr.bf16.mxu0 0
        %6280 = vmatmul.mubr.bf16.gmra.mrb[0].mxu0 %v6055
        %v6281 = vpop.f32.mrb[0].mxu0
        %v6282 = vadd.f32 %v6077, %v6281
        %v6283 = vpop.f32.mrb[0].mxu0
        %v6284 = vpop.f32.mrb[0].mxu0
        %v6285 = vadd.f32 %v6077, %v6284
        %v6286 = vpop.f32.mrb[0].mxu0
        %6287 = vdwg.mxu0
        %v6288 = vld [vmem:[%s17] sm:$0x1]
        %v6289 = vld [vmem:[%s17 + $0x1] sm:$0x1]
        %v6290 = vld [vmem:[%s17 + $0x2] sm:$0x1]
        %v6291 = vld [vmem:[%s17 + $0x3] sm:$0x1]
        %v6292 = vld [vmem:[%s17 + $0x4] sm:$0x1]
        %v6293 = vld [vmem:[%s17 + $0x5] sm:$0x1]
        %v6294 = vld [vmem:[%s17 + $0x6] sm:$0x1]
        %v6295 = vld [vmem:[%s17 + $0x7] sm:$0x1]
        %v6296 = vld [vmem:[%s17 + $0x8] sm:$0x1]
        %v6297 = vrot.slane %v1873, 7
        %v6298 = vrot.slane %v1874, 7
        %v6299 = vrot.slane %v1875, 7
        %v6300 = vrot.slane %v1876, 7
        %v6301 = vrot.slane %v1877, 7
        %v6302 = vrot.slane %v1878, 7
        %v6303 = vrot.slane %v1879, 7
        %v6304 = vrot.slane %v1880, 7
        %v6305 = vrot.slane %v1881, 7
        %v6306 = vrot.slane %v1882, 7
        %v6307 = vrot.slane %v1883, 7
        %v6308 = vrot.slane %v1884, 7
        %v6309 = vrot.slane %v1885, 7
        %v6310 = vrot.slane %v1886, 7
        %v6311 = vrot.slane %v1887, 7
        %v6312 = vrot.slane %v1888, 7
        %v6313 = vrot.slane %v1889, 7
        %v6314 = vrot.slane %v1890, 7
        %v6315 = vrot.slane %v1891, 7
        %v6316 = vrot.slane %v1892, 7
        %v6317 = vrot.slane %v1893, 7
        %v6318 = vrot.slane %v1894, 7
        %v6319 = vrot.slane %v1895, 7
        %v6320 = vrot.slane %v1896, 7
        %v6321 = vrot.slane %v1897, 7
        %v6322 = vrot.slane %v1898, 7
        %v6323 = vrot.slane %v1899, 7
        %v6324 = vrot.slane %v1900, 7
        %v6325 = vrot.slane %v1901, 7
        %v6326 = vrot.slane %v1902, 7
        %v6327 = vrot.slane %v1903, 7
        %v6328 = vrot.slane %v1904, 7
        %v6329 = vsel %vm2600, %v6327, %v6328
        %v6330 = vsel %vm2600, %v6326, %v6327
        %v6331 = vsel %vm2600, %v6325, %v6326
        %v6332 = vsel %vm2600, %v6324, %v6325
        %v6333 = vsel %vm2600, %v6323, %v6324
        %v6334 = vsel %vm2600, %v6322, %v6323
        %v6335 = vsel %vm2600, %v6321, %v6322
        %v6336 = vsel %vm2600, %v6320, %v6321
        %v6337 = vsel %vm2600, %v6319, %v6320
        %v6338 = vsel %vm2600, %v6318, %v6319
        %v6339 = vsel %vm2600, %v6317, %v6318
        %v6340 = vsel %vm2600, %v6316, %v6317
        %v6341 = vsel %vm2600, %v6315, %v6316
        %v6342 = vsel %vm2600, %v6314, %v6315
        %v6343 = vsel %vm2600, %v6313, %v6314
        %v6344 = vsel %vm2600, %v6312, %v6313
        %v6345 = vsel %vm2600, %v6311, %v6312
        %v6346 = vsel %vm2600, %v6310, %v6311
        %v6347 = vsel %vm2600, %v6309, %v6310
        %v6348 = vsel %vm2600, %v6308, %v6309
        %v6349 = vsel %vm2600, %v6307, %v6308
        %v6350 = vsel %vm2600, %v6306, %v6307
        %v6351 = vsel %vm2600, %v6305, %v6306
        %v6352 = vsel %vm2600, %v6304, %v6305
        %v6353 = vsel %vm2600, %v6303, %v6304
        %v6354 = vsel %vm2600, %v6302, %v6303
        %v6355 = vsel %vm2600, %v6301, %v6302
        %v6356 = vsel %vm2600, %v6300, %v6301
        %v6357 = vsel %vm2600, %v6299, %v6300
        %v6358 = vsel %vm2600, %v6298, %v6299
        %v6359 = vsel %vm2600, %v6297, %v6298
        %v6360 = vsel %vm2600, %v6328, %v6297
        %v6361 = vsel %vm2665, %v6330, 0.0
        %v6362 = vsel %vm2666, %v6329, 0.0
        %v6363 = vsel %vm2667, %v6360, 0.0
        %v6364 = vsel %vm2668, %v6359, 0.0
        %v6365 = vsel %vm2669, %v6358, 0.0
        %v6366 = vsel %vm2670, %v6357, 0.0
        %v6367 = vsel %vm2671, %v6356, 0.0
        %v6368 = vsel %vm2672, %v6355, 0.0
        %v6369 = vsel %vm2673, %v6354, 0.0
        %v6370 = vsel %vm2674, %v6353, 0.0
        %v6371 = vsel %vm2675, %v6352, 0.0
        %v6372 = vsel %vm2676, %v6351, 0.0
        %v6373 = vsel %vm2677, %v6350, 0.0
        %v6374 = vsel %vm2678, %v6349, 0.0
        %v6375 = vsel %vm2679, %v6348, 0.0
        %v6376 = vsel %vm2680, %v6347, 0.0
        %v6377 = vsel %vm2681, %v6346, 0.0
        %v6378 = vsel %vm2682, %v6345, 0.0
        %v6379 = vsel %vm2683, %v6344, 0.0
        %v6380 = vsel %vm2684, %v6343, 0.0
        %v6381 = vsel %vm2685, %v6342, 0.0
        %v6382 = vsel %vm2686, %v6341, 0.0
        %v6383 = vsel %vm2687, %v6340, 0.0
        %v6384 = vsel %vm2688, %v6339, 0.0
        %v6385 = vsel %vm2689, %v6338, 0.0
        %v6386 = vsel %vm2690, %v6337, 0.0
        %v6387 = vsel %vm2691, %v6336, 0.0
        %v6388 = vsel %vm2692, %v6335, 0.0
        %v6389 = vsel %vm2693, %v6334, 0.0
        %v6390 = vsel %vm2694, %v6333, 0.0
        %v6391 = vsel %vm2695, %v6332, 0.0
        %v6392 = vsel %vm2696, %v6331, 0.0
        %v6394 = vlaneseq
        %v6395 = vshrl.u32 %v6394, 7
        %v6396 = vsub.s32 0, %v6395
        %v6397 = vrot.slane %v6288, %v6396
        %v6399 = vmul.f32 %v6361, %v6397
        %v6400 = vmul.f32 %v6362, %v6397
        %v6401 = vmul.f32 %v6363, %v6397
        %v6402 = vmul.f32 %v6364, %v6397
        %v6403 = vmul.f32 %v6365, %v6397
        %v6404 = vmul.f32 %v6366, %v6397
        %v6405 = vmul.f32 %v6367, %v6397
        %v6406 = vmul.f32 %v6368, %v6397
        %v6407 = vmul.f32 %v6369, %v6397
        %v6408 = vmul.f32 %v6370, %v6397
        %v6409 = vmul.f32 %v6371, %v6397
        %v6410 = vmul.f32 %v6372, %v6397
        %v6411 = vmul.f32 %v6373, %v6397
        %v6412 = vmul.f32 %v6374, %v6397
        %v6413 = vmul.f32 %v6375, %v6397
        %v6414 = vmul.f32 %v6376, %v6397
        %v6415 = vmul.f32 %v6377, %v6397
        %v6416 = vmul.f32 %v6378, %v6397
        %v6417 = vmul.f32 %v6379, %v6397
        %v6418 = vmul.f32 %v6380, %v6397
        %v6419 = vmul.f32 %v6381, %v6397
        %v6420 = vmul.f32 %v6382, %v6397
        %v6421 = vmul.f32 %v6383, %v6397
        %v6422 = vmul.f32 %v6384, %v6397
        %v6423 = vmul.f32 %v6385, %v6397
        %v6424 = vmul.f32 %v6386, %v6397
        %v6425 = vmul.f32 %v6387, %v6397
        %v6426 = vmul.f32 %v6388, %v6397
        %v6427 = vmul.f32 %v6389, %v6397
        %v6428 = vmul.f32 %v6390, %v6397
        %v6429 = vmul.f32 %v6391, %v6397
        %v6430 = vmul.f32 %v6392, %v6397
        %v6431 = vadd.f32 %v6399, 0.0
        %v6432 = vadd.f32 %v6400, 0.0
        %v6433 = vadd.f32 %v6401, 0.0
        %v6434 = vadd.f32 %v6402, 0.0
        %v6435 = vadd.f32 %v6403, 0.0
        %v6436 = vadd.f32 %v6404, 0.0
        %v6437 = vadd.f32 %v6405, 0.0
        %v6438 = vadd.f32 %v6406, 0.0
        %v6439 = vadd.f32 %v6407, 0.0
        %v6440 = vadd.f32 %v6408, 0.0
        %v6441 = vadd.f32 %v6409, 0.0
        %v6442 = vadd.f32 %v6410, 0.0
        %v6443 = vadd.f32 %v6411, 0.0
        %v6444 = vadd.f32 %v6412, 0.0
        %v6445 = vadd.f32 %v6413, 0.0
        %v6446 = vadd.f32 %v6414, 0.0
        %v6447 = vadd.f32 %v6415, 0.0
        %v6448 = vadd.f32 %v6416, 0.0
        %v6449 = vadd.f32 %v6417, 0.0
        %v6450 = vadd.f32 %v6418, 0.0
        %v6451 = vadd.f32 %v6419, 0.0
        %v6452 = vadd.f32 %v6420, 0.0
        %v6453 = vadd.f32 %v6421, 0.0
        %v6454 = vadd.f32 %v6422, 0.0
        %v6455 = vadd.f32 %v6423, 0.0
        %v6456 = vadd.f32 %v6424, 0.0
        %v6457 = vadd.f32 %v6425, 0.0
        %v6458 = vadd.f32 %v6426, 0.0
        %v6459 = vadd.f32 %v6427, 0.0
        %v6460 = vadd.f32 %v6428, 0.0
        %v6461 = vadd.f32 %v6429, 0.0
        %v6462 = vadd.f32 %v6430, 0.0
        %v6463 = vsel %vm2831, %v1903, 0.0
        %v6464 = vsel %vm2832, %v1904, 0.0
        %v6465 = vsel %vm2833, %v1873, 0.0
        %v6466 = vsel %vm2834, %v1874, 0.0
        %v6467 = vsel %vm2835, %v1875, 0.0
        %v6468 = vsel %vm2836, %v1876, 0.0
        %v6469 = vsel %vm2837, %v1877, 0.0
        %v6470 = vsel %vm2838, %v1878, 0.0
        %v6471 = vsel %vm2839, %v1879, 0.0
        %v6472 = vsel %vm2840, %v1880, 0.0
        %v6473 = vsel %vm2841, %v1881, 0.0
        %v6474 = vsel %vm2842, %v1882, 0.0
        %v6475 = vsel %vm2843, %v1883, 0.0
        %v6476 = vsel %vm2844, %v1884, 0.0
        %v6477 = vsel %vm2845, %v1885, 0.0
        %v6478 = vsel %vm2846, %v1886, 0.0
        %v6479 = vsel %vm2847, %v1887, 0.0
        %v6480 = vsel %vm2848, %v1888, 0.0
        %v6481 = vsel %vm2849, %v1889, 0.0
        %v6482 = vsel %vm2850, %v1890, 0.0
        %v6483 = vsel %vm2851, %v1891, 0.0
        %v6484 = vsel %vm2852, %v1892, 0.0
        %v6485 = vsel %vm2853, %v1893, 0.0
        %v6486 = vsel %vm2854, %v1894, 0.0
        %v6487 = vsel %vm2855, %v1895, 0.0
        %v6488 = vsel %vm2856, %v1896, 0.0
        %v6489 = vsel %vm2857, %v1897, 0.0
        %v6490 = vsel %vm2858, %v1898, 0.0
        %v6491 = vsel %vm2859, %v1899, 0.0
        %v6492 = vsel %vm2860, %v1900, 0.0
        %v6493 = vsel %vm2861, %v1901, 0.0
        %v6494 = vsel %vm2862, %v1902, 0.0
        %v6496 = vlaneseq
        %v6497 = vshrl.u32 %v6496, 7
        %v6498 = vsub.s32 0, %v6497
        %v6499 = vrot.slane %v6289, %v6498
        %v6501 = vmul.f32 %v6463, %v6499
        %v6502 = vmul.f32 %v6464, %v6499
        %v6503 = vmul.f32 %v6465, %v6499
        %v6504 = vmul.f32 %v6466, %v6499
        %v6505 = vmul.f32 %v6467, %v6499
        %v6506 = vmul.f32 %v6468, %v6499
        %v6507 = vmul.f32 %v6469, %v6499
        %v6508 = vmul.f32 %v6470, %v6499
        %v6509 = vmul.f32 %v6471, %v6499
        %v6510 = vmul.f32 %v6472, %v6499
        %v6511 = vmul.f32 %v6473, %v6499
        %v6512 = vmul.f32 %v6474, %v6499
        %v6513 = vmul.f32 %v6475, %v6499
        %v6514 = vmul.f32 %v6476, %v6499
        %v6515 = vmul.f32 %v6477, %v6499
        %v6516 = vmul.f32 %v6478, %v6499
        %v6517 = vmul.f32 %v6479, %v6499
        %v6518 = vmul.f32 %v6480, %v6499
        %v6519 = vmul.f32 %v6481, %v6499
        %v6520 = vmul.f32 %v6482, %v6499
        %v6521 = vmul.f32 %v6483, %v6499
        %v6522 = vmul.f32 %v6484, %v6499
        %v6523 = vmul.f32 %v6485, %v6499
        %v6524 = vmul.f32 %v6486, %v6499
        %v6525 = vmul.f32 %v6487, %v6499
        %v6526 = vmul.f32 %v6488, %v6499
        %v6527 = vmul.f32 %v6489, %v6499
        %v6528 = vmul.f32 %v6490, %v6499
        %v6529 = vmul.f32 %v6491, %v6499
        %v6530 = vmul.f32 %v6492, %v6499
        %v6531 = vmul.f32 %v6493, %v6499
        %v6532 = vmul.f32 %v6494, %v6499
        %v6533 = vadd.f32 %v6431, %v6501
        %v6534 = vadd.f32 %v6432, %v6502
        %v6535 = vadd.f32 %v6433, %v6503
        %v6536 = vadd.f32 %v6434, %v6504
        %v6537 = vadd.f32 %v6435, %v6505
        %v6538 = vadd.f32 %v6436, %v6506
        %v6539 = vadd.f32 %v6437, %v6507
        %v6540 = vadd.f32 %v6438, %v6508
        %v6541 = vadd.f32 %v6439, %v6509
        %v6542 = vadd.f32 %v6440, %v6510
        %v6543 = vadd.f32 %v6441, %v6511
        %v6544 = vadd.f32 %v6442, %v6512
        %v6545 = vadd.f32 %v6443, %v6513
        %v6546 = vadd.f32 %v6444, %v6514
        %v6547 = vadd.f32 %v6445, %v6515
        %v6548 = vadd.f32 %v6446, %v6516
        %v6549 = vadd.f32 %v6447, %v6517
        %v6550 = vadd.f32 %v6448, %v6518
        %v6551 = vadd.f32 %v6449, %v6519
        %v6552 = vadd.f32 %v6450, %v6520
        %v6553 = vadd.f32 %v6451, %v6521
        %v6554 = vadd.f32 %v6452, %v6522
        %v6555 = vadd.f32 %v6453, %v6523
        %v6556 = vadd.f32 %v6454, %v6524
        %v6557 = vadd.f32 %v6455, %v6525
        %v6558 = vadd.f32 %v6456, %v6526
        %v6559 = vadd.f32 %v6457, %v6527
        %v6560 = vadd.f32 %v6458, %v6528
        %v6561 = vadd.f32 %v6459, %v6529
        %v6562 = vadd.f32 %v6460, %v6530
        %v6563 = vadd.f32 %v6461, %v6531
        %v6564 = vadd.f32 %v6462, %v6532
        %v6565 = vrot.slane %v1873, 1
        %v6566 = vrot.slane %v1874, 1
        %v6567 = vrot.slane %v1875, 1
        %v6568 = vrot.slane %v1876, 1
        %v6569 = vrot.slane %v1877, 1
        %v6570 = vrot.slane %v1878, 1
        %v6571 = vrot.slane %v1879, 1
        %v6572 = vrot.slane %v1880, 1
        %v6573 = vrot.slane %v1881, 1
        %v6574 = vrot.slane %v1882, 1
        %v6575 = vrot.slane %v1883, 1
        %v6576 = vrot.slane %v1884, 1
        %v6577 = vrot.slane %v1885, 1
        %v6578 = vrot.slane %v1886, 1
        %v6579 = vrot.slane %v1887, 1
        %v6580 = vrot.slane %v1888, 1
        %v6581 = vrot.slane %v1889, 1
        %v6582 = vrot.slane %v1890, 1
        %v6583 = vrot.slane %v1891, 1
        %v6584 = vrot.slane %v1892, 1
        %v6585 = vrot.slane %v1893, 1
        %v6586 = vrot.slane %v1894, 1
        %v6587 = vrot.slane %v1895, 1
        %v6588 = vrot.slane %v1896, 1
        %v6589 = vrot.slane %v1897, 1
        %v6590 = vrot.slane %v1898, 1
        %v6591 = vrot.slane %v1899, 1
        %v6592 = vrot.slane %v1900, 1
        %v6593 = vrot.slane %v1901, 1
        %v6594 = vrot.slane %v1902, 1
        %v6595 = vrot.slane %v1903, 1
        %v6596 = vrot.slane %v1904, 1
        %v6597 = vsel %vm2997, %v6595, %v6596
        %v6598 = vsel %vm2997, %v6594, %v6595
        %v6599 = vsel %vm2997, %v6593, %v6594
        %v6600 = vsel %vm2997, %v6592, %v6593
        %v6601 = vsel %vm2997, %v6591, %v6592
        %v6602 = vsel %vm2997, %v6590, %v6591
        %v6603 = vsel %vm2997, %v6589, %v6590
        %v6604 = vsel %vm2997, %v6588, %v6589
        %v6605 = vsel %vm2997, %v6587, %v6588
        %v6606 = vsel %vm2997, %v6586, %v6587
        %v6607 = vsel %vm2997, %v6585, %v6586
        %v6608 = vsel %vm2997, %v6584, %v6585
        %v6609 = vsel %vm2997, %v6583, %v6584
        %v6610 = vsel %vm2997, %v6582, %v6583
        %v6611 = vsel %vm2997, %v6581, %v6582
        %v6612 = vsel %vm2997, %v6580, %v6581
        %v6613 = vsel %vm2997, %v6579, %v6580
        %v6614 = vsel %vm2997, %v6578, %v6579
        %v6615 = vsel %vm2997, %v6577, %v6578
        %v6616 = vsel %vm2997, %v6576, %v6577
        %v6617 = vsel %vm2997, %v6575, %v6576
        %v6618 = vsel %vm2997, %v6574, %v6575
        %v6619 = vsel %vm2997, %v6573, %v6574
        %v6620 = vsel %vm2997, %v6572, %v6573
        %v6621 = vsel %vm2997, %v6571, %v6572
        %v6622 = vsel %vm2997, %v6570, %v6571
        %v6623 = vsel %vm2997, %v6569, %v6570
        %v6624 = vsel %vm2997, %v6568, %v6569
        %v6625 = vsel %vm2997, %v6567, %v6568
        %v6626 = vsel %vm2997, %v6566, %v6567
        %v6627 = vsel %vm2997, %v6565, %v6566
        %v6628 = vsel %vm2997, %v6596, %v6565
        %v6629 = vsel %vm3062, %v6597, 0.0
        %v6630 = vsel %vm3063, %v6628, 0.0
        %v6631 = vsel %vm3064, %v6627, 0.0
        %v6632 = vsel %vm3065, %v6626, 0.0
        %v6633 = vsel %vm3066, %v6625, 0.0
        %v6634 = vsel %vm3067, %v6624, 0.0
        %v6635 = vsel %vm3068, %v6623, 0.0
        %v6636 = vsel %vm3069, %v6622, 0.0
        %v6637 = vsel %vm3070, %v6621, 0.0
        %v6638 = vsel %vm3071, %v6620, 0.0
        %v6639 = vsel %vm3072, %v6619, 0.0
        %v6640 = vsel %vm3073, %v6618, 0.0
        %v6641 = vsel %vm3074, %v6617, 0.0
        %v6642 = vsel %vm3075, %v6616, 0.0
        %v6643 = vsel %vm3076, %v6615, 0.0
        %v6644 = vsel %vm3077, %v6614, 0.0
        %v6645 = vsel %vm3078, %v6613, 0.0
        %v6646 = vsel %vm3079, %v6612, 0.0
        %v6647 = vsel %vm3080, %v6611, 0.0
        %v6648 = vsel %vm3081, %v6610, 0.0
        %v6649 = vsel %vm3082, %v6609, 0.0
        %v6650 = vsel %vm3083, %v6608, 0.0
        %v6651 = vsel %vm3084, %v6607, 0.0
        %v6652 = vsel %vm3085, %v6606, 0.0
        %v6653 = vsel %vm3086, %v6605, 0.0
        %v6654 = vsel %vm3087, %v6604, 0.0
        %v6655 = vsel %vm3088, %v6603, 0.0
        %v6656 = vsel %vm3089, %v6602, 0.0
        %v6657 = vsel %vm3090, %v6601, 0.0
        %v6658 = vsel %vm3091, %v6600, 0.0
        %v6659 = vsel %vm3092, %v6599, 0.0
        %v6660 = vsel %vm3093, %v6598, 0.0
        %v6662 = vlaneseq
        %v6663 = vshrl.u32 %v6662, 7
        %v6664 = vsub.s32 0, %v6663
        %v6665 = vrot.slane %v6290, %v6664
        %v6667 = vmul.f32 %v6629, %v6665
        %v6668 = vmul.f32 %v6630, %v6665
        %v6669 = vmul.f32 %v6631, %v6665
        %v6670 = vmul.f32 %v6632, %v6665
        %v6671 = vmul.f32 %v6633, %v6665
        %v6672 = vmul.f32 %v6634, %v6665
        %v6673 = vmul.f32 %v6635, %v6665
        %v6674 = vmul.f32 %v6636, %v6665
        %v6675 = vmul.f32 %v6637, %v6665
        %v6676 = vmul.f32 %v6638, %v6665
        %v6677 = vmul.f32 %v6639, %v6665
        %v6678 = vmul.f32 %v6640, %v6665
        %v6679 = vmul.f32 %v6641, %v6665
        %v6680 = vmul.f32 %v6642, %v6665
        %v6681 = vmul.f32 %v6643, %v6665
        %v6682 = vmul.f32 %v6644, %v6665
        %v6683 = vmul.f32 %v6645, %v6665
        %v6684 = vmul.f32 %v6646, %v6665
        %v6685 = vmul.f32 %v6647, %v6665
        %v6686 = vmul.f32 %v6648, %v6665
        %v6687 = vmul.f32 %v6649, %v6665
        %v6688 = vmul.f32 %v6650, %v6665
        %v6689 = vmul.f32 %v6651, %v6665
        %v6690 = vmul.f32 %v6652, %v6665
        %v6691 = vmul.f32 %v6653, %v6665
        %v6692 = vmul.f32 %v6654, %v6665
        %v6693 = vmul.f32 %v6655, %v6665
        %v6694 = vmul.f32 %v6656, %v6665
        %v6695 = vmul.f32 %v6657, %v6665
        %v6696 = vmul.f32 %v6658, %v6665
        %v6697 = vmul.f32 %v6659, %v6665
        %v6698 = vmul.f32 %v6660, %v6665
        %v6699 = vadd.f32 %v6533, %v6667
        %v6700 = vadd.f32 %v6534, %v6668
        %v6701 = vadd.f32 %v6535, %v6669
        %v6702 = vadd.f32 %v6536, %v6670
        %v6703 = vadd.f32 %v6537, %v6671
        %v6704 = vadd.f32 %v6538, %v6672
        %v6705 = vadd.f32 %v6539, %v6673
        %v6706 = vadd.f32 %v6540, %v6674
        %v6707 = vadd.f32 %v6541, %v6675
        %v6708 = vadd.f32 %v6542, %v6676
        %v6709 = vadd.f32 %v6543, %v6677
        %v6710 = vadd.f32 %v6544, %v6678
        %v6711 = vadd.f32 %v6545, %v6679
        %v6712 = vadd.f32 %v6546, %v6680
        %v6713 = vadd.f32 %v6547, %v6681
        %v6714 = vadd.f32 %v6548, %v6682
        %v6715 = vadd.f32 %v6549, %v6683
        %v6716 = vadd.f32 %v6550, %v6684
        %v6717 = vadd.f32 %v6551, %v6685
        %v6718 = vadd.f32 %v6552, %v6686
        %v6719 = vadd.f32 %v6553, %v6687
        %v6720 = vadd.f32 %v6554, %v6688
        %v6721 = vadd.f32 %v6555, %v6689
        %v6722 = vadd.f32 %v6556, %v6690
        %v6723 = vadd.f32 %v6557, %v6691
        %v6724 = vadd.f32 %v6558, %v6692
        %v6725 = vadd.f32 %v6559, %v6693
        %v6726 = vadd.f32 %v6560, %v6694
        %v6727 = vadd.f32 %v6561, %v6695
        %v6728 = vadd.f32 %v6562, %v6696
        %v6729 = vadd.f32 %v6563, %v6697
        %v6730 = vadd.f32 %v6564, %v6698
        %v6731 = vsel %vm3228, %v6360, 0.0
        %v6732 = vsel %vm3229, %v6359, 0.0
        %v6733 = vsel %vm3230, %v6358, 0.0
        %v6734 = vsel %vm3231, %v6357, 0.0
        %v6735 = vsel %vm3232, %v6356, 0.0
        %v6736 = vsel %vm3233, %v6355, 0.0
        %v6737 = vsel %vm3234, %v6354, 0.0
        %v6738 = vsel %vm3235, %v6353, 0.0
        %v6739 = vsel %vm3236, %v6352, 0.0
        %v6740 = vsel %vm3237, %v6351, 0.0
        %v6741 = vsel %vm3238, %v6350, 0.0
        %v6742 = vsel %vm3239, %v6349, 0.0
        %v6743 = vsel %vm3240, %v6348, 0.0
        %v6744 = vsel %vm3241, %v6347, 0.0
        %v6745 = vsel %vm3242, %v6346, 0.0
        %v6746 = vsel %vm3243, %v6345, 0.0
        %v6747 = vsel %vm3244, %v6344, 0.0
        %v6748 = vsel %vm3245, %v6343, 0.0
        %v6749 = vsel %vm3246, %v6342, 0.0
        %v6750 = vsel %vm3247, %v6341, 0.0
        %v6751 = vsel %vm3248, %v6340, 0.0
        %v6752 = vsel %vm3249, %v6339, 0.0
        %v6753 = vsel %vm3250, %v6338, 0.0
        %v6754 = vsel %vm3251, %v6337, 0.0
        %v6755 = vsel %vm3252, %v6336, 0.0
        %v6756 = vsel %vm3253, %v6335, 0.0
        %v6757 = vsel %vm3254, %v6334, 0.0
        %v6758 = vsel %vm3255, %v6333, 0.0
        %v6759 = vsel %vm3256, %v6332, 0.0
        %v6760 = vsel %vm3257, %v6331, 0.0
        %v6761 = vsel %vm3258, %v6330, 0.0
        %v6762 = vsel %vm3259, %v6329, 0.0
        %v6764 = vlaneseq
        %v6765 = vshrl.u32 %v6764, 7
        %v6766 = vsub.s32 0, %v6765
        %v6767 = vrot.slane %v6291, %v6766
        %v6769 = vmul.f32 %v6731, %v6767
        %v6770 = vmul.f32 %v6732, %v6767
        %v6771 = vmul.f32 %v6733, %v6767
        %v6772 = vmul.f32 %v6734, %v6767
        %v6773 = vmul.f32 %v6735, %v6767
        %v6774 = vmul.f32 %v6736, %v6767
        %v6775 = vmul.f32 %v6737, %v6767
        %v6776 = vmul.f32 %v6738, %v6767
        %v6777 = vmul.f32 %v6739, %v6767
        %v6778 = vmul.f32 %v6740, %v6767
        %v6779 = vmul.f32 %v6741, %v6767
        %v6780 = vmul.f32 %v6742, %v6767
        %v6781 = vmul.f32 %v6743, %v6767
        %v6782 = vmul.f32 %v6744, %v6767
        %v6783 = vmul.f32 %v6745, %v6767
        %v6784 = vmul.f32 %v6746, %v6767
        %v6785 = vmul.f32 %v6747, %v6767
        %v6786 = vmul.f32 %v6748, %v6767
        %v6787 = vmul.f32 %v6749, %v6767
        %v6788 = vmul.f32 %v6750, %v6767
        %v6789 = vmul.f32 %v6751, %v6767
        %v6790 = vmul.f32 %v6752, %v6767
        %v6791 = vmul.f32 %v6753, %v6767
        %v6792 = vmul.f32 %v6754, %v6767
        %v6793 = vmul.f32 %v6755, %v6767
        %v6794 = vmul.f32 %v6756, %v6767
        %v6795 = vmul.f32 %v6757, %v6767
        %v6796 = vmul.f32 %v6758, %v6767
        %v6797 = vmul.f32 %v6759, %v6767
        %v6798 = vmul.f32 %v6760, %v6767
        %v6799 = vmul.f32 %v6761, %v6767
        %v6800 = vmul.f32 %v6762, %v6767
        %v6801 = vadd.f32 %v6699, %v6769
        %v6802 = vadd.f32 %v6700, %v6770
        %v6803 = vadd.f32 %v6701, %v6771
        %v6804 = vadd.f32 %v6702, %v6772
        %v6805 = vadd.f32 %v6703, %v6773
        %v6806 = vadd.f32 %v6704, %v6774
        %v6807 = vadd.f32 %v6705, %v6775
        %v6808 = vadd.f32 %v6706, %v6776
        %v6809 = vadd.f32 %v6707, %v6777
        %v6810 = vadd.f32 %v6708, %v6778
        %v6811 = vadd.f32 %v6709, %v6779
        %v6812 = vadd.f32 %v6710, %v6780
        %v6813 = vadd.f32 %v6711, %v6781
        %v6814 = vadd.f32 %v6712, %v6782
        %v6815 = vadd.f32 %v6713, %v6783
        %v6816 = vadd.f32 %v6714, %v6784
        %v6817 = vadd.f32 %v6715, %v6785
        %v6818 = vadd.f32 %v6716, %v6786
        %v6819 = vadd.f32 %v6717, %v6787
        %v6820 = vadd.f32 %v6718, %v6788
        %v6821 = vadd.f32 %v6719, %v6789
        %v6822 = vadd.f32 %v6720, %v6790
        %v6823 = vadd.f32 %v6721, %v6791
        %v6824 = vadd.f32 %v6722, %v6792
        %v6825 = vadd.f32 %v6723, %v6793
        %v6826 = vadd.f32 %v6724, %v6794
        %v6827 = vadd.f32 %v6725, %v6795
        %v6828 = vadd.f32 %v6726, %v6796
        %v6829 = vadd.f32 %v6727, %v6797
        %v6830 = vadd.f32 %v6728, %v6798
        %v6831 = vadd.f32 %v6729, %v6799
        %v6832 = vadd.f32 %v6730, %v6800
        %v6834 = vlaneseq
        %v6835 = vshrl.u32 %v6834, 7
        %v6836 = vsub.s32 0, %v6835
        %v6837 = vrot.slane %v6292, %v6836
        %v6839 = vmul.f32 %v1873, %v6837
        %v6840 = vmul.f32 %v1874, %v6837
        %v6841 = vmul.f32 %v1875, %v6837
        %v6842 = vmul.f32 %v1876, %v6837
        %v6843 = vmul.f32 %v1877, %v6837
        %v6844 = vmul.f32 %v1878, %v6837
        %v6845 = vmul.f32 %v1879, %v6837
        %v6846 = vmul.f32 %v1880, %v6837
        %v6847 = vmul.f32 %v1881, %v6837
        %v6848 = vmul.f32 %v1882, %v6837
        %v6849 = vmul.f32 %v1883, %v6837
        %v6850 = vmul.f32 %v1884, %v6837
        %v6851 = vmul.f32 %v1885, %v6837
        %v6852 = vmul.f32 %v1886, %v6837
        %v6853 = vmul.f32 %v1887, %v6837
        %v6854 = vmul.f32 %v1888, %v6837
        %v6855 = vmul.f32 %v1889, %v6837
        %v6856 = vmul.f32 %v1890, %v6837
        %v6857 = vmul.f32 %v1891, %v6837
        %v6858 = vmul.f32 %v1892, %v6837
        %v6859 = vmul.f32 %v1893, %v6837
        %v6860 = vmul.f32 %v1894, %v6837
        %v6861 = vmul.f32 %v1895, %v6837
        %v6862 = vmul.f32 %v1896, %v6837
        %v6863 = vmul.f32 %v1897, %v6837
        %v6864 = vmul.f32 %v1898, %v6837
        %v6865 = vmul.f32 %v1899, %v6837
        %v6866 = vmul.f32 %v1900, %v6837
        %v6867 = vmul.f32 %v1901, %v6837
        %v6868 = vmul.f32 %v1902, %v6837
        %v6869 = vmul.f32 %v1903, %v6837
        %v6870 = vmul.f32 %v1904, %v6837
        %v6871 = vadd.f32 %v6801, %v6839
        %v6872 = vadd.f32 %v6802, %v6840
        %v6873 = vadd.f32 %v6803, %v6841
        %v6874 = vadd.f32 %v6804, %v6842
        %v6875 = vadd.f32 %v6805, %v6843
        %v6876 = vadd.f32 %v6806, %v6844
        %v6877 = vadd.f32 %v6807, %v6845
        %v6878 = vadd.f32 %v6808, %v6846
        %v6879 = vadd.f32 %v6809, %v6847
        %v6880 = vadd.f32 %v6810, %v6848
        %v6881 = vadd.f32 %v6811, %v6849
        %v6882 = vadd.f32 %v6812, %v6850
        %v6883 = vadd.f32 %v6813, %v6851
        %v6884 = vadd.f32 %v6814, %v6852
        %v6885 = vadd.f32 %v6815, %v6853
        %v6886 = vadd.f32 %v6816, %v6854
        %v6887 = vadd.f32 %v6817, %v6855
        %v6888 = vadd.f32 %v6818, %v6856
        %v6889 = vadd.f32 %v6819, %v6857
        %v6890 = vadd.f32 %v6820, %v6858
        %v6891 = vadd.f32 %v6821, %v6859
        %v6892 = vadd.f32 %v6822, %v6860
        %v6893 = vadd.f32 %v6823, %v6861
        %v6894 = vadd.f32 %v6824, %v6862
        %v6895 = vadd.f32 %v6825, %v6863
        %v6896 = vadd.f32 %v6826, %v6864
        %v6897 = vadd.f32 %v6827, %v6865
        %v6898 = vadd.f32 %v6828, %v6866
        %v6899 = vadd.f32 %v6829, %v6867
        %v6900 = vadd.f32 %v6830, %v6868
        %v6901 = vadd.f32 %v6831, %v6869
        %v6902 = vadd.f32 %v6832, %v6870
        %v6903 = vsel %vm3464, %v6627, 0.0
        %v6904 = vsel %vm3465, %v6626, 0.0
        %v6905 = vsel %vm3466, %v6625, 0.0
        %v6906 = vsel %vm3467, %v6624, 0.0
        %v6907 = vsel %vm3468, %v6623, 0.0
        %v6908 = vsel %vm3469, %v6622, 0.0
        %v6909 = vsel %vm3470, %v6621, 0.0
        %v6910 = vsel %vm3471, %v6620, 0.0
        %v6911 = vsel %vm3472, %v6619, 0.0
        %v6912 = vsel %vm3473, %v6618, 0.0
        %v6913 = vsel %vm3474, %v6617, 0.0
        %v6914 = vsel %vm3475, %v6616, 0.0
        %v6915 = vsel %vm3476, %v6615, 0.0
        %v6916 = vsel %vm3477, %v6614, 0.0
        %v6917 = vsel %vm3478, %v6613, 0.0
        %v6918 = vsel %vm3479, %v6612, 0.0
        %v6919 = vsel %vm3480, %v6611, 0.0
        %v6920 = vsel %vm3481, %v6610, 0.0
        %v6921 = vsel %vm3482, %v6609, 0.0
        %v6922 = vsel %vm3483, %v6608, 0.0
        %v6923 = vsel %vm3484, %v6607, 0.0
        %v6924 = vsel %vm3485, %v6606, 0.0
        %v6925 = vsel %vm3486, %v6605, 0.0
        %v6926 = vsel %vm3487, %v6604, 0.0
        %v6927 = vsel %vm3488, %v6603, 0.0
        %v6928 = vsel %vm3489, %v6602, 0.0
        %v6929 = vsel %vm3490, %v6601, 0.0
        %v6930 = vsel %vm3491, %v6600, 0.0
        %v6931 = vsel %vm3492, %v6599, 0.0
        %v6932 = vsel %vm3493, %v6598, 0.0
        %v6933 = vsel %vm3494, %v6597, 0.0
        %v6934 = vsel %vm3495, %v6628, 0.0
        %v6936 = vlaneseq
        %v6937 = vshrl.u32 %v6936, 7
        %v6938 = vsub.s32 0, %v6937
        %v6939 = vrot.slane %v6293, %v6938
        %v6941 = vmul.f32 %v6903, %v6939
        %v6942 = vmul.f32 %v6904, %v6939
        %v6943 = vmul.f32 %v6905, %v6939
        %v6944 = vmul.f32 %v6906, %v6939
        %v6945 = vmul.f32 %v6907, %v6939
        %v6946 = vmul.f32 %v6908, %v6939
        %v6947 = vmul.f32 %v6909, %v6939
        %v6948 = vmul.f32 %v6910, %v6939
        %v6949 = vmul.f32 %v6911, %v6939
        %v6950 = vmul.f32 %v6912, %v6939
        %v6951 = vmul.f32 %v6913, %v6939
        %v6952 = vmul.f32 %v6914, %v6939
        %v6953 = vmul.f32 %v6915, %v6939
        %v6954 = vmul.f32 %v6916, %v6939
        %v6955 = vmul.f32 %v6917, %v6939
        %v6956 = vmul.f32 %v6918, %v6939
        %v6957 = vmul.f32 %v6919, %v6939
        %v6958 = vmul.f32 %v6920, %v6939
        %v6959 = vmul.f32 %v6921, %v6939
        %v6960 = vmul.f32 %v6922, %v6939
        %v6961 = vmul.f32 %v6923, %v6939
        %v6962 = vmul.f32 %v6924, %v6939
        %v6963 = vmul.f32 %v6925, %v6939
        %v6964 = vmul.f32 %v6926, %v6939
        %v6965 = vmul.f32 %v6927, %v6939
        %v6966 = vmul.f32 %v6928, %v6939
        %v6967 = vmul.f32 %v6929, %v6939
        %v6968 = vmul.f32 %v6930, %v6939
        %v6969 = vmul.f32 %v6931, %v6939
        %v6970 = vmul.f32 %v6932, %v6939
        %v6971 = vmul.f32 %v6933, %v6939
        %v6972 = vmul.f32 %v6934, %v6939
        %v6973 = vadd.f32 %v6871, %v6941
        %v6974 = vadd.f32 %v6872, %v6942
        %v6975 = vadd.f32 %v6873, %v6943
        %v6976 = vadd.f32 %v6874, %v6944
        %v6977 = vadd.f32 %v6875, %v6945
        %v6978 = vadd.f32 %v6876, %v6946
        %v6979 = vadd.f32 %v6877, %v6947
        %v6980 = vadd.f32 %v6878, %v6948
        %v6981 = vadd.f32 %v6879, %v6949
        %v6982 = vadd.f32 %v6880, %v6950
        %v6983 = vadd.f32 %v6881, %v6951
        %v6984 = vadd.f32 %v6882, %v6952
        %v6985 = vadd.f32 %v6883, %v6953
        %v6986 = vadd.f32 %v6884, %v6954
        %v6987 = vadd.f32 %v6885, %v6955
        %v6988 = vadd.f32 %v6886, %v6956
        %v6989 = vadd.f32 %v6887, %v6957
        %v6990 = vadd.f32 %v6888, %v6958
        %v6991 = vadd.f32 %v6889, %v6959
        %v6992 = vadd.f32 %v6890, %v6960
        %v6993 = vadd.f32 %v6891, %v6961
        %v6994 = vadd.f32 %v6892, %v6962
        %v6995 = vadd.f32 %v6893, %v6963
        %v6996 = vadd.f32 %v6894, %v6964
        %v6997 = vadd.f32 %v6895, %v6965
        %v6998 = vadd.f32 %v6896, %v6966
        %v6999 = vadd.f32 %v6897, %v6967
        %v7000 = vadd.f32 %v6898, %v6968
        %v7001 = vadd.f32 %v6899, %v6969
        %v7002 = vadd.f32 %v6900, %v6970
        %v7003 = vadd.f32 %v6901, %v6971
        %v7004 = vadd.f32 %v6902, %v6972
        %v7005 = vsel %vm3630, %v6358, 0.0
        %v7006 = vsel %vm3631, %v6357, 0.0
        %v7007 = vsel %vm3632, %v6356, 0.0
        %v7008 = vsel %vm3633, %v6355, 0.0
        %v7009 = vsel %vm3634, %v6354, 0.0
        %v7010 = vsel %vm3635, %v6353, 0.0
        %v7011 = vsel %vm3636, %v6352, 0.0
        %v7012 = vsel %vm3637, %v6351, 0.0
        %v7013 = vsel %vm3638, %v6350, 0.0
        %v7014 = vsel %vm3639, %v6349, 0.0
        %v7015 = vsel %vm3640, %v6348, 0.0
        %v7016 = vsel %vm3641, %v6347, 0.0
        %v7017 = vsel %vm3642, %v6346, 0.0
        %v7018 = vsel %vm3643, %v6345, 0.0
        %v7019 = vsel %vm3644, %v6344, 0.0
        %v7020 = vsel %vm3645, %v6343, 0.0
        %v7021 = vsel %vm3646, %v6342, 0.0
        %v7022 = vsel %vm3647, %v6341, 0.0
        %v7023 = vsel %vm3648, %v6340, 0.0
        %v7024 = vsel %vm3649, %v6339, 0.0
        %v7025 = vsel %vm3650, %v6338, 0.0
        %v7026 = vsel %vm3651, %v6337, 0.0
        %v7027 = vsel %vm3652, %v6336, 0.0
        %v7028 = vsel %vm3653, %v6335, 0.0
        %v7029 = vsel %vm3654, %v6334, 0.0
        %v7030 = vsel %vm3655, %v6333, 0.0
        %v7031 = vsel %vm3656, %v6332, 0.0
        %v7032 = vsel %vm3657, %v6331, 0.0
        %v7033 = vsel %vm3658, %v6330, 0.0
        %v7034 = vsel %vm3659, %v6329, 0.0
        %v7035 = vsel %vm3660, %v6360, 0.0
        %v7036 = vsel %vm3661, %v6359, 0.0
        %v7038 = vlaneseq
        %v7039 = vshrl.u32 %v7038, 7
        %v7040 = vsub.s32 0, %v7039
        %v7041 = vrot.slane %v6294, %v7040
        %v7043 = vmul.f32 %v7005, %v7041
        %v7044 = vmul.f32 %v7006, %v7041
        %v7045 = vmul.f32 %v7007, %v7041
        %v7046 = vmul.f32 %v7008, %v7041
        %v7047 = vmul.f32 %v7009, %v7041
        %v7048 = vmul.f32 %v7010, %v7041
        %v7049 = vmul.f32 %v7011, %v7041
        %v7050 = vmul.f32 %v7012, %v7041
        %v7051 = vmul.f32 %v7013, %v7041
        %v7052 = vmul.f32 %v7014, %v7041
        %v7053 = vmul.f32 %v7015, %v7041
        %v7054 = vmul.f32 %v7016, %v7041
        %v7055 = vmul.f32 %v7017, %v7041
        %v7056 = vmul.f32 %v7018, %v7041
        %v7057 = vmul.f32 %v7019, %v7041
        %v7058 = vmul.f32 %v7020, %v7041
        %v7059 = vmul.f32 %v7021, %v7041
        %v7060 = vmul.f32 %v7022, %v7041
        %v7061 = vmul.f32 %v7023, %v7041
        %v7062 = vmul.f32 %v7024, %v7041
        %v7063 = vmul.f32 %v7025, %v7041
        %v7064 = vmul.f32 %v7026, %v7041
        %v7065 = vmul.f32 %v7027, %v7041
        %v7066 = vmul.f32 %v7028, %v7041
        %v7067 = vmul.f32 %v7029, %v7041
        %v7068 = vmul.f32 %v7030, %v7041
        %v7069 = vmul.f32 %v7031, %v7041
        %v7070 = vmul.f32 %v7032, %v7041
        %v7071 = vmul.f32 %v7033, %v7041
        %v7072 = vmul.f32 %v7034, %v7041
        %v7073 = vmul.f32 %v7035, %v7041
        %v7074 = vmul.f32 %v7036, %v7041
        %v7075 = vadd.f32 %v6973, %v7043
        %v7076 = vadd.f32 %v6974, %v7044
        %v7077 = vadd.f32 %v6975, %v7045
        %v7078 = vadd.f32 %v6976, %v7046
        %v7079 = vadd.f32 %v6977, %v7047
        %v7080 = vadd.f32 %v6978, %v7048
        %v7081 = vadd.f32 %v6979, %v7049
        %v7082 = vadd.f32 %v6980, %v7050
        %v7083 = vadd.f32 %v6981, %v7051
        %v7084 = vadd.f32 %v6982, %v7052
        %v7085 = vadd.f32 %v6983, %v7053
        %v7086 = vadd.f32 %v6984, %v7054
        %v7087 = vadd.f32 %v6985, %v7055
        %v7088 = vadd.f32 %v6986, %v7056
        %v7089 = vadd.f32 %v6987, %v7057
        %v7090 = vadd.f32 %v6988, %v7058
        %v7091 = vadd.f32 %v6989, %v7059
        %v7092 = vadd.f32 %v6990, %v7060
        %v7093 = vadd.f32 %v6991, %v7061
        %v7094 = vadd.f32 %v6992, %v7062
        %v7095 = vadd.f32 %v6993, %v7063
        %v7096 = vadd.f32 %v6994, %v7064
        %v7097 = vadd.f32 %v6995, %v7065
        %v7098 = vadd.f32 %v6996, %v7066
        %v7099 = vadd.f32 %v6997, %v7067
        %v7100 = vadd.f32 %v6998, %v7068
        %v7101 = vadd.f32 %v6999, %v7069
        %v7102 = vadd.f32 %v7000, %v7070
        %v7103 = vadd.f32 %v7001, %v7071
        %v7104 = vadd.f32 %v7002, %v7072
        %v7105 = vadd.f32 %v7003, %v7073
        %v7106 = vadd.f32 %v7004, %v7074
        %v7107 = vsel %vm3796, %v1875, 0.0
        %v7108 = vsel %vm3797, %v1876, 0.0
        %v7109 = vsel %vm3798, %v1877, 0.0
        %v7110 = vsel %vm3799, %v1878, 0.0
        %v7111 = vsel %vm3800, %v1879, 0.0
        %v7112 = vsel %vm3801, %v1880, 0.0
        %v7113 = vsel %vm3802, %v1881, 0.0
        %v7114 = vsel %vm3803, %v1882, 0.0
        %v7115 = vsel %vm3804, %v1883, 0.0
        %v7116 = vsel %vm3805, %v1884, 0.0
        %v7117 = vsel %vm3806, %v1885, 0.0
        %v7118 = vsel %vm3807, %v1886, 0.0
        %v7119 = vsel %vm3808, %v1887, 0.0
        %v7120 = vsel %vm3809, %v1888, 0.0
        %v7121 = vsel %vm3810, %v1889, 0.0
        %v7122 = vsel %vm3811, %v1890, 0.0
        %v7123 = vsel %vm3812, %v1891, 0.0
        %v7124 = vsel %vm3813, %v1892, 0.0
        %v7125 = vsel %vm3814, %v1893, 0.0
        %v7126 = vsel %vm3815, %v1894, 0.0
        %v7127 = vsel %vm3816, %v1895, 0.0
        %v7128 = vsel %vm3817, %v1896, 0.0
        %v7129 = vsel %vm3818, %v1897, 0.0
        %v7130 = vsel %vm3819, %v1898, 0.0
        %v7131 = vsel %vm3820, %v1899, 0.0
        %v7132 = vsel %vm3821, %v1900, 0.0
        %v7133 = vsel %vm3822, %v1901, 0.0
        %v7134 = vsel %vm3823, %v1902, 0.0
        %v7135 = vsel %vm3824, %v1903, 0.0
        %v7136 = vsel %vm3825, %v1904, 0.0
        %v7137 = vsel %vm3826, %v1873, 0.0
        %v7138 = vsel %vm3827, %v1874, 0.0
        %v7140 = vlaneseq
        %v7141 = vshrl.u32 %v7140, 7
        %v7142 = vsub.s32 0, %v7141
        %v7143 = vrot.slane %v6295, %v7142
        %v7145 = vmul.f32 %v7107, %v7143
        %v7146 = vmul.f32 %v7108, %v7143
        %v7147 = vmul.f32 %v7109, %v7143
        %v7148 = vmul.f32 %v7110, %v7143
        %v7149 = vmul.f32 %v7111, %v7143
        %v7150 = vmul.f32 %v7112, %v7143
        %v7151 = vmul.f32 %v7113, %v7143
        %v7152 = vmul.f32 %v7114, %v7143
        %v7153 = vmul.f32 %v7115, %v7143
        %v7154 = vmul.f32 %v7116, %v7143
        %v7155 = vmul.f32 %v7117, %v7143
        %v7156 = vmul.f32 %v7118, %v7143
        %v7157 = vmul.f32 %v7119, %v7143
        %v7158 = vmul.f32 %v7120, %v7143
        %v7159 = vmul.f32 %v7121, %v7143
        %v7160 = vmul.f32 %v7122, %v7143
        %v7161 = vmul.f32 %v7123, %v7143
        %v7162 = vmul.f32 %v7124, %v7143
        %v7163 = vmul.f32 %v7125, %v7143
        %v7164 = vmul.f32 %v7126, %v7143
        %v7165 = vmul.f32 %v7127, %v7143
        %v7166 = vmul.f32 %v7128, %v7143
        %v7167 = vmul.f32 %v7129, %v7143
        %v7168 = vmul.f32 %v7130, %v7143
        %v7169 = vmul.f32 %v7131, %v7143
        %v7170 = vmul.f32 %v7132, %v7143
        %v7171 = vmul.f32 %v7133, %v7143
        %v7172 = vmul.f32 %v7134, %v7143
        %v7173 = vmul.f32 %v7135, %v7143
        %v7174 = vmul.f32 %v7136, %v7143
        %v7175 = vmul.f32 %v7137, %v7143
        %v7176 = vmul.f32 %v7138, %v7143
        %v7177 = vadd.f32 %v7075, %v7145
        %v7178 = vadd.f32 %v7076, %v7146
        %v7179 = vadd.f32 %v7077, %v7147
        %v7180 = vadd.f32 %v7078, %v7148
        %v7181 = vadd.f32 %v7079, %v7149
        %v7182 = vadd.f32 %v7080, %v7150
        %v7183 = vadd.f32 %v7081, %v7151
        %v7184 = vadd.f32 %v7082, %v7152
        %v7185 = vadd.f32 %v7083, %v7153
        %v7186 = vadd.f32 %v7084, %v7154
        %v7187 = vadd.f32 %v7085, %v7155
        %v7188 = vadd.f32 %v7086, %v7156
        %v7189 = vadd.f32 %v7087, %v7157
        %v7190 = vadd.f32 %v7088, %v7158
        %v7191 = vadd.f32 %v7089, %v7159
        %v7192 = vadd.f32 %v7090, %v7160
        %v7193 = vadd.f32 %v7091, %v7161
        %v7194 = vadd.f32 %v7092, %v7162
        %v7195 = vadd.f32 %v7093, %v7163
        %v7196 = vadd.f32 %v7094, %v7164
        %v7197 = vadd.f32 %v7095, %v7165
        %v7198 = vadd.f32 %v7096, %v7166
        %v7199 = vadd.f32 %v7097, %v7167
        %v7200 = vadd.f32 %v7098, %v7168
        %v7201 = vadd.f32 %v7099, %v7169
        %v7202 = vadd.f32 %v7100, %v7170
        %v7203 = vadd.f32 %v7101, %v7171
        %v7204 = vadd.f32 %v7102, %v7172
        %v7205 = vadd.f32 %v7103, %v7173
        %v7206 = vadd.f32 %v7104, %v7174
        %v7207 = vadd.f32 %v7105, %v7175
        %v7208 = vadd.f32 %v7106, %v7176
        %v7209 = vsel %vm3962, %v6625, 0.0
        %v7210 = vsel %vm3963, %v6624, 0.0
        %v7211 = vsel %vm3964, %v6623, 0.0
        %v7212 = vsel %vm3965, %v6622, 0.0
        %v7213 = vsel %vm3966, %v6621, 0.0
        %v7214 = vsel %vm3967, %v6620, 0.0
        %v7215 = vsel %vm3968, %v6619, 0.0
        %v7216 = vsel %vm3969, %v6618, 0.0
        %v7217 = vsel %vm3970, %v6617, 0.0
        %v7218 = vsel %vm3971, %v6616, 0.0
        %v7219 = vsel %vm3972, %v6615, 0.0
        %v7220 = vsel %vm3973, %v6614, 0.0
        %v7221 = vsel %vm3974, %v6613, 0.0
        %v7222 = vsel %vm3975, %v6612, 0.0
        %v7223 = vsel %vm3976, %v6611, 0.0
        %v7224 = vsel %vm3977, %v6610, 0.0
        %v7225 = vsel %vm3978, %v6609, 0.0
        %v7226 = vsel %vm3979, %v6608, 0.0
        %v7227 = vsel %vm3980, %v6607, 0.0
        %v7228 = vsel %vm3981, %v6606, 0.0
        %v7229 = vsel %vm3982, %v6605, 0.0
        %v7230 = vsel %vm3983, %v6604, 0.0
        %v7231 = vsel %vm3984, %v6603, 0.0
        %v7232 = vsel %vm3985, %v6602, 0.0
        %v7233 = vsel %vm3986, %v6601, 0.0
        %v7234 = vsel %vm3987, %v6600, 0.0
        %v7235 = vsel %vm3988, %v6599, 0.0
        %v7236 = vsel %vm3989, %v6598, 0.0
        %v7237 = vsel %vm3990, %v6597, 0.0
        %v7238 = vsel %vm3991, %v6628, 0.0
        %v7239 = vsel %vm3992, %v6627, 0.0
        %v7240 = vsel %vm3993, %v6626, 0.0
        %v7242 = vlaneseq
        %v7243 = vshrl.u32 %v7242, 7
        %v7244 = vsub.s32 0, %v7243
        %v7245 = vrot.slane %v6296, %v7244
        %v7247 = vmul.f32 %v7209, %v7245
        %v7248 = vmul.f32 %v7210, %v7245
        %v7249 = vmul.f32 %v7211, %v7245
        %v7250 = vmul.f32 %v7212, %v7245
        %v7251 = vmul.f32 %v7213, %v7245
        %v7252 = vmul.f32 %v7214, %v7245
        %v7253 = vmul.f32 %v7215, %v7245
        %v7254 = vmul.f32 %v7216, %v7245
        %v7255 = vmul.f32 %v7217, %v7245
        %v7256 = vmul.f32 %v7218, %v7245
        %v7257 = vmul.f32 %v7219, %v7245
        %v7258 = vmul.f32 %v7220, %v7245
        %v7259 = vmul.f32 %v7221, %v7245
        %v7260 = vmul.f32 %v7222, %v7245
        %v7261 = vmul.f32 %v7223, %v7245
        %v7262 = vmul.f32 %v7224, %v7245
        %v7263 = vmul.f32 %v7225, %v7245
        %v7264 = vmul.f32 %v7226, %v7245
        %v7265 = vmul.f32 %v7227, %v7245
        %v7266 = vmul.f32 %v7228, %v7245
        %v7267 = vmul.f32 %v7229, %v7245
        %v7268 = vmul.f32 %v7230, %v7245
        %v7269 = vmul.f32 %v7231, %v7245
        %v7270 = vmul.f32 %v7232, %v7245
        %v7271 = vmul.f32 %v7233, %v7245
        %v7272 = vmul.f32 %v7234, %v7245
        %v7273 = vmul.f32 %v7235, %v7245
        %v7274 = vmul.f32 %v7236, %v7245
        %v7275 = vmul.f32 %v7237, %v7245
        %v7276 = vmul.f32 %v7238, %v7245
        %v7277 = vmul.f32 %v7239, %v7245
        %v7278 = vmul.f32 %v7240, %v7245
        %v7279 = vadd.f32 %v7177, %v7247
        %v7280 = vadd.f32 %v7178, %v7248
        %v7281 = vadd.f32 %v7179, %v7249
        %v7282 = vadd.f32 %v7180, %v7250
        %v7283 = vadd.f32 %v7181, %v7251
        %v7284 = vadd.f32 %v7182, %v7252
        %v7285 = vadd.f32 %v7183, %v7253
        %v7286 = vadd.f32 %v7184, %v7254
        %v7287 = vadd.f32 %v7185, %v7255
        %v7288 = vadd.f32 %v7186, %v7256
        %v7289 = vadd.f32 %v7187, %v7257
        %v7290 = vadd.f32 %v7188, %v7258
        %v7291 = vadd.f32 %v7189, %v7259
        %v7292 = vadd.f32 %v7190, %v7260
        %v7293 = vadd.f32 %v7191, %v7261
        %v7294 = vadd.f32 %v7192, %v7262
        %v7295 = vadd.f32 %v7193, %v7263
        %v7296 = vadd.f32 %v7194, %v7264
        %v7297 = vadd.f32 %v7195, %v7265
        %v7298 = vadd.f32 %v7196, %v7266
        %v7299 = vadd.f32 %v7197, %v7267
        %v7300 = vadd.f32 %v7198, %v7268
        %v7301 = vadd.f32 %v7199, %v7269
        %v7302 = vadd.f32 %v7200, %v7270
        %v7303 = vadd.f32 %v7201, %v7271
        %v7304 = vadd.f32 %v7202, %v7272
        %v7305 = vadd.f32 %v7203, %v7273
        %v7306 = vadd.f32 %v7204, %v7274
        %v7307 = vadd.f32 %v7205, %v7275
        %v7308 = vadd.f32 %v7206, %v7276
        %v7309 = vadd.f32 %v7207, %v7277
        %v7310 = vadd.f32 %v7208, %v7278
        %v7311 = vld [vmem:[%s18] sm:$0x1]
        %v7313 = vlaneseq
        %v7314 = vshrl.u32 %v7313, 7
        %v7315 = vsub.s32 0, %v7314
        %v7316 = vrot.slane %v7311, %v7315
        %v7318 = vadd.f32 %v7279, %v7316
        %v7319 = vadd.f32 %v7280, %v7316
        %v7320 = vadd.f32 %v7281, %v7316
        %v7321 = vadd.f32 %v7282, %v7316
        %v7322 = vadd.f32 %v7283, %v7316
        %v7323 = vadd.f32 %v7284, %v7316
        %v7324 = vadd.f32 %v7285, %v7316
        %v7325 = vadd.f32 %v7286, %v7316
        %v7326 = vadd.f32 %v7287, %v7316
        %v7327 = vadd.f32 %v7288, %v7316
        %v7328 = vadd.f32 %v7289, %v7316
        %v7329 = vadd.f32 %v7290, %v7316
        %v7330 = vadd.f32 %v7291, %v7316
        %v7331 = vadd.f32 %v7292, %v7316
        %v7332 = vadd.f32 %v7293, %v7316
        %v7333 = vadd.f32 %v7294, %v7316
        %v7334 = vadd.f32 %v7295, %v7316
        %v7335 = vadd.f32 %v7296, %v7316
        %v7336 = vadd.f32 %v7297, %v7316
        %v7337 = vadd.f32 %v7298, %v7316
        %v7338 = vadd.f32 %v7299, %v7316
        %v7339 = vadd.f32 %v7300, %v7316
        %v7340 = vadd.f32 %v7301, %v7316
        %v7341 = vadd.f32 %v7302, %v7316
        %v7342 = vadd.f32 %v7303, %v7316
        %v7343 = vadd.f32 %v7304, %v7316
        %v7344 = vadd.f32 %v7305, %v7316
        %v7345 = vadd.f32 %v7306, %v7316
        %v7346 = vadd.f32 %v7307, %v7316
        %v7347 = vadd.f32 %v7308, %v7316
        %v7348 = vadd.f32 %v7309, %v7316
        %v7349 = vadd.f32 %v7310, %v7316
        %v7350 = vpack.c.bf16 %v7319, %v7318
        %v7351 = vpack.c.bf16 %v7321, %v7320
        %v7352 = vpack.c.bf16 %v7323, %v7322
        %v7353 = vpack.c.bf16 %v7325, %v7324
        %v7354 = vpack.c.bf16 %v7327, %v7326
        %v7355 = vpack.c.bf16 %v7329, %v7328
        %v7356 = vpack.c.bf16 %v7331, %v7330
        %v7357 = vpack.c.bf16 %v7333, %v7332
        %v7358 = vpack.c.bf16 %v7335, %v7334
        %v7359 = vpack.c.bf16 %v7337, %v7336
        %v7360 = vpack.c.bf16 %v7339, %v7338
        %v7361 = vpack.c.bf16 %v7341, %v7340
        %v7362 = vpack.c.bf16 %v7343, %v7342
        %v7363 = vpack.c.bf16 %v7345, %v7344
        %v7364 = vpack.c.bf16 %v7347, %v7346
        %v7365 = vpack.c.bf16 %v7349, %v7348
        %v7366 = vld [vmem:[%s19] sm:$0xf]
        %v7367 = vld [vmem:[%s19 + $0x4] sm:$0xf]
        %v7368 = vld [vmem:[%s19 + $0x8] sm:$0xf]
        %v7369 = vld [vmem:[%s19 + $0xc] sm:$0xf]
        %v7370 = vld [vmem:[%s20] sm:$0x1]
        %v7372 = vlaneseq
        %v7373 = vshrl.u32 %v7372, 7
        %v7374 = vsub.s32 0, %v7373
        %v7375 = vrot.slane %v7370, %v7374
        %v7381 = vunpack.c.l.b16 %v7366
        %v7382 = vunpack.c.l.b16 %v7367
        %v7383 = vunpack.c.l.b16 %v7368
        %v7384 = vunpack.c.l.b16 %v7369
        %v7385 = vpack.c.b16 %v7382, %v7381
        %v7386 = vpack.c.b16 %v7384, %v7383
        %v7390 = vsel %vm1913, %v7350, 0
        %v7393 = vsel %vm1913, %v7351, 0
        %v7396 = vsel %vm1913, %v7352, 0
        %v7399 = vsel %vm1913, %v7353, 0
        %v7402 = vsel %vm1913, %v7354, 0
        %v7405 = vsel %vm1913, %v7355, 0
        %v7408 = vsel %vm1913, %v7356, 0
        %v7411 = vsel %vm1913, %v7357, 0
        %v7414 = vsel %vm1913, %v7358, 0
        %v7417 = vsel %vm1913, %v7359, 0
        %v7420 = vsel %vm1913, %v7360, 0
        %v7423 = vsel %vm1913, %v7361, 0
        %v7426 = vsel %vm1913, %v7362, 0
        %v7429 = vsel %vm1913, %v7363, 0
        %v7432 = vsel %vm1913, %v7364, 0
        %v7435 = vsel %vm1913, %v7365, 0
        %7437 = vmatprep.subr.bf16.mxu0 0
        %7438 = vmatpush1.bf16.msra.mxu0 %v7385
        %7439 = vmatprep.subr.bf16.mxu0 0
        %7440 = vmatpush1.bf16.msra.mxu0 %v7386
        %7441 = vmatprep.subr.bf16.mxu0 0
        %7442 = vmatpush1.bf16.msra.mxu0 0
        %7443 = vmatprep.subr.bf16.mxu0 0
        %7444 = vmatpush1.bf16.msra.mxu0 0
        %7445 = vmatprep.subr.bf16.mxu0 0
        %7446 = vmatpush1.bf16.msra.mxu0 0
        %7447 = vmatprep.subr.bf16.mxu0 0
        %7448 = vmatpush1.bf16.msra.mxu0 0
        %7449 = vmatprep.subr.bf16.mxu0 0
        %7450 = vmatpush1.bf16.msra.mxu0 0
        %7451 = vmatprep.subr.bf16.mxu0 0
        %7452 = vmatpush1.bf16.msra.mxu0 0
        %7453 = vmatprep.subr.bf16.mxu0 0
        %7454 = vmatpush1.bf16.msra.mxu0 0
        %7455 = vmatprep.subr.bf16.mxu0 0
        %7456 = vmatpush1.bf16.msra.mxu0 0
        %7457 = vmatprep.subr.bf16.mxu0 0
        %7458 = vmatpush1.bf16.msra.mxu0 0
        %7459 = vmatprep.subr.bf16.mxu0 0
        %7460 = vmatpush1.bf16.msra.mxu0 0
        %7461 = vmatprep.subr.bf16.mxu0 0
        %7462 = vmatpush1.bf16.msra.mxu0 0
        %7463 = vmatprep.subr.bf16.mxu0 0
        %7464 = vmatpush1.bf16.msra.mxu0 0
        %7465 = vmatprep.subr.bf16.mxu0 0
        %7466 = vmatpush1.bf16.msra.mxu0 0
        %7467 = vmatprep.subr.bf16.mxu0 0
        %7468 = vmatpush1.bf16.msra.mxu0 0
        %7469 = vmatprep.mubr.bf16.mxu0 0
        %7470 = vmatmul.mubr.bf16.gmra.mrb[0].mxu0 %v7390
        %v7471 = vpop.f32.mrb[0].mxu0
        %v7472 = vadd.f32 %v7375, %v7471
        %v7473 = vpop.f32.mrb[0].mxu0
        %v7474 = vpop.f32.mrb[0].mxu0
        %v7475 = vadd.f32 %v7375, %v7474
        %v7476 = vpop.f32.mrb[0].mxu0
        %7477 = vmatprep.mubr.bf16.mxu0 0
        %7478 = vmatmul.mubr.bf16.gmra.mrb[0].mxu0 %v7393
        %v7479 = vpop.f32.mrb[0].mxu0
        %v7480 = vadd.f32 %v7375, %v7479
        %v7481 = vpop.f32.mrb[0].mxu0
        %v7482 = vpop.f32.mrb[0].mxu0
        %v7483 = vadd.f32 %v7375, %v7482
        %v7484 = vpop.f32.mrb[0].mxu0
        %7485 = vmatprep.mubr.bf16.mxu0 0
        %7486 = vmatmul.mubr.bf16.gmra.mrb[0].mxu0 %v7396
        %v7487 = vpop.f32.mrb[0].mxu0
        %v7488 = vadd.f32 %v7375, %v7487
        %v7489 = vpop.f32.mrb[0].mxu0
        %v7490 = vpop.f32.mrb[0].mxu0
        %v7491 = vadd.f32 %v7375, %v7490
        %v7492 = vpop.f32.mrb[0].mxu0
        %7493 = vmatprep.mubr.bf16.mxu0 0
        %7494 = vmatmul.mubr.bf16.gmra.mrb[0].mxu0 %v7399
        %v7495 = vpop.f32.mrb[0].mxu0
        %v7496 = vadd.f32 %v7375, %v7495
        %v7497 = vpop.f32.mrb[0].mxu0
        %v7498 = vpop.f32.mrb[0].mxu0
        %v7499 = vadd.f32 %v7375, %v7498
        %v7500 = vpop.f32.mrb[0].mxu0
        %7501 = vmatprep.mubr.bf16.mxu0 0
        %7502 = vmatmul.mubr.bf16.gmra.mrb[0].mxu0 %v7402
        %v7503 = vpop.f32.mrb[0].mxu0
        %v7504 = vadd.f32 %v7375, %v7503
        %v7505 = vpop.f32.mrb[0].mxu0
        %v7506 = vpop.f32.mrb[0].mxu0
        %v7507 = vadd.f32 %v7375, %v7506
        %v7508 = vpop.f32.mrb[0].mxu0
        %7509 = vmatprep.mubr.bf16.mxu0 0
        %7510 = vmatmul.mubr.bf16.gmra.mrb[0].mxu0 %v7405
        %v7511 = vpop.f32.mrb[0].mxu0
        %v7512 = vadd.f32 %v7375, %v7511
        %v7513 = vpop.f32.mrb[0].mxu0
        %v7514 = vpop.f32.mrb[0].mxu0
        %v7515 = vadd.f32 %v7375, %v7514
        %v7516 = vpop.f32.mrb[0].mxu0
        %7517 = vmatprep.mubr.bf16.mxu0 0
        %7518 = vmatmul.mubr.bf16.gmra.mrb[0].mxu0 %v7408
        %v7519 = vpop.f32.mrb[0].mxu0
        %v7520 = vadd.f32 %v7375, %v7519
        %v7521 = vpop.f32.mrb[0].mxu0
        %v7522 = vpop.f32.mrb[0].mxu0
        %v7523 = vadd.f32 %v7375, %v7522
        %v7524 = vpop.f32.mrb[0].mxu0
        %7525 = vmatprep.mubr.bf16.mxu0 0
        %7526 = vmatmul.mubr.bf16.gmra.mrb[0].mxu0 %v7411
        %v7527 = vpop.f32.mrb[0].mxu0
        %v7528 = vadd.f32 %v7375, %v7527
        %v7529 = vpop.f32.mrb[0].mxu0
        %v7530 = vpop.f32.mrb[0].mxu0
        %v7531 = vadd.f32 %v7375, %v7530
        %v7532 = vpop.f32.mrb[0].mxu0
        %7533 = vmatprep.mubr.bf16.mxu0 0
        %7534 = vmatmul.mubr.bf16.gmra.mrb[0].mxu0 %v7414
        %v7535 = vpop.f32.mrb[0].mxu0
        %v7536 = vadd.f32 %v7375, %v7535
        %v7537 = vpop.f32.mrb[0].mxu0
        %v7538 = vpop.f32.mrb[0].mxu0
        %v7539 = vadd.f32 %v7375, %v7538
        %v7540 = vpop.f32.mrb[0].mxu0
        %7541 = vmatprep.mubr.bf16.mxu0 0
        %7542 = vmatmul.mubr.bf16.gmra.mrb[0].mxu0 %v7417
        %v7543 = vpop.f32.mrb[0].mxu0
        %v7544 = vadd.f32 %v7375, %v7543
        %v7545 = vpop.f32.mrb[0].mxu0
        %v7546 = vpop.f32.mrb[0].mxu0
        %v7547 = vadd.f32 %v7375, %v7546
        %v7548 = vpop.f32.mrb[0].mxu0
        %7549 = vmatprep.mubr.bf16.mxu0 0
        %7550 = vmatmul.mubr.bf16.gmra.mrb[0].mxu0 %v7420
        %v7551 = vpop.f32.mrb[0].mxu0
        %v7552 = vadd.f32 %v7375, %v7551
        %v7553 = vpop.f32.mrb[0].mxu0
        %v7554 = vpop.f32.mrb[0].mxu0
        %v7555 = vadd.f32 %v7375, %v7554
        %v7556 = vpop.f32.mrb[0].mxu0
        %7557 = vmatprep.mubr.bf16.mxu0 0
        %7558 = vmatmul.mubr.bf16.gmra.mrb[0].mxu0 %v7423
        %v7559 = vpop.f32.mrb[0].mxu0
        %v7560 = vadd.f32 %v7375, %v7559
        %v7561 = vpop.f32.mrb[0].mxu0
        %v7562 = vpop.f32.mrb[0].mxu0
        %v7563 = vadd.f32 %v7375, %v7562
        %v7564 = vpop.f32.mrb[0].mxu0
        %7565 = vmatprep.mubr.bf16.mxu0 0
        %7566 = vmatmul.mubr.bf16.gmra.mrb[0].mxu0 %v7426
        %v7567 = vpop.f32.mrb[0].mxu0
        %v7568 = vadd.f32 %v7375, %v7567
        %v7569 = vpop.f32.mrb[0].mxu0
        %v7570 = vpop.f32.mrb[0].mxu0
        %v7571 = vadd.f32 %v7375, %v7570
        %v7572 = vpop.f32.mrb[0].mxu0
        %7573 = vmatprep.mubr.bf16.mxu0 0
        %7574 = vmatmul.mubr.bf16.gmra.mrb[0].mxu0 %v7429
        %v7575 = vpop.f32.mrb[0].mxu0
        %v7576 = vadd.f32 %v7375, %v7575
        %v7577 = vpop.f32.mrb[0].mxu0
        %v7578 = vpop.f32.mrb[0].mxu0
        %v7579 = vadd.f32 %v7375, %v7578
        %v7580 = vpop.f32.mrb[0].mxu0
        %7581 = vmatprep.mubr.bf16.mxu0 0
        %7582 = vmatmul.mubr.bf16.gmra.mrb[0].mxu0 %v7432
        %v7583 = vpop.f32.mrb[0].mxu0
        %v7584 = vadd.f32 %v7375, %v7583
        %v7585 = vpop.f32.mrb[0].mxu0
        %v7586 = vpop.f32.mrb[0].mxu0
        %v7587 = vadd.f32 %v7375, %v7586
        %v7588 = vpop.f32.mrb[0].mxu0
        %7589 = vmatprep.mubr.bf16.mxu0 0
        %7590 = vmatmul.mubr.bf16.gmra.mrb[0].mxu0 %v7435
        %v7591 = vpop.f32.mrb[0].mxu0
        %v7592 = vadd.f32 %v7375, %v7591
        %v7593 = vpop.f32.mrb[0].mxu0
        %v7594 = vpop.f32.mrb[0].mxu0
        %v7595 = vadd.f32 %v7375, %v7594
        %v7596 = vpop.f32.mrb[0].mxu0
        %7597 = vdwg.mxu0
        %v7598 = vadd.f32 %v6162, %v7472
        %v7599 = vadd.f32 %v6165, %v7475
        %v7600 = vadd.f32 %v6170, %v7480
        %v7601 = vadd.f32 %v6173, %v7483
        %v7602 = vadd.f32 %v6178, %v7488
        %v7603 = vadd.f32 %v6181, %v7491
        %v7604 = vadd.f32 %v6186, %v7496
        %v7605 = vadd.f32 %v6189, %v7499
        %v7606 = vadd.f32 %v6194, %v7504
        %v7607 = vadd.f32 %v6197, %v7507
        %v7608 = vadd.f32 %v6202, %v7512
        %v7609 = vadd.f32 %v6205, %v7515
        %v7610 = vadd.f32 %v6210, %v7520
        %v7611 = vadd.f32 %v6213, %v7523
        %v7612 = vadd.f32 %v6218, %v7528
        %v7613 = vadd.f32 %v6221, %v7531
        %v7614 = vadd.f32 %v6226, %v7536
        %v7615 = vadd.f32 %v6229, %v7539
        %v7616 = vadd.f32 %v6234, %v7544
        %v7617 = vadd.f32 %v6237, %v7547
        %v7618 = vadd.f32 %v6242, %v7552
        %v7619 = vadd.f32 %v6245, %v7555
        %v7620 = vadd.f32 %v6250, %v7560
        %v7621 = vadd.f32 %v6253, %v7563
        %v7622 = vadd.f32 %v6258, %v7568
        %v7623 = vadd.f32 %v6261, %v7571
        %v7624 = vadd.f32 %v6266, %v7576
        %v7625 = vadd.f32 %v6269, %v7579
        %v7626 = vadd.f32 %v6274, %v7584
        %v7627 = vadd.f32 %v6277, %v7587
        %v7628 = vadd.f32 %v6282, %v7592
        %v7629 = vadd.f32 %v6285, %v7595
        %7630 = vst [vmem:[%s649] sm:$0xff] %v7598
        %7631 = vst [vmem:[%s649 + $0x8] sm:$0xff] %v7599
        %7632 = vst [vmem:[%s649 + $0x10] sm:$0xff] %v7600
        %7633 = vst [vmem:[%s649 + $0x18] sm:$0xff] %v7601
        %7634 = vst [vmem:[%s649 + $0x20] sm:$0xff] %v7602
        %7635 = vst [vmem:[%s649 + $0x28] sm:$0xff] %v7603
        %7636 = vst [vmem:[%s649 + $0x30] sm:$0xff] %v7604
        %7637 = vst [vmem:[%s649 + $0x38] sm:$0xff] %v7605
        %7638 = vst [vmem:[%s649 + $0x40] sm:$0xff] %v7606
        %7639 = vst [vmem:[%s649 + $0x48] sm:$0xff] %v7607
        %7640 = vst [vmem:[%s649 + $0x50] sm:$0xff] %v7608
        %7641 = vst [vmem:[%s649 + $0x58] sm:$0xff] %v7609
        %7642 = vst [vmem:[%s649 + $0x60] sm:$0xff] %v7610
        %7643 = vst [vmem:[%s649 + $0x68] sm:$0xff] %v7611
        %7644 = vst [vmem:[%s649 + $0x70] sm:$0xff] %v7612
        %7645 = vst [vmem:[%s649 + $0x78] sm:$0xff] %v7613
        %7646 = vst [vmem:[%s649 + $0x80] sm:$0xff] %v7614
        %7647 = vst [vmem:[%s649 + $0x88] sm:$0xff] %v7615
        %7648 = vst [vmem:[%s649 + $0x90] sm:$0xff] %v7616
        %7649 = vst [vmem:[%s649 + $0x98] sm:$0xff] %v7617
        %7650 = vst [vmem:[%s649 + $0xa0] sm:$0xff] %v7618
        %7651 = vst [vmem:[%s649 + $0xa8] sm:$0xff] %v7619
        %7652 = vst [vmem:[%s649 + $0xb0] sm:$0xff] %v7620
        %7653 = vst [vmem:[%s649 + $0xb8] sm:$0xff] %v7621
        %7654 = vst [vmem:[%s649 + $0xc0] sm:$0xff] %v7622
        %7655 = vst [vmem:[%s649 + $0xc8] sm:$0xff] %v7623
        %7656 = vst [vmem:[%s649 + $0xd0] sm:$0xff] %v7624
        %7657 = vst [vmem:[%s649 + $0xd8] sm:$0xff] %v7625
        %7658 = vst [vmem:[%s649 + $0xe0] sm:$0xff] %v7626
        %7659 = vst [vmem:[%s649 + $0xe8] sm:$0xff] %v7627
        %7660 = vst [vmem:[%s649 + $0xf0] sm:$0xff] %v7628
        %7661 = vst [vmem:[%s649 + $0xf8] sm:$0xff] %v7629
        %s7662 = sand.u32 %s489, 1
        %s7663 = scalar_lea.sflag [#allocation3], %s7662
        %s7664 = sand.u32 %s489, 1
        %s7665 = smul.addr %s7664, 256
        %s7666 = scalar_lea.vmem [#allocation2], %s7665
        // Predicated region
        $region105: #{depthwise_separable_residual_block.1} parent=103 // pred_check
          %p7667 = pneg %p499
        $region106: #{depthwise_separable_residual_block.1} parent=103 // pred_check_branch
          %7669 = sbr.rel (%p7667) target = $region108
        $region107: #{depthwise_separable_residual_block.1} parent=103 // pred_region
          %s7671 = ssub.s32 4096, 4096
          %7672 = vsyncadd %s7663, %s7671
          %s7673 = smul.addr %s35, 32
          %s7674 = smul.addr %s7673, 128
          %s7675 = scalar_lea.hbm %s21, %s7674
          %s7676 = sshll.u32 %s7666, 4
          %s7677 = int_to_ptr.vmem [resolvable:$true] %s7676
          %7682 = dma.vmem_to_hbm [thread:$0]  %s7677, 4096, %s7675, %s7663, 128, 128, 8
        $region108: #{depthwise_separable_residual_block.1} parent=103 // pred_fallthru
          _
      $region104: #{depthwise_separable_residual_block.1} parent=5 // pred_fallthru
        _
      %p7683 = scmp.le.s32.totalorder 2, %s30
      // Predicated region
      $region109: #{depthwise_separable_residual_block.1} parent=5 // pred_check
        %p7684 = pneg %p7683
      $region110: #{depthwise_separable_residual_block.1} parent=5 // pred_check_branch
        %7686 = sbr.rel (%p7684) target = $region112
      $region111: #{depthwise_separable_residual_block.1} parent=5 // pred_region
        %s7687 = ssub.s32 %s30, 2
        // Predicated region
        $region113: #{depthwise_separable_residual_block.1} parent=111 // pred_check
          %p7688 = pneg %p505
        $region114: #{depthwise_separable_residual_block.1} parent=111 // pred_check_branch
          %7690 = sbr.rel (%p7688) target = $region116
        $region115: #{depthwise_separable_residual_block.1} parent=111 // pred_region
          %s7691 = sand.u32 %s490, 1
          %s7692 = scalar_lea.sflag [#allocation3], %s7691
          %s7693 = sand.u32 %s490, 1
          %s7694 = smul.addr %s7693, 256
          %s7695 = scalar_lea.vmem [#allocation2], %s7694
          %7696 = dma.done %s7692, 4096
        $region116: #{depthwise_separable_residual_block.1} parent=111 // pred_fallthru
          _
      $region112: #{depthwise_separable_residual_block.1} parent=5 // pred_fallthru
        _
    $region6: #{depthwise_separable_residual_block.1} parent=1 // loop_footer
      %s34 = sadd.s32 1, %s30
    $region7: #{depthwise_separable_residual_block.1} parent=1 // loop_footer_branch
      %29 = sbr.rel target = $region3
    $region8: #{depthwise_separable_residual_block.1} parent=1 // loop_exit
      _
    %7697 = vsyncpa [#allocation3], 1
    %s7698 = scalar_lea.sflag [#allocation3], 1
    %7699 = vsyncpa %s7698, 1

</llo_original>
